<compile_context>
chip_gen: v5e
topology: v5e:2x2
jax: 0.10.0
libtpu: 0.0.40
codegen_flags: <defaults>
</compile_context>

<pallas_src>
import functools

import jax
import jax.numpy as jnp
from jax import lax
from jax.experimental import pallas as pl
from jax.experimental.pallas import tpu as pltpu


def _fused_linear_kernel(x_ref, w_ref, b_ref, o_ref):
    """One batch tile: (TB, K) @ (K, N) + (1, N) on the MXU."""
    o_ref[...] = (
        jnp.dot(
            x_ref[...],
            w_ref[...],
            precision=lax.Precision.HIGHEST,
            preferred_element_type=jnp.float32,
        )
        + b_ref[...]
    )


@jax.jit
def net_forward(x, params):
    """Forward pass matching the PyTorch Net.  x: (B, 3, 32, 32) float32."""
    w_conv, b_conv, w_fc, b_fc = params
    B, c_in, H, W = x.shape
    c_out, _, kh, kw = w_conv.shape
    oh, ow = H - kh + 1, W - kw + 1
    n_out = w_fc.shape[0]
    K = c_in * H * W

    # ---- Fold conv1 + fc1 into a single (K, n_out) effective weight ----
    # Exact because the network is linear between the two layers.
    # wf[n, co, oi, oj] matches PyTorch's view(B, -1) flatten order.
    wf = w_fc.reshape(n_out, c_out, oh, ow)
    w_eff = jnp.zeros((n_out, c_in, H, W), jnp.float32)
    for ki in range(kh):
        for kj in range(kw):
            # contribution of tap (ki, kj): scatter the (oh, ow) window to
            # input-pixel positions (oi + ki, oj + kj).
            term = jnp.einsum("oc,nohw->nchw", w_conv[:, :, ki, kj], wf)
            w_eff = w_eff + jnp.pad(
                term, ((0, 0), (0, 0), (ki, H - oh - ki), (kj, W - ow - kj))
            )
    w_eff = w_eff.reshape(n_out, K).T  # (K, n_out), K = 3072 (lane-dense contraction)
    b_eff = (b_fc + jnp.einsum("c,nchw->n", b_conv, wf)).reshape(1, n_out)

    # ---- Input as a flat (B, K) slab; pad batch to a sublane multiple ----
    x2 = x.reshape(B, K)
    tb = min(128, ((B + 7) // 8) * 8)           # batch tile (multiple of 8)
    Bp = pl.cdiv(B, tb) * tb
    if Bp != B:
        x2 = jnp.pad(x2, ((0, Bp - B), (0, 0)))
    grid_b = Bp // tb

    flops = 2 * Bp * K * n_out
    bytes_accessed = 4 * (Bp * K + K * n_out + n_out + Bp * n_out)

    out = pl.pallas_call(
        _fused_linear_kernel,
        out_shape=jax.ShapeDtypeStruct((Bp, n_out), jnp.float32),
        grid=(grid_b,),
        in_specs=[
            pl.BlockSpec((tb, K), lambda b: (b, 0)),        # batch tile of x
            pl.BlockSpec((K, n_out), lambda b: (0, 0)),     # W_eff (resident)
            pl.BlockSpec((1, n_out), lambda b: (0, 0)),     # folded bias
        ],
        out_specs=pl.BlockSpec((tb, n_out), lambda b: (b, 0)),
        compiler_params=pltpu.CompilerParams(
            dimension_semantics=("parallel",),              # v7x: shard tiles over 2 TCs
            vmem_limit_bytes=32 * 1024 * 1024,              # safe on v5e/v6e/v7x
        ),
        cost_estimate=pl.CostEstimate(
            flops=flops, transcendentals=0, bytes_accessed=bytes_accessed
        ),
    )(x2, w_eff, b_eff)

    return out[:B]


def init_params(key):
    k1, k2, k3, k4 = jax.random.split(key, 4)
    w_conv = jax.random.normal(k1, (16, 3, 3, 3), jnp.float32) * 0.05
    b_conv = jax.random.normal(k2, (16,), jnp.float32) * 0.05
    w_fc = jax.random.normal(k3, (2, 16 * 30 * 30), jnp.float32) * 0.01
    b_fc = jax.random.normal(k4, (2,), jnp.float32) * 0.01
    return w_conv, b_conv, w_fc, b_fc


def reference_forward(x, params):
    """Pure-JAX reference (lax conv) for a correctness check."""
    w_conv, b_conv, w_fc, b_fc = params
    conv = lax.conv_general_dilated(
        x, w_conv, window_strides=(1, 1), padding="VALID",
        dimension_numbers=("NCHW", "OIHW", "NCHW"))
    conv = conv + b_conv.reshape(1, -1, 1, 1)
    flat = conv.reshape(x.shape[0], -1)
    return flat @ w_fc.T + b_fc


if __name__ == "__main__":
    key = jax.random.PRNGKey(0)
    kx, kp = jax.random.split(key)
    x = jax.random.normal(kx, (2, 3, 32, 32), jnp.float32)
    params = init_params(kp)

    out = jax.block_until_ready(net_forward(x, params))

    ref = reference_forward(x, params)
    assert out.shape == (2, 2)
    assert jnp.allclose(out, ref, atol=2e-3, rtol=2e-3), (out, ref)

    print("KERNEL_OK")
</pallas_src>

<mosaic_0001>
module attributes {stable_mosaic.version = 11 : i64} {
  func.func @_fused_linear_kernel(%arg0: i32, %arg1: memref<8x3072xf32, #tpu.memory_space<vmem>>, %arg2: memref<3072x2xf32, #tpu.memory_space<vmem>>, %arg3: memref<1x2xf32, #tpu.memory_space<vmem>>, %arg4: memref<8x2xf32, #tpu.memory_space<vmem>>) attributes {dimension_semantics = [#tpu.dimension_semantics<parallel>], iteration_bounds = array<i64: 1>, scalar_prefetch = 0 : i64, scratch_operands = 0 : i64, tpu.core_type = #tpu.core_type<tc>, window_params = [{transform_indices = @transform_0, window_bounds = array<i64: 8, 3072>}, {pipeline_mode = #tpu.pipeline_mode<synchronous>, transform_indices = @transform_1, window_bounds = array<i64: 3072, 2>}, {pipeline_mode = #tpu.pipeline_mode<synchronous>, transform_indices = @transform_2, window_bounds = array<i64: 1, 2>}, {transform_indices = @transform_3, window_bounds = array<i64: 8, 2>}]} {
    %c0 = arith.constant 0 : index
    %c0_0 = arith.constant 0 : index
    %0 = vector.load %arg1[%c0, %c0_0] : memref<8x3072xf32, #tpu.memory_space<vmem>>, vector<8x3072xf32>
    %c0_1 = arith.constant 0 : index
    %c0_2 = arith.constant 0 : index
    %1 = vector.load %arg2[%c0_1, %c0_2] : memref<3072x2xf32, #tpu.memory_space<vmem>>, vector<3072x2xf32>
    %cst = arith.constant dense<0.000000e+00> : vector<8x2xf32>
    %2 = tpu.matmul %0, %1, %cst {dimension_numbers = #tpu.dot_dimension_numbers<[1], [0], [0], [1], [0, 0, 1, 1], [], []>, precision = #tpu.contract_precision<fp32>} : vector<8x3072xf32>, vector<3072x2xf32>, vector<8x2xf32> -> vector<8x2xf32>
    %c0_3 = arith.constant 0 : index
    %c0_4 = arith.constant 0 : index
    %3 = vector.load %arg3[%c0_3, %c0_4] : memref<1x2xf32, #tpu.memory_space<vmem>>, vector<1x2xf32>
    %4 = vector.broadcast %3 : vector<1x2xf32> to vector<8x2xf32>
    %5 = arith.addf %2, %4 : vector<8x2xf32>
    %c0_5 = arith.constant 0 : index
    %c0_6 = arith.constant 0 : index
    %6 = vector.load %arg4[%c0_5, %c0_6] : memref<8x2xf32, #tpu.memory_space<vmem>>, vector<8x2xf32>
    tpu.vector_store %arg4[%c0_5, %c0_6], %5 {strides = array<i32>} : memref<8x2xf32, #tpu.memory_space<vmem>>, vector<8x2xf32>,
    return
  }
  func.func @transform_0(%arg0: i32) -> (i32, i32) {
    %c0_i32 = arith.constant 0 : i32
    %c0_i32_0 = arith.constant 0 : i32
    return %arg0, %c0_i32 : i32, i32
  }
  func.func @transform_1(%arg0: i32) -> (i32, i32) {
    %c0_i32 = arith.constant 0 : i32
    %c0_i32_0 = arith.constant 0 : i32
    %c0_i32_1 = arith.constant 0 : i32
    return %c0_i32, %c0_i32_0 : i32, i32
  }
  func.func @transform_2(%arg0: i32) -> (i32, i32) {
    %c0_i32 = arith.constant 0 : i32
    %c0_i32_0 = arith.constant 0 : i32
    %c0_i32_1 = arith.constant 0 : i32
    return %c0_i32, %c0_i32_0 : i32, i32
  }
  func.func @transform_3(%arg0: i32) -> (i32, i32) {
    %c0_i32 = arith.constant 0 : i32
    %c0_i32_0 = arith.constant 0 : i32
    return %arg0, %c0_i32 : i32, i32
  }
}

</mosaic_0001>

<llo_original>
// kernel: net_forward.1
$region0: #{net_forward.1}
  #allocation0 [shape = 'u32[]', space=smem, size = 0x4, offset = 0x4, fixed_abs, tag = 'smem constant byte address 0x4 - core index']
  #allocation1 [shape = 'u32[72,128]{1,0:T(1,128)}', space=vmem, size = 0x9000, scoped, tag = 'internal scratch']
  %s0 = inlined_call_operand.vmem [shape: f32[8,3072], index: 0, kind: input, shape index: {}]
  %s1 = inlined_call_operand.vmem [shape: f32[3072,2], index: 1, kind: input, shape index: {}]
  %s2 = inlined_call_operand.vmem [shape: f32[1,2], index: 2, kind: input, shape index: {}]
  %s3 = inlined_call_operand.vmem [shape: f32[8,2], index: 3, kind: output, shape index: {}]
  %s4 = sld [smem:[#allocation0]]
  $region22: #{net_forward.1} parent=0
    _
  %s6 = ssub.s32 1, %s4
  %s7 = scalar_select 0, %s6, %s4
  // Predicated region
  $region2: #{net_forward.1} parent=0 // pred_check
    _
  $region3: #{net_forward.1} parent=0 // pred_check_branch
    %9 = sbr.rel (0) target = $region5
  $region4: #{net_forward.1} parent=0 // pred_region
    _
  $region5: #{net_forward.1} parent=0 // pred_fallthru
    _
  // Predicated region
  $region6: #{net_forward.1} parent=0 // pred_check
    _
  $region7: #{net_forward.1} parent=0 // pred_check_branch
    %11 = sbr.rel (0) target = $region9
  $region8: #{net_forward.1} parent=0 // pred_region
    _
  $region9: #{net_forward.1} parent=0 // pred_fallthru
    _
  // Predicated region
  $region10: #{net_forward.1} parent=0 // pred_check
    _
  $region11: #{net_forward.1} parent=0 // pred_check_branch
    %13 = sbr.rel (0) target = $region13
  $region12: #{net_forward.1} parent=0 // pred_region
    _
  $region13: #{net_forward.1} parent=0 // pred_fallthru
    _
  %v14 = vld [vmem:[%s0] sm:$0xff]
  %v15 = vld [vmem:[%s0 + $0x8] sm:$0xff]
  %v16 = vld [vmem:[%s0 + $0x10] sm:$0xff]
  %v17 = vld [vmem:[%s0 + $0x18] sm:$0xff]
  %v18 = vld [vmem:[%s0 + $0x20] sm:$0xff]
  %v19 = vld [vmem:[%s0 + $0x28] sm:$0xff]
  %v20 = vld [vmem:[%s0 + $0x30] sm:$0xff]
  %v21 = vld [vmem:[%s0 + $0x38] sm:$0xff]
  %v22 = vld [vmem:[%s0 + $0x40] sm:$0xff]
  %v23 = vld [vmem:[%s0 + $0x48] sm:$0xff]
  %v24 = vld [vmem:[%s0 + $0x50] sm:$0xff]
  %v25 = vld [vmem:[%s0 + $0x58] sm:$0xff]
  %v26 = vld [vmem:[%s0 + $0x60] sm:$0xff]
  %v27 = vld [vmem:[%s0 + $0x68] sm:$0xff]
  %v28 = vld [vmem:[%s0 + $0x70] sm:$0xff]
  %v29 = vld [vmem:[%s0 + $0x78] sm:$0xff]
  %v30 = vld [vmem:[%s0 + $0x80] sm:$0xff]
  %v31 = vld [vmem:[%s0 + $0x88] sm:$0xff]
  %v32 = vld [vmem:[%s0 + $0x90] sm:$0xff]
  %v33 = vld [vmem:[%s0 + $0x98] sm:$0xff]
  %v34 = vld [vmem:[%s0 + $0xa0] sm:$0xff]
  %v35 = vld [vmem:[%s0 + $0xa8] sm:$0xff]
  %v36 = vld [vmem:[%s0 + $0xb0] sm:$0xff]
  %v37 = vld [vmem:[%s0 + $0xb8] sm:$0xff]
  %v38 = vld [vmem:[%s1] sm:$0xff]
  %v39 = vld [vmem:[%s1 + $0x8] sm:$0xff]
  %v40 = vld [vmem:[%s1 + $0x10] sm:$0xff]
  %v41 = vld [vmem:[%s1 + $0x18] sm:$0xff]
  %v42 = vld [vmem:[%s1 + $0x20] sm:$0xff]
  %v43 = vld [vmem:[%s1 + $0x28] sm:$0xff]
  %v44 = vld [vmem:[%s1 + $0x30] sm:$0xff]
  %v45 = vld [vmem:[%s1 + $0x38] sm:$0xff]
  %v46 = vld [vmem:[%s1 + $0x40] sm:$0xff]
  %v47 = vld [vmem:[%s1 + $0x48] sm:$0xff]
  %v48 = vld [vmem:[%s1 + $0x50] sm:$0xff]
  %v49 = vld [vmem:[%s1 + $0x58] sm:$0xff]
  %v50 = vld [vmem:[%s1 + $0x60] sm:$0xff]
  %v51 = vld [vmem:[%s1 + $0x68] sm:$0xff]
  %v52 = vld [vmem:[%s1 + $0x70] sm:$0xff]
  %v53 = vld [vmem:[%s1 + $0x78] sm:$0xff]
  %v54 = vld [vmem:[%s1 + $0x80] sm:$0xff]
  %v55 = vld [vmem:[%s1 + $0x88] sm:$0xff]
  %v56 = vld [vmem:[%s1 + $0x90] sm:$0xff]
  %v57 = vld [vmem:[%s1 + $0x98] sm:$0xff]
  %v58 = vld [vmem:[%s1 + $0xa0] sm:$0xff]
  %v59 = vld [vmem:[%s1 + $0xa8] sm:$0xff]
  %v60 = vld [vmem:[%s1 + $0xb0] sm:$0xff]
  %v61 = vld [vmem:[%s1 + $0xb8] sm:$0xff]
  %v62 = vld [vmem:[%s1 + $0xc0] sm:$0xff]
  %v63 = vld [vmem:[%s1 + $0xc8] sm:$0xff]
  %v64 = vld [vmem:[%s1 + $0xd0] sm:$0xff]
  %v65 = vld [vmem:[%s1 + $0xd8] sm:$0xff]
  %v66 = vld [vmem:[%s1 + $0xe0] sm:$0xff]
  %v67 = vld [vmem:[%s1 + $0xe8] sm:$0xff]
  %v68 = vld [vmem:[%s1 + $0xf0] sm:$0xff]
  %v69 = vld [vmem:[%s1 + $0xf8] sm:$0xff]
  %v70 = vld [vmem:[%s1 + $0x100] sm:$0xff]
  %v71 = vld [vmem:[%s1 + $0x108] sm:$0xff]
  %v72 = vld [vmem:[%s1 + $0x110] sm:$0xff]
  %v73 = vld [vmem:[%s1 + $0x118] sm:$0xff]
  %v74 = vld [vmem:[%s1 + $0x120] sm:$0xff]
  %v75 = vld [vmem:[%s1 + $0x128] sm:$0xff]
  %v76 = vld [vmem:[%s1 + $0x130] sm:$0xff]
  %v77 = vld [vmem:[%s1 + $0x138] sm:$0xff]
  %v78 = vld [vmem:[%s1 + $0x140] sm:$0xff]
  %v79 = vld [vmem:[%s1 + $0x148] sm:$0xff]
  %v80 = vld [vmem:[%s1 + $0x150] sm:$0xff]
  %v81 = vld [vmem:[%s1 + $0x158] sm:$0xff]
  %v82 = vld [vmem:[%s1 + $0x160] sm:$0xff]
  %v83 = vld [vmem:[%s1 + $0x168] sm:$0xff]
  %v84 = vld [vmem:[%s1 + $0x170] sm:$0xff]
  %v85 = vld [vmem:[%s1 + $0x178] sm:$0xff]
  %v86 = vld [vmem:[%s1 + $0x180] sm:$0xff]
  %v87 = vld [vmem:[%s1 + $0x188] sm:$0xff]
  %v88 = vld [vmem:[%s1 + $0x190] sm:$0xff]
  %v89 = vld [vmem:[%s1 + $0x198] sm:$0xff]
  %v90 = vld [vmem:[%s1 + $0x1a0] sm:$0xff]
  %v91 = vld [vmem:[%s1 + $0x1a8] sm:$0xff]
  %v92 = vld [vmem:[%s1 + $0x1b0] sm:$0xff]
  %v93 = vld [vmem:[%s1 + $0x1b8] sm:$0xff]
  %v94 = vld [vmem:[%s1 + $0x1c0] sm:$0xff]
  %v95 = vld [vmem:[%s1 + $0x1c8] sm:$0xff]
  %v96 = vld [vmem:[%s1 + $0x1d0] sm:$0xff]
  %v97 = vld [vmem:[%s1 + $0x1d8] sm:$0xff]
  %v98 = vld [vmem:[%s1 + $0x1e0] sm:$0xff]
  %v99 = vld [vmem:[%s1 + $0x1e8] sm:$0xff]
  %v100 = vld [vmem:[%s1 + $0x1f0] sm:$0xff]
  %v101 = vld [vmem:[%s1 + $0x1f8] sm:$0xff]
  %v102 = vld [vmem:[%s1 + $0x200] sm:$0xff]
  %v103 = vld [vmem:[%s1 + $0x208] sm:$0xff]
  %v104 = vld [vmem:[%s1 + $0x210] sm:$0xff]
  %v105 = vld [vmem:[%s1 + $0x218] sm:$0xff]
  %v106 = vld [vmem:[%s1 + $0x220] sm:$0xff]
  %v107 = vld [vmem:[%s1 + $0x228] sm:$0xff]
  %v108 = vld [vmem:[%s1 + $0x230] sm:$0xff]
  %v109 = vld [vmem:[%s1 + $0x238] sm:$0xff]
  %v110 = vld [vmem:[%s1 + $0x240] sm:$0xff]
  %v111 = vld [vmem:[%s1 + $0x248] sm:$0xff]
  %v112 = vld [vmem:[%s1 + $0x250] sm:$0xff]
  %v113 = vld [vmem:[%s1 + $0x258] sm:$0xff]
  %v114 = vld [vmem:[%s1 + $0x260] sm:$0xff]
  %v115 = vld [vmem:[%s1 + $0x268] sm:$0xff]
  %v116 = vld [vmem:[%s1 + $0x270] sm:$0xff]
  %v117 = vld [vmem:[%s1 + $0x278] sm:$0xff]
  %v118 = vld [vmem:[%s1 + $0x280] sm:$0xff]
  %v119 = vld [vmem:[%s1 + $0x288] sm:$0xff]
  %v120 = vld [vmem:[%s1 + $0x290] sm:$0xff]
  %v121 = vld [vmem:[%s1 + $0x298] sm:$0xff]
  %v122 = vld [vmem:[%s1 + $0x2a0] sm:$0xff]
  %v123 = vld [vmem:[%s1 + $0x2a8] sm:$0xff]
  %v124 = vld [vmem:[%s1 + $0x2b0] sm:$0xff]
  %v125 = vld [vmem:[%s1 + $0x2b8] sm:$0xff]
  %v126 = vld [vmem:[%s1 + $0x2c0] sm:$0xff]
  %v127 = vld [vmem:[%s1 + $0x2c8] sm:$0xff]
  %v128 = vld [vmem:[%s1 + $0x2d0] sm:$0xff]
  %v129 = vld [vmem:[%s1 + $0x2d8] sm:$0xff]
  %v130 = vld [vmem:[%s1 + $0x2e0] sm:$0xff]
  %v131 = vld [vmem:[%s1 + $0x2e8] sm:$0xff]
  %v132 = vld [vmem:[%s1 + $0x2f0] sm:$0xff]
  %v133 = vld [vmem:[%s1 + $0x2f8] sm:$0xff]
  %v134 = vld [vmem:[%s1 + $0x300] sm:$0xff]
  %v135 = vld [vmem:[%s1 + $0x308] sm:$0xff]
  %v136 = vld [vmem:[%s1 + $0x310] sm:$0xff]
  %v137 = vld [vmem:[%s1 + $0x318] sm:$0xff]
  %v138 = vld [vmem:[%s1 + $0x320] sm:$0xff]
  %v139 = vld [vmem:[%s1 + $0x328] sm:$0xff]
  %v140 = vld [vmem:[%s1 + $0x330] sm:$0xff]
  %v141 = vld [vmem:[%s1 + $0x338] sm:$0xff]
  %v142 = vld [vmem:[%s1 + $0x340] sm:$0xff]
  %v143 = vld [vmem:[%s1 + $0x348] sm:$0xff]
  %v144 = vld [vmem:[%s1 + $0x350] sm:$0xff]
  %v145 = vld [vmem:[%s1 + $0x358] sm:$0xff]
  %v146 = vld [vmem:[%s1 + $0x360] sm:$0xff]
  %v147 = vld [vmem:[%s1 + $0x368] sm:$0xff]
  %v148 = vld [vmem:[%s1 + $0x370] sm:$0xff]
  %v149 = vld [vmem:[%s1 + $0x378] sm:$0xff]
  %v150 = vld [vmem:[%s1 + $0x380] sm:$0xff]
  %v151 = vld [vmem:[%s1 + $0x388] sm:$0xff]
  %v152 = vld [vmem:[%s1 + $0x390] sm:$0xff]
  %v153 = vld [vmem:[%s1 + $0x398] sm:$0xff]
  %v154 = vld [vmem:[%s1 + $0x3a0] sm:$0xff]
  %v155 = vld [vmem:[%s1 + $0x3a8] sm:$0xff]
  %v156 = vld [vmem:[%s1 + $0x3b0] sm:$0xff]
  %v157 = vld [vmem:[%s1 + $0x3b8] sm:$0xff]
  %v158 = vld [vmem:[%s1 + $0x3c0] sm:$0xff]
  %v159 = vld [vmem:[%s1 + $0x3c8] sm:$0xff]
  %v160 = vld [vmem:[%s1 + $0x3d0] sm:$0xff]
  %v161 = vld [vmem:[%s1 + $0x3d8] sm:$0xff]
  %v162 = vld [vmem:[%s1 + $0x3e0] sm:$0xff]
  %v163 = vld [vmem:[%s1 + $0x3e8] sm:$0xff]
  %v164 = vld [vmem:[%s1 + $0x3f0] sm:$0xff]
  %v165 = vld [vmem:[%s1 + $0x3f8] sm:$0xff]
  %v166 = vld [vmem:[%s1 + $0x400] sm:$0xff]
  %v167 = vld [vmem:[%s1 + $0x408] sm:$0xff]
  %v168 = vld [vmem:[%s1 + $0x410] sm:$0xff]
  %v169 = vld [vmem:[%s1 + $0x418] sm:$0xff]
  %v170 = vld [vmem:[%s1 + $0x420] sm:$0xff]
  %v171 = vld [vmem:[%s1 + $0x428] sm:$0xff]
  %v172 = vld [vmem:[%s1 + $0x430] sm:$0xff]
  %v173 = vld [vmem:[%s1 + $0x438] sm:$0xff]
  %v174 = vld [vmem:[%s1 + $0x440] sm:$0xff]
  %v175 = vld [vmem:[%s1 + $0x448] sm:$0xff]
  %v176 = vld [vmem:[%s1 + $0x450] sm:$0xff]
  %v177 = vld [vmem:[%s1 + $0x458] sm:$0xff]
  %v178 = vld [vmem:[%s1 + $0x460] sm:$0xff]
  %v179 = vld [vmem:[%s1 + $0x468] sm:$0xff]
  %v180 = vld [vmem:[%s1 + $0x470] sm:$0xff]
  %v181 = vld [vmem:[%s1 + $0x478] sm:$0xff]
  %v182 = vld [vmem:[%s1 + $0x480] sm:$0xff]
  %v183 = vld [vmem:[%s1 + $0x488] sm:$0xff]
  %v184 = vld [vmem:[%s1 + $0x490] sm:$0xff]
  %v185 = vld [vmem:[%s1 + $0x498] sm:$0xff]
  %v186 = vld [vmem:[%s1 + $0x4a0] sm:$0xff]
  %v187 = vld [vmem:[%s1 + $0x4a8] sm:$0xff]
  %v188 = vld [vmem:[%s1 + $0x4b0] sm:$0xff]
  %v189 = vld [vmem:[%s1 + $0x4b8] sm:$0xff]
  %v190 = vld [vmem:[%s1 + $0x4c0] sm:$0xff]
  %v191 = vld [vmem:[%s1 + $0x4c8] sm:$0xff]
  %v192 = vld [vmem:[%s1 + $0x4d0] sm:$0xff]
  %v193 = vld [vmem:[%s1 + $0x4d8] sm:$0xff]
  %v194 = vld [vmem:[%s1 + $0x4e0] sm:$0xff]
  %v195 = vld [vmem:[%s1 + $0x4e8] sm:$0xff]
  %v196 = vld [vmem:[%s1 + $0x4f0] sm:$0xff]
  %v197 = vld [vmem:[%s1 + $0x4f8] sm:$0xff]
  %v198 = vld [vmem:[%s1 + $0x500] sm:$0xff]
  %v199 = vld [vmem:[%s1 + $0x508] sm:$0xff]
  %v200 = vld [vmem:[%s1 + $0x510] sm:$0xff]
  %v201 = vld [vmem:[%s1 + $0x518] sm:$0xff]
  %v202 = vld [vmem:[%s1 + $0x520] sm:$0xff]
  %v203 = vld [vmem:[%s1 + $0x528] sm:$0xff]
  %v204 = vld [vmem:[%s1 + $0x530] sm:$0xff]
  %v205 = vld [vmem:[%s1 + $0x538] sm:$0xff]
  %v206 = vld [vmem:[%s1 + $0x540] sm:$0xff]
  %v207 = vld [vmem:[%s1 + $0x548] sm:$0xff]
  %v208 = vld [vmem:[%s1 + $0x550] sm:$0xff]
  %v209 = vld [vmem:[%s1 + $0x558] sm:$0xff]
  %v210 = vld [vmem:[%s1 + $0x560] sm:$0xff]
  %v211 = vld [vmem:[%s1 + $0x568] sm:$0xff]
  %v212 = vld [vmem:[%s1 + $0x570] sm:$0xff]
  %v213 = vld [vmem:[%s1 + $0x578] sm:$0xff]
  %v214 = vld [vmem:[%s1 + $0x580] sm:$0xff]
  %v215 = vld [vmem:[%s1 + $0x588] sm:$0xff]
  %v216 = vld [vmem:[%s1 + $0x590] sm:$0xff]
  %v217 = vld [vmem:[%s1 + $0x598] sm:$0xff]
  %v218 = vld [vmem:[%s1 + $0x5a0] sm:$0xff]
  %v219 = vld [vmem:[%s1 + $0x5a8] sm:$0xff]
  %v220 = vld [vmem:[%s1 + $0x5b0] sm:$0xff]
  %v221 = vld [vmem:[%s1 + $0x5b8] sm:$0xff]
  %v222 = vld [vmem:[%s1 + $0x5c0] sm:$0xff]
  %v223 = vld [vmem:[%s1 + $0x5c8] sm:$0xff]
  %v224 = vld [vmem:[%s1 + $0x5d0] sm:$0xff]
  %v225 = vld [vmem:[%s1 + $0x5d8] sm:$0xff]
  %v226 = vld [vmem:[%s1 + $0x5e0] sm:$0xff]
  %v227 = vld [vmem:[%s1 + $0x5e8] sm:$0xff]
  %v228 = vld [vmem:[%s1 + $0x5f0] sm:$0xff]
  %v229 = vld [vmem:[%s1 + $0x5f8] sm:$0xff]
  %v230 = vld [vmem:[%s1 + $0x600] sm:$0xff]
  %v231 = vld [vmem:[%s1 + $0x608] sm:$0xff]
  %v232 = vld [vmem:[%s1 + $0x610] sm:$0xff]
  %v233 = vld [vmem:[%s1 + $0x618] sm:$0xff]
  %v234 = vld [vmem:[%s1 + $0x620] sm:$0xff]
  %v235 = vld [vmem:[%s1 + $0x628] sm:$0xff]
  %v236 = vld [vmem:[%s1 + $0x630] sm:$0xff]
  %v237 = vld [vmem:[%s1 + $0x638] sm:$0xff]
  %v238 = vld [vmem:[%s1 + $0x640] sm:$0xff]
  %v239 = vld [vmem:[%s1 + $0x648] sm:$0xff]
  %v240 = vld [vmem:[%s1 + $0x650] sm:$0xff]
  %v241 = vld [vmem:[%s1 + $0x658] sm:$0xff]
  %v242 = vld [vmem:[%s1 + $0x660] sm:$0xff]
  %v243 = vld [vmem:[%s1 + $0x668] sm:$0xff]
  %v244 = vld [vmem:[%s1 + $0x670] sm:$0xff]
  %v245 = vld [vmem:[%s1 + $0x678] sm:$0xff]
  %v246 = vld [vmem:[%s1 + $0x680] sm:$0xff]
  %v247 = vld [vmem:[%s1 + $0x688] sm:$0xff]
  %v248 = vld [vmem:[%s1 + $0x690] sm:$0xff]
  %v249 = vld [vmem:[%s1 + $0x698] sm:$0xff]
  %v250 = vld [vmem:[%s1 + $0x6a0] sm:$0xff]
  %v251 = vld [vmem:[%s1 + $0x6a8] sm:$0xff]
  %v252 = vld [vmem:[%s1 + $0x6b0] sm:$0xff]
  %v253 = vld [vmem:[%s1 + $0x6b8] sm:$0xff]
  %v254 = vld [vmem:[%s1 + $0x6c0] sm:$0xff]
  %v255 = vld [vmem:[%s1 + $0x6c8] sm:$0xff]
  %v256 = vld [vmem:[%s1 + $0x6d0] sm:$0xff]
  %v257 = vld [vmem:[%s1 + $0x6d8] sm:$0xff]
  %v258 = vld [vmem:[%s1 + $0x6e0] sm:$0xff]
  %v259 = vld [vmem:[%s1 + $0x6e8] sm:$0xff]
  %v260 = vld [vmem:[%s1 + $0x6f0] sm:$0xff]
  %v261 = vld [vmem:[%s1 + $0x6f8] sm:$0xff]
  %v262 = vld [vmem:[%s1 + $0x700] sm:$0xff]
  %v263 = vld [vmem:[%s1 + $0x708] sm:$0xff]
  %v264 = vld [vmem:[%s1 + $0x710] sm:$0xff]
  %v265 = vld [vmem:[%s1 + $0x718] sm:$0xff]
  %v266 = vld [vmem:[%s1 + $0x720] sm:$0xff]
  %v267 = vld [vmem:[%s1 + $0x728] sm:$0xff]
  %v268 = vld [vmem:[%s1 + $0x730] sm:$0xff]
  %v269 = vld [vmem:[%s1 + $0x738] sm:$0xff]
  %v270 = vld [vmem:[%s1 + $0x740] sm:$0xff]
  %v271 = vld [vmem:[%s1 + $0x748] sm:$0xff]
  %v272 = vld [vmem:[%s1 + $0x750] sm:$0xff]
  %v273 = vld [vmem:[%s1 + $0x758] sm:$0xff]
  %v274 = vld [vmem:[%s1 + $0x760] sm:$0xff]
  %v275 = vld [vmem:[%s1 + $0x768] sm:$0xff]
  %v276 = vld [vmem:[%s1 + $0x770] sm:$0xff]
  %v277 = vld [vmem:[%s1 + $0x778] sm:$0xff]
  %v278 = vld [vmem:[%s1 + $0x780] sm:$0xff]
  %v279 = vld [vmem:[%s1 + $0x788] sm:$0xff]
  %v280 = vld [vmem:[%s1 + $0x790] sm:$0xff]
  %v281 = vld [vmem:[%s1 + $0x798] sm:$0xff]
  %v282 = vld [vmem:[%s1 + $0x7a0] sm:$0xff]
  %v283 = vld [vmem:[%s1 + $0x7a8] sm:$0xff]
  %v284 = vld [vmem:[%s1 + $0x7b0] sm:$0xff]
  %v285 = vld [vmem:[%s1 + $0x7b8] sm:$0xff]
  %v286 = vld [vmem:[%s1 + $0x7c0] sm:$0xff]
  %v287 = vld [vmem:[%s1 + $0x7c8] sm:$0xff]
  %v288 = vld [vmem:[%s1 + $0x7d0] sm:$0xff]
  %v289 = vld [vmem:[%s1 + $0x7d8] sm:$0xff]
  %v290 = vld [vmem:[%s1 + $0x7e0] sm:$0xff]
  %v291 = vld [vmem:[%s1 + $0x7e8] sm:$0xff]
  %v292 = vld [vmem:[%s1 + $0x7f0] sm:$0xff]
  %v293 = vld [vmem:[%s1 + $0x7f8] sm:$0xff]
  %v294 = vld [vmem:[%s1 + $0x800] sm:$0xff]
  %v295 = vld [vmem:[%s1 + $0x808] sm:$0xff]
  %v296 = vld [vmem:[%s1 + $0x810] sm:$0xff]
  %v297 = vld [vmem:[%s1 + $0x818] sm:$0xff]
  %v298 = vld [vmem:[%s1 + $0x820] sm:$0xff]
  %v299 = vld [vmem:[%s1 + $0x828] sm:$0xff]
  %v300 = vld [vmem:[%s1 + $0x830] sm:$0xff]
  %v301 = vld [vmem:[%s1 + $0x838] sm:$0xff]
  %v302 = vld [vmem:[%s1 + $0x840] sm:$0xff]
  %v303 = vld [vmem:[%s1 + $0x848] sm:$0xff]
  %v304 = vld [vmem:[%s1 + $0x850] sm:$0xff]
  %v305 = vld [vmem:[%s1 + $0x858] sm:$0xff]
  %v306 = vld [vmem:[%s1 + $0x860] sm:$0xff]
  %v307 = vld [vmem:[%s1 + $0x868] sm:$0xff]
  %v308 = vld [vmem:[%s1 + $0x870] sm:$0xff]
  %v309 = vld [vmem:[%s1 + $0x878] sm:$0xff]
  %v310 = vld [vmem:[%s1 + $0x880] sm:$0xff]
  %v311 = vld [vmem:[%s1 + $0x888] sm:$0xff]
  %v312 = vld [vmem:[%s1 + $0x890] sm:$0xff]
  %v313 = vld [vmem:[%s1 + $0x898] sm:$0xff]
  %v314 = vld [vmem:[%s1 + $0x8a0] sm:$0xff]
  %v315 = vld [vmem:[%s1 + $0x8a8] sm:$0xff]
  %v316 = vld [vmem:[%s1 + $0x8b0] sm:$0xff]
  %v317 = vld [vmem:[%s1 + $0x8b8] sm:$0xff]
  %v318 = vld [vmem:[%s1 + $0x8c0] sm:$0xff]
  %v319 = vld [vmem:[%s1 + $0x8c8] sm:$0xff]
  %v320 = vld [vmem:[%s1 + $0x8d0] sm:$0xff]
  %v321 = vld [vmem:[%s1 + $0x8d8] sm:$0xff]
  %v322 = vld [vmem:[%s1 + $0x8e0] sm:$0xff]
  %v323 = vld [vmem:[%s1 + $0x8e8] sm:$0xff]
  %v324 = vld [vmem:[%s1 + $0x8f0] sm:$0xff]
  %v325 = vld [vmem:[%s1 + $0x8f8] sm:$0xff]
  %v326 = vld [vmem:[%s1 + $0x900] sm:$0xff]
  %v327 = vld [vmem:[%s1 + $0x908] sm:$0xff]
  %v328 = vld [vmem:[%s1 + $0x910] sm:$0xff]
  %v329 = vld [vmem:[%s1 + $0x918] sm:$0xff]
  %v330 = vld [vmem:[%s1 + $0x920] sm:$0xff]
  %v331 = vld [vmem:[%s1 + $0x928] sm:$0xff]
  %v332 = vld [vmem:[%s1 + $0x930] sm:$0xff]
  %v333 = vld [vmem:[%s1 + $0x938] sm:$0xff]
  %v334 = vld [vmem:[%s1 + $0x940] sm:$0xff]
  %v335 = vld [vmem:[%s1 + $0x948] sm:$0xff]
  %v336 = vld [vmem:[%s1 + $0x950] sm:$0xff]
  %v337 = vld [vmem:[%s1 + $0x958] sm:$0xff]
  %v338 = vld [vmem:[%s1 + $0x960] sm:$0xff]
  %v339 = vld [vmem:[%s1 + $0x968] sm:$0xff]
  %v340 = vld [vmem:[%s1 + $0x970] sm:$0xff]
  %v341 = vld [vmem:[%s1 + $0x978] sm:$0xff]
  %v342 = vld [vmem:[%s1 + $0x980] sm:$0xff]
  %v343 = vld [vmem:[%s1 + $0x988] sm:$0xff]
  %v344 = vld [vmem:[%s1 + $0x990] sm:$0xff]
  %v345 = vld [vmem:[%s1 + $0x998] sm:$0xff]
  %v346 = vld [vmem:[%s1 + $0x9a0] sm:$0xff]
  %v347 = vld [vmem:[%s1 + $0x9a8] sm:$0xff]
  %v348 = vld [vmem:[%s1 + $0x9b0] sm:$0xff]
  %v349 = vld [vmem:[%s1 + $0x9b8] sm:$0xff]
  %v350 = vld [vmem:[%s1 + $0x9c0] sm:$0xff]
  %v351 = vld [vmem:[%s1 + $0x9c8] sm:$0xff]
  %v352 = vld [vmem:[%s1 + $0x9d0] sm:$0xff]
  %v353 = vld [vmem:[%s1 + $0x9d8] sm:$0xff]
  %v354 = vld [vmem:[%s1 + $0x9e0] sm:$0xff]
  %v355 = vld [vmem:[%s1 + $0x9e8] sm:$0xff]
  %v356 = vld [vmem:[%s1 + $0x9f0] sm:$0xff]
  %v357 = vld [vmem:[%s1 + $0x9f8] sm:$0xff]
  %v358 = vld [vmem:[%s1 + $0xa00] sm:$0xff]
  %v359 = vld [vmem:[%s1 + $0xa08] sm:$0xff]
  %v360 = vld [vmem:[%s1 + $0xa10] sm:$0xff]
  %v361 = vld [vmem:[%s1 + $0xa18] sm:$0xff]
  %v362 = vld [vmem:[%s1 + $0xa20] sm:$0xff]
  %v363 = vld [vmem:[%s1 + $0xa28] sm:$0xff]
  %v364 = vld [vmem:[%s1 + $0xa30] sm:$0xff]
  %v365 = vld [vmem:[%s1 + $0xa38] sm:$0xff]
  %v366 = vld [vmem:[%s1 + $0xa40] sm:$0xff]
  %v367 = vld [vmem:[%s1 + $0xa48] sm:$0xff]
  %v368 = vld [vmem:[%s1 + $0xa50] sm:$0xff]
  %v369 = vld [vmem:[%s1 + $0xa58] sm:$0xff]
  %v370 = vld [vmem:[%s1 + $0xa60] sm:$0xff]
  %v371 = vld [vmem:[%s1 + $0xa68] sm:$0xff]
  %v372 = vld [vmem:[%s1 + $0xa70] sm:$0xff]
  %v373 = vld [vmem:[%s1 + $0xa78] sm:$0xff]
  %v374 = vld [vmem:[%s1 + $0xa80] sm:$0xff]
  %v375 = vld [vmem:[%s1 + $0xa88] sm:$0xff]
  %v376 = vld [vmem:[%s1 + $0xa90] sm:$0xff]
  %v377 = vld [vmem:[%s1 + $0xa98] sm:$0xff]
  %v378 = vld [vmem:[%s1 + $0xaa0] sm:$0xff]
  %v379 = vld [vmem:[%s1 + $0xaa8] sm:$0xff]
  %v380 = vld [vmem:[%s1 + $0xab0] sm:$0xff]
  %v381 = vld [vmem:[%s1 + $0xab8] sm:$0xff]
  %v382 = vld [vmem:[%s1 + $0xac0] sm:$0xff]
  %v383 = vld [vmem:[%s1 + $0xac8] sm:$0xff]
  %v384 = vld [vmem:[%s1 + $0xad0] sm:$0xff]
  %v385 = vld [vmem:[%s1 + $0xad8] sm:$0xff]
  %v386 = vld [vmem:[%s1 + $0xae0] sm:$0xff]
  %v387 = vld [vmem:[%s1 + $0xae8] sm:$0xff]
  %v388 = vld [vmem:[%s1 + $0xaf0] sm:$0xff]
  %v389 = vld [vmem:[%s1 + $0xaf8] sm:$0xff]
  %v390 = vld [vmem:[%s1 + $0xb00] sm:$0xff]
  %v391 = vld [vmem:[%s1 + $0xb08] sm:$0xff]
  %v392 = vld [vmem:[%s1 + $0xb10] sm:$0xff]
  %v393 = vld [vmem:[%s1 + $0xb18] sm:$0xff]
  %v394 = vld [vmem:[%s1 + $0xb20] sm:$0xff]
  %v395 = vld [vmem:[%s1 + $0xb28] sm:$0xff]
  %v396 = vld [vmem:[%s1 + $0xb30] sm:$0xff]
  %v397 = vld [vmem:[%s1 + $0xb38] sm:$0xff]
  %v398 = vld [vmem:[%s1 + $0xb40] sm:$0xff]
  %v399 = vld [vmem:[%s1 + $0xb48] sm:$0xff]
  %v400 = vld [vmem:[%s1 + $0xb50] sm:$0xff]
  %v401 = vld [vmem:[%s1 + $0xb58] sm:$0xff]
  %v402 = vld [vmem:[%s1 + $0xb60] sm:$0xff]
  %v403 = vld [vmem:[%s1 + $0xb68] sm:$0xff]
  %v404 = vld [vmem:[%s1 + $0xb70] sm:$0xff]
  %v405 = vld [vmem:[%s1 + $0xb78] sm:$0xff]
  %v406 = vld [vmem:[%s1 + $0xb80] sm:$0xff]
  %v407 = vld [vmem:[%s1 + $0xb88] sm:$0xff]
  %v408 = vld [vmem:[%s1 + $0xb90] sm:$0xff]
  %v409 = vld [vmem:[%s1 + $0xb98] sm:$0xff]
  %v410 = vld [vmem:[%s1 + $0xba0] sm:$0xff]
  %v411 = vld [vmem:[%s1 + $0xba8] sm:$0xff]
  %v412 = vld [vmem:[%s1 + $0xbb0] sm:$0xff]
  %v413 = vld [vmem:[%s1 + $0xbb8] sm:$0xff]
  %v414 = vld [vmem:[%s1 + $0xbc0] sm:$0xff]
  %v415 = vld [vmem:[%s1 + $0xbc8] sm:$0xff]
  %v416 = vld [vmem:[%s1 + $0xbd0] sm:$0xff]
  %v417 = vld [vmem:[%s1 + $0xbd8] sm:$0xff]
  %v418 = vld [vmem:[%s1 + $0xbe0] sm:$0xff]
  %v419 = vld [vmem:[%s1 + $0xbe8] sm:$0xff]
  %v420 = vld [vmem:[%s1 + $0xbf0] sm:$0xff]
  %v421 = vld [vmem:[%s1 + $0xbf8] sm:$0xff]
  %v422 = vld [vmem:[%s2] sm:$0x1]
  %v424 = vperm.slane %v422, 0
  %v426 = vand.u32 %v53, 4294901760
  %427 = vmatpush.msra.mxu0 %v426
  %v428 = vand.u32 %v52, 4294901760
  %429 = vmatpush.msra.mxu0 %v428
  %v430 = vand.u32 %v51, 4294901760
  %431 = vmatpush.msra.mxu0 %v430
  %v432 = vand.u32 %v50, 4294901760
  %433 = vmatpush.msra.mxu0 %v432
  %v434 = vand.u32 %v49, 4294901760
  %435 = vmatpush.msra.mxu0 %v434
  %v436 = vand.u32 %v48, 4294901760
  %437 = vmatpush.msra.mxu0 %v436
  %v438 = vand.u32 %v47, 4294901760
  %439 = vmatpush.msra.mxu0 %v438
  %v440 = vand.u32 %v46, 4294901760
  %441 = vmatpush.msra.mxu0 %v440
  %v442 = vand.u32 %v45, 4294901760
  %443 = vmatpush.msra.mxu0 %v442
  %v444 = vand.u32 %v44, 4294901760
  %445 = vmatpush.msra.mxu0 %v444
  %v446 = vand.u32 %v43, 4294901760
  %447 = vmatpush.msra.mxu0 %v446
  %v448 = vand.u32 %v42, 4294901760
  %449 = vmatpush.msra.mxu0 %v448
  %v450 = vand.u32 %v41, 4294901760
  %451 = vmatpush.msra.mxu0 %v450
  %v452 = vand.u32 %v40, 4294901760
  %453 = vmatpush.msra.mxu0 %v452
  %v454 = vand.u32 %v39, 4294901760
  %455 = vmatpush.msra.mxu0 %v454
  %v456 = vand.u32 %v38, 4294901760
  %457 = vmatpush.msra.mxu0 %v456
  %v458 = vand.u32 %v14, 4294901760
  %v459 = vsub.f32 %v14, %v458
  %v460 = vand.u32 %v459, 4294901760
  %v461 = vsub.f32 %v459, %v460
  %v462 = vand.u32 %v461, 4294901760
  %463 = vmatmul.f32.gmra.mxu0 %v462
  %v464 = vpop.f32.mrf.mxu0
  %v465 = vadd.f32 %v424, %v464
  %466 = vdwg.mxu0
  %v467 = vand.u32 %v53, 4294901760
  %v468 = vsub.f32 %v53, %v467
  %v469 = vand.u32 %v468, 4294901760
  %v470 = vsub.f32 %v468, %v469
  %v471 = vand.u32 %v470, 4294901760
  %472 = vmatpush.msra.mxu0 %v471
  %v473 = vand.u32 %v52, 4294901760
  %v474 = vsub.f32 %v52, %v473
  %v475 = vand.u32 %v474, 4294901760
  %v476 = vsub.f32 %v474, %v475
  %v477 = vand.u32 %v476, 4294901760
  %478 = vmatpush.msra.mxu0 %v477
  %v479 = vand.u32 %v51, 4294901760
  %v480 = vsub.f32 %v51, %v479
  %v481 = vand.u32 %v480, 4294901760
  %v482 = vsub.f32 %v480, %v481
  %v483 = vand.u32 %v482, 4294901760
  %484 = vmatpush.msra.mxu0 %v483
  %v485 = vand.u32 %v50, 4294901760
  %v486 = vsub.f32 %v50, %v485
  %v487 = vand.u32 %v486, 4294901760
  %v488 = vsub.f32 %v486, %v487
  %v489 = vand.u32 %v488, 4294901760
  %490 = vmatpush.msra.mxu0 %v489
  %v491 = vand.u32 %v49, 4294901760
  %v492 = vsub.f32 %v49, %v491
  %v493 = vand.u32 %v492, 4294901760
  %v494 = vsub.f32 %v492, %v493
  %v495 = vand.u32 %v494, 4294901760
  %496 = vmatpush.msra.mxu0 %v495
  %v497 = vand.u32 %v48, 4294901760
  %v498 = vsub.f32 %v48, %v497
  %v499 = vand.u32 %v498, 4294901760
  %v500 = vsub.f32 %v498, %v499
  %v501 = vand.u32 %v500, 4294901760
  %502 = vmatpush.msra.mxu0 %v501
  %v503 = vand.u32 %v47, 4294901760
  %v504 = vsub.f32 %v47, %v503
  %v505 = vand.u32 %v504, 4294901760
  %v506 = vsub.f32 %v504, %v505
  %v507 = vand.u32 %v506, 4294901760
  %508 = vmatpush.msra.mxu0 %v507
  %v509 = vand.u32 %v46, 4294901760
  %v510 = vsub.f32 %v46, %v509
  %v511 = vand.u32 %v510, 4294901760
  %v512 = vsub.f32 %v510, %v511
  %v513 = vand.u32 %v512, 4294901760
  %514 = vmatpush.msra.mxu0 %v513
  %v515 = vand.u32 %v45, 4294901760
  %v516 = vsub.f32 %v45, %v515
  %v517 = vand.u32 %v516, 4294901760
  %v518 = vsub.f32 %v516, %v517
  %v519 = vand.u32 %v518, 4294901760
  %520 = vmatpush.msra.mxu0 %v519
  %v521 = vand.u32 %v44, 4294901760
  %v522 = vsub.f32 %v44, %v521
  %v523 = vand.u32 %v522, 4294901760
  %v524 = vsub.f32 %v522, %v523
  %v525 = vand.u32 %v524, 4294901760
  %526 = vmatpush.msra.mxu0 %v525
  %v527 = vand.u32 %v43, 4294901760
  %v528 = vsub.f32 %v43, %v527
  %v529 = vand.u32 %v528, 4294901760
  %v530 = vsub.f32 %v528, %v529
  %v531 = vand.u32 %v530, 4294901760
  %532 = vmatpush.msra.mxu0 %v531
  %v533 = vand.u32 %v42, 4294901760
  %v534 = vsub.f32 %v42, %v533
  %v535 = vand.u32 %v534, 4294901760
  %v536 = vsub.f32 %v534, %v535
  %v537 = vand.u32 %v536, 4294901760
  %538 = vmatpush.msra.mxu0 %v537
  %v539 = vand.u32 %v41, 4294901760
  %v540 = vsub.f32 %v41, %v539
  %v541 = vand.u32 %v540, 4294901760
  %v542 = vsub.f32 %v540, %v541
  %v543 = vand.u32 %v542, 4294901760
  %544 = vmatpush.msra.mxu0 %v543
  %v545 = vand.u32 %v40, 4294901760
  %v546 = vsub.f32 %v40, %v545
  %v547 = vand.u32 %v546, 4294901760
  %v548 = vsub.f32 %v546, %v547
  %v549 = vand.u32 %v548, 4294901760
  %550 = vmatpush.msra.mxu0 %v549
  %v551 = vand.u32 %v39, 4294901760
  %v552 = vsub.f32 %v39, %v551
  %v553 = vand.u32 %v552, 4294901760
  %v554 = vsub.f32 %v552, %v553
  %v555 = vand.u32 %v554, 4294901760
  %556 = vmatpush.msra.mxu0 %v555
  %v557 = vand.u32 %v38, 4294901760
  %v558 = vsub.f32 %v38, %v557
  %v559 = vand.u32 %v558, 4294901760
  %v560 = vsub.f32 %v558, %v559
  %v561 = vand.u32 %v560, 4294901760
  %562 = vmatpush.msra.mxu0 %v561
  %v563 = vand.u32 %v14, 4294901760
  %564 = vmatmul.f32.gmra.mxu0 %v563
  %v565 = vpop.f32.mrf.mxu0
  %v566 = vadd.f32 %v465, %v565
  %567 = vdwg.mxu0
  %v568 = vand.u32 %v53, 4294901760
  %v569 = vsub.f32 %v53, %v568
  %570 = vmatpush.msra.mxu0 %v569
  %v571 = vand.u32 %v52, 4294901760
  %v572 = vsub.f32 %v52, %v571
  %573 = vmatpush.msra.mxu0 %v572
  %v574 = vand.u32 %v51, 4294901760
  %v575 = vsub.f32 %v51, %v574
  %576 = vmatpush.msra.mxu0 %v575
  %v577 = vand.u32 %v50, 4294901760
  %v578 = vsub.f32 %v50, %v577
  %579 = vmatpush.msra.mxu0 %v578
  %v580 = vand.u32 %v49, 4294901760
  %v581 = vsub.f32 %v49, %v580
  %582 = vmatpush.msra.mxu0 %v581
  %v583 = vand.u32 %v48, 4294901760
  %v584 = vsub.f32 %v48, %v583
  %585 = vmatpush.msra.mxu0 %v584
  %v586 = vand.u32 %v47, 4294901760
  %v587 = vsub.f32 %v47, %v586
  %588 = vmatpush.msra.mxu0 %v587
  %v589 = vand.u32 %v46, 4294901760
  %v590 = vsub.f32 %v46, %v589
  %591 = vmatpush.msra.mxu0 %v590
  %v592 = vand.u32 %v45, 4294901760
  %v593 = vsub.f32 %v45, %v592
  %594 = vmatpush.msra.mxu0 %v593
  %v595 = vand.u32 %v44, 4294901760
  %v596 = vsub.f32 %v44, %v595
  %597 = vmatpush.msra.mxu0 %v596
  %v598 = vand.u32 %v43, 4294901760
  %v599 = vsub.f32 %v43, %v598
  %600 = vmatpush.msra.mxu0 %v599
  %v601 = vand.u32 %v42, 4294901760
  %v602 = vsub.f32 %v42, %v601
  %603 = vmatpush.msra.mxu0 %v602
  %v604 = vand.u32 %v41, 4294901760
  %v605 = vsub.f32 %v41, %v604
  %606 = vmatpush.msra.mxu0 %v605
  %v607 = vand.u32 %v40, 4294901760
  %v608 = vsub.f32 %v40, %v607
  %609 = vmatpush.msra.mxu0 %v608
  %v610 = vand.u32 %v39, 4294901760
  %v611 = vsub.f32 %v39, %v610
  %612 = vmatpush.msra.mxu0 %v611
  %v613 = vand.u32 %v38, 4294901760
  %v614 = vsub.f32 %v38, %v613
  %615 = vmatpush.msra.mxu0 %v614
  %v616 = vand.u32 %v14, 4294901760
  %v617 = vsub.f32 %v14, %v616
  %618 = vmatmul.f32.gmra.mxu0 %v617
  %v619 = vpop.f32.mrf.mxu0
  %v620 = vadd.f32 %v566, %v619
  %621 = vdwg.mxu0
  %v622 = vand.u32 %v53, 4294901760
  %623 = vmatpush.msra.mxu0 %v622
  %v624 = vand.u32 %v52, 4294901760
  %625 = vmatpush.msra.mxu0 %v624
  %v626 = vand.u32 %v51, 4294901760
  %627 = vmatpush.msra.mxu0 %v626
  %v628 = vand.u32 %v50, 4294901760
  %629 = vmatpush.msra.mxu0 %v628
  %v630 = vand.u32 %v49, 4294901760
  %631 = vmatpush.msra.mxu0 %v630
  %v632 = vand.u32 %v48, 4294901760
  %633 = vmatpush.msra.mxu0 %v632
  %v634 = vand.u32 %v47, 4294901760
  %635 = vmatpush.msra.mxu0 %v634
  %v636 = vand.u32 %v46, 4294901760
  %637 = vmatpush.msra.mxu0 %v636
  %v638 = vand.u32 %v45, 4294901760
  %639 = vmatpush.msra.mxu0 %v638
  %v640 = vand.u32 %v44, 4294901760
  %641 = vmatpush.msra.mxu0 %v640
  %v642 = vand.u32 %v43, 4294901760
  %643 = vmatpush.msra.mxu0 %v642
  %v644 = vand.u32 %v42, 4294901760
  %645 = vmatpush.msra.mxu0 %v644
  %v646 = vand.u32 %v41, 4294901760
  %647 = vmatpush.msra.mxu0 %v646
  %v648 = vand.u32 %v40, 4294901760
  %649 = vmatpush.msra.mxu0 %v648
  %v650 = vand.u32 %v39, 4294901760
  %651 = vmatpush.msra.mxu0 %v650
  %v652 = vand.u32 %v38, 4294901760
  %653 = vmatpush.msra.mxu0 %v652
  %v654 = vand.u32 %v14, 4294901760
  %v655 = vsub.f32 %v14, %v654
  %v656 = vand.u32 %v655, 4294901760
  %657 = vmatmul.f32.gmra.mxu0 %v656
  %v658 = vpop.f32.mrf.mxu0
  %v659 = vadd.f32 %v620, %v658
  %660 = vdwg.mxu0
  %v661 = vand.u32 %v53, 4294901760
  %v662 = vsub.f32 %v53, %v661
  %v663 = vand.u32 %v662, 4294901760
  %664 = vmatpush.msra.mxu0 %v663
  %v665 = vand.u32 %v52, 4294901760
  %v666 = vsub.f32 %v52, %v665
  %v667 = vand.u32 %v666, 4294901760
  %668 = vmatpush.msra.mxu0 %v667
  %v669 = vand.u32 %v51, 4294901760
  %v670 = vsub.f32 %v51, %v669
  %v671 = vand.u32 %v670, 4294901760
  %672 = vmatpush.msra.mxu0 %v671
  %v673 = vand.u32 %v50, 4294901760
  %v674 = vsub.f32 %v50, %v673
  %v675 = vand.u32 %v674, 4294901760
  %676 = vmatpush.msra.mxu0 %v675
  %v677 = vand.u32 %v49, 4294901760
  %v678 = vsub.f32 %v49, %v677
  %v679 = vand.u32 %v678, 4294901760
  %680 = vmatpush.msra.mxu0 %v679
  %v681 = vand.u32 %v48, 4294901760
  %v682 = vsub.f32 %v48, %v681
  %v683 = vand.u32 %v682, 4294901760
  %684 = vmatpush.msra.mxu0 %v683
  %v685 = vand.u32 %v47, 4294901760
  %v686 = vsub.f32 %v47, %v685
  %v687 = vand.u32 %v686, 4294901760
  %688 = vmatpush.msra.mxu0 %v687
  %v689 = vand.u32 %v46, 4294901760
  %v690 = vsub.f32 %v46, %v689
  %v691 = vand.u32 %v690, 4294901760
  %692 = vmatpush.msra.mxu0 %v691
  %v693 = vand.u32 %v45, 4294901760
  %v694 = vsub.f32 %v45, %v693
  %v695 = vand.u32 %v694, 4294901760
  %696 = vmatpush.msra.mxu0 %v695
  %v697 = vand.u32 %v44, 4294901760
  %v698 = vsub.f32 %v44, %v697
  %v699 = vand.u32 %v698, 4294901760
  %700 = vmatpush.msra.mxu0 %v699
  %v701 = vand.u32 %v43, 4294901760
  %v702 = vsub.f32 %v43, %v701
  %v703 = vand.u32 %v702, 4294901760
  %704 = vmatpush.msra.mxu0 %v703
  %v705 = vand.u32 %v42, 4294901760
  %v706 = vsub.f32 %v42, %v705
  %v707 = vand.u32 %v706, 4294901760
  %708 = vmatpush.msra.mxu0 %v707
  %v709 = vand.u32 %v41, 4294901760
  %v710 = vsub.f32 %v41, %v709
  %v711 = vand.u32 %v710, 4294901760
  %712 = vmatpush.msra.mxu0 %v711
  %v713 = vand.u32 %v40, 4294901760
  %v714 = vsub.f32 %v40, %v713
  %v715 = vand.u32 %v714, 4294901760
  %716 = vmatpush.msra.mxu0 %v715
  %v717 = vand.u32 %v39, 4294901760
  %v718 = vsub.f32 %v39, %v717
  %v719 = vand.u32 %v718, 4294901760
  %720 = vmatpush.msra.mxu0 %v719
  %v721 = vand.u32 %v38, 4294901760
  %v722 = vsub.f32 %v38, %v721
  %v723 = vand.u32 %v722, 4294901760
  %724 = vmatpush.msra.mxu0 %v723
  %v725 = vand.u32 %v14, 4294901760
  %726 = vmatmul.f32.gmra.mxu0 %v725
  %v727 = vpop.f32.mrf.mxu0
  %v728 = vadd.f32 %v659, %v727
  %729 = vdwg.mxu0
  %v730 = vand.u32 %v53, 4294901760
  %731 = vmatpush.msra.mxu0 %v730
  %v732 = vand.u32 %v52, 4294901760
  %733 = vmatpush.msra.mxu0 %v732
  %v734 = vand.u32 %v51, 4294901760
  %735 = vmatpush.msra.mxu0 %v734
  %v736 = vand.u32 %v50, 4294901760
  %737 = vmatpush.msra.mxu0 %v736
  %v738 = vand.u32 %v49, 4294901760
  %739 = vmatpush.msra.mxu0 %v738
  %v740 = vand.u32 %v48, 4294901760
  %741 = vmatpush.msra.mxu0 %v740
  %v742 = vand.u32 %v47, 4294901760
  %743 = vmatpush.msra.mxu0 %v742
  %v744 = vand.u32 %v46, 4294901760
  %745 = vmatpush.msra.mxu0 %v744
  %v746 = vand.u32 %v45, 4294901760
  %747 = vmatpush.msra.mxu0 %v746
  %v748 = vand.u32 %v44, 4294901760
  %749 = vmatpush.msra.mxu0 %v748
  %v750 = vand.u32 %v43, 4294901760
  %751 = vmatpush.msra.mxu0 %v750
  %v752 = vand.u32 %v42, 4294901760
  %753 = vmatpush.msra.mxu0 %v752
  %v754 = vand.u32 %v41, 4294901760
  %755 = vmatpush.msra.mxu0 %v754
  %v756 = vand.u32 %v40, 4294901760
  %757 = vmatpush.msra.mxu0 %v756
  %v758 = vand.u32 %v39, 4294901760
  %759 = vmatpush.msra.mxu0 %v758
  %v760 = vand.u32 %v38, 4294901760
  %761 = vmatpush.msra.mxu0 %v760
  %v762 = vand.u32 %v14, 4294901760
  %763 = vmatmul.f32.gmra.mxu0 %v762
  %v764 = vpop.f32.mrf.mxu0
  %v765 = vadd.f32 %v728, %v764
  %766 = vdwg.mxu0
  %v767 = vand.u32 %v69, 4294901760
  %768 = vmatpush.msra.mxu0 %v767
  %v769 = vand.u32 %v68, 4294901760
  %770 = vmatpush.msra.mxu0 %v769
  %v771 = vand.u32 %v67, 4294901760
  %772 = vmatpush.msra.mxu0 %v771
  %v773 = vand.u32 %v66, 4294901760
  %774 = vmatpush.msra.mxu0 %v773
  %v775 = vand.u32 %v65, 4294901760
  %776 = vmatpush.msra.mxu0 %v775
  %v777 = vand.u32 %v64, 4294901760
  %778 = vmatpush.msra.mxu0 %v777
  %v779 = vand.u32 %v63, 4294901760
  %780 = vmatpush.msra.mxu0 %v779
  %v781 = vand.u32 %v62, 4294901760
  %782 = vmatpush.msra.mxu0 %v781
  %v783 = vand.u32 %v61, 4294901760
  %784 = vmatpush.msra.mxu0 %v783
  %v785 = vand.u32 %v60, 4294901760
  %786 = vmatpush.msra.mxu0 %v785
  %v787 = vand.u32 %v59, 4294901760
  %788 = vmatpush.msra.mxu0 %v787
  %v789 = vand.u32 %v58, 4294901760
  %790 = vmatpush.msra.mxu0 %v789
  %v791 = vand.u32 %v57, 4294901760
  %792 = vmatpush.msra.mxu0 %v791
  %v793 = vand.u32 %v56, 4294901760
  %794 = vmatpush.msra.mxu0 %v793
  %v795 = vand.u32 %v55, 4294901760
  %796 = vmatpush.msra.mxu0 %v795
  %v797 = vand.u32 %v54, 4294901760
  %798 = vmatpush.msra.mxu0 %v797
  %v799 = vand.u32 %v15, 4294901760
  %v800 = vsub.f32 %v15, %v799
  %v801 = vand.u32 %v800, 4294901760
  %v802 = vsub.f32 %v800, %v801
  %v803 = vand.u32 %v802, 4294901760
  %804 = vmatmul.f32.gmra.mxu0 %v803
  %v805 = vpop.f32.mrf.mxu0
  %v806 = vadd.f32 %v765, %v805
  %807 = vdwg.mxu0
  %v808 = vand.u32 %v69, 4294901760
  %v809 = vsub.f32 %v69, %v808
  %v810 = vand.u32 %v809, 4294901760
  %v811 = vsub.f32 %v809, %v810
  %v812 = vand.u32 %v811, 4294901760
  %813 = vmatpush.msra.mxu0 %v812
  %v814 = vand.u32 %v68, 4294901760
  %v815 = vsub.f32 %v68, %v814
  %v816 = vand.u32 %v815, 4294901760
  %v817 = vsub.f32 %v815, %v816
  %v818 = vand.u32 %v817, 4294901760
  %819 = vmatpush.msra.mxu0 %v818
  %v820 = vand.u32 %v67, 4294901760
  %v821 = vsub.f32 %v67, %v820
  %v822 = vand.u32 %v821, 4294901760
  %v823 = vsub.f32 %v821, %v822
  %v824 = vand.u32 %v823, 4294901760
  %825 = vmatpush.msra.mxu0 %v824
  %v826 = vand.u32 %v66, 4294901760
  %v827 = vsub.f32 %v66, %v826
  %v828 = vand.u32 %v827, 4294901760
  %v829 = vsub.f32 %v827, %v828
  %v830 = vand.u32 %v829, 4294901760
  %831 = vmatpush.msra.mxu0 %v830
  %v832 = vand.u32 %v65, 4294901760
  %v833 = vsub.f32 %v65, %v832
  %v834 = vand.u32 %v833, 4294901760
  %v835 = vsub.f32 %v833, %v834
  %v836 = vand.u32 %v835, 4294901760
  %837 = vmatpush.msra.mxu0 %v836
  %v838 = vand.u32 %v64, 4294901760
  %v839 = vsub.f32 %v64, %v838
  %v840 = vand.u32 %v839, 4294901760
  %v841 = vsub.f32 %v839, %v840
  %v842 = vand.u32 %v841, 4294901760
  %843 = vmatpush.msra.mxu0 %v842
  %v844 = vand.u32 %v63, 4294901760
  %v845 = vsub.f32 %v63, %v844
  %v846 = vand.u32 %v845, 4294901760
  %v847 = vsub.f32 %v845, %v846
  %v848 = vand.u32 %v847, 4294901760
  %849 = vmatpush.msra.mxu0 %v848
  %v850 = vand.u32 %v62, 4294901760
  %v851 = vsub.f32 %v62, %v850
  %v852 = vand.u32 %v851, 4294901760
  %v853 = vsub.f32 %v851, %v852
  %v854 = vand.u32 %v853, 4294901760
  %855 = vmatpush.msra.mxu0 %v854
  %v856 = vand.u32 %v61, 4294901760
  %v857 = vsub.f32 %v61, %v856
  %v858 = vand.u32 %v857, 4294901760
  %v859 = vsub.f32 %v857, %v858
  %v860 = vand.u32 %v859, 4294901760
  %861 = vmatpush.msra.mxu0 %v860
  %v862 = vand.u32 %v60, 4294901760
  %v863 = vsub.f32 %v60, %v862
  %v864 = vand.u32 %v863, 4294901760
  %v865 = vsub.f32 %v863, %v864
  %v866 = vand.u32 %v865, 4294901760
  %867 = vmatpush.msra.mxu0 %v866
  %v868 = vand.u32 %v59, 4294901760
  %v869 = vsub.f32 %v59, %v868
  %v870 = vand.u32 %v869, 4294901760
  %v871 = vsub.f32 %v869, %v870
  %v872 = vand.u32 %v871, 4294901760
  %873 = vmatpush.msra.mxu0 %v872
  %v874 = vand.u32 %v58, 4294901760
  %v875 = vsub.f32 %v58, %v874
  %v876 = vand.u32 %v875, 4294901760
  %v877 = vsub.f32 %v875, %v876
  %v878 = vand.u32 %v877, 4294901760
  %879 = vmatpush.msra.mxu0 %v878
  %v880 = vand.u32 %v57, 4294901760
  %v881 = vsub.f32 %v57, %v880
  %v882 = vand.u32 %v881, 4294901760
  %v883 = vsub.f32 %v881, %v882
  %v884 = vand.u32 %v883, 4294901760
  %885 = vmatpush.msra.mxu0 %v884
  %v886 = vand.u32 %v56, 4294901760
  %v887 = vsub.f32 %v56, %v886
  %v888 = vand.u32 %v887, 4294901760
  %v889 = vsub.f32 %v887, %v888
  %v890 = vand.u32 %v889, 4294901760
  %891 = vmatpush.msra.mxu0 %v890
  %v892 = vand.u32 %v55, 4294901760
  %v893 = vsub.f32 %v55, %v892
  %v894 = vand.u32 %v893, 4294901760
  %v895 = vsub.f32 %v893, %v894
  %v896 = vand.u32 %v895, 4294901760
  %897 = vmatpush.msra.mxu0 %v896
  %v898 = vand.u32 %v54, 4294901760
  %v899 = vsub.f32 %v54, %v898
  %v900 = vand.u32 %v899, 4294901760
  %v901 = vsub.f32 %v899, %v900
  %v902 = vand.u32 %v901, 4294901760
  %903 = vmatpush.msra.mxu0 %v902
  %v904 = vand.u32 %v15, 4294901760
  %905 = vmatmul.f32.gmra.mxu0 %v904
  %v906 = vpop.f32.mrf.mxu0
  %v907 = vadd.f32 %v806, %v906
  %908 = vdwg.mxu0
  %v909 = vand.u32 %v69, 4294901760
  %v910 = vsub.f32 %v69, %v909
  %911 = vmatpush.msra.mxu0 %v910
  %v912 = vand.u32 %v68, 4294901760
  %v913 = vsub.f32 %v68, %v912
  %914 = vmatpush.msra.mxu0 %v913
  %v915 = vand.u32 %v67, 4294901760
  %v916 = vsub.f32 %v67, %v915
  %917 = vmatpush.msra.mxu0 %v916
  %v918 = vand.u32 %v66, 4294901760
  %v919 = vsub.f32 %v66, %v918
  %920 = vmatpush.msra.mxu0 %v919
  %v921 = vand.u32 %v65, 4294901760
  %v922 = vsub.f32 %v65, %v921
  %923 = vmatpush.msra.mxu0 %v922
  %v924 = vand.u32 %v64, 4294901760
  %v925 = vsub.f32 %v64, %v924
  %926 = vmatpush.msra.mxu0 %v925
  %v927 = vand.u32 %v63, 4294901760
  %v928 = vsub.f32 %v63, %v927
  %929 = vmatpush.msra.mxu0 %v928
  %v930 = vand.u32 %v62, 4294901760
  %v931 = vsub.f32 %v62, %v930
  %932 = vmatpush.msra.mxu0 %v931
  %v933 = vand.u32 %v61, 4294901760
  %v934 = vsub.f32 %v61, %v933
  %935 = vmatpush.msra.mxu0 %v934
  %v936 = vand.u32 %v60, 4294901760
  %v937 = vsub.f32 %v60, %v936
  %938 = vmatpush.msra.mxu0 %v937
  %v939 = vand.u32 %v59, 4294901760
  %v940 = vsub.f32 %v59, %v939
  %941 = vmatpush.msra.mxu0 %v940
  %v942 = vand.u32 %v58, 4294901760
  %v943 = vsub.f32 %v58, %v942
  %944 = vmatpush.msra.mxu0 %v943
  %v945 = vand.u32 %v57, 4294901760
  %v946 = vsub.f32 %v57, %v945
  %947 = vmatpush.msra.mxu0 %v946
  %v948 = vand.u32 %v56, 4294901760
  %v949 = vsub.f32 %v56, %v948
  %950 = vmatpush.msra.mxu0 %v949
  %v951 = vand.u32 %v55, 4294901760
  %v952 = vsub.f32 %v55, %v951
  %953 = vmatpush.msra.mxu0 %v952
  %v954 = vand.u32 %v54, 4294901760
  %v955 = vsub.f32 %v54, %v954
  %956 = vmatpush.msra.mxu0 %v955
  %v957 = vand.u32 %v15, 4294901760
  %v958 = vsub.f32 %v15, %v957
  %959 = vmatmul.f32.gmra.mxu0 %v958
  %v960 = vpop.f32.mrf.mxu0
  %v961 = vadd.f32 %v907, %v960
  %962 = vdwg.mxu0
  %v963 = vand.u32 %v69, 4294901760
  %964 = vmatpush.msra.mxu0 %v963
  %v965 = vand.u32 %v68, 4294901760
  %966 = vmatpush.msra.mxu0 %v965
  %v967 = vand.u32 %v67, 4294901760
  %968 = vmatpush.msra.mxu0 %v967
  %v969 = vand.u32 %v66, 4294901760
  %970 = vmatpush.msra.mxu0 %v969
  %v971 = vand.u32 %v65, 4294901760
  %972 = vmatpush.msra.mxu0 %v971
  %v973 = vand.u32 %v64, 4294901760
  %974 = vmatpush.msra.mxu0 %v973
  %v975 = vand.u32 %v63, 4294901760
  %976 = vmatpush.msra.mxu0 %v975
  %v977 = vand.u32 %v62, 4294901760
  %978 = vmatpush.msra.mxu0 %v977
  %v979 = vand.u32 %v61, 4294901760
  %980 = vmatpush.msra.mxu0 %v979
  %v981 = vand.u32 %v60, 4294901760
  %982 = vmatpush.msra.mxu0 %v981
  %v983 = vand.u32 %v59, 4294901760
  %984 = vmatpush.msra.mxu0 %v983
  %v985 = vand.u32 %v58, 4294901760
  %986 = vmatpush.msra.mxu0 %v985
  %v987 = vand.u32 %v57, 4294901760
  %988 = vmatpush.msra.mxu0 %v987
  %v989 = vand.u32 %v56, 4294901760
  %990 = vmatpush.msra.mxu0 %v989
  %v991 = vand.u32 %v55, 4294901760
  %992 = vmatpush.msra.mxu0 %v991
  %v993 = vand.u32 %v54, 4294901760
  %994 = vmatpush.msra.mxu0 %v993
  %v995 = vand.u32 %v15, 4294901760
  %v996 = vsub.f32 %v15, %v995
  %v997 = vand.u32 %v996, 4294901760
  %998 = vmatmul.f32.gmra.mxu0 %v997
  %v999 = vpop.f32.mrf.mxu0
  %v1000 = vadd.f32 %v961, %v999
  %1001 = vdwg.mxu0
  %v1002 = vand.u32 %v69, 4294901760
  %v1003 = vsub.f32 %v69, %v1002
  %v1004 = vand.u32 %v1003, 4294901760
  %1005 = vmatpush.msra.mxu0 %v1004
  %v1006 = vand.u32 %v68, 4294901760
  %v1007 = vsub.f32 %v68, %v1006
  %v1008 = vand.u32 %v1007, 4294901760
  %1009 = vmatpush.msra.mxu0 %v1008
  %v1010 = vand.u32 %v67, 4294901760
  %v1011 = vsub.f32 %v67, %v1010
  %v1012 = vand.u32 %v1011, 4294901760
  %1013 = vmatpush.msra.mxu0 %v1012
  %v1014 = vand.u32 %v66, 4294901760
  %v1015 = vsub.f32 %v66, %v1014
  %v1016 = vand.u32 %v1015, 4294901760
  %1017 = vmatpush.msra.mxu0 %v1016
  %v1018 = vand.u32 %v65, 4294901760
  %v1019 = vsub.f32 %v65, %v1018
  %v1020 = vand.u32 %v1019, 4294901760
  %1021 = vmatpush.msra.mxu0 %v1020
  %v1022 = vand.u32 %v64, 4294901760
  %v1023 = vsub.f32 %v64, %v1022
  %v1024 = vand.u32 %v1023, 4294901760
  %1025 = vmatpush.msra.mxu0 %v1024
  %v1026 = vand.u32 %v63, 4294901760
  %v1027 = vsub.f32 %v63, %v1026
  %v1028 = vand.u32 %v1027, 4294901760
  %1029 = vmatpush.msra.mxu0 %v1028
  %v1030 = vand.u32 %v62, 4294901760
  %v1031 = vsub.f32 %v62, %v1030
  %v1032 = vand.u32 %v1031, 4294901760
  %1033 = vmatpush.msra.mxu0 %v1032
  %v1034 = vand.u32 %v61, 4294901760
  %v1035 = vsub.f32 %v61, %v1034
  %v1036 = vand.u32 %v1035, 4294901760
  %1037 = vmatpush.msra.mxu0 %v1036
  %v1038 = vand.u32 %v60, 4294901760
  %v1039 = vsub.f32 %v60, %v1038
  %v1040 = vand.u32 %v1039, 4294901760
  %1041 = vmatpush.msra.mxu0 %v1040
  %v1042 = vand.u32 %v59, 4294901760
  %v1043 = vsub.f32 %v59, %v1042
  %v1044 = vand.u32 %v1043, 4294901760
  %1045 = vmatpush.msra.mxu0 %v1044
  %v1046 = vand.u32 %v58, 4294901760
  %v1047 = vsub.f32 %v58, %v1046
  %v1048 = vand.u32 %v1047, 4294901760
  %1049 = vmatpush.msra.mxu0 %v1048
  %v1050 = vand.u32 %v57, 4294901760
  %v1051 = vsub.f32 %v57, %v1050
  %v1052 = vand.u32 %v1051, 4294901760
  %1053 = vmatpush.msra.mxu0 %v1052
  %v1054 = vand.u32 %v56, 4294901760
  %v1055 = vsub.f32 %v56, %v1054
  %v1056 = vand.u32 %v1055, 4294901760
  %1057 = vmatpush.msra.mxu0 %v1056
  %v1058 = vand.u32 %v55, 4294901760
  %v1059 = vsub.f32 %v55, %v1058
  %v1060 = vand.u32 %v1059, 4294901760
  %1061 = vmatpush.msra.mxu0 %v1060
  %v1062 = vand.u32 %v54, 4294901760
  %v1063 = vsub.f32 %v54, %v1062
  %v1064 = vand.u32 %v1063, 4294901760
  %1065 = vmatpush.msra.mxu0 %v1064
  %v1066 = vand.u32 %v15, 4294901760
  %1067 = vmatmul.f32.gmra.mxu0 %v1066
  %v1068 = vpop.f32.mrf.mxu0
  %v1069 = vadd.f32 %v1000, %v1068
  %1070 = vdwg.mxu0
  %v1071 = vand.u32 %v69, 4294901760
  %1072 = vmatpush.msra.mxu0 %v1071
  %v1073 = vand.u32 %v68, 4294901760
  %1074 = vmatpush.msra.mxu0 %v1073
  %v1075 = vand.u32 %v67, 4294901760
  %1076 = vmatpush.msra.mxu0 %v1075
  %v1077 = vand.u32 %v66, 4294901760
  %1078 = vmatpush.msra.mxu0 %v1077
  %v1079 = vand.u32 %v65, 4294901760
  %1080 = vmatpush.msra.mxu0 %v1079
  %v1081 = vand.u32 %v64, 4294901760
  %1082 = vmatpush.msra.mxu0 %v1081
  %v1083 = vand.u32 %v63, 4294901760
  %1084 = vmatpush.msra.mxu0 %v1083
  %v1085 = vand.u32 %v62, 4294901760
  %1086 = vmatpush.msra.mxu0 %v1085
  %v1087 = vand.u32 %v61, 4294901760
  %1088 = vmatpush.msra.mxu0 %v1087
  %v1089 = vand.u32 %v60, 4294901760
  %1090 = vmatpush.msra.mxu0 %v1089
  %v1091 = vand.u32 %v59, 4294901760
  %1092 = vmatpush.msra.mxu0 %v1091
  %v1093 = vand.u32 %v58, 4294901760
  %1094 = vmatpush.msra.mxu0 %v1093
  %v1095 = vand.u32 %v57, 4294901760
  %1096 = vmatpush.msra.mxu0 %v1095
  %v1097 = vand.u32 %v56, 4294901760
  %1098 = vmatpush.msra.mxu0 %v1097
  %v1099 = vand.u32 %v55, 4294901760
  %1100 = vmatpush.msra.mxu0 %v1099
  %v1101 = vand.u32 %v54, 4294901760
  %1102 = vmatpush.msra.mxu0 %v1101
  %v1103 = vand.u32 %v15, 4294901760
  %1104 = vmatmul.f32.gmra.mxu0 %v1103
  %v1105 = vpop.f32.mrf.mxu0
  %v1106 = vadd.f32 %v1069, %v1105
  %1107 = vdwg.mxu0
  %v1108 = vand.u32 %v85, 4294901760
  %1109 = vmatpush.msra.mxu0 %v1108
  %v1110 = vand.u32 %v84, 4294901760
  %1111 = vmatpush.msra.mxu0 %v1110
  %v1112 = vand.u32 %v83, 4294901760
  %1113 = vmatpush.msra.mxu0 %v1112
  %v1114 = vand.u32 %v82, 4294901760
  %1115 = vmatpush.msra.mxu0 %v1114
  %v1116 = vand.u32 %v81, 4294901760
  %1117 = vmatpush.msra.mxu0 %v1116
  %v1118 = vand.u32 %v80, 4294901760
  %1119 = vmatpush.msra.mxu0 %v1118
  %v1120 = vand.u32 %v79, 4294901760
  %1121 = vmatpush.msra.mxu0 %v1120
  %v1122 = vand.u32 %v78, 4294901760
  %1123 = vmatpush.msra.mxu0 %v1122
  %v1124 = vand.u32 %v77, 4294901760
  %1125 = vmatpush.msra.mxu0 %v1124
  %v1126 = vand.u32 %v76, 4294901760
  %1127 = vmatpush.msra.mxu0 %v1126
  %v1128 = vand.u32 %v75, 4294901760
  %1129 = vmatpush.msra.mxu0 %v1128
  %v1130 = vand.u32 %v74, 4294901760
  %1131 = vmatpush.msra.mxu0 %v1130
  %v1132 = vand.u32 %v73, 4294901760
  %1133 = vmatpush.msra.mxu0 %v1132
  %v1134 = vand.u32 %v72, 4294901760
  %1135 = vmatpush.msra.mxu0 %v1134
  %v1136 = vand.u32 %v71, 4294901760
  %1137 = vmatpush.msra.mxu0 %v1136
  %v1138 = vand.u32 %v70, 4294901760
  %1139 = vmatpush.msra.mxu0 %v1138
  %v1140 = vand.u32 %v16, 4294901760
  %v1141 = vsub.f32 %v16, %v1140
  %v1142 = vand.u32 %v1141, 4294901760
  %v1143 = vsub.f32 %v1141, %v1142
  %v1144 = vand.u32 %v1143, 4294901760
  %1145 = vmatmul.f32.gmra.mxu0 %v1144
  %v1146 = vpop.f32.mrf.mxu0
  %v1147 = vadd.f32 %v1106, %v1146
  %1148 = vdwg.mxu0
  %v1149 = vand.u32 %v85, 4294901760
  %v1150 = vsub.f32 %v85, %v1149
  %v1151 = vand.u32 %v1150, 4294901760
  %v1152 = vsub.f32 %v1150, %v1151
  %v1153 = vand.u32 %v1152, 4294901760
  %1154 = vmatpush.msra.mxu0 %v1153
  %v1155 = vand.u32 %v84, 4294901760
  %v1156 = vsub.f32 %v84, %v1155
  %v1157 = vand.u32 %v1156, 4294901760
  %v1158 = vsub.f32 %v1156, %v1157
  %v1159 = vand.u32 %v1158, 4294901760
  %1160 = vmatpush.msra.mxu0 %v1159
  %v1161 = vand.u32 %v83, 4294901760
  %v1162 = vsub.f32 %v83, %v1161
  %v1163 = vand.u32 %v1162, 4294901760
  %v1164 = vsub.f32 %v1162, %v1163
  %v1165 = vand.u32 %v1164, 4294901760
  %1166 = vmatpush.msra.mxu0 %v1165
  %v1167 = vand.u32 %v82, 4294901760
  %v1168 = vsub.f32 %v82, %v1167
  %v1169 = vand.u32 %v1168, 4294901760
  %v1170 = vsub.f32 %v1168, %v1169
  %v1171 = vand.u32 %v1170, 4294901760
  %1172 = vmatpush.msra.mxu0 %v1171
  %v1173 = vand.u32 %v81, 4294901760
  %v1174 = vsub.f32 %v81, %v1173
  %v1175 = vand.u32 %v1174, 4294901760
  %v1176 = vsub.f32 %v1174, %v1175
  %v1177 = vand.u32 %v1176, 4294901760
  %1178 = vmatpush.msra.mxu0 %v1177
  %v1179 = vand.u32 %v80, 4294901760
  %v1180 = vsub.f32 %v80, %v1179
  %v1181 = vand.u32 %v1180, 4294901760
  %v1182 = vsub.f32 %v1180, %v1181
  %v1183 = vand.u32 %v1182, 4294901760
  %1184 = vmatpush.msra.mxu0 %v1183
  %v1185 = vand.u32 %v79, 4294901760
  %v1186 = vsub.f32 %v79, %v1185
  %v1187 = vand.u32 %v1186, 4294901760
  %v1188 = vsub.f32 %v1186, %v1187
  %v1189 = vand.u32 %v1188, 4294901760
  %1190 = vmatpush.msra.mxu0 %v1189
  %v1191 = vand.u32 %v78, 4294901760
  %v1192 = vsub.f32 %v78, %v1191
  %v1193 = vand.u32 %v1192, 4294901760
  %v1194 = vsub.f32 %v1192, %v1193
  %v1195 = vand.u32 %v1194, 4294901760
  %1196 = vmatpush.msra.mxu0 %v1195
  %v1197 = vand.u32 %v77, 4294901760
  %v1198 = vsub.f32 %v77, %v1197
  %v1199 = vand.u32 %v1198, 4294901760
  %v1200 = vsub.f32 %v1198, %v1199
  %v1201 = vand.u32 %v1200, 4294901760
  %1202 = vmatpush.msra.mxu0 %v1201
  %v1203 = vand.u32 %v76, 4294901760
  %v1204 = vsub.f32 %v76, %v1203
  %v1205 = vand.u32 %v1204, 4294901760
  %v1206 = vsub.f32 %v1204, %v1205
  %v1207 = vand.u32 %v1206, 4294901760
  %1208 = vmatpush.msra.mxu0 %v1207
  %v1209 = vand.u32 %v75, 4294901760
  %v1210 = vsub.f32 %v75, %v1209
  %v1211 = vand.u32 %v1210, 4294901760
  %v1212 = vsub.f32 %v1210, %v1211
  %v1213 = vand.u32 %v1212, 4294901760
  %1214 = vmatpush.msra.mxu0 %v1213
  %v1215 = vand.u32 %v74, 4294901760
  %v1216 = vsub.f32 %v74, %v1215
  %v1217 = vand.u32 %v1216, 4294901760
  %v1218 = vsub.f32 %v1216, %v1217
  %v1219 = vand.u32 %v1218, 4294901760
  %1220 = vmatpush.msra.mxu0 %v1219
  %v1221 = vand.u32 %v73, 4294901760
  %v1222 = vsub.f32 %v73, %v1221
  %v1223 = vand.u32 %v1222, 4294901760
  %v1224 = vsub.f32 %v1222, %v1223
  %v1225 = vand.u32 %v1224, 4294901760
  %1226 = vmatpush.msra.mxu0 %v1225
  %v1227 = vand.u32 %v72, 4294901760
  %v1228 = vsub.f32 %v72, %v1227
  %v1229 = vand.u32 %v1228, 4294901760
  %v1230 = vsub.f32 %v1228, %v1229
  %v1231 = vand.u32 %v1230, 4294901760
  %1232 = vmatpush.msra.mxu0 %v1231
  %v1233 = vand.u32 %v71, 4294901760
  %v1234 = vsub.f32 %v71, %v1233
  %v1235 = vand.u32 %v1234, 4294901760
  %v1236 = vsub.f32 %v1234, %v1235
  %v1237 = vand.u32 %v1236, 4294901760
  %1238 = vmatpush.msra.mxu0 %v1237
  %v1239 = vand.u32 %v70, 4294901760
  %v1240 = vsub.f32 %v70, %v1239
  %v1241 = vand.u32 %v1240, 4294901760
  %v1242 = vsub.f32 %v1240, %v1241
  %v1243 = vand.u32 %v1242, 4294901760
  %1244 = vmatpush.msra.mxu0 %v1243
  %v1245 = vand.u32 %v16, 4294901760
  %1246 = vmatmul.f32.gmra.mxu0 %v1245
  %v1247 = vpop.f32.mrf.mxu0
  %v1248 = vadd.f32 %v1147, %v1247
  %1249 = vdwg.mxu0
  %v1250 = vand.u32 %v85, 4294901760
  %v1251 = vsub.f32 %v85, %v1250
  %1252 = vmatpush.msra.mxu0 %v1251
  %v1253 = vand.u32 %v84, 4294901760
  %v1254 = vsub.f32 %v84, %v1253
  %1255 = vmatpush.msra.mxu0 %v1254
  %v1256 = vand.u32 %v83, 4294901760
  %v1257 = vsub.f32 %v83, %v1256
  %1258 = vmatpush.msra.mxu0 %v1257
  %v1259 = vand.u32 %v82, 4294901760
  %v1260 = vsub.f32 %v82, %v1259
  %1261 = vmatpush.msra.mxu0 %v1260
  %v1262 = vand.u32 %v81, 4294901760
  %v1263 = vsub.f32 %v81, %v1262
  %1264 = vmatpush.msra.mxu0 %v1263
  %v1265 = vand.u32 %v80, 4294901760
  %v1266 = vsub.f32 %v80, %v1265
  %1267 = vmatpush.msra.mxu0 %v1266
  %v1268 = vand.u32 %v79, 4294901760
  %v1269 = vsub.f32 %v79, %v1268
  %1270 = vmatpush.msra.mxu0 %v1269
  %v1271 = vand.u32 %v78, 4294901760
  %v1272 = vsub.f32 %v78, %v1271
  %1273 = vmatpush.msra.mxu0 %v1272
  %v1274 = vand.u32 %v77, 4294901760
  %v1275 = vsub.f32 %v77, %v1274
  %1276 = vmatpush.msra.mxu0 %v1275
  %v1277 = vand.u32 %v76, 4294901760
  %v1278 = vsub.f32 %v76, %v1277
  %1279 = vmatpush.msra.mxu0 %v1278
  %v1280 = vand.u32 %v75, 4294901760
  %v1281 = vsub.f32 %v75, %v1280
  %1282 = vmatpush.msra.mxu0 %v1281
  %v1283 = vand.u32 %v74, 4294901760
  %v1284 = vsub.f32 %v74, %v1283
  %1285 = vmatpush.msra.mxu0 %v1284
  %v1286 = vand.u32 %v73, 4294901760
  %v1287 = vsub.f32 %v73, %v1286
  %1288 = vmatpush.msra.mxu0 %v1287
  %v1289 = vand.u32 %v72, 4294901760
  %v1290 = vsub.f32 %v72, %v1289
  %1291 = vmatpush.msra.mxu0 %v1290
  %v1292 = vand.u32 %v71, 4294901760
  %v1293 = vsub.f32 %v71, %v1292
  %1294 = vmatpush.msra.mxu0 %v1293
  %v1295 = vand.u32 %v70, 4294901760
  %v1296 = vsub.f32 %v70, %v1295
  %1297 = vmatpush.msra.mxu0 %v1296
  %v1298 = vand.u32 %v16, 4294901760
  %v1299 = vsub.f32 %v16, %v1298
  %1300 = vmatmul.f32.gmra.mxu0 %v1299
  %v1301 = vpop.f32.mrf.mxu0
  %v1302 = vadd.f32 %v1248, %v1301
  %1303 = vdwg.mxu0
  %v1304 = vand.u32 %v85, 4294901760
  %1305 = vmatpush.msra.mxu0 %v1304
  %v1306 = vand.u32 %v84, 4294901760
  %1307 = vmatpush.msra.mxu0 %v1306
  %v1308 = vand.u32 %v83, 4294901760
  %1309 = vmatpush.msra.mxu0 %v1308
  %v1310 = vand.u32 %v82, 4294901760
  %1311 = vmatpush.msra.mxu0 %v1310
  %v1312 = vand.u32 %v81, 4294901760
  %1313 = vmatpush.msra.mxu0 %v1312
  %v1314 = vand.u32 %v80, 4294901760
  %1315 = vmatpush.msra.mxu0 %v1314
  %v1316 = vand.u32 %v79, 4294901760
  %1317 = vmatpush.msra.mxu0 %v1316
  %v1318 = vand.u32 %v78, 4294901760
  %1319 = vmatpush.msra.mxu0 %v1318
  %v1320 = vand.u32 %v77, 4294901760
  %1321 = vmatpush.msra.mxu0 %v1320
  %v1322 = vand.u32 %v76, 4294901760
  %1323 = vmatpush.msra.mxu0 %v1322
  %v1324 = vand.u32 %v75, 4294901760
  %1325 = vmatpush.msra.mxu0 %v1324
  %v1326 = vand.u32 %v74, 4294901760
  %1327 = vmatpush.msra.mxu0 %v1326
  %v1328 = vand.u32 %v73, 4294901760
  %1329 = vmatpush.msra.mxu0 %v1328
  %v1330 = vand.u32 %v72, 4294901760
  %1331 = vmatpush.msra.mxu0 %v1330
  %v1332 = vand.u32 %v71, 4294901760
  %1333 = vmatpush.msra.mxu0 %v1332
  %v1334 = vand.u32 %v70, 4294901760
  %1335 = vmatpush.msra.mxu0 %v1334
  %v1336 = vand.u32 %v16, 4294901760
  %v1337 = vsub.f32 %v16, %v1336
  %v1338 = vand.u32 %v1337, 4294901760
  %1339 = vmatmul.f32.gmra.mxu0 %v1338
  %v1340 = vpop.f32.mrf.mxu0
  %v1341 = vadd.f32 %v1302, %v1340
  %1342 = vdwg.mxu0
  %v1343 = vand.u32 %v85, 4294901760
  %v1344 = vsub.f32 %v85, %v1343
  %v1345 = vand.u32 %v1344, 4294901760
  %1346 = vmatpush.msra.mxu0 %v1345
  %v1347 = vand.u32 %v84, 4294901760
  %v1348 = vsub.f32 %v84, %v1347
  %v1349 = vand.u32 %v1348, 4294901760
  %1350 = vmatpush.msra.mxu0 %v1349
  %v1351 = vand.u32 %v83, 4294901760
  %v1352 = vsub.f32 %v83, %v1351
  %v1353 = vand.u32 %v1352, 4294901760
  %1354 = vmatpush.msra.mxu0 %v1353
  %v1355 = vand.u32 %v82, 4294901760
  %v1356 = vsub.f32 %v82, %v1355
  %v1357 = vand.u32 %v1356, 4294901760
  %1358 = vmatpush.msra.mxu0 %v1357
  %v1359 = vand.u32 %v81, 4294901760
  %v1360 = vsub.f32 %v81, %v1359
  %v1361 = vand.u32 %v1360, 4294901760
  %1362 = vmatpush.msra.mxu0 %v1361
  %v1363 = vand.u32 %v80, 4294901760
  %v1364 = vsub.f32 %v80, %v1363
  %v1365 = vand.u32 %v1364, 4294901760
  %1366 = vmatpush.msra.mxu0 %v1365
  %v1367 = vand.u32 %v79, 4294901760
  %v1368 = vsub.f32 %v79, %v1367
  %v1369 = vand.u32 %v1368, 4294901760
  %1370 = vmatpush.msra.mxu0 %v1369
  %v1371 = vand.u32 %v78, 4294901760
  %v1372 = vsub.f32 %v78, %v1371
  %v1373 = vand.u32 %v1372, 4294901760
  %1374 = vmatpush.msra.mxu0 %v1373
  %v1375 = vand.u32 %v77, 4294901760
  %v1376 = vsub.f32 %v77, %v1375
  %v1377 = vand.u32 %v1376, 4294901760
  %1378 = vmatpush.msra.mxu0 %v1377
  %v1379 = vand.u32 %v76, 4294901760
  %v1380 = vsub.f32 %v76, %v1379
  %v1381 = vand.u32 %v1380, 4294901760
  %1382 = vmatpush.msra.mxu0 %v1381
  %v1383 = vand.u32 %v75, 4294901760
  %v1384 = vsub.f32 %v75, %v1383
  %v1385 = vand.u32 %v1384, 4294901760
  %1386 = vmatpush.msra.mxu0 %v1385
  %v1387 = vand.u32 %v74, 4294901760
  %v1388 = vsub.f32 %v74, %v1387
  %v1389 = vand.u32 %v1388, 4294901760
  %1390 = vmatpush.msra.mxu0 %v1389
  %v1391 = vand.u32 %v73, 4294901760
  %v1392 = vsub.f32 %v73, %v1391
  %v1393 = vand.u32 %v1392, 4294901760
  %1394 = vmatpush.msra.mxu0 %v1393
  %v1395 = vand.u32 %v72, 4294901760
  %v1396 = vsub.f32 %v72, %v1395
  %v1397 = vand.u32 %v1396, 4294901760
  %1398 = vmatpush.msra.mxu0 %v1397
  %v1399 = vand.u32 %v71, 4294901760
  %v1400 = vsub.f32 %v71, %v1399
  %v1401 = vand.u32 %v1400, 4294901760
  %1402 = vmatpush.msra.mxu0 %v1401
  %v1403 = vand.u32 %v70, 4294901760
  %v1404 = vsub.f32 %v70, %v1403
  %v1405 = vand.u32 %v1404, 4294901760
  %1406 = vmatpush.msra.mxu0 %v1405
  %v1407 = vand.u32 %v16, 4294901760
  %1408 = vmatmul.f32.gmra.mxu0 %v1407
  %v1409 = vpop.f32.mrf.mxu0
  %v1410 = vadd.f32 %v1341, %v1409
  %1411 = vdwg.mxu0
  %v1412 = vand.u32 %v85, 4294901760
  %1413 = vmatpush.msra.mxu0 %v1412
  %v1414 = vand.u32 %v84, 4294901760
  %1415 = vmatpush.msra.mxu0 %v1414
  %v1416 = vand.u32 %v83, 4294901760
  %1417 = vmatpush.msra.mxu0 %v1416
  %v1418 = vand.u32 %v82, 4294901760
  %1419 = vmatpush.msra.mxu0 %v1418
  %v1420 = vand.u32 %v81, 4294901760
  %1421 = vmatpush.msra.mxu0 %v1420
  %v1422 = vand.u32 %v80, 4294901760
  %1423 = vmatpush.msra.mxu0 %v1422
  %v1424 = vand.u32 %v79, 4294901760
  %1425 = vmatpush.msra.mxu0 %v1424
  %v1426 = vand.u32 %v78, 4294901760
  %1427 = vmatpush.msra.mxu0 %v1426
  %v1428 = vand.u32 %v77, 4294901760
  %1429 = vmatpush.msra.mxu0 %v1428
  %v1430 = vand.u32 %v76, 4294901760
  %1431 = vmatpush.msra.mxu0 %v1430
  %v1432 = vand.u32 %v75, 4294901760
  %1433 = vmatpush.msra.mxu0 %v1432
  %v1434 = vand.u32 %v74, 4294901760
  %1435 = vmatpush.msra.mxu0 %v1434
  %v1436 = vand.u32 %v73, 4294901760
  %1437 = vmatpush.msra.mxu0 %v1436
  %v1438 = vand.u32 %v72, 4294901760
  %1439 = vmatpush.msra.mxu0 %v1438
  %v1440 = vand.u32 %v71, 4294901760
  %1441 = vmatpush.msra.mxu0 %v1440
  %v1442 = vand.u32 %v70, 4294901760
  %1443 = vmatpush.msra.mxu0 %v1442
  %v1444 = vand.u32 %v16, 4294901760
  %1445 = vmatmul.f32.gmra.mxu0 %v1444
  %v1446 = vpop.f32.mrf.mxu0
  %v1447 = vadd.f32 %v1410, %v1446
  %1448 = vdwg.mxu0
  %v1449 = vand.u32 %v101, 4294901760
  %1450 = vmatpush.msra.mxu0 %v1449
  %v1451 = vand.u32 %v100, 4294901760
  %1452 = vmatpush.msra.mxu0 %v1451
  %v1453 = vand.u32 %v99, 4294901760
  %1454 = vmatpush.msra.mxu0 %v1453
  %v1455 = vand.u32 %v98, 4294901760
  %1456 = vmatpush.msra.mxu0 %v1455
  %v1457 = vand.u32 %v97, 4294901760
  %1458 = vmatpush.msra.mxu0 %v1457
  %v1459 = vand.u32 %v96, 4294901760
  %1460 = vmatpush.msra.mxu0 %v1459
  %v1461 = vand.u32 %v95, 4294901760
  %1462 = vmatpush.msra.mxu0 %v1461
  %v1463 = vand.u32 %v94, 4294901760
  %1464 = vmatpush.msra.mxu0 %v1463
  %v1465 = vand.u32 %v93, 4294901760
  %1466 = vmatpush.msra.mxu0 %v1465
  %v1467 = vand.u32 %v92, 4294901760
  %1468 = vmatpush.msra.mxu0 %v1467
  %v1469 = vand.u32 %v91, 4294901760
  %1470 = vmatpush.msra.mxu0 %v1469
  %v1471 = vand.u32 %v90, 4294901760
  %1472 = vmatpush.msra.mxu0 %v1471
  %v1473 = vand.u32 %v89, 4294901760
  %1474 = vmatpush.msra.mxu0 %v1473
  %v1475 = vand.u32 %v88, 4294901760
  %1476 = vmatpush.msra.mxu0 %v1475
  %v1477 = vand.u32 %v87, 4294901760
  %1478 = vmatpush.msra.mxu0 %v1477
  %v1479 = vand.u32 %v86, 4294901760
  %1480 = vmatpush.msra.mxu0 %v1479
  %v1481 = vand.u32 %v17, 4294901760
  %v1482 = vsub.f32 %v17, %v1481
  %v1483 = vand.u32 %v1482, 4294901760
  %v1484 = vsub.f32 %v1482, %v1483
  %v1485 = vand.u32 %v1484, 4294901760
  %1486 = vmatmul.f32.gmra.mxu0 %v1485
  %v1487 = vpop.f32.mrf.mxu0
  %v1488 = vadd.f32 %v1447, %v1487
  %1489 = vdwg.mxu0
  %v1490 = vand.u32 %v101, 4294901760
  %v1491 = vsub.f32 %v101, %v1490
  %v1492 = vand.u32 %v1491, 4294901760
  %v1493 = vsub.f32 %v1491, %v1492
  %v1494 = vand.u32 %v1493, 4294901760
  %1495 = vmatpush.msra.mxu0 %v1494
  %v1496 = vand.u32 %v100, 4294901760
  %v1497 = vsub.f32 %v100, %v1496
  %v1498 = vand.u32 %v1497, 4294901760
  %v1499 = vsub.f32 %v1497, %v1498
  %v1500 = vand.u32 %v1499, 4294901760
  %1501 = vmatpush.msra.mxu0 %v1500
  %v1502 = vand.u32 %v99, 4294901760
  %v1503 = vsub.f32 %v99, %v1502
  %v1504 = vand.u32 %v1503, 4294901760
  %v1505 = vsub.f32 %v1503, %v1504
  %v1506 = vand.u32 %v1505, 4294901760
  %1507 = vmatpush.msra.mxu0 %v1506
  %v1508 = vand.u32 %v98, 4294901760
  %v1509 = vsub.f32 %v98, %v1508
  %v1510 = vand.u32 %v1509, 4294901760
  %v1511 = vsub.f32 %v1509, %v1510
  %v1512 = vand.u32 %v1511, 4294901760
  %1513 = vmatpush.msra.mxu0 %v1512
  %v1514 = vand.u32 %v97, 4294901760
  %v1515 = vsub.f32 %v97, %v1514
  %v1516 = vand.u32 %v1515, 4294901760
  %v1517 = vsub.f32 %v1515, %v1516
  %v1518 = vand.u32 %v1517, 4294901760
  %1519 = vmatpush.msra.mxu0 %v1518
  %v1520 = vand.u32 %v96, 4294901760
  %v1521 = vsub.f32 %v96, %v1520
  %v1522 = vand.u32 %v1521, 4294901760
  %v1523 = vsub.f32 %v1521, %v1522
  %v1524 = vand.u32 %v1523, 4294901760
  %1525 = vmatpush.msra.mxu0 %v1524
  %v1526 = vand.u32 %v95, 4294901760
  %v1527 = vsub.f32 %v95, %v1526
  %v1528 = vand.u32 %v1527, 4294901760
  %v1529 = vsub.f32 %v1527, %v1528
  %v1530 = vand.u32 %v1529, 4294901760
  %1531 = vmatpush.msra.mxu0 %v1530
  %v1532 = vand.u32 %v94, 4294901760
  %v1533 = vsub.f32 %v94, %v1532
  %v1534 = vand.u32 %v1533, 4294901760
  %v1535 = vsub.f32 %v1533, %v1534
  %v1536 = vand.u32 %v1535, 4294901760
  %1537 = vmatpush.msra.mxu0 %v1536
  %v1538 = vand.u32 %v93, 4294901760
  %v1539 = vsub.f32 %v93, %v1538
  %v1540 = vand.u32 %v1539, 4294901760
  %v1541 = vsub.f32 %v1539, %v1540
  %v1542 = vand.u32 %v1541, 4294901760
  %1543 = vmatpush.msra.mxu0 %v1542
  %v1544 = vand.u32 %v92, 4294901760
  %v1545 = vsub.f32 %v92, %v1544
  %v1546 = vand.u32 %v1545, 4294901760
  %v1547 = vsub.f32 %v1545, %v1546
  %v1548 = vand.u32 %v1547, 4294901760
  %1549 = vmatpush.msra.mxu0 %v1548
  %v1550 = vand.u32 %v91, 4294901760
  %v1551 = vsub.f32 %v91, %v1550
  %v1552 = vand.u32 %v1551, 4294901760
  %v1553 = vsub.f32 %v1551, %v1552
  %v1554 = vand.u32 %v1553, 4294901760
  %1555 = vmatpush.msra.mxu0 %v1554
  %v1556 = vand.u32 %v90, 4294901760
  %v1557 = vsub.f32 %v90, %v1556
  %v1558 = vand.u32 %v1557, 4294901760
  %v1559 = vsub.f32 %v1557, %v1558
  %v1560 = vand.u32 %v1559, 4294901760
  %1561 = vmatpush.msra.mxu0 %v1560
  %v1562 = vand.u32 %v89, 4294901760
  %v1563 = vsub.f32 %v89, %v1562
  %v1564 = vand.u32 %v1563, 4294901760
  %v1565 = vsub.f32 %v1563, %v1564
  %v1566 = vand.u32 %v1565, 4294901760
  %1567 = vmatpush.msra.mxu0 %v1566
  %v1568 = vand.u32 %v88, 4294901760
  %v1569 = vsub.f32 %v88, %v1568
  %v1570 = vand.u32 %v1569, 4294901760
  %v1571 = vsub.f32 %v1569, %v1570
  %v1572 = vand.u32 %v1571, 4294901760
  %1573 = vmatpush.msra.mxu0 %v1572
  %v1574 = vand.u32 %v87, 4294901760
  %v1575 = vsub.f32 %v87, %v1574
  %v1576 = vand.u32 %v1575, 4294901760
  %v1577 = vsub.f32 %v1575, %v1576
  %v1578 = vand.u32 %v1577, 4294901760
  %1579 = vmatpush.msra.mxu0 %v1578
  %v1580 = vand.u32 %v86, 4294901760
  %v1581 = vsub.f32 %v86, %v1580
  %v1582 = vand.u32 %v1581, 4294901760
  %v1583 = vsub.f32 %v1581, %v1582
  %v1584 = vand.u32 %v1583, 4294901760
  %1585 = vmatpush.msra.mxu0 %v1584
  %v1586 = vand.u32 %v17, 4294901760
  %1587 = vmatmul.f32.gmra.mxu0 %v1586
  %v1588 = vpop.f32.mrf.mxu0
  %v1589 = vadd.f32 %v1488, %v1588
  %1590 = vdwg.mxu0
  %v1591 = vand.u32 %v101, 4294901760
  %v1592 = vsub.f32 %v101, %v1591
  %1593 = vmatpush.msra.mxu0 %v1592
  %v1594 = vand.u32 %v100, 4294901760
  %v1595 = vsub.f32 %v100, %v1594
  %1596 = vmatpush.msra.mxu0 %v1595
  %v1597 = vand.u32 %v99, 4294901760
  %v1598 = vsub.f32 %v99, %v1597
  %1599 = vmatpush.msra.mxu0 %v1598
  %v1600 = vand.u32 %v98, 4294901760
  %v1601 = vsub.f32 %v98, %v1600
  %1602 = vmatpush.msra.mxu0 %v1601
  %v1603 = vand.u32 %v97, 4294901760
  %v1604 = vsub.f32 %v97, %v1603
  %1605 = vmatpush.msra.mxu0 %v1604
  %v1606 = vand.u32 %v96, 4294901760
  %v1607 = vsub.f32 %v96, %v1606
  %1608 = vmatpush.msra.mxu0 %v1607
  %v1609 = vand.u32 %v95, 4294901760
  %v1610 = vsub.f32 %v95, %v1609
  %1611 = vmatpush.msra.mxu0 %v1610
  %v1612 = vand.u32 %v94, 4294901760
  %v1613 = vsub.f32 %v94, %v1612
  %1614 = vmatpush.msra.mxu0 %v1613
  %v1615 = vand.u32 %v93, 4294901760
  %v1616 = vsub.f32 %v93, %v1615
  %1617 = vmatpush.msra.mxu0 %v1616
  %v1618 = vand.u32 %v92, 4294901760
  %v1619 = vsub.f32 %v92, %v1618
  %1620 = vmatpush.msra.mxu0 %v1619
  %v1621 = vand.u32 %v91, 4294901760
  %v1622 = vsub.f32 %v91, %v1621
  %1623 = vmatpush.msra.mxu0 %v1622
  %v1624 = vand.u32 %v90, 4294901760
  %v1625 = vsub.f32 %v90, %v1624
  %1626 = vmatpush.msra.mxu0 %v1625
  %v1627 = vand.u32 %v89, 4294901760
  %v1628 = vsub.f32 %v89, %v1627
  %1629 = vmatpush.msra.mxu0 %v1628
  %v1630 = vand.u32 %v88, 4294901760
  %v1631 = vsub.f32 %v88, %v1630
  %1632 = vmatpush.msra.mxu0 %v1631
  %v1633 = vand.u32 %v87, 4294901760
  %v1634 = vsub.f32 %v87, %v1633
  %1635 = vmatpush.msra.mxu0 %v1634
  %v1636 = vand.u32 %v86, 4294901760
  %v1637 = vsub.f32 %v86, %v1636
  %1638 = vmatpush.msra.mxu0 %v1637
  %v1639 = vand.u32 %v17, 4294901760
  %v1640 = vsub.f32 %v17, %v1639
  %1641 = vmatmul.f32.gmra.mxu0 %v1640
  %v1642 = vpop.f32.mrf.mxu0
  %v1643 = vadd.f32 %v1589, %v1642
  %1644 = vdwg.mxu0
  %v1645 = vand.u32 %v101, 4294901760
  %1646 = vmatpush.msra.mxu0 %v1645
  %v1647 = vand.u32 %v100, 4294901760
  %1648 = vmatpush.msra.mxu0 %v1647
  %v1649 = vand.u32 %v99, 4294901760
  %1650 = vmatpush.msra.mxu0 %v1649
  %v1651 = vand.u32 %v98, 4294901760
  %1652 = vmatpush.msra.mxu0 %v1651
  %v1653 = vand.u32 %v97, 4294901760
  %1654 = vmatpush.msra.mxu0 %v1653
  %v1655 = vand.u32 %v96, 4294901760
  %1656 = vmatpush.msra.mxu0 %v1655
  %v1657 = vand.u32 %v95, 4294901760
  %1658 = vmatpush.msra.mxu0 %v1657
  %v1659 = vand.u32 %v94, 4294901760
  %1660 = vmatpush.msra.mxu0 %v1659
  %v1661 = vand.u32 %v93, 4294901760
  %1662 = vmatpush.msra.mxu0 %v1661
  %v1663 = vand.u32 %v92, 4294901760
  %1664 = vmatpush.msra.mxu0 %v1663
  %v1665 = vand.u32 %v91, 4294901760
  %1666 = vmatpush.msra.mxu0 %v1665
  %v1667 = vand.u32 %v90, 4294901760
  %1668 = vmatpush.msra.mxu0 %v1667
  %v1669 = vand.u32 %v89, 4294901760
  %1670 = vmatpush.msra.mxu0 %v1669
  %v1671 = vand.u32 %v88, 4294901760
  %1672 = vmatpush.msra.mxu0 %v1671
  %v1673 = vand.u32 %v87, 4294901760
  %1674 = vmatpush.msra.mxu0 %v1673
  %v1675 = vand.u32 %v86, 4294901760
  %1676 = vmatpush.msra.mxu0 %v1675
  %v1677 = vand.u32 %v17, 4294901760
  %v1678 = vsub.f32 %v17, %v1677
  %v1679 = vand.u32 %v1678, 4294901760
  %1680 = vmatmul.f32.gmra.mxu0 %v1679
  %v1681 = vpop.f32.mrf.mxu0
  %v1682 = vadd.f32 %v1643, %v1681
  %1683 = vdwg.mxu0
  %v1684 = vand.u32 %v101, 4294901760
  %v1685 = vsub.f32 %v101, %v1684
  %v1686 = vand.u32 %v1685, 4294901760
  %1687 = vmatpush.msra.mxu0 %v1686
  %v1688 = vand.u32 %v100, 4294901760
  %v1689 = vsub.f32 %v100, %v1688
  %v1690 = vand.u32 %v1689, 4294901760
  %1691 = vmatpush.msra.mxu0 %v1690
  %v1692 = vand.u32 %v99, 4294901760
  %v1693 = vsub.f32 %v99, %v1692
  %v1694 = vand.u32 %v1693, 4294901760
  %1695 = vmatpush.msra.mxu0 %v1694
  %v1696 = vand.u32 %v98, 4294901760
  %v1697 = vsub.f32 %v98, %v1696
  %v1698 = vand.u32 %v1697, 4294901760
  %1699 = vmatpush.msra.mxu0 %v1698
  %v1700 = vand.u32 %v97, 4294901760
  %v1701 = vsub.f32 %v97, %v1700
  %v1702 = vand.u32 %v1701, 4294901760
  %1703 = vmatpush.msra.mxu0 %v1702
  %v1704 = vand.u32 %v96, 4294901760
  %v1705 = vsub.f32 %v96, %v1704
  %v1706 = vand.u32 %v1705, 4294901760
  %1707 = vmatpush.msra.mxu0 %v1706
  %v1708 = vand.u32 %v95, 4294901760
  %v1709 = vsub.f32 %v95, %v1708
  %v1710 = vand.u32 %v1709, 4294901760
  %1711 = vmatpush.msra.mxu0 %v1710
  %v1712 = vand.u32 %v94, 4294901760
  %v1713 = vsub.f32 %v94, %v1712
  %v1714 = vand.u32 %v1713, 4294901760
  %1715 = vmatpush.msra.mxu0 %v1714
  %v1716 = vand.u32 %v93, 4294901760
  %v1717 = vsub.f32 %v93, %v1716
  %v1718 = vand.u32 %v1717, 4294901760
  %1719 = vmatpush.msra.mxu0 %v1718
  %v1720 = vand.u32 %v92, 4294901760
  %v1721 = vsub.f32 %v92, %v1720
  %v1722 = vand.u32 %v1721, 4294901760
  %1723 = vmatpush.msra.mxu0 %v1722
  %v1724 = vand.u32 %v91, 4294901760
  %v1725 = vsub.f32 %v91, %v1724
  %v1726 = vand.u32 %v1725, 4294901760
  %1727 = vmatpush.msra.mxu0 %v1726
  %v1728 = vand.u32 %v90, 4294901760
  %v1729 = vsub.f32 %v90, %v1728
  %v1730 = vand.u32 %v1729, 4294901760
  %1731 = vmatpush.msra.mxu0 %v1730
  %v1732 = vand.u32 %v89, 4294901760
  %v1733 = vsub.f32 %v89, %v1732
  %v1734 = vand.u32 %v1733, 4294901760
  %1735 = vmatpush.msra.mxu0 %v1734
  %v1736 = vand.u32 %v88, 4294901760
  %v1737 = vsub.f32 %v88, %v1736
  %v1738 = vand.u32 %v1737, 4294901760
  %1739 = vmatpush.msra.mxu0 %v1738
  %v1740 = vand.u32 %v87, 4294901760
  %v1741 = vsub.f32 %v87, %v1740
  %v1742 = vand.u32 %v1741, 4294901760
  %1743 = vmatpush.msra.mxu0 %v1742
  %v1744 = vand.u32 %v86, 4294901760
  %v1745 = vsub.f32 %v86, %v1744
  %v1746 = vand.u32 %v1745, 4294901760
  %1747 = vmatpush.msra.mxu0 %v1746
  %v1748 = vand.u32 %v17, 4294901760
  %1749 = vmatmul.f32.gmra.mxu0 %v1748
  %v1750 = vpop.f32.mrf.mxu0
  %v1751 = vadd.f32 %v1682, %v1750
  %1752 = vdwg.mxu0
  %v1753 = vand.u32 %v101, 4294901760
  %1754 = vmatpush.msra.mxu0 %v1753
  %v1755 = vand.u32 %v100, 4294901760
  %1756 = vmatpush.msra.mxu0 %v1755
  %v1757 = vand.u32 %v99, 4294901760
  %1758 = vmatpush.msra.mxu0 %v1757
  %v1759 = vand.u32 %v98, 4294901760
  %1760 = vmatpush.msra.mxu0 %v1759
  %v1761 = vand.u32 %v97, 4294901760
  %1762 = vmatpush.msra.mxu0 %v1761
  %v1763 = vand.u32 %v96, 4294901760
  %1764 = vmatpush.msra.mxu0 %v1763
  %v1765 = vand.u32 %v95, 4294901760
  %1766 = vmatpush.msra.mxu0 %v1765
  %v1767 = vand.u32 %v94, 4294901760
  %1768 = vmatpush.msra.mxu0 %v1767
  %v1769 = vand.u32 %v93, 4294901760
  %1770 = vmatpush.msra.mxu0 %v1769
  %v1771 = vand.u32 %v92, 4294901760
  %1772 = vmatpush.msra.mxu0 %v1771
  %v1773 = vand.u32 %v91, 4294901760
  %1774 = vmatpush.msra.mxu0 %v1773
  %v1775 = vand.u32 %v90, 4294901760
  %1776 = vmatpush.msra.mxu0 %v1775
  %v1777 = vand.u32 %v89, 4294901760
  %1778 = vmatpush.msra.mxu0 %v1777
  %v1779 = vand.u32 %v88, 4294901760
  %1780 = vmatpush.msra.mxu0 %v1779
  %v1781 = vand.u32 %v87, 4294901760
  %1782 = vmatpush.msra.mxu0 %v1781
  %v1783 = vand.u32 %v86, 4294901760
  %1784 = vmatpush.msra.mxu0 %v1783
  %v1785 = vand.u32 %v17, 4294901760
  %1786 = vmatmul.f32.gmra.mxu0 %v1785
  %v1787 = vpop.f32.mrf.mxu0
  %v1788 = vadd.f32 %v1751, %v1787
  %1789 = vdwg.mxu0
  %v1790 = vand.u32 %v117, 4294901760
  %1791 = vmatpush.msra.mxu0 %v1790
  %v1792 = vand.u32 %v116, 4294901760
  %1793 = vmatpush.msra.mxu0 %v1792
  %v1794 = vand.u32 %v115, 4294901760
  %1795 = vmatpush.msra.mxu0 %v1794
  %v1796 = vand.u32 %v114, 4294901760
  %1797 = vmatpush.msra.mxu0 %v1796
  %v1798 = vand.u32 %v113, 4294901760
  %1799 = vmatpush.msra.mxu0 %v1798
  %v1800 = vand.u32 %v112, 4294901760
  %1801 = vmatpush.msra.mxu0 %v1800
  %v1802 = vand.u32 %v111, 4294901760
  %1803 = vmatpush.msra.mxu0 %v1802
  %v1804 = vand.u32 %v110, 4294901760
  %1805 = vmatpush.msra.mxu0 %v1804
  %v1806 = vand.u32 %v109, 4294901760
  %1807 = vmatpush.msra.mxu0 %v1806
  %v1808 = vand.u32 %v108, 4294901760
  %1809 = vmatpush.msra.mxu0 %v1808
  %v1810 = vand.u32 %v107, 4294901760
  %1811 = vmatpush.msra.mxu0 %v1810
  %v1812 = vand.u32 %v106, 4294901760
  %1813 = vmatpush.msra.mxu0 %v1812
  %v1814 = vand.u32 %v105, 4294901760
  %1815 = vmatpush.msra.mxu0 %v1814
  %v1816 = vand.u32 %v104, 4294901760
  %1817 = vmatpush.msra.mxu0 %v1816
  %v1818 = vand.u32 %v103, 4294901760
  %1819 = vmatpush.msra.mxu0 %v1818
  %v1820 = vand.u32 %v102, 4294901760
  %1821 = vmatpush.msra.mxu0 %v1820
  %v1822 = vand.u32 %v18, 4294901760
  %v1823 = vsub.f32 %v18, %v1822
  %v1824 = vand.u32 %v1823, 4294901760
  %v1825 = vsub.f32 %v1823, %v1824
  %v1826 = vand.u32 %v1825, 4294901760
  %1827 = vmatmul.f32.gmra.mxu0 %v1826
  %v1828 = vpop.f32.mrf.mxu0
  %v1829 = vadd.f32 %v1788, %v1828
  %1830 = vdwg.mxu0
  %v1831 = vand.u32 %v117, 4294901760
  %v1832 = vsub.f32 %v117, %v1831
  %v1833 = vand.u32 %v1832, 4294901760
  %v1834 = vsub.f32 %v1832, %v1833
  %v1835 = vand.u32 %v1834, 4294901760
  %1836 = vmatpush.msra.mxu0 %v1835
  %v1837 = vand.u32 %v116, 4294901760
  %v1838 = vsub.f32 %v116, %v1837
  %v1839 = vand.u32 %v1838, 4294901760
  %v1840 = vsub.f32 %v1838, %v1839
  %v1841 = vand.u32 %v1840, 4294901760
  %1842 = vmatpush.msra.mxu0 %v1841
  %v1843 = vand.u32 %v115, 4294901760
  %v1844 = vsub.f32 %v115, %v1843
  %v1845 = vand.u32 %v1844, 4294901760
  %v1846 = vsub.f32 %v1844, %v1845
  %v1847 = vand.u32 %v1846, 4294901760
  %1848 = vmatpush.msra.mxu0 %v1847
  %v1849 = vand.u32 %v114, 4294901760
  %v1850 = vsub.f32 %v114, %v1849
  %v1851 = vand.u32 %v1850, 4294901760
  %v1852 = vsub.f32 %v1850, %v1851
  %v1853 = vand.u32 %v1852, 4294901760
  %1854 = vmatpush.msra.mxu0 %v1853
  %v1855 = vand.u32 %v113, 4294901760
  %v1856 = vsub.f32 %v113, %v1855
  %v1857 = vand.u32 %v1856, 4294901760
  %v1858 = vsub.f32 %v1856, %v1857
  %v1859 = vand.u32 %v1858, 4294901760
  %1860 = vmatpush.msra.mxu0 %v1859
  %v1861 = vand.u32 %v112, 4294901760
  %v1862 = vsub.f32 %v112, %v1861
  %v1863 = vand.u32 %v1862, 4294901760
  %v1864 = vsub.f32 %v1862, %v1863
  %v1865 = vand.u32 %v1864, 4294901760
  %1866 = vmatpush.msra.mxu0 %v1865
  %v1867 = vand.u32 %v111, 4294901760
  %v1868 = vsub.f32 %v111, %v1867
  %v1869 = vand.u32 %v1868, 4294901760
  %v1870 = vsub.f32 %v1868, %v1869
  %v1871 = vand.u32 %v1870, 4294901760
  %1872 = vmatpush.msra.mxu0 %v1871
  %v1873 = vand.u32 %v110, 4294901760
  %v1874 = vsub.f32 %v110, %v1873
  %v1875 = vand.u32 %v1874, 4294901760
  %v1876 = vsub.f32 %v1874, %v1875
  %v1877 = vand.u32 %v1876, 4294901760
  %1878 = vmatpush.msra.mxu0 %v1877
  %v1879 = vand.u32 %v109, 4294901760
  %v1880 = vsub.f32 %v109, %v1879
  %v1881 = vand.u32 %v1880, 4294901760
  %v1882 = vsub.f32 %v1880, %v1881
  %v1883 = vand.u32 %v1882, 4294901760
  %1884 = vmatpush.msra.mxu0 %v1883
  %v1885 = vand.u32 %v108, 4294901760
  %v1886 = vsub.f32 %v108, %v1885
  %v1887 = vand.u32 %v1886, 4294901760
  %v1888 = vsub.f32 %v1886, %v1887
  %v1889 = vand.u32 %v1888, 4294901760
  %1890 = vmatpush.msra.mxu0 %v1889
  %v1891 = vand.u32 %v107, 4294901760
  %v1892 = vsub.f32 %v107, %v1891
  %v1893 = vand.u32 %v1892, 4294901760
  %v1894 = vsub.f32 %v1892, %v1893
  %v1895 = vand.u32 %v1894, 4294901760
  %1896 = vmatpush.msra.mxu0 %v1895
  %v1897 = vand.u32 %v106, 4294901760
  %v1898 = vsub.f32 %v106, %v1897
  %v1899 = vand.u32 %v1898, 4294901760
  %v1900 = vsub.f32 %v1898, %v1899
  %v1901 = vand.u32 %v1900, 4294901760
  %1902 = vmatpush.msra.mxu0 %v1901
  %v1903 = vand.u32 %v105, 4294901760
  %v1904 = vsub.f32 %v105, %v1903
  %v1905 = vand.u32 %v1904, 4294901760
  %v1906 = vsub.f32 %v1904, %v1905
  %v1907 = vand.u32 %v1906, 4294901760
  %1908 = vmatpush.msra.mxu0 %v1907
  %v1909 = vand.u32 %v104, 4294901760
  %v1910 = vsub.f32 %v104, %v1909
  %v1911 = vand.u32 %v1910, 4294901760
  %v1912 = vsub.f32 %v1910, %v1911
  %v1913 = vand.u32 %v1912, 4294901760
  %1914 = vmatpush.msra.mxu0 %v1913
  %v1915 = vand.u32 %v103, 4294901760
  %v1916 = vsub.f32 %v103, %v1915
  %v1917 = vand.u32 %v1916, 4294901760
  %v1918 = vsub.f32 %v1916, %v1917
  %v1919 = vand.u32 %v1918, 4294901760
  %1920 = vmatpush.msra.mxu0 %v1919
  %v1921 = vand.u32 %v102, 4294901760
  %v1922 = vsub.f32 %v102, %v1921
  %v1923 = vand.u32 %v1922, 4294901760
  %v1924 = vsub.f32 %v1922, %v1923
  %v1925 = vand.u32 %v1924, 4294901760
  %1926 = vmatpush.msra.mxu0 %v1925
  %v1927 = vand.u32 %v18, 4294901760
  %1928 = vmatmul.f32.gmra.mxu0 %v1927
  %v1929 = vpop.f32.mrf.mxu0
  %v1930 = vadd.f32 %v1829, %v1929
  %1931 = vdwg.mxu0
  %v1932 = vand.u32 %v117, 4294901760
  %v1933 = vsub.f32 %v117, %v1932
  %1934 = vmatpush.msra.mxu0 %v1933
  %v1935 = vand.u32 %v116, 4294901760
  %v1936 = vsub.f32 %v116, %v1935
  %1937 = vmatpush.msra.mxu0 %v1936
  %v1938 = vand.u32 %v115, 4294901760
  %v1939 = vsub.f32 %v115, %v1938
  %1940 = vmatpush.msra.mxu0 %v1939
  %v1941 = vand.u32 %v114, 4294901760
  %v1942 = vsub.f32 %v114, %v1941
  %1943 = vmatpush.msra.mxu0 %v1942
  %v1944 = vand.u32 %v113, 4294901760
  %v1945 = vsub.f32 %v113, %v1944
  %1946 = vmatpush.msra.mxu0 %v1945
  %v1947 = vand.u32 %v112, 4294901760
  %v1948 = vsub.f32 %v112, %v1947
  %1949 = vmatpush.msra.mxu0 %v1948
  %v1950 = vand.u32 %v111, 4294901760
  %v1951 = vsub.f32 %v111, %v1950
  %1952 = vmatpush.msra.mxu0 %v1951
  %v1953 = vand.u32 %v110, 4294901760
  %v1954 = vsub.f32 %v110, %v1953
  %1955 = vmatpush.msra.mxu0 %v1954
  %v1956 = vand.u32 %v109, 4294901760
  %v1957 = vsub.f32 %v109, %v1956
  %1958 = vmatpush.msra.mxu0 %v1957
  %v1959 = vand.u32 %v108, 4294901760
  %v1960 = vsub.f32 %v108, %v1959
  %1961 = vmatpush.msra.mxu0 %v1960
  %v1962 = vand.u32 %v107, 4294901760
  %v1963 = vsub.f32 %v107, %v1962
  %1964 = vmatpush.msra.mxu0 %v1963
  %v1965 = vand.u32 %v106, 4294901760
  %v1966 = vsub.f32 %v106, %v1965
  %1967 = vmatpush.msra.mxu0 %v1966
  %v1968 = vand.u32 %v105, 4294901760
  %v1969 = vsub.f32 %v105, %v1968
  %1970 = vmatpush.msra.mxu0 %v1969
  %v1971 = vand.u32 %v104, 4294901760
  %v1972 = vsub.f32 %v104, %v1971
  %1973 = vmatpush.msra.mxu0 %v1972
  %v1974 = vand.u32 %v103, 4294901760
  %v1975 = vsub.f32 %v103, %v1974
  %1976 = vmatpush.msra.mxu0 %v1975
  %v1977 = vand.u32 %v102, 4294901760
  %v1978 = vsub.f32 %v102, %v1977
  %1979 = vmatpush.msra.mxu0 %v1978
  %v1980 = vand.u32 %v18, 4294901760
  %v1981 = vsub.f32 %v18, %v1980
  %1982 = vmatmul.f32.gmra.mxu0 %v1981
  %v1983 = vpop.f32.mrf.mxu0
  %v1984 = vadd.f32 %v1930, %v1983
  %1985 = vdwg.mxu0
  %v1986 = vand.u32 %v117, 4294901760
  %1987 = vmatpush.msra.mxu0 %v1986
  %v1988 = vand.u32 %v116, 4294901760
  %1989 = vmatpush.msra.mxu0 %v1988
  %v1990 = vand.u32 %v115, 4294901760
  %1991 = vmatpush.msra.mxu0 %v1990
  %v1992 = vand.u32 %v114, 4294901760
  %1993 = vmatpush.msra.mxu0 %v1992
  %v1994 = vand.u32 %v113, 4294901760
  %1995 = vmatpush.msra.mxu0 %v1994
  %v1996 = vand.u32 %v112, 4294901760
  %1997 = vmatpush.msra.mxu0 %v1996
  %v1998 = vand.u32 %v111, 4294901760
  %1999 = vmatpush.msra.mxu0 %v1998
  %v2000 = vand.u32 %v110, 4294901760
  %2001 = vmatpush.msra.mxu0 %v2000
  %v2002 = vand.u32 %v109, 4294901760
  %2003 = vmatpush.msra.mxu0 %v2002
  %v2004 = vand.u32 %v108, 4294901760
  %2005 = vmatpush.msra.mxu0 %v2004
  %v2006 = vand.u32 %v107, 4294901760
  %2007 = vmatpush.msra.mxu0 %v2006
  %v2008 = vand.u32 %v106, 4294901760
  %2009 = vmatpush.msra.mxu0 %v2008
  %v2010 = vand.u32 %v105, 4294901760
  %2011 = vmatpush.msra.mxu0 %v2010
  %v2012 = vand.u32 %v104, 4294901760
  %2013 = vmatpush.msra.mxu0 %v2012
  %v2014 = vand.u32 %v103, 4294901760
  %2015 = vmatpush.msra.mxu0 %v2014
  %v2016 = vand.u32 %v102, 4294901760
  %2017 = vmatpush.msra.mxu0 %v2016
  %v2018 = vand.u32 %v18, 4294901760
  %v2019 = vsub.f32 %v18, %v2018
  %v2020 = vand.u32 %v2019, 4294901760
  %2021 = vmatmul.f32.gmra.mxu0 %v2020
  %v2022 = vpop.f32.mrf.mxu0
  %v2023 = vadd.f32 %v1984, %v2022
  %2024 = vdwg.mxu0
  %v2025 = vand.u32 %v117, 4294901760
  %v2026 = vsub.f32 %v117, %v2025
  %v2027 = vand.u32 %v2026, 4294901760
  %2028 = vmatpush.msra.mxu0 %v2027
  %v2029 = vand.u32 %v116, 4294901760
  %v2030 = vsub.f32 %v116, %v2029
  %v2031 = vand.u32 %v2030, 4294901760
  %2032 = vmatpush.msra.mxu0 %v2031
  %v2033 = vand.u32 %v115, 4294901760
  %v2034 = vsub.f32 %v115, %v2033
  %v2035 = vand.u32 %v2034, 4294901760
  %2036 = vmatpush.msra.mxu0 %v2035
  %v2037 = vand.u32 %v114, 4294901760
  %v2038 = vsub.f32 %v114, %v2037
  %v2039 = vand.u32 %v2038, 4294901760
  %2040 = vmatpush.msra.mxu0 %v2039
  %v2041 = vand.u32 %v113, 4294901760
  %v2042 = vsub.f32 %v113, %v2041
  %v2043 = vand.u32 %v2042, 4294901760
  %2044 = vmatpush.msra.mxu0 %v2043
  %v2045 = vand.u32 %v112, 4294901760
  %v2046 = vsub.f32 %v112, %v2045
  %v2047 = vand.u32 %v2046, 4294901760
  %2048 = vmatpush.msra.mxu0 %v2047
  %v2049 = vand.u32 %v111, 4294901760
  %v2050 = vsub.f32 %v111, %v2049
  %v2051 = vand.u32 %v2050, 4294901760
  %2052 = vmatpush.msra.mxu0 %v2051
  %v2053 = vand.u32 %v110, 4294901760
  %v2054 = vsub.f32 %v110, %v2053
  %v2055 = vand.u32 %v2054, 4294901760
  %2056 = vmatpush.msra.mxu0 %v2055
  %v2057 = vand.u32 %v109, 4294901760
  %v2058 = vsub.f32 %v109, %v2057
  %v2059 = vand.u32 %v2058, 4294901760
  %2060 = vmatpush.msra.mxu0 %v2059
  %v2061 = vand.u32 %v108, 4294901760
  %v2062 = vsub.f32 %v108, %v2061
  %v2063 = vand.u32 %v2062, 4294901760
  %2064 = vmatpush.msra.mxu0 %v2063
  %v2065 = vand.u32 %v107, 4294901760
  %v2066 = vsub.f32 %v107, %v2065
  %v2067 = vand.u32 %v2066, 4294901760
  %2068 = vmatpush.msra.mxu0 %v2067
  %v2069 = vand.u32 %v106, 4294901760
  %v2070 = vsub.f32 %v106, %v2069
  %v2071 = vand.u32 %v2070, 4294901760
  %2072 = vmatpush.msra.mxu0 %v2071
  %v2073 = vand.u32 %v105, 4294901760
  %v2074 = vsub.f32 %v105, %v2073
  %v2075 = vand.u32 %v2074, 4294901760
  %2076 = vmatpush.msra.mxu0 %v2075
  %v2077 = vand.u32 %v104, 4294901760
  %v2078 = vsub.f32 %v104, %v2077
  %v2079 = vand.u32 %v2078, 4294901760
  %2080 = vmatpush.msra.mxu0 %v2079
  %v2081 = vand.u32 %v103, 4294901760
  %v2082 = vsub.f32 %v103, %v2081
  %v2083 = vand.u32 %v2082, 4294901760
  %2084 = vmatpush.msra.mxu0 %v2083
  %v2085 = vand.u32 %v102, 4294901760
  %v2086 = vsub.f32 %v102, %v2085
  %v2087 = vand.u32 %v2086, 4294901760
  %2088 = vmatpush.msra.mxu0 %v2087
  %v2089 = vand.u32 %v18, 4294901760
  %2090 = vmatmul.f32.gmra.mxu0 %v2089
  %v2091 = vpop.f32.mrf.mxu0
  %v2092 = vadd.f32 %v2023, %v2091
  %2093 = vdwg.mxu0
  %v2094 = vand.u32 %v117, 4294901760
  %2095 = vmatpush.msra.mxu0 %v2094
  %v2096 = vand.u32 %v116, 4294901760
  %2097 = vmatpush.msra.mxu0 %v2096
  %v2098 = vand.u32 %v115, 4294901760
  %2099 = vmatpush.msra.mxu0 %v2098
  %v2100 = vand.u32 %v114, 4294901760
  %2101 = vmatpush.msra.mxu0 %v2100
  %v2102 = vand.u32 %v113, 4294901760
  %2103 = vmatpush.msra.mxu0 %v2102
  %v2104 = vand.u32 %v112, 4294901760
  %2105 = vmatpush.msra.mxu0 %v2104
  %v2106 = vand.u32 %v111, 4294901760
  %2107 = vmatpush.msra.mxu0 %v2106
  %v2108 = vand.u32 %v110, 4294901760
  %2109 = vmatpush.msra.mxu0 %v2108
  %v2110 = vand.u32 %v109, 4294901760
  %2111 = vmatpush.msra.mxu0 %v2110
  %v2112 = vand.u32 %v108, 4294901760
  %2113 = vmatpush.msra.mxu0 %v2112
  %v2114 = vand.u32 %v107, 4294901760
  %2115 = vmatpush.msra.mxu0 %v2114
  %v2116 = vand.u32 %v106, 4294901760
  %2117 = vmatpush.msra.mxu0 %v2116
  %v2118 = vand.u32 %v105, 4294901760
  %2119 = vmatpush.msra.mxu0 %v2118
  %v2120 = vand.u32 %v104, 4294901760
  %2121 = vmatpush.msra.mxu0 %v2120
  %v2122 = vand.u32 %v103, 4294901760
  %2123 = vmatpush.msra.mxu0 %v2122
  %v2124 = vand.u32 %v102, 4294901760
  %2125 = vmatpush.msra.mxu0 %v2124
  %v2126 = vand.u32 %v18, 4294901760
  %2127 = vmatmul.f32.gmra.mxu0 %v2126
  %v2128 = vpop.f32.mrf.mxu0
  %v2129 = vadd.f32 %v2092, %v2128
  %2130 = vdwg.mxu0
  %v2131 = vand.u32 %v133, 4294901760
  %2132 = vmatpush.msra.mxu0 %v2131
  %v2133 = vand.u32 %v132, 4294901760
  %2134 = vmatpush.msra.mxu0 %v2133
  %v2135 = vand.u32 %v131, 4294901760
  %2136 = vmatpush.msra.mxu0 %v2135
  %v2137 = vand.u32 %v130, 4294901760
  %2138 = vmatpush.msra.mxu0 %v2137
  %v2139 = vand.u32 %v129, 4294901760
  %2140 = vmatpush.msra.mxu0 %v2139
  %v2141 = vand.u32 %v128, 4294901760
  %2142 = vmatpush.msra.mxu0 %v2141
  %v2143 = vand.u32 %v127, 4294901760
  %2144 = vmatpush.msra.mxu0 %v2143
  %v2145 = vand.u32 %v126, 4294901760
  %2146 = vmatpush.msra.mxu0 %v2145
  %v2147 = vand.u32 %v125, 4294901760
  %2148 = vmatpush.msra.mxu0 %v2147
  %v2149 = vand.u32 %v124, 4294901760
  %2150 = vmatpush.msra.mxu0 %v2149
  %v2151 = vand.u32 %v123, 4294901760
  %2152 = vmatpush.msra.mxu0 %v2151
  %v2153 = vand.u32 %v122, 4294901760
  %2154 = vmatpush.msra.mxu0 %v2153
  %v2155 = vand.u32 %v121, 4294901760
  %2156 = vmatpush.msra.mxu0 %v2155
  %v2157 = vand.u32 %v120, 4294901760
  %2158 = vmatpush.msra.mxu0 %v2157
  %v2159 = vand.u32 %v119, 4294901760
  %2160 = vmatpush.msra.mxu0 %v2159
  %v2161 = vand.u32 %v118, 4294901760
  %2162 = vmatpush.msra.mxu0 %v2161
  %v2163 = vand.u32 %v19, 4294901760
  %v2164 = vsub.f32 %v19, %v2163
  %v2165 = vand.u32 %v2164, 4294901760
  %v2166 = vsub.f32 %v2164, %v2165
  %v2167 = vand.u32 %v2166, 4294901760
  %2168 = vmatmul.f32.gmra.mxu0 %v2167
  %v2169 = vpop.f32.mrf.mxu0
  %v2170 = vadd.f32 %v2129, %v2169
  %2171 = vdwg.mxu0
  %v2172 = vand.u32 %v133, 4294901760
  %v2173 = vsub.f32 %v133, %v2172
  %v2174 = vand.u32 %v2173, 4294901760
  %v2175 = vsub.f32 %v2173, %v2174
  %v2176 = vand.u32 %v2175, 4294901760
  %2177 = vmatpush.msra.mxu0 %v2176
  %v2178 = vand.u32 %v132, 4294901760
  %v2179 = vsub.f32 %v132, %v2178
  %v2180 = vand.u32 %v2179, 4294901760
  %v2181 = vsub.f32 %v2179, %v2180
  %v2182 = vand.u32 %v2181, 4294901760
  %2183 = vmatpush.msra.mxu0 %v2182
  %v2184 = vand.u32 %v131, 4294901760
  %v2185 = vsub.f32 %v131, %v2184
  %v2186 = vand.u32 %v2185, 4294901760
  %v2187 = vsub.f32 %v2185, %v2186
  %v2188 = vand.u32 %v2187, 4294901760
  %2189 = vmatpush.msra.mxu0 %v2188
  %v2190 = vand.u32 %v130, 4294901760
  %v2191 = vsub.f32 %v130, %v2190
  %v2192 = vand.u32 %v2191, 4294901760
  %v2193 = vsub.f32 %v2191, %v2192
  %v2194 = vand.u32 %v2193, 4294901760
  %2195 = vmatpush.msra.mxu0 %v2194
  %v2196 = vand.u32 %v129, 4294901760
  %v2197 = vsub.f32 %v129, %v2196
  %v2198 = vand.u32 %v2197, 4294901760
  %v2199 = vsub.f32 %v2197, %v2198
  %v2200 = vand.u32 %v2199, 4294901760
  %2201 = vmatpush.msra.mxu0 %v2200
  %v2202 = vand.u32 %v128, 4294901760
  %v2203 = vsub.f32 %v128, %v2202
  %v2204 = vand.u32 %v2203, 4294901760
  %v2205 = vsub.f32 %v2203, %v2204
  %v2206 = vand.u32 %v2205, 4294901760
  %2207 = vmatpush.msra.mxu0 %v2206
  %v2208 = vand.u32 %v127, 4294901760
  %v2209 = vsub.f32 %v127, %v2208
  %v2210 = vand.u32 %v2209, 4294901760
  %v2211 = vsub.f32 %v2209, %v2210
  %v2212 = vand.u32 %v2211, 4294901760
  %2213 = vmatpush.msra.mxu0 %v2212
  %v2214 = vand.u32 %v126, 4294901760
  %v2215 = vsub.f32 %v126, %v2214
  %v2216 = vand.u32 %v2215, 4294901760
  %v2217 = vsub.f32 %v2215, %v2216
  %v2218 = vand.u32 %v2217, 4294901760
  %2219 = vmatpush.msra.mxu0 %v2218
  %v2220 = vand.u32 %v125, 4294901760
  %v2221 = vsub.f32 %v125, %v2220
  %v2222 = vand.u32 %v2221, 4294901760
  %v2223 = vsub.f32 %v2221, %v2222
  %v2224 = vand.u32 %v2223, 4294901760
  %2225 = vmatpush.msra.mxu0 %v2224
  %v2226 = vand.u32 %v124, 4294901760
  %v2227 = vsub.f32 %v124, %v2226
  %v2228 = vand.u32 %v2227, 4294901760
  %v2229 = vsub.f32 %v2227, %v2228
  %v2230 = vand.u32 %v2229, 4294901760
  %2231 = vmatpush.msra.mxu0 %v2230
  %v2232 = vand.u32 %v123, 4294901760
  %v2233 = vsub.f32 %v123, %v2232
  %v2234 = vand.u32 %v2233, 4294901760
  %v2235 = vsub.f32 %v2233, %v2234
  %v2236 = vand.u32 %v2235, 4294901760
  %2237 = vmatpush.msra.mxu0 %v2236
  %v2238 = vand.u32 %v122, 4294901760
  %v2239 = vsub.f32 %v122, %v2238
  %v2240 = vand.u32 %v2239, 4294901760
  %v2241 = vsub.f32 %v2239, %v2240
  %v2242 = vand.u32 %v2241, 4294901760
  %2243 = vmatpush.msra.mxu0 %v2242
  %v2244 = vand.u32 %v121, 4294901760
  %v2245 = vsub.f32 %v121, %v2244
  %v2246 = vand.u32 %v2245, 4294901760
  %v2247 = vsub.f32 %v2245, %v2246
  %v2248 = vand.u32 %v2247, 4294901760
  %2249 = vmatpush.msra.mxu0 %v2248
  %v2250 = vand.u32 %v120, 4294901760
  %v2251 = vsub.f32 %v120, %v2250
  %v2252 = vand.u32 %v2251, 4294901760
  %v2253 = vsub.f32 %v2251, %v2252
  %v2254 = vand.u32 %v2253, 4294901760
  %2255 = vmatpush.msra.mxu0 %v2254
  %v2256 = vand.u32 %v119, 4294901760
  %v2257 = vsub.f32 %v119, %v2256
  %v2258 = vand.u32 %v2257, 4294901760
  %v2259 = vsub.f32 %v2257, %v2258
  %v2260 = vand.u32 %v2259, 4294901760
  %2261 = vmatpush.msra.mxu0 %v2260
  %v2262 = vand.u32 %v118, 4294901760
  %v2263 = vsub.f32 %v118, %v2262
  %v2264 = vand.u32 %v2263, 4294901760
  %v2265 = vsub.f32 %v2263, %v2264
  %v2266 = vand.u32 %v2265, 4294901760
  %2267 = vmatpush.msra.mxu0 %v2266
  %v2268 = vand.u32 %v19, 4294901760
  %2269 = vmatmul.f32.gmra.mxu0 %v2268
  %v2270 = vpop.f32.mrf.mxu0
  %v2271 = vadd.f32 %v2170, %v2270
  %2272 = vdwg.mxu0
  %v2273 = vand.u32 %v133, 4294901760
  %v2274 = vsub.f32 %v133, %v2273
  %2275 = vmatpush.msra.mxu0 %v2274
  %v2276 = vand.u32 %v132, 4294901760
  %v2277 = vsub.f32 %v132, %v2276
  %2278 = vmatpush.msra.mxu0 %v2277
  %v2279 = vand.u32 %v131, 4294901760
  %v2280 = vsub.f32 %v131, %v2279
  %2281 = vmatpush.msra.mxu0 %v2280
  %v2282 = vand.u32 %v130, 4294901760
  %v2283 = vsub.f32 %v130, %v2282
  %2284 = vmatpush.msra.mxu0 %v2283
  %v2285 = vand.u32 %v129, 4294901760
  %v2286 = vsub.f32 %v129, %v2285
  %2287 = vmatpush.msra.mxu0 %v2286
  %v2288 = vand.u32 %v128, 4294901760
  %v2289 = vsub.f32 %v128, %v2288
  %2290 = vmatpush.msra.mxu0 %v2289
  %v2291 = vand.u32 %v127, 4294901760
  %v2292 = vsub.f32 %v127, %v2291
  %2293 = vmatpush.msra.mxu0 %v2292
  %v2294 = vand.u32 %v126, 4294901760
  %v2295 = vsub.f32 %v126, %v2294
  %2296 = vmatpush.msra.mxu0 %v2295
  %v2297 = vand.u32 %v125, 4294901760
  %v2298 = vsub.f32 %v125, %v2297
  %2299 = vmatpush.msra.mxu0 %v2298
  %v2300 = vand.u32 %v124, 4294901760
  %v2301 = vsub.f32 %v124, %v2300
  %2302 = vmatpush.msra.mxu0 %v2301
  %v2303 = vand.u32 %v123, 4294901760
  %v2304 = vsub.f32 %v123, %v2303
  %2305 = vmatpush.msra.mxu0 %v2304
  %v2306 = vand.u32 %v122, 4294901760
  %v2307 = vsub.f32 %v122, %v2306
  %2308 = vmatpush.msra.mxu0 %v2307
  %v2309 = vand.u32 %v121, 4294901760
  %v2310 = vsub.f32 %v121, %v2309
  %2311 = vmatpush.msra.mxu0 %v2310
  %v2312 = vand.u32 %v120, 4294901760
  %v2313 = vsub.f32 %v120, %v2312
  %2314 = vmatpush.msra.mxu0 %v2313
  %v2315 = vand.u32 %v119, 4294901760
  %v2316 = vsub.f32 %v119, %v2315
  %2317 = vmatpush.msra.mxu0 %v2316
  %v2318 = vand.u32 %v118, 4294901760
  %v2319 = vsub.f32 %v118, %v2318
  %2320 = vmatpush.msra.mxu0 %v2319
  %v2321 = vand.u32 %v19, 4294901760
  %v2322 = vsub.f32 %v19, %v2321
  %2323 = vmatmul.f32.gmra.mxu0 %v2322
  %v2324 = vpop.f32.mrf.mxu0
  %v2325 = vadd.f32 %v2271, %v2324
  %2326 = vdwg.mxu0
  %v2327 = vand.u32 %v133, 4294901760
  %2328 = vmatpush.msra.mxu0 %v2327
  %v2329 = vand.u32 %v132, 4294901760
  %2330 = vmatpush.msra.mxu0 %v2329
  %v2331 = vand.u32 %v131, 4294901760
  %2332 = vmatpush.msra.mxu0 %v2331
  %v2333 = vand.u32 %v130, 4294901760
  %2334 = vmatpush.msra.mxu0 %v2333
  %v2335 = vand.u32 %v129, 4294901760
  %2336 = vmatpush.msra.mxu0 %v2335
  %v2337 = vand.u32 %v128, 4294901760
  %2338 = vmatpush.msra.mxu0 %v2337
  %v2339 = vand.u32 %v127, 4294901760
  %2340 = vmatpush.msra.mxu0 %v2339
  %v2341 = vand.u32 %v126, 4294901760
  %2342 = vmatpush.msra.mxu0 %v2341
  %v2343 = vand.u32 %v125, 4294901760
  %2344 = vmatpush.msra.mxu0 %v2343
  %v2345 = vand.u32 %v124, 4294901760
  %2346 = vmatpush.msra.mxu0 %v2345
  %v2347 = vand.u32 %v123, 4294901760
  %2348 = vmatpush.msra.mxu0 %v2347
  %v2349 = vand.u32 %v122, 4294901760
  %2350 = vmatpush.msra.mxu0 %v2349
  %v2351 = vand.u32 %v121, 4294901760
  %2352 = vmatpush.msra.mxu0 %v2351
  %v2353 = vand.u32 %v120, 4294901760
  %2354 = vmatpush.msra.mxu0 %v2353
  %v2355 = vand.u32 %v119, 4294901760
  %2356 = vmatpush.msra.mxu0 %v2355
  %v2357 = vand.u32 %v118, 4294901760
  %2358 = vmatpush.msra.mxu0 %v2357
  %v2359 = vand.u32 %v19, 4294901760
  %v2360 = vsub.f32 %v19, %v2359
  %v2361 = vand.u32 %v2360, 4294901760
  %2362 = vmatmul.f32.gmra.mxu0 %v2361
  %v2363 = vpop.f32.mrf.mxu0
  %v2364 = vadd.f32 %v2325, %v2363
  %2365 = vdwg.mxu0
  %v2366 = vand.u32 %v133, 4294901760
  %v2367 = vsub.f32 %v133, %v2366
  %v2368 = vand.u32 %v2367, 4294901760
  %2369 = vmatpush.msra.mxu0 %v2368
  %v2370 = vand.u32 %v132, 4294901760
  %v2371 = vsub.f32 %v132, %v2370
  %v2372 = vand.u32 %v2371, 4294901760
  %2373 = vmatpush.msra.mxu0 %v2372
  %v2374 = vand.u32 %v131, 4294901760
  %v2375 = vsub.f32 %v131, %v2374
  %v2376 = vand.u32 %v2375, 4294901760
  %2377 = vmatpush.msra.mxu0 %v2376
  %v2378 = vand.u32 %v130, 4294901760
  %v2379 = vsub.f32 %v130, %v2378
  %v2380 = vand.u32 %v2379, 4294901760
  %2381 = vmatpush.msra.mxu0 %v2380
  %v2382 = vand.u32 %v129, 4294901760
  %v2383 = vsub.f32 %v129, %v2382
  %v2384 = vand.u32 %v2383, 4294901760
  %2385 = vmatpush.msra.mxu0 %v2384
  %v2386 = vand.u32 %v128, 4294901760
  %v2387 = vsub.f32 %v128, %v2386
  %v2388 = vand.u32 %v2387, 4294901760
  %2389 = vmatpush.msra.mxu0 %v2388
  %v2390 = vand.u32 %v127, 4294901760
  %v2391 = vsub.f32 %v127, %v2390
  %v2392 = vand.u32 %v2391, 4294901760
  %2393 = vmatpush.msra.mxu0 %v2392
  %v2394 = vand.u32 %v126, 4294901760
  %v2395 = vsub.f32 %v126, %v2394
  %v2396 = vand.u32 %v2395, 4294901760
  %2397 = vmatpush.msra.mxu0 %v2396
  %v2398 = vand.u32 %v125, 4294901760
  %v2399 = vsub.f32 %v125, %v2398
  %v2400 = vand.u32 %v2399, 4294901760
  %2401 = vmatpush.msra.mxu0 %v2400
  %v2402 = vand.u32 %v124, 4294901760
  %v2403 = vsub.f32 %v124, %v2402
  %v2404 = vand.u32 %v2403, 4294901760
  %2405 = vmatpush.msra.mxu0 %v2404
  %v2406 = vand.u32 %v123, 4294901760
  %v2407 = vsub.f32 %v123, %v2406
  %v2408 = vand.u32 %v2407, 4294901760
  %2409 = vmatpush.msra.mxu0 %v2408
  %v2410 = vand.u32 %v122, 4294901760
  %v2411 = vsub.f32 %v122, %v2410
  %v2412 = vand.u32 %v2411, 4294901760
  %2413 = vmatpush.msra.mxu0 %v2412
  %v2414 = vand.u32 %v121, 4294901760
  %v2415 = vsub.f32 %v121, %v2414
  %v2416 = vand.u32 %v2415, 4294901760
  %2417 = vmatpush.msra.mxu0 %v2416
  %v2418 = vand.u32 %v120, 4294901760
  %v2419 = vsub.f32 %v120, %v2418
  %v2420 = vand.u32 %v2419, 4294901760
  %2421 = vmatpush.msra.mxu0 %v2420
  %v2422 = vand.u32 %v119, 4294901760
  %v2423 = vsub.f32 %v119, %v2422
  %v2424 = vand.u32 %v2423, 4294901760
  %2425 = vmatpush.msra.mxu0 %v2424
  %v2426 = vand.u32 %v118, 4294901760
  %v2427 = vsub.f32 %v118, %v2426
  %v2428 = vand.u32 %v2427, 4294901760
  %2429 = vmatpush.msra.mxu0 %v2428
  %v2430 = vand.u32 %v19, 4294901760
  %2431 = vmatmul.f32.gmra.mxu0 %v2430
  %v2432 = vpop.f32.mrf.mxu0
  %v2433 = vadd.f32 %v2364, %v2432
  %2434 = vdwg.mxu0
  %v2435 = vand.u32 %v133, 4294901760
  %2436 = vmatpush.msra.mxu0 %v2435
  %v2437 = vand.u32 %v132, 4294901760
  %2438 = vmatpush.msra.mxu0 %v2437
  %v2439 = vand.u32 %v131, 4294901760
  %2440 = vmatpush.msra.mxu0 %v2439
  %v2441 = vand.u32 %v130, 4294901760
  %2442 = vmatpush.msra.mxu0 %v2441
  %v2443 = vand.u32 %v129, 4294901760
  %2444 = vmatpush.msra.mxu0 %v2443
  %v2445 = vand.u32 %v128, 4294901760
  %2446 = vmatpush.msra.mxu0 %v2445
  %v2447 = vand.u32 %v127, 4294901760
  %2448 = vmatpush.msra.mxu0 %v2447
  %v2449 = vand.u32 %v126, 4294901760
  %2450 = vmatpush.msra.mxu0 %v2449
  %v2451 = vand.u32 %v125, 4294901760
  %2452 = vmatpush.msra.mxu0 %v2451
  %v2453 = vand.u32 %v124, 4294901760
  %2454 = vmatpush.msra.mxu0 %v2453
  %v2455 = vand.u32 %v123, 4294901760
  %2456 = vmatpush.msra.mxu0 %v2455
  %v2457 = vand.u32 %v122, 4294901760
  %2458 = vmatpush.msra.mxu0 %v2457
  %v2459 = vand.u32 %v121, 4294901760
  %2460 = vmatpush.msra.mxu0 %v2459
  %v2461 = vand.u32 %v120, 4294901760
  %2462 = vmatpush.msra.mxu0 %v2461
  %v2463 = vand.u32 %v119, 4294901760
  %2464 = vmatpush.msra.mxu0 %v2463
  %v2465 = vand.u32 %v118, 4294901760
  %2466 = vmatpush.msra.mxu0 %v2465
  %v2467 = vand.u32 %v19, 4294901760
  %2468 = vmatmul.f32.gmra.mxu0 %v2467
  %v2469 = vpop.f32.mrf.mxu0
  %v2470 = vadd.f32 %v2433, %v2469
  %2471 = vdwg.mxu0
  %v2472 = vand.u32 %v149, 4294901760
  %2473 = vmatpush.msra.mxu0 %v2472
  %v2474 = vand.u32 %v148, 4294901760
  %2475 = vmatpush.msra.mxu0 %v2474
  %v2476 = vand.u32 %v147, 4294901760
  %2477 = vmatpush.msra.mxu0 %v2476
  %v2478 = vand.u32 %v146, 4294901760
  %2479 = vmatpush.msra.mxu0 %v2478
  %v2480 = vand.u32 %v145, 4294901760
  %2481 = vmatpush.msra.mxu0 %v2480
  %v2482 = vand.u32 %v144, 4294901760
  %2483 = vmatpush.msra.mxu0 %v2482
  %v2484 = vand.u32 %v143, 4294901760
  %2485 = vmatpush.msra.mxu0 %v2484
  %v2486 = vand.u32 %v142, 4294901760
  %2487 = vmatpush.msra.mxu0 %v2486
  %v2488 = vand.u32 %v141, 4294901760
  %2489 = vmatpush.msra.mxu0 %v2488
  %v2490 = vand.u32 %v140, 4294901760
  %2491 = vmatpush.msra.mxu0 %v2490
  %v2492 = vand.u32 %v139, 4294901760
  %2493 = vmatpush.msra.mxu0 %v2492
  %v2494 = vand.u32 %v138, 4294901760
  %2495 = vmatpush.msra.mxu0 %v2494
  %v2496 = vand.u32 %v137, 4294901760
  %2497 = vmatpush.msra.mxu0 %v2496
  %v2498 = vand.u32 %v136, 4294901760
  %2499 = vmatpush.msra.mxu0 %v2498
  %v2500 = vand.u32 %v135, 4294901760
  %2501 = vmatpush.msra.mxu0 %v2500
  %v2502 = vand.u32 %v134, 4294901760
  %2503 = vmatpush.msra.mxu0 %v2502
  %v2504 = vand.u32 %v20, 4294901760
  %v2505 = vsub.f32 %v20, %v2504
  %v2506 = vand.u32 %v2505, 4294901760
  %v2507 = vsub.f32 %v2505, %v2506
  %v2508 = vand.u32 %v2507, 4294901760
  %2509 = vmatmul.f32.gmra.mxu0 %v2508
  %v2510 = vpop.f32.mrf.mxu0
  %v2511 = vadd.f32 %v2470, %v2510
  %2512 = vdwg.mxu0
  %v2513 = vand.u32 %v149, 4294901760
  %v2514 = vsub.f32 %v149, %v2513
  %v2515 = vand.u32 %v2514, 4294901760
  %v2516 = vsub.f32 %v2514, %v2515
  %v2517 = vand.u32 %v2516, 4294901760
  %2518 = vmatpush.msra.mxu0 %v2517
  %v2519 = vand.u32 %v148, 4294901760
  %v2520 = vsub.f32 %v148, %v2519
  %v2521 = vand.u32 %v2520, 4294901760
  %v2522 = vsub.f32 %v2520, %v2521
  %v2523 = vand.u32 %v2522, 4294901760
  %2524 = vmatpush.msra.mxu0 %v2523
  %v2525 = vand.u32 %v147, 4294901760
  %v2526 = vsub.f32 %v147, %v2525
  %v2527 = vand.u32 %v2526, 4294901760
  %v2528 = vsub.f32 %v2526, %v2527
  %v2529 = vand.u32 %v2528, 4294901760
  %2530 = vmatpush.msra.mxu0 %v2529
  %v2531 = vand.u32 %v146, 4294901760
  %v2532 = vsub.f32 %v146, %v2531
  %v2533 = vand.u32 %v2532, 4294901760
  %v2534 = vsub.f32 %v2532, %v2533
  %v2535 = vand.u32 %v2534, 4294901760
  %2536 = vmatpush.msra.mxu0 %v2535
  %v2537 = vand.u32 %v145, 4294901760
  %v2538 = vsub.f32 %v145, %v2537
  %v2539 = vand.u32 %v2538, 4294901760
  %v2540 = vsub.f32 %v2538, %v2539
  %v2541 = vand.u32 %v2540, 4294901760
  %2542 = vmatpush.msra.mxu0 %v2541
  %v2543 = vand.u32 %v144, 4294901760
  %v2544 = vsub.f32 %v144, %v2543
  %v2545 = vand.u32 %v2544, 4294901760
  %v2546 = vsub.f32 %v2544, %v2545
  %v2547 = vand.u32 %v2546, 4294901760
  %2548 = vmatpush.msra.mxu0 %v2547
  %v2549 = vand.u32 %v143, 4294901760
  %v2550 = vsub.f32 %v143, %v2549
  %v2551 = vand.u32 %v2550, 4294901760
  %v2552 = vsub.f32 %v2550, %v2551
  %v2553 = vand.u32 %v2552, 4294901760
  %2554 = vmatpush.msra.mxu0 %v2553
  %v2555 = vand.u32 %v142, 4294901760
  %v2556 = vsub.f32 %v142, %v2555
  %v2557 = vand.u32 %v2556, 4294901760
  %v2558 = vsub.f32 %v2556, %v2557
  %v2559 = vand.u32 %v2558, 4294901760
  %2560 = vmatpush.msra.mxu0 %v2559
  %v2561 = vand.u32 %v141, 4294901760
  %v2562 = vsub.f32 %v141, %v2561
  %v2563 = vand.u32 %v2562, 4294901760
  %v2564 = vsub.f32 %v2562, %v2563
  %v2565 = vand.u32 %v2564, 4294901760
  %2566 = vmatpush.msra.mxu0 %v2565
  %v2567 = vand.u32 %v140, 4294901760
  %v2568 = vsub.f32 %v140, %v2567
  %v2569 = vand.u32 %v2568, 4294901760
  %v2570 = vsub.f32 %v2568, %v2569
  %v2571 = vand.u32 %v2570, 4294901760
  %2572 = vmatpush.msra.mxu0 %v2571
  %v2573 = vand.u32 %v139, 4294901760
  %v2574 = vsub.f32 %v139, %v2573
  %v2575 = vand.u32 %v2574, 4294901760
  %v2576 = vsub.f32 %v2574, %v2575
  %v2577 = vand.u32 %v2576, 4294901760
  %2578 = vmatpush.msra.mxu0 %v2577
  %v2579 = vand.u32 %v138, 4294901760
  %v2580 = vsub.f32 %v138, %v2579
  %v2581 = vand.u32 %v2580, 4294901760
  %v2582 = vsub.f32 %v2580, %v2581
  %v2583 = vand.u32 %v2582, 4294901760
  %2584 = vmatpush.msra.mxu0 %v2583
  %v2585 = vand.u32 %v137, 4294901760
  %v2586 = vsub.f32 %v137, %v2585
  %v2587 = vand.u32 %v2586, 4294901760
  %v2588 = vsub.f32 %v2586, %v2587
  %v2589 = vand.u32 %v2588, 4294901760
  %2590 = vmatpush.msra.mxu0 %v2589
  %v2591 = vand.u32 %v136, 4294901760
  %v2592 = vsub.f32 %v136, %v2591
  %v2593 = vand.u32 %v2592, 4294901760
  %v2594 = vsub.f32 %v2592, %v2593
  %v2595 = vand.u32 %v2594, 4294901760
  %2596 = vmatpush.msra.mxu0 %v2595
  %v2597 = vand.u32 %v135, 4294901760
  %v2598 = vsub.f32 %v135, %v2597
  %v2599 = vand.u32 %v2598, 4294901760
  %v2600 = vsub.f32 %v2598, %v2599
  %v2601 = vand.u32 %v2600, 4294901760
  %2602 = vmatpush.msra.mxu0 %v2601
  %v2603 = vand.u32 %v134, 4294901760
  %v2604 = vsub.f32 %v134, %v2603
  %v2605 = vand.u32 %v2604, 4294901760
  %v2606 = vsub.f32 %v2604, %v2605
  %v2607 = vand.u32 %v2606, 4294901760
  %2608 = vmatpush.msra.mxu0 %v2607
  %v2609 = vand.u32 %v20, 4294901760
  %2610 = vmatmul.f32.gmra.mxu0 %v2609
  %v2611 = vpop.f32.mrf.mxu0
  %v2612 = vadd.f32 %v2511, %v2611
  %2613 = vdwg.mxu0
  %v2614 = vand.u32 %v149, 4294901760
  %v2615 = vsub.f32 %v149, %v2614
  %2616 = vmatpush.msra.mxu0 %v2615
  %v2617 = vand.u32 %v148, 4294901760
  %v2618 = vsub.f32 %v148, %v2617
  %2619 = vmatpush.msra.mxu0 %v2618
  %v2620 = vand.u32 %v147, 4294901760
  %v2621 = vsub.f32 %v147, %v2620
  %2622 = vmatpush.msra.mxu0 %v2621
  %v2623 = vand.u32 %v146, 4294901760
  %v2624 = vsub.f32 %v146, %v2623
  %2625 = vmatpush.msra.mxu0 %v2624
  %v2626 = vand.u32 %v145, 4294901760
  %v2627 = vsub.f32 %v145, %v2626
  %2628 = vmatpush.msra.mxu0 %v2627
  %v2629 = vand.u32 %v144, 4294901760
  %v2630 = vsub.f32 %v144, %v2629
  %2631 = vmatpush.msra.mxu0 %v2630
  %v2632 = vand.u32 %v143, 4294901760
  %v2633 = vsub.f32 %v143, %v2632
  %2634 = vmatpush.msra.mxu0 %v2633
  %v2635 = vand.u32 %v142, 4294901760
  %v2636 = vsub.f32 %v142, %v2635
  %2637 = vmatpush.msra.mxu0 %v2636
  %v2638 = vand.u32 %v141, 4294901760
  %v2639 = vsub.f32 %v141, %v2638
  %2640 = vmatpush.msra.mxu0 %v2639
  %v2641 = vand.u32 %v140, 4294901760
  %v2642 = vsub.f32 %v140, %v2641
  %2643 = vmatpush.msra.mxu0 %v2642
  %v2644 = vand.u32 %v139, 4294901760
  %v2645 = vsub.f32 %v139, %v2644
  %2646 = vmatpush.msra.mxu0 %v2645
  %v2647 = vand.u32 %v138, 4294901760
  %v2648 = vsub.f32 %v138, %v2647
  %2649 = vmatpush.msra.mxu0 %v2648
  %v2650 = vand.u32 %v137, 4294901760
  %v2651 = vsub.f32 %v137, %v2650
  %2652 = vmatpush.msra.mxu0 %v2651
  %v2653 = vand.u32 %v136, 4294901760
  %v2654 = vsub.f32 %v136, %v2653
  %2655 = vmatpush.msra.mxu0 %v2654
  %v2656 = vand.u32 %v135, 4294901760
  %v2657 = vsub.f32 %v135, %v2656
  %2658 = vmatpush.msra.mxu0 %v2657
  %v2659 = vand.u32 %v134, 4294901760
  %v2660 = vsub.f32 %v134, %v2659
  %2661 = vmatpush.msra.mxu0 %v2660
  %v2662 = vand.u32 %v20, 4294901760
  %v2663 = vsub.f32 %v20, %v2662
  %2664 = vmatmul.f32.gmra.mxu0 %v2663
  %v2665 = vpop.f32.mrf.mxu0
  %v2666 = vadd.f32 %v2612, %v2665
  %2667 = vdwg.mxu0
  %v2668 = vand.u32 %v149, 4294901760
  %2669 = vmatpush.msra.mxu0 %v2668
  %v2670 = vand.u32 %v148, 4294901760
  %2671 = vmatpush.msra.mxu0 %v2670
  %v2672 = vand.u32 %v147, 4294901760
  %2673 = vmatpush.msra.mxu0 %v2672
  %v2674 = vand.u32 %v146, 4294901760
  %2675 = vmatpush.msra.mxu0 %v2674
  %v2676 = vand.u32 %v145, 4294901760
  %2677 = vmatpush.msra.mxu0 %v2676
  %v2678 = vand.u32 %v144, 4294901760
  %2679 = vmatpush.msra.mxu0 %v2678
  %v2680 = vand.u32 %v143, 4294901760
  %2681 = vmatpush.msra.mxu0 %v2680
  %v2682 = vand.u32 %v142, 4294901760
  %2683 = vmatpush.msra.mxu0 %v2682
  %v2684 = vand.u32 %v141, 4294901760
  %2685 = vmatpush.msra.mxu0 %v2684
  %v2686 = vand.u32 %v140, 4294901760
  %2687 = vmatpush.msra.mxu0 %v2686
  %v2688 = vand.u32 %v139, 4294901760
  %2689 = vmatpush.msra.mxu0 %v2688
  %v2690 = vand.u32 %v138, 4294901760
  %2691 = vmatpush.msra.mxu0 %v2690
  %v2692 = vand.u32 %v137, 4294901760
  %2693 = vmatpush.msra.mxu0 %v2692
  %v2694 = vand.u32 %v136, 4294901760
  %2695 = vmatpush.msra.mxu0 %v2694
  %v2696 = vand.u32 %v135, 4294901760
  %2697 = vmatpush.msra.mxu0 %v2696
  %v2698 = vand.u32 %v134, 4294901760
  %2699 = vmatpush.msra.mxu0 %v2698
  %v2700 = vand.u32 %v20, 4294901760
  %v2701 = vsub.f32 %v20, %v2700
  %v2702 = vand.u32 %v2701, 4294901760
  %2703 = vmatmul.f32.gmra.mxu0 %v2702
  %v2704 = vpop.f32.mrf.mxu0
  %v2705 = vadd.f32 %v2666, %v2704
  %2706 = vdwg.mxu0
  %v2707 = vand.u32 %v149, 4294901760
  %v2708 = vsub.f32 %v149, %v2707
  %v2709 = vand.u32 %v2708, 4294901760
  %2710 = vmatpush.msra.mxu0 %v2709
  %v2711 = vand.u32 %v148, 4294901760
  %v2712 = vsub.f32 %v148, %v2711
  %v2713 = vand.u32 %v2712, 4294901760
  %2714 = vmatpush.msra.mxu0 %v2713
  %v2715 = vand.u32 %v147, 4294901760
  %v2716 = vsub.f32 %v147, %v2715
  %v2717 = vand.u32 %v2716, 4294901760
  %2718 = vmatpush.msra.mxu0 %v2717
  %v2719 = vand.u32 %v146, 4294901760
  %v2720 = vsub.f32 %v146, %v2719
  %v2721 = vand.u32 %v2720, 4294901760
  %2722 = vmatpush.msra.mxu0 %v2721
  %v2723 = vand.u32 %v145, 4294901760
  %v2724 = vsub.f32 %v145, %v2723
  %v2725 = vand.u32 %v2724, 4294901760
  %2726 = vmatpush.msra.mxu0 %v2725
  %v2727 = vand.u32 %v144, 4294901760
  %v2728 = vsub.f32 %v144, %v2727
  %v2729 = vand.u32 %v2728, 4294901760
  %2730 = vmatpush.msra.mxu0 %v2729
  %v2731 = vand.u32 %v143, 4294901760
  %v2732 = vsub.f32 %v143, %v2731
  %v2733 = vand.u32 %v2732, 4294901760
  %2734 = vmatpush.msra.mxu0 %v2733
  %v2735 = vand.u32 %v142, 4294901760
  %v2736 = vsub.f32 %v142, %v2735
  %v2737 = vand.u32 %v2736, 4294901760
  %2738 = vmatpush.msra.mxu0 %v2737
  %v2739 = vand.u32 %v141, 4294901760
  %v2740 = vsub.f32 %v141, %v2739
  %v2741 = vand.u32 %v2740, 4294901760
  %2742 = vmatpush.msra.mxu0 %v2741
  %v2743 = vand.u32 %v140, 4294901760
  %v2744 = vsub.f32 %v140, %v2743
  %v2745 = vand.u32 %v2744, 4294901760
  %2746 = vmatpush.msra.mxu0 %v2745
  %v2747 = vand.u32 %v139, 4294901760
  %v2748 = vsub.f32 %v139, %v2747
  %v2749 = vand.u32 %v2748, 4294901760
  %2750 = vmatpush.msra.mxu0 %v2749
  %v2751 = vand.u32 %v138, 4294901760
  %v2752 = vsub.f32 %v138, %v2751
  %v2753 = vand.u32 %v2752, 4294901760
  %2754 = vmatpush.msra.mxu0 %v2753
  %v2755 = vand.u32 %v137, 4294901760
  %v2756 = vsub.f32 %v137, %v2755
  %v2757 = vand.u32 %v2756, 4294901760
  %2758 = vmatpush.msra.mxu0 %v2757
  %v2759 = vand.u32 %v136, 4294901760
  %v2760 = vsub.f32 %v136, %v2759
  %v2761 = vand.u32 %v2760, 4294901760
  %2762 = vmatpush.msra.mxu0 %v2761
  %v2763 = vand.u32 %v135, 4294901760
  %v2764 = vsub.f32 %v135, %v2763
  %v2765 = vand.u32 %v2764, 4294901760
  %2766 = vmatpush.msra.mxu0 %v2765
  %v2767 = vand.u32 %v134, 4294901760
  %v2768 = vsub.f32 %v134, %v2767
  %v2769 = vand.u32 %v2768, 4294901760
  %2770 = vmatpush.msra.mxu0 %v2769
  %v2771 = vand.u32 %v20, 4294901760
  %2772 = vmatmul.f32.gmra.mxu0 %v2771
  %v2773 = vpop.f32.mrf.mxu0
  %v2774 = vadd.f32 %v2705, %v2773
  %2775 = vdwg.mxu0
  %v2776 = vand.u32 %v149, 4294901760
  %2777 = vmatpush.msra.mxu0 %v2776
  %v2778 = vand.u32 %v148, 4294901760
  %2779 = vmatpush.msra.mxu0 %v2778
  %v2780 = vand.u32 %v147, 4294901760
  %2781 = vmatpush.msra.mxu0 %v2780
  %v2782 = vand.u32 %v146, 4294901760
  %2783 = vmatpush.msra.mxu0 %v2782
  %v2784 = vand.u32 %v145, 4294901760
  %2785 = vmatpush.msra.mxu0 %v2784
  %v2786 = vand.u32 %v144, 4294901760
  %2787 = vmatpush.msra.mxu0 %v2786
  %v2788 = vand.u32 %v143, 4294901760
  %2789 = vmatpush.msra.mxu0 %v2788
  %v2790 = vand.u32 %v142, 4294901760
  %2791 = vmatpush.msra.mxu0 %v2790
  %v2792 = vand.u32 %v141, 4294901760
  %2793 = vmatpush.msra.mxu0 %v2792
  %v2794 = vand.u32 %v140, 4294901760
  %2795 = vmatpush.msra.mxu0 %v2794
  %v2796 = vand.u32 %v139, 4294901760
  %2797 = vmatpush.msra.mxu0 %v2796
  %v2798 = vand.u32 %v138, 4294901760
  %2799 = vmatpush.msra.mxu0 %v2798
  %v2800 = vand.u32 %v137, 4294901760
  %2801 = vmatpush.msra.mxu0 %v2800
  %v2802 = vand.u32 %v136, 4294901760
  %2803 = vmatpush.msra.mxu0 %v2802
  %v2804 = vand.u32 %v135, 4294901760
  %2805 = vmatpush.msra.mxu0 %v2804
  %v2806 = vand.u32 %v134, 4294901760
  %2807 = vmatpush.msra.mxu0 %v2806
  %v2808 = vand.u32 %v20, 4294901760
  %2809 = vmatmul.f32.gmra.mxu0 %v2808
  %v2810 = vpop.f32.mrf.mxu0
  %v2811 = vadd.f32 %v2774, %v2810
  %2812 = vdwg.mxu0
  %v2813 = vand.u32 %v165, 4294901760
  %2814 = vmatpush.msra.mxu0 %v2813
  %v2815 = vand.u32 %v164, 4294901760
  %2816 = vmatpush.msra.mxu0 %v2815
  %v2817 = vand.u32 %v163, 4294901760
  %2818 = vmatpush.msra.mxu0 %v2817
  %v2819 = vand.u32 %v162, 4294901760
  %2820 = vmatpush.msra.mxu0 %v2819
  %v2821 = vand.u32 %v161, 4294901760
  %2822 = vmatpush.msra.mxu0 %v2821
  %v2823 = vand.u32 %v160, 4294901760
  %2824 = vmatpush.msra.mxu0 %v2823
  %v2825 = vand.u32 %v159, 4294901760
  %2826 = vmatpush.msra.mxu0 %v2825
  %v2827 = vand.u32 %v158, 4294901760
  %2828 = vmatpush.msra.mxu0 %v2827
  %v2829 = vand.u32 %v157, 4294901760
  %2830 = vmatpush.msra.mxu0 %v2829
  %v2831 = vand.u32 %v156, 4294901760
  %2832 = vmatpush.msra.mxu0 %v2831
  %v2833 = vand.u32 %v155, 4294901760
  %2834 = vmatpush.msra.mxu0 %v2833
  %v2835 = vand.u32 %v154, 4294901760
  %2836 = vmatpush.msra.mxu0 %v2835
  %v2837 = vand.u32 %v153, 4294901760
  %2838 = vmatpush.msra.mxu0 %v2837
  %v2839 = vand.u32 %v152, 4294901760
  %2840 = vmatpush.msra.mxu0 %v2839
  %v2841 = vand.u32 %v151, 4294901760
  %2842 = vmatpush.msra.mxu0 %v2841
  %v2843 = vand.u32 %v150, 4294901760
  %2844 = vmatpush.msra.mxu0 %v2843
  %v2845 = vand.u32 %v21, 4294901760
  %v2846 = vsub.f32 %v21, %v2845
  %v2847 = vand.u32 %v2846, 4294901760
  %v2848 = vsub.f32 %v2846, %v2847
  %v2849 = vand.u32 %v2848, 4294901760
  %2850 = vmatmul.f32.gmra.mxu0 %v2849
  %v2851 = vpop.f32.mrf.mxu0
  %v2852 = vadd.f32 %v2811, %v2851
  %2853 = vdwg.mxu0
  %v2854 = vand.u32 %v165, 4294901760
  %v2855 = vsub.f32 %v165, %v2854
  %v2856 = vand.u32 %v2855, 4294901760
  %v2857 = vsub.f32 %v2855, %v2856
  %v2858 = vand.u32 %v2857, 4294901760
  %2859 = vmatpush.msra.mxu0 %v2858
  %v2860 = vand.u32 %v164, 4294901760
  %v2861 = vsub.f32 %v164, %v2860
  %v2862 = vand.u32 %v2861, 4294901760
  %v2863 = vsub.f32 %v2861, %v2862
  %v2864 = vand.u32 %v2863, 4294901760
  %2865 = vmatpush.msra.mxu0 %v2864
  %v2866 = vand.u32 %v163, 4294901760
  %v2867 = vsub.f32 %v163, %v2866
  %v2868 = vand.u32 %v2867, 4294901760
  %v2869 = vsub.f32 %v2867, %v2868
  %v2870 = vand.u32 %v2869, 4294901760
  %2871 = vmatpush.msra.mxu0 %v2870
  %v2872 = vand.u32 %v162, 4294901760
  %v2873 = vsub.f32 %v162, %v2872
  %v2874 = vand.u32 %v2873, 4294901760
  %v2875 = vsub.f32 %v2873, %v2874
  %v2876 = vand.u32 %v2875, 4294901760
  %2877 = vmatpush.msra.mxu0 %v2876
  %v2878 = vand.u32 %v161, 4294901760
  %v2879 = vsub.f32 %v161, %v2878
  %v2880 = vand.u32 %v2879, 4294901760
  %v2881 = vsub.f32 %v2879, %v2880
  %v2882 = vand.u32 %v2881, 4294901760
  %2883 = vmatpush.msra.mxu0 %v2882
  %v2884 = vand.u32 %v160, 4294901760
  %v2885 = vsub.f32 %v160, %v2884
  %v2886 = vand.u32 %v2885, 4294901760
  %v2887 = vsub.f32 %v2885, %v2886
  %v2888 = vand.u32 %v2887, 4294901760
  %2889 = vmatpush.msra.mxu0 %v2888
  %v2890 = vand.u32 %v159, 4294901760
  %v2891 = vsub.f32 %v159, %v2890
  %v2892 = vand.u32 %v2891, 4294901760
  %v2893 = vsub.f32 %v2891, %v2892
  %v2894 = vand.u32 %v2893, 4294901760
  %2895 = vmatpush.msra.mxu0 %v2894
  %v2896 = vand.u32 %v158, 4294901760
  %v2897 = vsub.f32 %v158, %v2896
  %v2898 = vand.u32 %v2897, 4294901760
  %v2899 = vsub.f32 %v2897, %v2898
  %v2900 = vand.u32 %v2899, 4294901760
  %2901 = vmatpush.msra.mxu0 %v2900
  %v2902 = vand.u32 %v157, 4294901760
  %v2903 = vsub.f32 %v157, %v2902
  %v2904 = vand.u32 %v2903, 4294901760
  %v2905 = vsub.f32 %v2903, %v2904
  %v2906 = vand.u32 %v2905, 4294901760
  %2907 = vmatpush.msra.mxu0 %v2906
  %v2908 = vand.u32 %v156, 4294901760
  %v2909 = vsub.f32 %v156, %v2908
  %v2910 = vand.u32 %v2909, 4294901760
  %v2911 = vsub.f32 %v2909, %v2910
  %v2912 = vand.u32 %v2911, 4294901760
  %2913 = vmatpush.msra.mxu0 %v2912
  %v2914 = vand.u32 %v155, 4294901760
  %v2915 = vsub.f32 %v155, %v2914
  %v2916 = vand.u32 %v2915, 4294901760
  %v2917 = vsub.f32 %v2915, %v2916
  %v2918 = vand.u32 %v2917, 4294901760
  %2919 = vmatpush.msra.mxu0 %v2918
  %v2920 = vand.u32 %v154, 4294901760
  %v2921 = vsub.f32 %v154, %v2920
  %v2922 = vand.u32 %v2921, 4294901760
  %v2923 = vsub.f32 %v2921, %v2922
  %v2924 = vand.u32 %v2923, 4294901760
  %2925 = vmatpush.msra.mxu0 %v2924
  %v2926 = vand.u32 %v153, 4294901760
  %v2927 = vsub.f32 %v153, %v2926
  %v2928 = vand.u32 %v2927, 4294901760
  %v2929 = vsub.f32 %v2927, %v2928
  %v2930 = vand.u32 %v2929, 4294901760
  %2931 = vmatpush.msra.mxu0 %v2930
  %v2932 = vand.u32 %v152, 4294901760
  %v2933 = vsub.f32 %v152, %v2932
  %v2934 = vand.u32 %v2933, 4294901760
  %v2935 = vsub.f32 %v2933, %v2934
  %v2936 = vand.u32 %v2935, 4294901760
  %2937 = vmatpush.msra.mxu0 %v2936
  %v2938 = vand.u32 %v151, 4294901760
  %v2939 = vsub.f32 %v151, %v2938
  %v2940 = vand.u32 %v2939, 4294901760
  %v2941 = vsub.f32 %v2939, %v2940
  %v2942 = vand.u32 %v2941, 4294901760
  %2943 = vmatpush.msra.mxu0 %v2942
  %v2944 = vand.u32 %v150, 4294901760
  %v2945 = vsub.f32 %v150, %v2944
  %v2946 = vand.u32 %v2945, 4294901760
  %v2947 = vsub.f32 %v2945, %v2946
  %v2948 = vand.u32 %v2947, 4294901760
  %2949 = vmatpush.msra.mxu0 %v2948
  %v2950 = vand.u32 %v21, 4294901760
  %2951 = vmatmul.f32.gmra.mxu0 %v2950
  %v2952 = vpop.f32.mrf.mxu0
  %v2953 = vadd.f32 %v2852, %v2952
  %2954 = vdwg.mxu0
  %v2955 = vand.u32 %v165, 4294901760
  %v2956 = vsub.f32 %v165, %v2955
  %2957 = vmatpush.msra.mxu0 %v2956
  %v2958 = vand.u32 %v164, 4294901760
  %v2959 = vsub.f32 %v164, %v2958
  %2960 = vmatpush.msra.mxu0 %v2959
  %v2961 = vand.u32 %v163, 4294901760
  %v2962 = vsub.f32 %v163, %v2961
  %2963 = vmatpush.msra.mxu0 %v2962
  %v2964 = vand.u32 %v162, 4294901760
  %v2965 = vsub.f32 %v162, %v2964
  %2966 = vmatpush.msra.mxu0 %v2965
  %v2967 = vand.u32 %v161, 4294901760
  %v2968 = vsub.f32 %v161, %v2967
  %2969 = vmatpush.msra.mxu0 %v2968
  %v2970 = vand.u32 %v160, 4294901760
  %v2971 = vsub.f32 %v160, %v2970
  %2972 = vmatpush.msra.mxu0 %v2971
  %v2973 = vand.u32 %v159, 4294901760
  %v2974 = vsub.f32 %v159, %v2973
  %2975 = vmatpush.msra.mxu0 %v2974
  %v2976 = vand.u32 %v158, 4294901760
  %v2977 = vsub.f32 %v158, %v2976
  %2978 = vmatpush.msra.mxu0 %v2977
  %v2979 = vand.u32 %v157, 4294901760
  %v2980 = vsub.f32 %v157, %v2979
  %2981 = vmatpush.msra.mxu0 %v2980
  %v2982 = vand.u32 %v156, 4294901760
  %v2983 = vsub.f32 %v156, %v2982
  %2984 = vmatpush.msra.mxu0 %v2983
  %v2985 = vand.u32 %v155, 4294901760
  %v2986 = vsub.f32 %v155, %v2985
  %2987 = vmatpush.msra.mxu0 %v2986
  %v2988 = vand.u32 %v154, 4294901760
  %v2989 = vsub.f32 %v154, %v2988
  %2990 = vmatpush.msra.mxu0 %v2989
  %v2991 = vand.u32 %v153, 4294901760
  %v2992 = vsub.f32 %v153, %v2991
  %2993 = vmatpush.msra.mxu0 %v2992
  %v2994 = vand.u32 %v152, 4294901760
  %v2995 = vsub.f32 %v152, %v2994
  %2996 = vmatpush.msra.mxu0 %v2995
  %v2997 = vand.u32 %v151, 4294901760
  %v2998 = vsub.f32 %v151, %v2997
  %2999 = vmatpush.msra.mxu0 %v2998
  %v3000 = vand.u32 %v150, 4294901760
  %v3001 = vsub.f32 %v150, %v3000
  %3002 = vmatpush.msra.mxu0 %v3001
  %v3003 = vand.u32 %v21, 4294901760
  %v3004 = vsub.f32 %v21, %v3003
  %3005 = vmatmul.f32.gmra.mxu0 %v3004
  %v3006 = vpop.f32.mrf.mxu0
  %v3007 = vadd.f32 %v2953, %v3006
  %3008 = vdwg.mxu0
  %v3009 = vand.u32 %v165, 4294901760
  %3010 = vmatpush.msra.mxu0 %v3009
  %v3011 = vand.u32 %v164, 4294901760
  %3012 = vmatpush.msra.mxu0 %v3011
  %v3013 = vand.u32 %v163, 4294901760
  %3014 = vmatpush.msra.mxu0 %v3013
  %v3015 = vand.u32 %v162, 4294901760
  %3016 = vmatpush.msra.mxu0 %v3015
  %v3017 = vand.u32 %v161, 4294901760
  %3018 = vmatpush.msra.mxu0 %v3017
  %v3019 = vand.u32 %v160, 4294901760
  %3020 = vmatpush.msra.mxu0 %v3019
  %v3021 = vand.u32 %v159, 4294901760
  %3022 = vmatpush.msra.mxu0 %v3021
  %v3023 = vand.u32 %v158, 4294901760
  %3024 = vmatpush.msra.mxu0 %v3023
  %v3025 = vand.u32 %v157, 4294901760
  %3026 = vmatpush.msra.mxu0 %v3025
  %v3027 = vand.u32 %v156, 4294901760
  %3028 = vmatpush.msra.mxu0 %v3027
  %v3029 = vand.u32 %v155, 4294901760
  %3030 = vmatpush.msra.mxu0 %v3029
  %v3031 = vand.u32 %v154, 4294901760
  %3032 = vmatpush.msra.mxu0 %v3031
  %v3033 = vand.u32 %v153, 4294901760
  %3034 = vmatpush.msra.mxu0 %v3033
  %v3035 = vand.u32 %v152, 4294901760
  %3036 = vmatpush.msra.mxu0 %v3035
  %v3037 = vand.u32 %v151, 4294901760
  %3038 = vmatpush.msra.mxu0 %v3037
  %v3039 = vand.u32 %v150, 4294901760
  %3040 = vmatpush.msra.mxu0 %v3039
  %v3041 = vand.u32 %v21, 4294901760
  %v3042 = vsub.f32 %v21, %v3041
  %v3043 = vand.u32 %v3042, 4294901760
  %3044 = vmatmul.f32.gmra.mxu0 %v3043
  %v3045 = vpop.f32.mrf.mxu0
  %v3046 = vadd.f32 %v3007, %v3045
  %3047 = vdwg.mxu0
  %v3048 = vand.u32 %v165, 4294901760
  %v3049 = vsub.f32 %v165, %v3048
  %v3050 = vand.u32 %v3049, 4294901760
  %3051 = vmatpush.msra.mxu0 %v3050
  %v3052 = vand.u32 %v164, 4294901760
  %v3053 = vsub.f32 %v164, %v3052
  %v3054 = vand.u32 %v3053, 4294901760
  %3055 = vmatpush.msra.mxu0 %v3054
  %v3056 = vand.u32 %v163, 4294901760
  %v3057 = vsub.f32 %v163, %v3056
  %v3058 = vand.u32 %v3057, 4294901760
  %3059 = vmatpush.msra.mxu0 %v3058
  %v3060 = vand.u32 %v162, 4294901760
  %v3061 = vsub.f32 %v162, %v3060
  %v3062 = vand.u32 %v3061, 4294901760
  %3063 = vmatpush.msra.mxu0 %v3062
  %v3064 = vand.u32 %v161, 4294901760
  %v3065 = vsub.f32 %v161, %v3064
  %v3066 = vand.u32 %v3065, 4294901760
  %3067 = vmatpush.msra.mxu0 %v3066
  %v3068 = vand.u32 %v160, 4294901760
  %v3069 = vsub.f32 %v160, %v3068
  %v3070 = vand.u32 %v3069, 4294901760
  %3071 = vmatpush.msra.mxu0 %v3070
  %v3072 = vand.u32 %v159, 4294901760
  %v3073 = vsub.f32 %v159, %v3072
  %v3074 = vand.u32 %v3073, 4294901760
  %3075 = vmatpush.msra.mxu0 %v3074
  %v3076 = vand.u32 %v158, 4294901760
  %v3077 = vsub.f32 %v158, %v3076
  %v3078 = vand.u32 %v3077, 4294901760
  %3079 = vmatpush.msra.mxu0 %v3078
  %v3080 = vand.u32 %v157, 4294901760
  %v3081 = vsub.f32 %v157, %v3080
  %v3082 = vand.u32 %v3081, 4294901760
  %3083 = vmatpush.msra.mxu0 %v3082
  %v3084 = vand.u32 %v156, 4294901760
  %v3085 = vsub.f32 %v156, %v3084
  %v3086 = vand.u32 %v3085, 4294901760
  %3087 = vmatpush.msra.mxu0 %v3086
  %v3088 = vand.u32 %v155, 4294901760
  %v3089 = vsub.f32 %v155, %v3088
  %v3090 = vand.u32 %v3089, 4294901760
  %3091 = vmatpush.msra.mxu0 %v3090
  %v3092 = vand.u32 %v154, 4294901760
  %v3093 = vsub.f32 %v154, %v3092
  %v3094 = vand.u32 %v3093, 4294901760
  %3095 = vmatpush.msra.mxu0 %v3094
  %v3096 = vand.u32 %v153, 4294901760
  %v3097 = vsub.f32 %v153, %v3096
  %v3098 = vand.u32 %v3097, 4294901760
  %3099 = vmatpush.msra.mxu0 %v3098
  %v3100 = vand.u32 %v152, 4294901760
  %v3101 = vsub.f32 %v152, %v3100
  %v3102 = vand.u32 %v3101, 4294901760
  %3103 = vmatpush.msra.mxu0 %v3102
  %v3104 = vand.u32 %v151, 4294901760
  %v3105 = vsub.f32 %v151, %v3104
  %v3106 = vand.u32 %v3105, 4294901760
  %3107 = vmatpush.msra.mxu0 %v3106
  %v3108 = vand.u32 %v150, 4294901760
  %v3109 = vsub.f32 %v150, %v3108
  %v3110 = vand.u32 %v3109, 4294901760
  %3111 = vmatpush.msra.mxu0 %v3110
  %v3112 = vand.u32 %v21, 4294901760
  %3113 = vmatmul.f32.gmra.mxu0 %v3112
  %v3114 = vpop.f32.mrf.mxu0
  %v3115 = vadd.f32 %v3046, %v3114
  %3116 = vdwg.mxu0
  %v3117 = vand.u32 %v165, 4294901760
  %3118 = vmatpush.msra.mxu0 %v3117
  %v3119 = vand.u32 %v164, 4294901760
  %3120 = vmatpush.msra.mxu0 %v3119
  %v3121 = vand.u32 %v163, 4294901760
  %3122 = vmatpush.msra.mxu0 %v3121
  %v3123 = vand.u32 %v162, 4294901760
  %3124 = vmatpush.msra.mxu0 %v3123
  %v3125 = vand.u32 %v161, 4294901760
  %3126 = vmatpush.msra.mxu0 %v3125
  %v3127 = vand.u32 %v160, 4294901760
  %3128 = vmatpush.msra.mxu0 %v3127
  %v3129 = vand.u32 %v159, 4294901760
  %3130 = vmatpush.msra.mxu0 %v3129
  %v3131 = vand.u32 %v158, 4294901760
  %3132 = vmatpush.msra.mxu0 %v3131
  %v3133 = vand.u32 %v157, 4294901760
  %3134 = vmatpush.msra.mxu0 %v3133
  %v3135 = vand.u32 %v156, 4294901760
  %3136 = vmatpush.msra.mxu0 %v3135
  %v3137 = vand.u32 %v155, 4294901760
  %3138 = vmatpush.msra.mxu0 %v3137
  %v3139 = vand.u32 %v154, 4294901760
  %3140 = vmatpush.msra.mxu0 %v3139
  %v3141 = vand.u32 %v153, 4294901760
  %3142 = vmatpush.msra.mxu0 %v3141
  %v3143 = vand.u32 %v152, 4294901760
  %3144 = vmatpush.msra.mxu0 %v3143
  %v3145 = vand.u32 %v151, 4294901760
  %3146 = vmatpush.msra.mxu0 %v3145
  %v3147 = vand.u32 %v150, 4294901760
  %3148 = vmatpush.msra.mxu0 %v3147
  %v3149 = vand.u32 %v21, 4294901760
  %3150 = vmatmul.f32.gmra.mxu0 %v3149
  %v3151 = vpop.f32.mrf.mxu0
  %v3152 = vadd.f32 %v3115, %v3151
  %3153 = vdwg.mxu0
  %v3154 = vand.u32 %v181, 4294901760
  %3155 = vmatpush.msra.mxu0 %v3154
  %v3156 = vand.u32 %v180, 4294901760
  %3157 = vmatpush.msra.mxu0 %v3156
  %v3158 = vand.u32 %v179, 4294901760
  %3159 = vmatpush.msra.mxu0 %v3158
  %v3160 = vand.u32 %v178, 4294901760
  %3161 = vmatpush.msra.mxu0 %v3160
  %v3162 = vand.u32 %v177, 4294901760
  %3163 = vmatpush.msra.mxu0 %v3162
  %v3164 = vand.u32 %v176, 4294901760
  %3165 = vmatpush.msra.mxu0 %v3164
  %v3166 = vand.u32 %v175, 4294901760
  %3167 = vmatpush.msra.mxu0 %v3166
  %v3168 = vand.u32 %v174, 4294901760
  %3169 = vmatpush.msra.mxu0 %v3168
  %v3170 = vand.u32 %v173, 4294901760
  %3171 = vmatpush.msra.mxu0 %v3170
  %v3172 = vand.u32 %v172, 4294901760
  %3173 = vmatpush.msra.mxu0 %v3172
  %v3174 = vand.u32 %v171, 4294901760
  %3175 = vmatpush.msra.mxu0 %v3174
  %v3176 = vand.u32 %v170, 4294901760
  %3177 = vmatpush.msra.mxu0 %v3176
  %v3178 = vand.u32 %v169, 4294901760
  %3179 = vmatpush.msra.mxu0 %v3178
  %v3180 = vand.u32 %v168, 4294901760
  %3181 = vmatpush.msra.mxu0 %v3180
  %v3182 = vand.u32 %v167, 4294901760
  %3183 = vmatpush.msra.mxu0 %v3182
  %v3184 = vand.u32 %v166, 4294901760
  %3185 = vmatpush.msra.mxu0 %v3184
  %v3186 = vand.u32 %v22, 4294901760
  %v3187 = vsub.f32 %v22, %v3186
  %v3188 = vand.u32 %v3187, 4294901760
  %v3189 = vsub.f32 %v3187, %v3188
  %v3190 = vand.u32 %v3189, 4294901760
  %3191 = vmatmul.f32.gmra.mxu0 %v3190
  %v3192 = vpop.f32.mrf.mxu0
  %v3193 = vadd.f32 %v3152, %v3192
  %3194 = vdwg.mxu0
  %v3195 = vand.u32 %v181, 4294901760
  %v3196 = vsub.f32 %v181, %v3195
  %v3197 = vand.u32 %v3196, 4294901760
  %v3198 = vsub.f32 %v3196, %v3197
  %v3199 = vand.u32 %v3198, 4294901760
  %3200 = vmatpush.msra.mxu0 %v3199
  %v3201 = vand.u32 %v180, 4294901760
  %v3202 = vsub.f32 %v180, %v3201
  %v3203 = vand.u32 %v3202, 4294901760
  %v3204 = vsub.f32 %v3202, %v3203
  %v3205 = vand.u32 %v3204, 4294901760
  %3206 = vmatpush.msra.mxu0 %v3205
  %v3207 = vand.u32 %v179, 4294901760
  %v3208 = vsub.f32 %v179, %v3207
  %v3209 = vand.u32 %v3208, 4294901760
  %v3210 = vsub.f32 %v3208, %v3209
  %v3211 = vand.u32 %v3210, 4294901760
  %3212 = vmatpush.msra.mxu0 %v3211
  %v3213 = vand.u32 %v178, 4294901760
  %v3214 = vsub.f32 %v178, %v3213
  %v3215 = vand.u32 %v3214, 4294901760
  %v3216 = vsub.f32 %v3214, %v3215
  %v3217 = vand.u32 %v3216, 4294901760
  %3218 = vmatpush.msra.mxu0 %v3217
  %v3219 = vand.u32 %v177, 4294901760
  %v3220 = vsub.f32 %v177, %v3219
  %v3221 = vand.u32 %v3220, 4294901760
  %v3222 = vsub.f32 %v3220, %v3221
  %v3223 = vand.u32 %v3222, 4294901760
  %3224 = vmatpush.msra.mxu0 %v3223
  %v3225 = vand.u32 %v176, 4294901760
  %v3226 = vsub.f32 %v176, %v3225
  %v3227 = vand.u32 %v3226, 4294901760
  %v3228 = vsub.f32 %v3226, %v3227
  %v3229 = vand.u32 %v3228, 4294901760
  %3230 = vmatpush.msra.mxu0 %v3229
  %v3231 = vand.u32 %v175, 4294901760
  %v3232 = vsub.f32 %v175, %v3231
  %v3233 = vand.u32 %v3232, 4294901760
  %v3234 = vsub.f32 %v3232, %v3233
  %v3235 = vand.u32 %v3234, 4294901760
  %3236 = vmatpush.msra.mxu0 %v3235
  %v3237 = vand.u32 %v174, 4294901760
  %v3238 = vsub.f32 %v174, %v3237
  %v3239 = vand.u32 %v3238, 4294901760
  %v3240 = vsub.f32 %v3238, %v3239
  %v3241 = vand.u32 %v3240, 4294901760
  %3242 = vmatpush.msra.mxu0 %v3241
  %v3243 = vand.u32 %v173, 4294901760
  %v3244 = vsub.f32 %v173, %v3243
  %v3245 = vand.u32 %v3244, 4294901760
  %v3246 = vsub.f32 %v3244, %v3245
  %v3247 = vand.u32 %v3246, 4294901760
  %3248 = vmatpush.msra.mxu0 %v3247
  %v3249 = vand.u32 %v172, 4294901760
  %v3250 = vsub.f32 %v172, %v3249
  %v3251 = vand.u32 %v3250, 4294901760
  %v3252 = vsub.f32 %v3250, %v3251
  %v3253 = vand.u32 %v3252, 4294901760
  %3254 = vmatpush.msra.mxu0 %v3253
  %v3255 = vand.u32 %v171, 4294901760
  %v3256 = vsub.f32 %v171, %v3255
  %v3257 = vand.u32 %v3256, 4294901760
  %v3258 = vsub.f32 %v3256, %v3257
  %v3259 = vand.u32 %v3258, 4294901760
  %3260 = vmatpush.msra.mxu0 %v3259
  %v3261 = vand.u32 %v170, 4294901760
  %v3262 = vsub.f32 %v170, %v3261
  %v3263 = vand.u32 %v3262, 4294901760
  %v3264 = vsub.f32 %v3262, %v3263
  %v3265 = vand.u32 %v3264, 4294901760
  %3266 = vmatpush.msra.mxu0 %v3265
  %v3267 = vand.u32 %v169, 4294901760
  %v3268 = vsub.f32 %v169, %v3267
  %v3269 = vand.u32 %v3268, 4294901760
  %v3270 = vsub.f32 %v3268, %v3269
  %v3271 = vand.u32 %v3270, 4294901760
  %3272 = vmatpush.msra.mxu0 %v3271
  %v3273 = vand.u32 %v168, 4294901760
  %v3274 = vsub.f32 %v168, %v3273
  %v3275 = vand.u32 %v3274, 4294901760
  %v3276 = vsub.f32 %v3274, %v3275
  %v3277 = vand.u32 %v3276, 4294901760
  %3278 = vmatpush.msra.mxu0 %v3277
  %v3279 = vand.u32 %v167, 4294901760
  %v3280 = vsub.f32 %v167, %v3279
  %v3281 = vand.u32 %v3280, 4294901760
  %v3282 = vsub.f32 %v3280, %v3281
  %v3283 = vand.u32 %v3282, 4294901760
  %3284 = vmatpush.msra.mxu0 %v3283
  %v3285 = vand.u32 %v166, 4294901760
  %v3286 = vsub.f32 %v166, %v3285
  %v3287 = vand.u32 %v3286, 4294901760
  %v3288 = vsub.f32 %v3286, %v3287
  %v3289 = vand.u32 %v3288, 4294901760
  %3290 = vmatpush.msra.mxu0 %v3289
  %v3291 = vand.u32 %v22, 4294901760
  %3292 = vmatmul.f32.gmra.mxu0 %v3291
  %v3293 = vpop.f32.mrf.mxu0
  %v3294 = vadd.f32 %v3193, %v3293
  %3295 = vdwg.mxu0
  %v3296 = vand.u32 %v181, 4294901760
  %v3297 = vsub.f32 %v181, %v3296
  %3298 = vmatpush.msra.mxu0 %v3297
  %v3299 = vand.u32 %v180, 4294901760
  %v3300 = vsub.f32 %v180, %v3299
  %3301 = vmatpush.msra.mxu0 %v3300
  %v3302 = vand.u32 %v179, 4294901760
  %v3303 = vsub.f32 %v179, %v3302
  %3304 = vmatpush.msra.mxu0 %v3303
  %v3305 = vand.u32 %v178, 4294901760
  %v3306 = vsub.f32 %v178, %v3305
  %3307 = vmatpush.msra.mxu0 %v3306
  %v3308 = vand.u32 %v177, 4294901760
  %v3309 = vsub.f32 %v177, %v3308
  %3310 = vmatpush.msra.mxu0 %v3309
  %v3311 = vand.u32 %v176, 4294901760
  %v3312 = vsub.f32 %v176, %v3311
  %3313 = vmatpush.msra.mxu0 %v3312
  %v3314 = vand.u32 %v175, 4294901760
  %v3315 = vsub.f32 %v175, %v3314
  %3316 = vmatpush.msra.mxu0 %v3315
  %v3317 = vand.u32 %v174, 4294901760
  %v3318 = vsub.f32 %v174, %v3317
  %3319 = vmatpush.msra.mxu0 %v3318
  %v3320 = vand.u32 %v173, 4294901760
  %v3321 = vsub.f32 %v173, %v3320
  %3322 = vmatpush.msra.mxu0 %v3321
  %v3323 = vand.u32 %v172, 4294901760
  %v3324 = vsub.f32 %v172, %v3323
  %3325 = vmatpush.msra.mxu0 %v3324
  %v3326 = vand.u32 %v171, 4294901760
  %v3327 = vsub.f32 %v171, %v3326
  %3328 = vmatpush.msra.mxu0 %v3327
  %v3329 = vand.u32 %v170, 4294901760
  %v3330 = vsub.f32 %v170, %v3329
  %3331 = vmatpush.msra.mxu0 %v3330
  %v3332 = vand.u32 %v169, 4294901760
  %v3333 = vsub.f32 %v169, %v3332
  %3334 = vmatpush.msra.mxu0 %v3333
  %v3335 = vand.u32 %v168, 4294901760
  %v3336 = vsub.f32 %v168, %v3335
  %3337 = vmatpush.msra.mxu0 %v3336
  %v3338 = vand.u32 %v167, 4294901760
  %v3339 = vsub.f32 %v167, %v3338
  %3340 = vmatpush.msra.mxu0 %v3339
  %v3341 = vand.u32 %v166, 4294901760
  %v3342 = vsub.f32 %v166, %v3341
  %3343 = vmatpush.msra.mxu0 %v3342
  %v3344 = vand.u32 %v22, 4294901760
  %v3345 = vsub.f32 %v22, %v3344
  %3346 = vmatmul.f32.gmra.mxu0 %v3345
  %v3347 = vpop.f32.mrf.mxu0
  %v3348 = vadd.f32 %v3294, %v3347
  %3349 = vdwg.mxu0
  %v3350 = vand.u32 %v181, 4294901760
  %3351 = vmatpush.msra.mxu0 %v3350
  %v3352 = vand.u32 %v180, 4294901760
  %3353 = vmatpush.msra.mxu0 %v3352
  %v3354 = vand.u32 %v179, 4294901760
  %3355 = vmatpush.msra.mxu0 %v3354
  %v3356 = vand.u32 %v178, 4294901760
  %3357 = vmatpush.msra.mxu0 %v3356
  %v3358 = vand.u32 %v177, 4294901760
  %3359 = vmatpush.msra.mxu0 %v3358
  %v3360 = vand.u32 %v176, 4294901760
  %3361 = vmatpush.msra.mxu0 %v3360
  %v3362 = vand.u32 %v175, 4294901760
  %3363 = vmatpush.msra.mxu0 %v3362
  %v3364 = vand.u32 %v174, 4294901760
  %3365 = vmatpush.msra.mxu0 %v3364
  %v3366 = vand.u32 %v173, 4294901760
  %3367 = vmatpush.msra.mxu0 %v3366
  %v3368 = vand.u32 %v172, 4294901760
  %3369 = vmatpush.msra.mxu0 %v3368
  %v3370 = vand.u32 %v171, 4294901760
  %3371 = vmatpush.msra.mxu0 %v3370
  %v3372 = vand.u32 %v170, 4294901760
  %3373 = vmatpush.msra.mxu0 %v3372
  %v3374 = vand.u32 %v169, 4294901760
  %3375 = vmatpush.msra.mxu0 %v3374
  %v3376 = vand.u32 %v168, 4294901760
  %3377 = vmatpush.msra.mxu0 %v3376
  %v3378 = vand.u32 %v167, 4294901760
  %3379 = vmatpush.msra.mxu0 %v3378
  %v3380 = vand.u32 %v166, 4294901760
  %3381 = vmatpush.msra.mxu0 %v3380
  %v3382 = vand.u32 %v22, 4294901760
  %v3383 = vsub.f32 %v22, %v3382
  %v3384 = vand.u32 %v3383, 4294901760
  %3385 = vmatmul.f32.gmra.mxu0 %v3384
  %v3386 = vpop.f32.mrf.mxu0
  %v3387 = vadd.f32 %v3348, %v3386
  %3388 = vdwg.mxu0
  %v3389 = vand.u32 %v181, 4294901760
  %v3390 = vsub.f32 %v181, %v3389
  %v3391 = vand.u32 %v3390, 4294901760
  %3392 = vmatpush.msra.mxu0 %v3391
  %v3393 = vand.u32 %v180, 4294901760
  %v3394 = vsub.f32 %v180, %v3393
  %v3395 = vand.u32 %v3394, 4294901760
  %3396 = vmatpush.msra.mxu0 %v3395
  %v3397 = vand.u32 %v179, 4294901760
  %v3398 = vsub.f32 %v179, %v3397
  %v3399 = vand.u32 %v3398, 4294901760
  %3400 = vmatpush.msra.mxu0 %v3399
  %v3401 = vand.u32 %v178, 4294901760
  %v3402 = vsub.f32 %v178, %v3401
  %v3403 = vand.u32 %v3402, 4294901760
  %3404 = vmatpush.msra.mxu0 %v3403
  %v3405 = vand.u32 %v177, 4294901760
  %v3406 = vsub.f32 %v177, %v3405
  %v3407 = vand.u32 %v3406, 4294901760
  %3408 = vmatpush.msra.mxu0 %v3407
  %v3409 = vand.u32 %v176, 4294901760
  %v3410 = vsub.f32 %v176, %v3409
  %v3411 = vand.u32 %v3410, 4294901760
  %3412 = vmatpush.msra.mxu0 %v3411
  %v3413 = vand.u32 %v175, 4294901760
  %v3414 = vsub.f32 %v175, %v3413
  %v3415 = vand.u32 %v3414, 4294901760
  %3416 = vmatpush.msra.mxu0 %v3415
  %v3417 = vand.u32 %v174, 4294901760
  %v3418 = vsub.f32 %v174, %v3417
  %v3419 = vand.u32 %v3418, 4294901760
  %3420 = vmatpush.msra.mxu0 %v3419
  %v3421 = vand.u32 %v173, 4294901760
  %v3422 = vsub.f32 %v173, %v3421
  %v3423 = vand.u32 %v3422, 4294901760
  %3424 = vmatpush.msra.mxu0 %v3423
  %v3425 = vand.u32 %v172, 4294901760
  %v3426 = vsub.f32 %v172, %v3425
  %v3427 = vand.u32 %v3426, 4294901760
  %3428 = vmatpush.msra.mxu0 %v3427
  %v3429 = vand.u32 %v171, 4294901760
  %v3430 = vsub.f32 %v171, %v3429
  %v3431 = vand.u32 %v3430, 4294901760
  %3432 = vmatpush.msra.mxu0 %v3431
  %v3433 = vand.u32 %v170, 4294901760
  %v3434 = vsub.f32 %v170, %v3433
  %v3435 = vand.u32 %v3434, 4294901760
  %3436 = vmatpush.msra.mxu0 %v3435
  %v3437 = vand.u32 %v169, 4294901760
  %v3438 = vsub.f32 %v169, %v3437
  %v3439 = vand.u32 %v3438, 4294901760
  %3440 = vmatpush.msra.mxu0 %v3439
  %v3441 = vand.u32 %v168, 4294901760
  %v3442 = vsub.f32 %v168, %v3441
  %v3443 = vand.u32 %v3442, 4294901760
  %3444 = vmatpush.msra.mxu0 %v3443
  %v3445 = vand.u32 %v167, 4294901760
  %v3446 = vsub.f32 %v167, %v3445
  %v3447 = vand.u32 %v3446, 4294901760
  %3448 = vmatpush.msra.mxu0 %v3447
  %v3449 = vand.u32 %v166, 4294901760
  %v3450 = vsub.f32 %v166, %v3449
  %v3451 = vand.u32 %v3450, 4294901760
  %3452 = vmatpush.msra.mxu0 %v3451
  %v3453 = vand.u32 %v22, 4294901760
  %3454 = vmatmul.f32.gmra.mxu0 %v3453
  %v3455 = vpop.f32.mrf.mxu0
  %v3456 = vadd.f32 %v3387, %v3455
  %3457 = vdwg.mxu0
  %v3458 = vand.u32 %v181, 4294901760
  %3459 = vmatpush.msra.mxu0 %v3458
  %v3460 = vand.u32 %v180, 4294901760
  %3461 = vmatpush.msra.mxu0 %v3460
  %v3462 = vand.u32 %v179, 4294901760
  %3463 = vmatpush.msra.mxu0 %v3462
  %v3464 = vand.u32 %v178, 4294901760
  %3465 = vmatpush.msra.mxu0 %v3464
  %v3466 = vand.u32 %v177, 4294901760
  %3467 = vmatpush.msra.mxu0 %v3466
  %v3468 = vand.u32 %v176, 4294901760
  %3469 = vmatpush.msra.mxu0 %v3468
  %v3470 = vand.u32 %v175, 4294901760
  %3471 = vmatpush.msra.mxu0 %v3470
  %v3472 = vand.u32 %v174, 4294901760
  %3473 = vmatpush.msra.mxu0 %v3472
  %v3474 = vand.u32 %v173, 4294901760
  %3475 = vmatpush.msra.mxu0 %v3474
  %v3476 = vand.u32 %v172, 4294901760
  %3477 = vmatpush.msra.mxu0 %v3476
  %v3478 = vand.u32 %v171, 4294901760
  %3479 = vmatpush.msra.mxu0 %v3478
  %v3480 = vand.u32 %v170, 4294901760
  %3481 = vmatpush.msra.mxu0 %v3480
  %v3482 = vand.u32 %v169, 4294901760
  %3483 = vmatpush.msra.mxu0 %v3482
  %v3484 = vand.u32 %v168, 4294901760
  %3485 = vmatpush.msra.mxu0 %v3484
  %v3486 = vand.u32 %v167, 4294901760
  %3487 = vmatpush.msra.mxu0 %v3486
  %v3488 = vand.u32 %v166, 4294901760
  %3489 = vmatpush.msra.mxu0 %v3488
  %v3490 = vand.u32 %v22, 4294901760
  %3491 = vmatmul.f32.gmra.mxu0 %v3490
  %v3492 = vpop.f32.mrf.mxu0
  %v3493 = vadd.f32 %v3456, %v3492
  %3494 = vdwg.mxu0
  %v3495 = vand.u32 %v197, 4294901760
  %3496 = vmatpush.msra.mxu0 %v3495
  %v3497 = vand.u32 %v196, 4294901760
  %3498 = vmatpush.msra.mxu0 %v3497
  %v3499 = vand.u32 %v195, 4294901760
  %3500 = vmatpush.msra.mxu0 %v3499
  %v3501 = vand.u32 %v194, 4294901760
  %3502 = vmatpush.msra.mxu0 %v3501
  %v3503 = vand.u32 %v193, 4294901760
  %3504 = vmatpush.msra.mxu0 %v3503
  %v3505 = vand.u32 %v192, 4294901760
  %3506 = vmatpush.msra.mxu0 %v3505
  %v3507 = vand.u32 %v191, 4294901760
  %3508 = vmatpush.msra.mxu0 %v3507
  %v3509 = vand.u32 %v190, 4294901760
  %3510 = vmatpush.msra.mxu0 %v3509
  %v3511 = vand.u32 %v189, 4294901760
  %3512 = vmatpush.msra.mxu0 %v3511
  %v3513 = vand.u32 %v188, 4294901760
  %3514 = vmatpush.msra.mxu0 %v3513
  %v3515 = vand.u32 %v187, 4294901760
  %3516 = vmatpush.msra.mxu0 %v3515
  %v3517 = vand.u32 %v186, 4294901760
  %3518 = vmatpush.msra.mxu0 %v3517
  %v3519 = vand.u32 %v185, 4294901760
  %3520 = vmatpush.msra.mxu0 %v3519
  %v3521 = vand.u32 %v184, 4294901760
  %3522 = vmatpush.msra.mxu0 %v3521
  %v3523 = vand.u32 %v183, 4294901760
  %3524 = vmatpush.msra.mxu0 %v3523
  %v3525 = vand.u32 %v182, 4294901760
  %3526 = vmatpush.msra.mxu0 %v3525
  %v3527 = vand.u32 %v23, 4294901760
  %v3528 = vsub.f32 %v23, %v3527
  %v3529 = vand.u32 %v3528, 4294901760
  %v3530 = vsub.f32 %v3528, %v3529
  %v3531 = vand.u32 %v3530, 4294901760
  %3532 = vmatmul.f32.gmra.mxu0 %v3531
  %v3533 = vpop.f32.mrf.mxu0
  %v3534 = vadd.f32 %v3493, %v3533
  %3535 = vdwg.mxu0
  %v3536 = vand.u32 %v197, 4294901760
  %v3537 = vsub.f32 %v197, %v3536
  %v3538 = vand.u32 %v3537, 4294901760
  %v3539 = vsub.f32 %v3537, %v3538
  %v3540 = vand.u32 %v3539, 4294901760
  %3541 = vmatpush.msra.mxu0 %v3540
  %v3542 = vand.u32 %v196, 4294901760
  %v3543 = vsub.f32 %v196, %v3542
  %v3544 = vand.u32 %v3543, 4294901760
  %v3545 = vsub.f32 %v3543, %v3544
  %v3546 = vand.u32 %v3545, 4294901760
  %3547 = vmatpush.msra.mxu0 %v3546
  %v3548 = vand.u32 %v195, 4294901760
  %v3549 = vsub.f32 %v195, %v3548
  %v3550 = vand.u32 %v3549, 4294901760
  %v3551 = vsub.f32 %v3549, %v3550
  %v3552 = vand.u32 %v3551, 4294901760
  %3553 = vmatpush.msra.mxu0 %v3552
  %v3554 = vand.u32 %v194, 4294901760
  %v3555 = vsub.f32 %v194, %v3554
  %v3556 = vand.u32 %v3555, 4294901760
  %v3557 = vsub.f32 %v3555, %v3556
  %v3558 = vand.u32 %v3557, 4294901760
  %3559 = vmatpush.msra.mxu0 %v3558
  %v3560 = vand.u32 %v193, 4294901760
  %v3561 = vsub.f32 %v193, %v3560
  %v3562 = vand.u32 %v3561, 4294901760
  %v3563 = vsub.f32 %v3561, %v3562
  %v3564 = vand.u32 %v3563, 4294901760
  %3565 = vmatpush.msra.mxu0 %v3564
  %v3566 = vand.u32 %v192, 4294901760
  %v3567 = vsub.f32 %v192, %v3566
  %v3568 = vand.u32 %v3567, 4294901760
  %v3569 = vsub.f32 %v3567, %v3568
  %v3570 = vand.u32 %v3569, 4294901760
  %3571 = vmatpush.msra.mxu0 %v3570
  %v3572 = vand.u32 %v191, 4294901760
  %v3573 = vsub.f32 %v191, %v3572
  %v3574 = vand.u32 %v3573, 4294901760
  %v3575 = vsub.f32 %v3573, %v3574
  %v3576 = vand.u32 %v3575, 4294901760
  %3577 = vmatpush.msra.mxu0 %v3576
  %v3578 = vand.u32 %v190, 4294901760
  %v3579 = vsub.f32 %v190, %v3578
  %v3580 = vand.u32 %v3579, 4294901760
  %v3581 = vsub.f32 %v3579, %v3580
  %v3582 = vand.u32 %v3581, 4294901760
  %3583 = vmatpush.msra.mxu0 %v3582
  %v3584 = vand.u32 %v189, 4294901760
  %v3585 = vsub.f32 %v189, %v3584
  %v3586 = vand.u32 %v3585, 4294901760
  %v3587 = vsub.f32 %v3585, %v3586
  %v3588 = vand.u32 %v3587, 4294901760
  %3589 = vmatpush.msra.mxu0 %v3588
  %v3590 = vand.u32 %v188, 4294901760
  %v3591 = vsub.f32 %v188, %v3590
  %v3592 = vand.u32 %v3591, 4294901760
  %v3593 = vsub.f32 %v3591, %v3592
  %v3594 = vand.u32 %v3593, 4294901760
  %3595 = vmatpush.msra.mxu0 %v3594
  %v3596 = vand.u32 %v187, 4294901760
  %v3597 = vsub.f32 %v187, %v3596
  %v3598 = vand.u32 %v3597, 4294901760
  %v3599 = vsub.f32 %v3597, %v3598
  %v3600 = vand.u32 %v3599, 4294901760
  %3601 = vmatpush.msra.mxu0 %v3600
  %v3602 = vand.u32 %v186, 4294901760
  %v3603 = vsub.f32 %v186, %v3602
  %v3604 = vand.u32 %v3603, 4294901760
  %v3605 = vsub.f32 %v3603, %v3604
  %v3606 = vand.u32 %v3605, 4294901760
  %3607 = vmatpush.msra.mxu0 %v3606
  %v3608 = vand.u32 %v185, 4294901760
  %v3609 = vsub.f32 %v185, %v3608
  %v3610 = vand.u32 %v3609, 4294901760
  %v3611 = vsub.f32 %v3609, %v3610
  %v3612 = vand.u32 %v3611, 4294901760
  %3613 = vmatpush.msra.mxu0 %v3612
  %v3614 = vand.u32 %v184, 4294901760
  %v3615 = vsub.f32 %v184, %v3614
  %v3616 = vand.u32 %v3615, 4294901760
  %v3617 = vsub.f32 %v3615, %v3616
  %v3618 = vand.u32 %v3617, 4294901760
  %3619 = vmatpush.msra.mxu0 %v3618
  %v3620 = vand.u32 %v183, 4294901760
  %v3621 = vsub.f32 %v183, %v3620
  %v3622 = vand.u32 %v3621, 4294901760
  %v3623 = vsub.f32 %v3621, %v3622
  %v3624 = vand.u32 %v3623, 4294901760
  %3625 = vmatpush.msra.mxu0 %v3624
  %v3626 = vand.u32 %v182, 4294901760
  %v3627 = vsub.f32 %v182, %v3626
  %v3628 = vand.u32 %v3627, 4294901760
  %v3629 = vsub.f32 %v3627, %v3628
  %v3630 = vand.u32 %v3629, 4294901760
  %3631 = vmatpush.msra.mxu0 %v3630
  %v3632 = vand.u32 %v23, 4294901760
  %3633 = vmatmul.f32.gmra.mxu0 %v3632
  %v3634 = vpop.f32.mrf.mxu0
  %v3635 = vadd.f32 %v3534, %v3634
  %3636 = vdwg.mxu0
  %v3637 = vand.u32 %v197, 4294901760
  %v3638 = vsub.f32 %v197, %v3637
  %3639 = vmatpush.msra.mxu0 %v3638
  %v3640 = vand.u32 %v196, 4294901760
  %v3641 = vsub.f32 %v196, %v3640
  %3642 = vmatpush.msra.mxu0 %v3641
  %v3643 = vand.u32 %v195, 4294901760
  %v3644 = vsub.f32 %v195, %v3643
  %3645 = vmatpush.msra.mxu0 %v3644
  %v3646 = vand.u32 %v194, 4294901760
  %v3647 = vsub.f32 %v194, %v3646
  %3648 = vmatpush.msra.mxu0 %v3647
  %v3649 = vand.u32 %v193, 4294901760
  %v3650 = vsub.f32 %v193, %v3649
  %3651 = vmatpush.msra.mxu0 %v3650
  %v3652 = vand.u32 %v192, 4294901760
  %v3653 = vsub.f32 %v192, %v3652
  %3654 = vmatpush.msra.mxu0 %v3653
  %v3655 = vand.u32 %v191, 4294901760
  %v3656 = vsub.f32 %v191, %v3655
  %3657 = vmatpush.msra.mxu0 %v3656
  %v3658 = vand.u32 %v190, 4294901760
  %v3659 = vsub.f32 %v190, %v3658
  %3660 = vmatpush.msra.mxu0 %v3659
  %v3661 = vand.u32 %v189, 4294901760
  %v3662 = vsub.f32 %v189, %v3661
  %3663 = vmatpush.msra.mxu0 %v3662
  %v3664 = vand.u32 %v188, 4294901760
  %v3665 = vsub.f32 %v188, %v3664
  %3666 = vmatpush.msra.mxu0 %v3665
  %v3667 = vand.u32 %v187, 4294901760
  %v3668 = vsub.f32 %v187, %v3667
  %3669 = vmatpush.msra.mxu0 %v3668
  %v3670 = vand.u32 %v186, 4294901760
  %v3671 = vsub.f32 %v186, %v3670
  %3672 = vmatpush.msra.mxu0 %v3671
  %v3673 = vand.u32 %v185, 4294901760
  %v3674 = vsub.f32 %v185, %v3673
  %3675 = vmatpush.msra.mxu0 %v3674
  %v3676 = vand.u32 %v184, 4294901760
  %v3677 = vsub.f32 %v184, %v3676
  %3678 = vmatpush.msra.mxu0 %v3677
  %v3679 = vand.u32 %v183, 4294901760
  %v3680 = vsub.f32 %v183, %v3679
  %3681 = vmatpush.msra.mxu0 %v3680
  %v3682 = vand.u32 %v182, 4294901760
  %v3683 = vsub.f32 %v182, %v3682
  %3684 = vmatpush.msra.mxu0 %v3683
  %v3685 = vand.u32 %v23, 4294901760
  %v3686 = vsub.f32 %v23, %v3685
  %3687 = vmatmul.f32.gmra.mxu0 %v3686
  %v3688 = vpop.f32.mrf.mxu0
  %v3689 = vadd.f32 %v3635, %v3688
  %3690 = vdwg.mxu0
  %v3691 = vand.u32 %v197, 4294901760
  %3692 = vmatpush.msra.mxu0 %v3691
  %v3693 = vand.u32 %v196, 4294901760
  %3694 = vmatpush.msra.mxu0 %v3693
  %v3695 = vand.u32 %v195, 4294901760
  %3696 = vmatpush.msra.mxu0 %v3695
  %v3697 = vand.u32 %v194, 4294901760
  %3698 = vmatpush.msra.mxu0 %v3697
  %v3699 = vand.u32 %v193, 4294901760
  %3700 = vmatpush.msra.mxu0 %v3699
  %v3701 = vand.u32 %v192, 4294901760
  %3702 = vmatpush.msra.mxu0 %v3701
  %v3703 = vand.u32 %v191, 4294901760
  %3704 = vmatpush.msra.mxu0 %v3703
  %v3705 = vand.u32 %v190, 4294901760
  %3706 = vmatpush.msra.mxu0 %v3705
  %v3707 = vand.u32 %v189, 4294901760
  %3708 = vmatpush.msra.mxu0 %v3707
  %v3709 = vand.u32 %v188, 4294901760
  %3710 = vmatpush.msra.mxu0 %v3709
  %v3711 = vand.u32 %v187, 4294901760
  %3712 = vmatpush.msra.mxu0 %v3711
  %v3713 = vand.u32 %v186, 4294901760
  %3714 = vmatpush.msra.mxu0 %v3713
  %v3715 = vand.u32 %v185, 4294901760
  %3716 = vmatpush.msra.mxu0 %v3715
  %v3717 = vand.u32 %v184, 4294901760
  %3718 = vmatpush.msra.mxu0 %v3717
  %v3719 = vand.u32 %v183, 4294901760
  %3720 = vmatpush.msra.mxu0 %v3719
  %v3721 = vand.u32 %v182, 4294901760
  %3722 = vmatpush.msra.mxu0 %v3721
  %v3723 = vand.u32 %v23, 4294901760
  %v3724 = vsub.f32 %v23, %v3723
  %v3725 = vand.u32 %v3724, 4294901760
  %3726 = vmatmul.f32.gmra.mxu0 %v3725
  %v3727 = vpop.f32.mrf.mxu0
  %v3728 = vadd.f32 %v3689, %v3727
  %3729 = vdwg.mxu0
  %v3730 = vand.u32 %v197, 4294901760
  %v3731 = vsub.f32 %v197, %v3730
  %v3732 = vand.u32 %v3731, 4294901760
  %3733 = vmatpush.msra.mxu0 %v3732
  %v3734 = vand.u32 %v196, 4294901760
  %v3735 = vsub.f32 %v196, %v3734
  %v3736 = vand.u32 %v3735, 4294901760
  %3737 = vmatpush.msra.mxu0 %v3736
  %v3738 = vand.u32 %v195, 4294901760
  %v3739 = vsub.f32 %v195, %v3738
  %v3740 = vand.u32 %v3739, 4294901760
  %3741 = vmatpush.msra.mxu0 %v3740
  %v3742 = vand.u32 %v194, 4294901760
  %v3743 = vsub.f32 %v194, %v3742
  %v3744 = vand.u32 %v3743, 4294901760
  %3745 = vmatpush.msra.mxu0 %v3744
  %v3746 = vand.u32 %v193, 4294901760
  %v3747 = vsub.f32 %v193, %v3746
  %v3748 = vand.u32 %v3747, 4294901760
  %3749 = vmatpush.msra.mxu0 %v3748
  %v3750 = vand.u32 %v192, 4294901760
  %v3751 = vsub.f32 %v192, %v3750
  %v3752 = vand.u32 %v3751, 4294901760
  %3753 = vmatpush.msra.mxu0 %v3752
  %v3754 = vand.u32 %v191, 4294901760
  %v3755 = vsub.f32 %v191, %v3754
  %v3756 = vand.u32 %v3755, 4294901760
  %3757 = vmatpush.msra.mxu0 %v3756
  %v3758 = vand.u32 %v190, 4294901760
  %v3759 = vsub.f32 %v190, %v3758
  %v3760 = vand.u32 %v3759, 4294901760
  %3761 = vmatpush.msra.mxu0 %v3760
  %v3762 = vand.u32 %v189, 4294901760
  %v3763 = vsub.f32 %v189, %v3762
  %v3764 = vand.u32 %v3763, 4294901760
  %3765 = vmatpush.msra.mxu0 %v3764
  %v3766 = vand.u32 %v188, 4294901760
  %v3767 = vsub.f32 %v188, %v3766
  %v3768 = vand.u32 %v3767, 4294901760
  %3769 = vmatpush.msra.mxu0 %v3768
  %v3770 = vand.u32 %v187, 4294901760
  %v3771 = vsub.f32 %v187, %v3770
  %v3772 = vand.u32 %v3771, 4294901760
  %3773 = vmatpush.msra.mxu0 %v3772
  %v3774 = vand.u32 %v186, 4294901760
  %v3775 = vsub.f32 %v186, %v3774
  %v3776 = vand.u32 %v3775, 4294901760
  %3777 = vmatpush.msra.mxu0 %v3776
  %v3778 = vand.u32 %v185, 4294901760
  %v3779 = vsub.f32 %v185, %v3778
  %v3780 = vand.u32 %v3779, 4294901760
  %3781 = vmatpush.msra.mxu0 %v3780
  %v3782 = vand.u32 %v184, 4294901760
  %v3783 = vsub.f32 %v184, %v3782
  %v3784 = vand.u32 %v3783, 4294901760
  %3785 = vmatpush.msra.mxu0 %v3784
  %v3786 = vand.u32 %v183, 4294901760
  %v3787 = vsub.f32 %v183, %v3786
  %v3788 = vand.u32 %v3787, 4294901760
  %3789 = vmatpush.msra.mxu0 %v3788
  %v3790 = vand.u32 %v182, 4294901760
  %v3791 = vsub.f32 %v182, %v3790
  %v3792 = vand.u32 %v3791, 4294901760
  %3793 = vmatpush.msra.mxu0 %v3792
  %v3794 = vand.u32 %v23, 4294901760
  %3795 = vmatmul.f32.gmra.mxu0 %v3794
  %v3796 = vpop.f32.mrf.mxu0
  %v3797 = vadd.f32 %v3728, %v3796
  %3798 = vdwg.mxu0
  %v3799 = vand.u32 %v197, 4294901760
  %3800 = vmatpush.msra.mxu0 %v3799
  %v3801 = vand.u32 %v196, 4294901760
  %3802 = vmatpush.msra.mxu0 %v3801
  %v3803 = vand.u32 %v195, 4294901760
  %3804 = vmatpush.msra.mxu0 %v3803
  %v3805 = vand.u32 %v194, 4294901760
  %3806 = vmatpush.msra.mxu0 %v3805
  %v3807 = vand.u32 %v193, 4294901760
  %3808 = vmatpush.msra.mxu0 %v3807
  %v3809 = vand.u32 %v192, 4294901760
  %3810 = vmatpush.msra.mxu0 %v3809
  %v3811 = vand.u32 %v191, 4294901760
  %3812 = vmatpush.msra.mxu0 %v3811
  %v3813 = vand.u32 %v190, 4294901760
  %3814 = vmatpush.msra.mxu0 %v3813
  %v3815 = vand.u32 %v189, 4294901760
  %3816 = vmatpush.msra.mxu0 %v3815
  %v3817 = vand.u32 %v188, 4294901760
  %3818 = vmatpush.msra.mxu0 %v3817
  %v3819 = vand.u32 %v187, 4294901760
  %3820 = vmatpush.msra.mxu0 %v3819
  %v3821 = vand.u32 %v186, 4294901760
  %3822 = vmatpush.msra.mxu0 %v3821
  %v3823 = vand.u32 %v185, 4294901760
  %3824 = vmatpush.msra.mxu0 %v3823
  %v3825 = vand.u32 %v184, 4294901760
  %3826 = vmatpush.msra.mxu0 %v3825
  %v3827 = vand.u32 %v183, 4294901760
  %3828 = vmatpush.msra.mxu0 %v3827
  %v3829 = vand.u32 %v182, 4294901760
  %3830 = vmatpush.msra.mxu0 %v3829
  %v3831 = vand.u32 %v23, 4294901760
  %3832 = vmatmul.f32.gmra.mxu0 %v3831
  %v3833 = vpop.f32.mrf.mxu0
  %v3834 = vadd.f32 %v3797, %v3833
  %3835 = vdwg.mxu0
  %v3836 = vand.u32 %v213, 4294901760
  %3837 = vmatpush.msra.mxu0 %v3836
  %v3838 = vand.u32 %v212, 4294901760
  %3839 = vmatpush.msra.mxu0 %v3838
  %v3840 = vand.u32 %v211, 4294901760
  %3841 = vmatpush.msra.mxu0 %v3840
  %v3842 = vand.u32 %v210, 4294901760
  %3843 = vmatpush.msra.mxu0 %v3842
  %v3844 = vand.u32 %v209, 4294901760
  %3845 = vmatpush.msra.mxu0 %v3844
  %v3846 = vand.u32 %v208, 4294901760
  %3847 = vmatpush.msra.mxu0 %v3846
  %v3848 = vand.u32 %v207, 4294901760
  %3849 = vmatpush.msra.mxu0 %v3848
  %v3850 = vand.u32 %v206, 4294901760
  %3851 = vmatpush.msra.mxu0 %v3850
  %v3852 = vand.u32 %v205, 4294901760
  %3853 = vmatpush.msra.mxu0 %v3852
  %v3854 = vand.u32 %v204, 4294901760
  %3855 = vmatpush.msra.mxu0 %v3854
  %v3856 = vand.u32 %v203, 4294901760
  %3857 = vmatpush.msra.mxu0 %v3856
  %v3858 = vand.u32 %v202, 4294901760
  %3859 = vmatpush.msra.mxu0 %v3858
  %v3860 = vand.u32 %v201, 4294901760
  %3861 = vmatpush.msra.mxu0 %v3860
  %v3862 = vand.u32 %v200, 4294901760
  %3863 = vmatpush.msra.mxu0 %v3862
  %v3864 = vand.u32 %v199, 4294901760
  %3865 = vmatpush.msra.mxu0 %v3864
  %v3866 = vand.u32 %v198, 4294901760
  %3867 = vmatpush.msra.mxu0 %v3866
  %v3868 = vand.u32 %v24, 4294901760
  %v3869 = vsub.f32 %v24, %v3868
  %v3870 = vand.u32 %v3869, 4294901760
  %v3871 = vsub.f32 %v3869, %v3870
  %v3872 = vand.u32 %v3871, 4294901760
  %3873 = vmatmul.f32.gmra.mxu0 %v3872
  %v3874 = vpop.f32.mrf.mxu0
  %v3875 = vadd.f32 %v3834, %v3874
  %3876 = vdwg.mxu0
  %v3877 = vand.u32 %v213, 4294901760
  %v3878 = vsub.f32 %v213, %v3877
  %v3879 = vand.u32 %v3878, 4294901760
  %v3880 = vsub.f32 %v3878, %v3879
  %v3881 = vand.u32 %v3880, 4294901760
  %3882 = vmatpush.msra.mxu0 %v3881
  %v3883 = vand.u32 %v212, 4294901760
  %v3884 = vsub.f32 %v212, %v3883
  %v3885 = vand.u32 %v3884, 4294901760
  %v3886 = vsub.f32 %v3884, %v3885
  %v3887 = vand.u32 %v3886, 4294901760
  %3888 = vmatpush.msra.mxu0 %v3887
  %v3889 = vand.u32 %v211, 4294901760
  %v3890 = vsub.f32 %v211, %v3889
  %v3891 = vand.u32 %v3890, 4294901760
  %v3892 = vsub.f32 %v3890, %v3891
  %v3893 = vand.u32 %v3892, 4294901760
  %3894 = vmatpush.msra.mxu0 %v3893
  %v3895 = vand.u32 %v210, 4294901760
  %v3896 = vsub.f32 %v210, %v3895
  %v3897 = vand.u32 %v3896, 4294901760
  %v3898 = vsub.f32 %v3896, %v3897
  %v3899 = vand.u32 %v3898, 4294901760
  %3900 = vmatpush.msra.mxu0 %v3899
  %v3901 = vand.u32 %v209, 4294901760
  %v3902 = vsub.f32 %v209, %v3901
  %v3903 = vand.u32 %v3902, 4294901760
  %v3904 = vsub.f32 %v3902, %v3903
  %v3905 = vand.u32 %v3904, 4294901760
  %3906 = vmatpush.msra.mxu0 %v3905
  %v3907 = vand.u32 %v208, 4294901760
  %v3908 = vsub.f32 %v208, %v3907
  %v3909 = vand.u32 %v3908, 4294901760
  %v3910 = vsub.f32 %v3908, %v3909
  %v3911 = vand.u32 %v3910, 4294901760
  %3912 = vmatpush.msra.mxu0 %v3911
  %v3913 = vand.u32 %v207, 4294901760
  %v3914 = vsub.f32 %v207, %v3913
  %v3915 = vand.u32 %v3914, 4294901760
  %v3916 = vsub.f32 %v3914, %v3915
  %v3917 = vand.u32 %v3916, 4294901760
  %3918 = vmatpush.msra.mxu0 %v3917
  %v3919 = vand.u32 %v206, 4294901760
  %v3920 = vsub.f32 %v206, %v3919
  %v3921 = vand.u32 %v3920, 4294901760
  %v3922 = vsub.f32 %v3920, %v3921
  %v3923 = vand.u32 %v3922, 4294901760
  %3924 = vmatpush.msra.mxu0 %v3923
  %v3925 = vand.u32 %v205, 4294901760
  %v3926 = vsub.f32 %v205, %v3925
  %v3927 = vand.u32 %v3926, 4294901760
  %v3928 = vsub.f32 %v3926, %v3927
  %v3929 = vand.u32 %v3928, 4294901760
  %3930 = vmatpush.msra.mxu0 %v3929
  %v3931 = vand.u32 %v204, 4294901760
  %v3932 = vsub.f32 %v204, %v3931
  %v3933 = vand.u32 %v3932, 4294901760
  %v3934 = vsub.f32 %v3932, %v3933
  %v3935 = vand.u32 %v3934, 4294901760
  %3936 = vmatpush.msra.mxu0 %v3935
  %v3937 = vand.u32 %v203, 4294901760
  %v3938 = vsub.f32 %v203, %v3937
  %v3939 = vand.u32 %v3938, 4294901760
  %v3940 = vsub.f32 %v3938, %v3939
  %v3941 = vand.u32 %v3940, 4294901760
  %3942 = vmatpush.msra.mxu0 %v3941
  %v3943 = vand.u32 %v202, 4294901760
  %v3944 = vsub.f32 %v202, %v3943
  %v3945 = vand.u32 %v3944, 4294901760
  %v3946 = vsub.f32 %v3944, %v3945
  %v3947 = vand.u32 %v3946, 4294901760
  %3948 = vmatpush.msra.mxu0 %v3947
  %v3949 = vand.u32 %v201, 4294901760
  %v3950 = vsub.f32 %v201, %v3949
  %v3951 = vand.u32 %v3950, 4294901760
  %v3952 = vsub.f32 %v3950, %v3951
  %v3953 = vand.u32 %v3952, 4294901760
  %3954 = vmatpush.msra.mxu0 %v3953
  %v3955 = vand.u32 %v200, 4294901760
  %v3956 = vsub.f32 %v200, %v3955
  %v3957 = vand.u32 %v3956, 4294901760
  %v3958 = vsub.f32 %v3956, %v3957
  %v3959 = vand.u32 %v3958, 4294901760
  %3960 = vmatpush.msra.mxu0 %v3959
  %v3961 = vand.u32 %v199, 4294901760
  %v3962 = vsub.f32 %v199, %v3961
  %v3963 = vand.u32 %v3962, 4294901760
  %v3964 = vsub.f32 %v3962, %v3963
  %v3965 = vand.u32 %v3964, 4294901760
  %3966 = vmatpush.msra.mxu0 %v3965
  %v3967 = vand.u32 %v198, 4294901760
  %v3968 = vsub.f32 %v198, %v3967
  %v3969 = vand.u32 %v3968, 4294901760
  %v3970 = vsub.f32 %v3968, %v3969
  %v3971 = vand.u32 %v3970, 4294901760
  %3972 = vmatpush.msra.mxu0 %v3971
  %v3973 = vand.u32 %v24, 4294901760
  %3974 = vmatmul.f32.gmra.mxu0 %v3973
  %v3975 = vpop.f32.mrf.mxu0
  %v3976 = vadd.f32 %v3875, %v3975
  %3977 = vdwg.mxu0
  %v3978 = vand.u32 %v213, 4294901760
  %v3979 = vsub.f32 %v213, %v3978
  %3980 = vmatpush.msra.mxu0 %v3979
  %v3981 = vand.u32 %v212, 4294901760
  %v3982 = vsub.f32 %v212, %v3981
  %3983 = vmatpush.msra.mxu0 %v3982
  %v3984 = vand.u32 %v211, 4294901760
  %v3985 = vsub.f32 %v211, %v3984
  %3986 = vmatpush.msra.mxu0 %v3985
  %v3987 = vand.u32 %v210, 4294901760
  %v3988 = vsub.f32 %v210, %v3987
  %3989 = vmatpush.msra.mxu0 %v3988
  %v3990 = vand.u32 %v209, 4294901760
  %v3991 = vsub.f32 %v209, %v3990
  %3992 = vmatpush.msra.mxu0 %v3991
  %v3993 = vand.u32 %v208, 4294901760
  %v3994 = vsub.f32 %v208, %v3993
  %3995 = vmatpush.msra.mxu0 %v3994
  %v3996 = vand.u32 %v207, 4294901760
  %v3997 = vsub.f32 %v207, %v3996
  %3998 = vmatpush.msra.mxu0 %v3997
  %v3999 = vand.u32 %v206, 4294901760
  %v4000 = vsub.f32 %v206, %v3999
  %4001 = vmatpush.msra.mxu0 %v4000
  %v4002 = vand.u32 %v205, 4294901760
  %v4003 = vsub.f32 %v205, %v4002
  %4004 = vmatpush.msra.mxu0 %v4003
  %v4005 = vand.u32 %v204, 4294901760
  %v4006 = vsub.f32 %v204, %v4005
  %4007 = vmatpush.msra.mxu0 %v4006
  %v4008 = vand.u32 %v203, 4294901760
  %v4009 = vsub.f32 %v203, %v4008
  %4010 = vmatpush.msra.mxu0 %v4009
  %v4011 = vand.u32 %v202, 4294901760
  %v4012 = vsub.f32 %v202, %v4011
  %4013 = vmatpush.msra.mxu0 %v4012
  %v4014 = vand.u32 %v201, 4294901760
  %v4015 = vsub.f32 %v201, %v4014
  %4016 = vmatpush.msra.mxu0 %v4015
  %v4017 = vand.u32 %v200, 4294901760
  %v4018 = vsub.f32 %v200, %v4017
  %4019 = vmatpush.msra.mxu0 %v4018
  %v4020 = vand.u32 %v199, 4294901760
  %v4021 = vsub.f32 %v199, %v4020
  %4022 = vmatpush.msra.mxu0 %v4021
  %v4023 = vand.u32 %v198, 4294901760
  %v4024 = vsub.f32 %v198, %v4023
  %4025 = vmatpush.msra.mxu0 %v4024
  %v4026 = vand.u32 %v24, 4294901760
  %v4027 = vsub.f32 %v24, %v4026
  %4028 = vmatmul.f32.gmra.mxu0 %v4027
  %v4029 = vpop.f32.mrf.mxu0
  %v4030 = vadd.f32 %v3976, %v4029
  %4031 = vdwg.mxu0
  %v4032 = vand.u32 %v213, 4294901760
  %4033 = vmatpush.msra.mxu0 %v4032
  %v4034 = vand.u32 %v212, 4294901760
  %4035 = vmatpush.msra.mxu0 %v4034
  %v4036 = vand.u32 %v211, 4294901760
  %4037 = vmatpush.msra.mxu0 %v4036
  %v4038 = vand.u32 %v210, 4294901760
  %4039 = vmatpush.msra.mxu0 %v4038
  %v4040 = vand.u32 %v209, 4294901760
  %4041 = vmatpush.msra.mxu0 %v4040
  %v4042 = vand.u32 %v208, 4294901760
  %4043 = vmatpush.msra.mxu0 %v4042
  %v4044 = vand.u32 %v207, 4294901760
  %4045 = vmatpush.msra.mxu0 %v4044
  %v4046 = vand.u32 %v206, 4294901760
  %4047 = vmatpush.msra.mxu0 %v4046
  %v4048 = vand.u32 %v205, 4294901760
  %4049 = vmatpush.msra.mxu0 %v4048
  %v4050 = vand.u32 %v204, 4294901760
  %4051 = vmatpush.msra.mxu0 %v4050
  %v4052 = vand.u32 %v203, 4294901760
  %4053 = vmatpush.msra.mxu0 %v4052
  %v4054 = vand.u32 %v202, 4294901760
  %4055 = vmatpush.msra.mxu0 %v4054
  %v4056 = vand.u32 %v201, 4294901760
  %4057 = vmatpush.msra.mxu0 %v4056
  %v4058 = vand.u32 %v200, 4294901760
  %4059 = vmatpush.msra.mxu0 %v4058
  %v4060 = vand.u32 %v199, 4294901760
  %4061 = vmatpush.msra.mxu0 %v4060
  %v4062 = vand.u32 %v198, 4294901760
  %4063 = vmatpush.msra.mxu0 %v4062
  %v4064 = vand.u32 %v24, 4294901760
  %v4065 = vsub.f32 %v24, %v4064
  %v4066 = vand.u32 %v4065, 4294901760
  %4067 = vmatmul.f32.gmra.mxu0 %v4066
  %v4068 = vpop.f32.mrf.mxu0
  %v4069 = vadd.f32 %v4030, %v4068
  %4070 = vdwg.mxu0
  %v4071 = vand.u32 %v213, 4294901760
  %v4072 = vsub.f32 %v213, %v4071
  %v4073 = vand.u32 %v4072, 4294901760
  %4074 = vmatpush.msra.mxu0 %v4073
  %v4075 = vand.u32 %v212, 4294901760
  %v4076 = vsub.f32 %v212, %v4075
  %v4077 = vand.u32 %v4076, 4294901760
  %4078 = vmatpush.msra.mxu0 %v4077
  %v4079 = vand.u32 %v211, 4294901760
  %v4080 = vsub.f32 %v211, %v4079
  %v4081 = vand.u32 %v4080, 4294901760
  %4082 = vmatpush.msra.mxu0 %v4081
  %v4083 = vand.u32 %v210, 4294901760
  %v4084 = vsub.f32 %v210, %v4083
  %v4085 = vand.u32 %v4084, 4294901760
  %4086 = vmatpush.msra.mxu0 %v4085
  %v4087 = vand.u32 %v209, 4294901760
  %v4088 = vsub.f32 %v209, %v4087
  %v4089 = vand.u32 %v4088, 4294901760
  %4090 = vmatpush.msra.mxu0 %v4089
  %v4091 = vand.u32 %v208, 4294901760
  %v4092 = vsub.f32 %v208, %v4091
  %v4093 = vand.u32 %v4092, 4294901760
  %4094 = vmatpush.msra.mxu0 %v4093
  %v4095 = vand.u32 %v207, 4294901760
  %v4096 = vsub.f32 %v207, %v4095
  %v4097 = vand.u32 %v4096, 4294901760
  %4098 = vmatpush.msra.mxu0 %v4097
  %v4099 = vand.u32 %v206, 4294901760
  %v4100 = vsub.f32 %v206, %v4099
  %v4101 = vand.u32 %v4100, 4294901760
  %4102 = vmatpush.msra.mxu0 %v4101
  %v4103 = vand.u32 %v205, 4294901760
  %v4104 = vsub.f32 %v205, %v4103
  %v4105 = vand.u32 %v4104, 4294901760
  %4106 = vmatpush.msra.mxu0 %v4105
  %v4107 = vand.u32 %v204, 4294901760
  %v4108 = vsub.f32 %v204, %v4107
  %v4109 = vand.u32 %v4108, 4294901760
  %4110 = vmatpush.msra.mxu0 %v4109
  %v4111 = vand.u32 %v203, 4294901760
  %v4112 = vsub.f32 %v203, %v4111
  %v4113 = vand.u32 %v4112, 4294901760
  %4114 = vmatpush.msra.mxu0 %v4113
  %v4115 = vand.u32 %v202, 4294901760
  %v4116 = vsub.f32 %v202, %v4115
  %v4117 = vand.u32 %v4116, 4294901760
  %4118 = vmatpush.msra.mxu0 %v4117
  %v4119 = vand.u32 %v201, 4294901760
  %v4120 = vsub.f32 %v201, %v4119
  %v4121 = vand.u32 %v4120, 4294901760
  %4122 = vmatpush.msra.mxu0 %v4121
  %v4123 = vand.u32 %v200, 4294901760
  %v4124 = vsub.f32 %v200, %v4123
  %v4125 = vand.u32 %v4124, 4294901760
  %4126 = vmatpush.msra.mxu0 %v4125
  %v4127 = vand.u32 %v199, 4294901760
  %v4128 = vsub.f32 %v199, %v4127
  %v4129 = vand.u32 %v4128, 4294901760
  %4130 = vmatpush.msra.mxu0 %v4129
  %v4131 = vand.u32 %v198, 4294901760
  %v4132 = vsub.f32 %v198, %v4131
  %v4133 = vand.u32 %v4132, 4294901760
  %4134 = vmatpush.msra.mxu0 %v4133
  %v4135 = vand.u32 %v24, 4294901760
  %4136 = vmatmul.f32.gmra.mxu0 %v4135
  %v4137 = vpop.f32.mrf.mxu0
  %v4138 = vadd.f32 %v4069, %v4137
  %4139 = vdwg.mxu0
  %v4140 = vand.u32 %v213, 4294901760
  %4141 = vmatpush.msra.mxu0 %v4140
  %v4142 = vand.u32 %v212, 4294901760
  %4143 = vmatpush.msra.mxu0 %v4142
  %v4144 = vand.u32 %v211, 4294901760
  %4145 = vmatpush.msra.mxu0 %v4144
  %v4146 = vand.u32 %v210, 4294901760
  %4147 = vmatpush.msra.mxu0 %v4146
  %v4148 = vand.u32 %v209, 4294901760
  %4149 = vmatpush.msra.mxu0 %v4148
  %v4150 = vand.u32 %v208, 4294901760
  %4151 = vmatpush.msra.mxu0 %v4150
  %v4152 = vand.u32 %v207, 4294901760
  %4153 = vmatpush.msra.mxu0 %v4152
  %v4154 = vand.u32 %v206, 4294901760
  %4155 = vmatpush.msra.mxu0 %v4154
  %v4156 = vand.u32 %v205, 4294901760
  %4157 = vmatpush.msra.mxu0 %v4156
  %v4158 = vand.u32 %v204, 4294901760
  %4159 = vmatpush.msra.mxu0 %v4158
  %v4160 = vand.u32 %v203, 4294901760
  %4161 = vmatpush.msra.mxu0 %v4160
  %v4162 = vand.u32 %v202, 4294901760
  %4163 = vmatpush.msra.mxu0 %v4162
  %v4164 = vand.u32 %v201, 4294901760
  %4165 = vmatpush.msra.mxu0 %v4164
  %v4166 = vand.u32 %v200, 4294901760
  %4167 = vmatpush.msra.mxu0 %v4166
  %v4168 = vand.u32 %v199, 4294901760
  %4169 = vmatpush.msra.mxu0 %v4168
  %v4170 = vand.u32 %v198, 4294901760
  %4171 = vmatpush.msra.mxu0 %v4170
  %v4172 = vand.u32 %v24, 4294901760
  %4173 = vmatmul.f32.gmra.mxu0 %v4172
  %v4174 = vpop.f32.mrf.mxu0
  %v4175 = vadd.f32 %v4138, %v4174
  %4176 = vdwg.mxu0
  %v4177 = vand.u32 %v229, 4294901760
  %4178 = vmatpush.msra.mxu0 %v4177
  %v4179 = vand.u32 %v228, 4294901760
  %4180 = vmatpush.msra.mxu0 %v4179
  %v4181 = vand.u32 %v227, 4294901760
  %4182 = vmatpush.msra.mxu0 %v4181
  %v4183 = vand.u32 %v226, 4294901760
  %4184 = vmatpush.msra.mxu0 %v4183
  %v4185 = vand.u32 %v225, 4294901760
  %4186 = vmatpush.msra.mxu0 %v4185
  %v4187 = vand.u32 %v224, 4294901760
  %4188 = vmatpush.msra.mxu0 %v4187
  %v4189 = vand.u32 %v223, 4294901760
  %4190 = vmatpush.msra.mxu0 %v4189
  %v4191 = vand.u32 %v222, 4294901760
  %4192 = vmatpush.msra.mxu0 %v4191
  %v4193 = vand.u32 %v221, 4294901760
  %4194 = vmatpush.msra.mxu0 %v4193
  %v4195 = vand.u32 %v220, 4294901760
  %4196 = vmatpush.msra.mxu0 %v4195
  %v4197 = vand.u32 %v219, 4294901760
  %4198 = vmatpush.msra.mxu0 %v4197
  %v4199 = vand.u32 %v218, 4294901760
  %4200 = vmatpush.msra.mxu0 %v4199
  %v4201 = vand.u32 %v217, 4294901760
  %4202 = vmatpush.msra.mxu0 %v4201
  %v4203 = vand.u32 %v216, 4294901760
  %4204 = vmatpush.msra.mxu0 %v4203
  %v4205 = vand.u32 %v215, 4294901760
  %4206 = vmatpush.msra.mxu0 %v4205
  %v4207 = vand.u32 %v214, 4294901760
  %4208 = vmatpush.msra.mxu0 %v4207
  %v4209 = vand.u32 %v25, 4294901760
  %v4210 = vsub.f32 %v25, %v4209
  %v4211 = vand.u32 %v4210, 4294901760
  %v4212 = vsub.f32 %v4210, %v4211
  %v4213 = vand.u32 %v4212, 4294901760
  %4214 = vmatmul.f32.gmra.mxu0 %v4213
  %v4215 = vpop.f32.mrf.mxu0
  %v4216 = vadd.f32 %v4175, %v4215
  %4217 = vdwg.mxu0
  %v4218 = vand.u32 %v229, 4294901760
  %v4219 = vsub.f32 %v229, %v4218
  %v4220 = vand.u32 %v4219, 4294901760
  %v4221 = vsub.f32 %v4219, %v4220
  %v4222 = vand.u32 %v4221, 4294901760
  %4223 = vmatpush.msra.mxu0 %v4222
  %v4224 = vand.u32 %v228, 4294901760
  %v4225 = vsub.f32 %v228, %v4224
  %v4226 = vand.u32 %v4225, 4294901760
  %v4227 = vsub.f32 %v4225, %v4226
  %v4228 = vand.u32 %v4227, 4294901760
  %4229 = vmatpush.msra.mxu0 %v4228
  %v4230 = vand.u32 %v227, 4294901760
  %v4231 = vsub.f32 %v227, %v4230
  %v4232 = vand.u32 %v4231, 4294901760
  %v4233 = vsub.f32 %v4231, %v4232
  %v4234 = vand.u32 %v4233, 4294901760
  %4235 = vmatpush.msra.mxu0 %v4234
  %v4236 = vand.u32 %v226, 4294901760
  %v4237 = vsub.f32 %v226, %v4236
  %v4238 = vand.u32 %v4237, 4294901760
  %v4239 = vsub.f32 %v4237, %v4238
  %v4240 = vand.u32 %v4239, 4294901760
  %4241 = vmatpush.msra.mxu0 %v4240
  %v4242 = vand.u32 %v225, 4294901760
  %v4243 = vsub.f32 %v225, %v4242
  %v4244 = vand.u32 %v4243, 4294901760
  %v4245 = vsub.f32 %v4243, %v4244
  %v4246 = vand.u32 %v4245, 4294901760
  %4247 = vmatpush.msra.mxu0 %v4246
  %v4248 = vand.u32 %v224, 4294901760
  %v4249 = vsub.f32 %v224, %v4248
  %v4250 = vand.u32 %v4249, 4294901760
  %v4251 = vsub.f32 %v4249, %v4250
  %v4252 = vand.u32 %v4251, 4294901760
  %4253 = vmatpush.msra.mxu0 %v4252
  %v4254 = vand.u32 %v223, 4294901760
  %v4255 = vsub.f32 %v223, %v4254
  %v4256 = vand.u32 %v4255, 4294901760
  %v4257 = vsub.f32 %v4255, %v4256
  %v4258 = vand.u32 %v4257, 4294901760
  %4259 = vmatpush.msra.mxu0 %v4258
  %v4260 = vand.u32 %v222, 4294901760
  %v4261 = vsub.f32 %v222, %v4260
  %v4262 = vand.u32 %v4261, 4294901760
  %v4263 = vsub.f32 %v4261, %v4262
  %v4264 = vand.u32 %v4263, 4294901760
  %4265 = vmatpush.msra.mxu0 %v4264
  %v4266 = vand.u32 %v221, 4294901760
  %v4267 = vsub.f32 %v221, %v4266
  %v4268 = vand.u32 %v4267, 4294901760
  %v4269 = vsub.f32 %v4267, %v4268
  %v4270 = vand.u32 %v4269, 4294901760
  %4271 = vmatpush.msra.mxu0 %v4270
  %v4272 = vand.u32 %v220, 4294901760
  %v4273 = vsub.f32 %v220, %v4272
  %v4274 = vand.u32 %v4273, 4294901760
  %v4275 = vsub.f32 %v4273, %v4274
  %v4276 = vand.u32 %v4275, 4294901760
  %4277 = vmatpush.msra.mxu0 %v4276
  %v4278 = vand.u32 %v219, 4294901760
  %v4279 = vsub.f32 %v219, %v4278
  %v4280 = vand.u32 %v4279, 4294901760
  %v4281 = vsub.f32 %v4279, %v4280
  %v4282 = vand.u32 %v4281, 4294901760
  %4283 = vmatpush.msra.mxu0 %v4282
  %v4284 = vand.u32 %v218, 4294901760
  %v4285 = vsub.f32 %v218, %v4284
  %v4286 = vand.u32 %v4285, 4294901760
  %v4287 = vsub.f32 %v4285, %v4286
  %v4288 = vand.u32 %v4287, 4294901760
  %4289 = vmatpush.msra.mxu0 %v4288
  %v4290 = vand.u32 %v217, 4294901760
  %v4291 = vsub.f32 %v217, %v4290
  %v4292 = vand.u32 %v4291, 4294901760
  %v4293 = vsub.f32 %v4291, %v4292
  %v4294 = vand.u32 %v4293, 4294901760
  %4295 = vmatpush.msra.mxu0 %v4294
  %v4296 = vand.u32 %v216, 4294901760
  %v4297 = vsub.f32 %v216, %v4296
  %v4298 = vand.u32 %v4297, 4294901760
  %v4299 = vsub.f32 %v4297, %v4298
  %v4300 = vand.u32 %v4299, 4294901760
  %4301 = vmatpush.msra.mxu0 %v4300
  %v4302 = vand.u32 %v215, 4294901760
  %v4303 = vsub.f32 %v215, %v4302
  %v4304 = vand.u32 %v4303, 4294901760
  %v4305 = vsub.f32 %v4303, %v4304
  %v4306 = vand.u32 %v4305, 4294901760
  %4307 = vmatpush.msra.mxu0 %v4306
  %v4308 = vand.u32 %v214, 4294901760
  %v4309 = vsub.f32 %v214, %v4308
  %v4310 = vand.u32 %v4309, 4294901760
  %v4311 = vsub.f32 %v4309, %v4310
  %v4312 = vand.u32 %v4311, 4294901760
  %4313 = vmatpush.msra.mxu0 %v4312
  %v4314 = vand.u32 %v25, 4294901760
  %4315 = vmatmul.f32.gmra.mxu0 %v4314
  %v4316 = vpop.f32.mrf.mxu0
  %v4317 = vadd.f32 %v4216, %v4316
  %4318 = vdwg.mxu0
  %v4319 = vand.u32 %v229, 4294901760
  %v4320 = vsub.f32 %v229, %v4319
  %4321 = vmatpush.msra.mxu0 %v4320
  %v4322 = vand.u32 %v228, 4294901760
  %v4323 = vsub.f32 %v228, %v4322
  %4324 = vmatpush.msra.mxu0 %v4323
  %v4325 = vand.u32 %v227, 4294901760
  %v4326 = vsub.f32 %v227, %v4325
  %4327 = vmatpush.msra.mxu0 %v4326
  %v4328 = vand.u32 %v226, 4294901760
  %v4329 = vsub.f32 %v226, %v4328
  %4330 = vmatpush.msra.mxu0 %v4329
  %v4331 = vand.u32 %v225, 4294901760
  %v4332 = vsub.f32 %v225, %v4331
  %4333 = vmatpush.msra.mxu0 %v4332
  %v4334 = vand.u32 %v224, 4294901760
  %v4335 = vsub.f32 %v224, %v4334
  %4336 = vmatpush.msra.mxu0 %v4335
  %v4337 = vand.u32 %v223, 4294901760
  %v4338 = vsub.f32 %v223, %v4337
  %4339 = vmatpush.msra.mxu0 %v4338
  %v4340 = vand.u32 %v222, 4294901760
  %v4341 = vsub.f32 %v222, %v4340
  %4342 = vmatpush.msra.mxu0 %v4341
  %v4343 = vand.u32 %v221, 4294901760
  %v4344 = vsub.f32 %v221, %v4343
  %4345 = vmatpush.msra.mxu0 %v4344
  %v4346 = vand.u32 %v220, 4294901760
  %v4347 = vsub.f32 %v220, %v4346
  %4348 = vmatpush.msra.mxu0 %v4347
  %v4349 = vand.u32 %v219, 4294901760
  %v4350 = vsub.f32 %v219, %v4349
  %4351 = vmatpush.msra.mxu0 %v4350
  %v4352 = vand.u32 %v218, 4294901760
  %v4353 = vsub.f32 %v218, %v4352
  %4354 = vmatpush.msra.mxu0 %v4353
  %v4355 = vand.u32 %v217, 4294901760
  %v4356 = vsub.f32 %v217, %v4355
  %4357 = vmatpush.msra.mxu0 %v4356
  %v4358 = vand.u32 %v216, 4294901760
  %v4359 = vsub.f32 %v216, %v4358
  %4360 = vmatpush.msra.mxu0 %v4359
  %v4361 = vand.u32 %v215, 4294901760
  %v4362 = vsub.f32 %v215, %v4361
  %4363 = vmatpush.msra.mxu0 %v4362
  %v4364 = vand.u32 %v214, 4294901760
  %v4365 = vsub.f32 %v214, %v4364
  %4366 = vmatpush.msra.mxu0 %v4365
  %v4367 = vand.u32 %v25, 4294901760
  %v4368 = vsub.f32 %v25, %v4367
  %4369 = vmatmul.f32.gmra.mxu0 %v4368
  %v4370 = vpop.f32.mrf.mxu0
  %v4371 = vadd.f32 %v4317, %v4370
  %4372 = vdwg.mxu0
  %v4373 = vand.u32 %v229, 4294901760
  %4374 = vmatpush.msra.mxu0 %v4373
  %v4375 = vand.u32 %v228, 4294901760
  %4376 = vmatpush.msra.mxu0 %v4375
  %v4377 = vand.u32 %v227, 4294901760
  %4378 = vmatpush.msra.mxu0 %v4377
  %v4379 = vand.u32 %v226, 4294901760
  %4380 = vmatpush.msra.mxu0 %v4379
  %v4381 = vand.u32 %v225, 4294901760
  %4382 = vmatpush.msra.mxu0 %v4381
  %v4383 = vand.u32 %v224, 4294901760
  %4384 = vmatpush.msra.mxu0 %v4383
  %v4385 = vand.u32 %v223, 4294901760
  %4386 = vmatpush.msra.mxu0 %v4385
  %v4387 = vand.u32 %v222, 4294901760
  %4388 = vmatpush.msra.mxu0 %v4387
  %v4389 = vand.u32 %v221, 4294901760
  %4390 = vmatpush.msra.mxu0 %v4389
  %v4391 = vand.u32 %v220, 4294901760
  %4392 = vmatpush.msra.mxu0 %v4391
  %v4393 = vand.u32 %v219, 4294901760
  %4394 = vmatpush.msra.mxu0 %v4393
  %v4395 = vand.u32 %v218, 4294901760
  %4396 = vmatpush.msra.mxu0 %v4395
  %v4397 = vand.u32 %v217, 4294901760
  %4398 = vmatpush.msra.mxu0 %v4397
  %v4399 = vand.u32 %v216, 4294901760
  %4400 = vmatpush.msra.mxu0 %v4399
  %v4401 = vand.u32 %v215, 4294901760
  %4402 = vmatpush.msra.mxu0 %v4401
  %v4403 = vand.u32 %v214, 4294901760
  %4404 = vmatpush.msra.mxu0 %v4403
  %v4405 = vand.u32 %v25, 4294901760
  %v4406 = vsub.f32 %v25, %v4405
  %v4407 = vand.u32 %v4406, 4294901760
  %4408 = vmatmul.f32.gmra.mxu0 %v4407
  %v4409 = vpop.f32.mrf.mxu0
  %v4410 = vadd.f32 %v4371, %v4409
  %4411 = vdwg.mxu0
  %v4412 = vand.u32 %v229, 4294901760
  %v4413 = vsub.f32 %v229, %v4412
  %v4414 = vand.u32 %v4413, 4294901760
  %4415 = vmatpush.msra.mxu0 %v4414
  %v4416 = vand.u32 %v228, 4294901760
  %v4417 = vsub.f32 %v228, %v4416
  %v4418 = vand.u32 %v4417, 4294901760
  %4419 = vmatpush.msra.mxu0 %v4418
  %v4420 = vand.u32 %v227, 4294901760
  %v4421 = vsub.f32 %v227, %v4420
  %v4422 = vand.u32 %v4421, 4294901760
  %4423 = vmatpush.msra.mxu0 %v4422
  %v4424 = vand.u32 %v226, 4294901760
  %v4425 = vsub.f32 %v226, %v4424
  %v4426 = vand.u32 %v4425, 4294901760
  %4427 = vmatpush.msra.mxu0 %v4426
  %v4428 = vand.u32 %v225, 4294901760
  %v4429 = vsub.f32 %v225, %v4428
  %v4430 = vand.u32 %v4429, 4294901760
  %4431 = vmatpush.msra.mxu0 %v4430
  %v4432 = vand.u32 %v224, 4294901760
  %v4433 = vsub.f32 %v224, %v4432
  %v4434 = vand.u32 %v4433, 4294901760
  %4435 = vmatpush.msra.mxu0 %v4434
  %v4436 = vand.u32 %v223, 4294901760
  %v4437 = vsub.f32 %v223, %v4436
  %v4438 = vand.u32 %v4437, 4294901760
  %4439 = vmatpush.msra.mxu0 %v4438
  %v4440 = vand.u32 %v222, 4294901760
  %v4441 = vsub.f32 %v222, %v4440
  %v4442 = vand.u32 %v4441, 4294901760
  %4443 = vmatpush.msra.mxu0 %v4442
  %v4444 = vand.u32 %v221, 4294901760
  %v4445 = vsub.f32 %v221, %v4444
  %v4446 = vand.u32 %v4445, 4294901760
  %4447 = vmatpush.msra.mxu0 %v4446
  %v4448 = vand.u32 %v220, 4294901760
  %v4449 = vsub.f32 %v220, %v4448
  %v4450 = vand.u32 %v4449, 4294901760
  %4451 = vmatpush.msra.mxu0 %v4450
  %v4452 = vand.u32 %v219, 4294901760
  %v4453 = vsub.f32 %v219, %v4452
  %v4454 = vand.u32 %v4453, 4294901760
  %4455 = vmatpush.msra.mxu0 %v4454
  %v4456 = vand.u32 %v218, 4294901760
  %v4457 = vsub.f32 %v218, %v4456
  %v4458 = vand.u32 %v4457, 4294901760
  %4459 = vmatpush.msra.mxu0 %v4458
  %v4460 = vand.u32 %v217, 4294901760
  %v4461 = vsub.f32 %v217, %v4460
  %v4462 = vand.u32 %v4461, 4294901760
  %4463 = vmatpush.msra.mxu0 %v4462
  %v4464 = vand.u32 %v216, 4294901760
  %v4465 = vsub.f32 %v216, %v4464
  %v4466 = vand.u32 %v4465, 4294901760
  %4467 = vmatpush.msra.mxu0 %v4466
  %v4468 = vand.u32 %v215, 4294901760
  %v4469 = vsub.f32 %v215, %v4468
  %v4470 = vand.u32 %v4469, 4294901760
  %4471 = vmatpush.msra.mxu0 %v4470
  %v4472 = vand.u32 %v214, 4294901760
  %v4473 = vsub.f32 %v214, %v4472
  %v4474 = vand.u32 %v4473, 4294901760
  %4475 = vmatpush.msra.mxu0 %v4474
  %v4476 = vand.u32 %v25, 4294901760
  %4477 = vmatmul.f32.gmra.mxu0 %v4476
  %v4478 = vpop.f32.mrf.mxu0
  %v4479 = vadd.f32 %v4410, %v4478
  %4480 = vdwg.mxu0
  %v4481 = vand.u32 %v229, 4294901760
  %4482 = vmatpush.msra.mxu0 %v4481
  %v4483 = vand.u32 %v228, 4294901760
  %4484 = vmatpush.msra.mxu0 %v4483
  %v4485 = vand.u32 %v227, 4294901760
  %4486 = vmatpush.msra.mxu0 %v4485
  %v4487 = vand.u32 %v226, 4294901760
  %4488 = vmatpush.msra.mxu0 %v4487
  %v4489 = vand.u32 %v225, 4294901760
  %4490 = vmatpush.msra.mxu0 %v4489
  %v4491 = vand.u32 %v224, 4294901760
  %4492 = vmatpush.msra.mxu0 %v4491
  %v4493 = vand.u32 %v223, 4294901760
  %4494 = vmatpush.msra.mxu0 %v4493
  %v4495 = vand.u32 %v222, 4294901760
  %4496 = vmatpush.msra.mxu0 %v4495
  %v4497 = vand.u32 %v221, 4294901760
  %4498 = vmatpush.msra.mxu0 %v4497
  %v4499 = vand.u32 %v220, 4294901760
  %4500 = vmatpush.msra.mxu0 %v4499
  %v4501 = vand.u32 %v219, 4294901760
  %4502 = vmatpush.msra.mxu0 %v4501
  %v4503 = vand.u32 %v218, 4294901760
  %4504 = vmatpush.msra.mxu0 %v4503
  %v4505 = vand.u32 %v217, 4294901760
  %4506 = vmatpush.msra.mxu0 %v4505
  %v4507 = vand.u32 %v216, 4294901760
  %4508 = vmatpush.msra.mxu0 %v4507
  %v4509 = vand.u32 %v215, 4294901760
  %4510 = vmatpush.msra.mxu0 %v4509
  %v4511 = vand.u32 %v214, 4294901760
  %4512 = vmatpush.msra.mxu0 %v4511
  %v4513 = vand.u32 %v25, 4294901760
  %4514 = vmatmul.f32.gmra.mxu0 %v4513
  %v4515 = vpop.f32.mrf.mxu0
  %v4516 = vadd.f32 %v4479, %v4515
  %4517 = vdwg.mxu0
  %v4518 = vand.u32 %v245, 4294901760
  %4519 = vmatpush.msra.mxu0 %v4518
  %v4520 = vand.u32 %v244, 4294901760
  %4521 = vmatpush.msra.mxu0 %v4520
  %v4522 = vand.u32 %v243, 4294901760
  %4523 = vmatpush.msra.mxu0 %v4522
  %v4524 = vand.u32 %v242, 4294901760
  %4525 = vmatpush.msra.mxu0 %v4524
  %v4526 = vand.u32 %v241, 4294901760
  %4527 = vmatpush.msra.mxu0 %v4526
  %v4528 = vand.u32 %v240, 4294901760
  %4529 = vmatpush.msra.mxu0 %v4528
  %v4530 = vand.u32 %v239, 4294901760
  %4531 = vmatpush.msra.mxu0 %v4530
  %v4532 = vand.u32 %v238, 4294901760
  %4533 = vmatpush.msra.mxu0 %v4532
  %v4534 = vand.u32 %v237, 4294901760
  %4535 = vmatpush.msra.mxu0 %v4534
  %v4536 = vand.u32 %v236, 4294901760
  %4537 = vmatpush.msra.mxu0 %v4536
  %v4538 = vand.u32 %v235, 4294901760
  %4539 = vmatpush.msra.mxu0 %v4538
  %v4540 = vand.u32 %v234, 4294901760
  %4541 = vmatpush.msra.mxu0 %v4540
  %v4542 = vand.u32 %v233, 4294901760
  %4543 = vmatpush.msra.mxu0 %v4542
  %v4544 = vand.u32 %v232, 4294901760
  %4545 = vmatpush.msra.mxu0 %v4544
  %v4546 = vand.u32 %v231, 4294901760
  %4547 = vmatpush.msra.mxu0 %v4546
  %v4548 = vand.u32 %v230, 4294901760
  %4549 = vmatpush.msra.mxu0 %v4548
  %v4550 = vand.u32 %v26, 4294901760
  %v4551 = vsub.f32 %v26, %v4550
  %v4552 = vand.u32 %v4551, 4294901760
  %v4553 = vsub.f32 %v4551, %v4552
  %v4554 = vand.u32 %v4553, 4294901760
  %4555 = vmatmul.f32.gmra.mxu0 %v4554
  %v4556 = vpop.f32.mrf.mxu0
  %v4557 = vadd.f32 %v4516, %v4556
  %4558 = vdwg.mxu0
  %v4559 = vand.u32 %v245, 4294901760
  %v4560 = vsub.f32 %v245, %v4559
  %v4561 = vand.u32 %v4560, 4294901760
  %v4562 = vsub.f32 %v4560, %v4561
  %v4563 = vand.u32 %v4562, 4294901760
  %4564 = vmatpush.msra.mxu0 %v4563
  %v4565 = vand.u32 %v244, 4294901760
  %v4566 = vsub.f32 %v244, %v4565
  %v4567 = vand.u32 %v4566, 4294901760
  %v4568 = vsub.f32 %v4566, %v4567
  %v4569 = vand.u32 %v4568, 4294901760
  %4570 = vmatpush.msra.mxu0 %v4569
  %v4571 = vand.u32 %v243, 4294901760
  %v4572 = vsub.f32 %v243, %v4571
  %v4573 = vand.u32 %v4572, 4294901760
  %v4574 = vsub.f32 %v4572, %v4573
  %v4575 = vand.u32 %v4574, 4294901760
  %4576 = vmatpush.msra.mxu0 %v4575
  %v4577 = vand.u32 %v242, 4294901760
  %v4578 = vsub.f32 %v242, %v4577
  %v4579 = vand.u32 %v4578, 4294901760
  %v4580 = vsub.f32 %v4578, %v4579
  %v4581 = vand.u32 %v4580, 4294901760
  %4582 = vmatpush.msra.mxu0 %v4581
  %v4583 = vand.u32 %v241, 4294901760
  %v4584 = vsub.f32 %v241, %v4583
  %v4585 = vand.u32 %v4584, 4294901760
  %v4586 = vsub.f32 %v4584, %v4585
  %v4587 = vand.u32 %v4586, 4294901760
  %4588 = vmatpush.msra.mxu0 %v4587
  %v4589 = vand.u32 %v240, 4294901760
  %v4590 = vsub.f32 %v240, %v4589
  %v4591 = vand.u32 %v4590, 4294901760
  %v4592 = vsub.f32 %v4590, %v4591
  %v4593 = vand.u32 %v4592, 4294901760
  %4594 = vmatpush.msra.mxu0 %v4593
  %v4595 = vand.u32 %v239, 4294901760
  %v4596 = vsub.f32 %v239, %v4595
  %v4597 = vand.u32 %v4596, 4294901760
  %v4598 = vsub.f32 %v4596, %v4597
  %v4599 = vand.u32 %v4598, 4294901760
  %4600 = vmatpush.msra.mxu0 %v4599
  %v4601 = vand.u32 %v238, 4294901760
  %v4602 = vsub.f32 %v238, %v4601
  %v4603 = vand.u32 %v4602, 4294901760
  %v4604 = vsub.f32 %v4602, %v4603
  %v4605 = vand.u32 %v4604, 4294901760
  %4606 = vmatpush.msra.mxu0 %v4605
  %v4607 = vand.u32 %v237, 4294901760
  %v4608 = vsub.f32 %v237, %v4607
  %v4609 = vand.u32 %v4608, 4294901760
  %v4610 = vsub.f32 %v4608, %v4609
  %v4611 = vand.u32 %v4610, 4294901760
  %4612 = vmatpush.msra.mxu0 %v4611
  %v4613 = vand.u32 %v236, 4294901760
  %v4614 = vsub.f32 %v236, %v4613
  %v4615 = vand.u32 %v4614, 4294901760
  %v4616 = vsub.f32 %v4614, %v4615
  %v4617 = vand.u32 %v4616, 4294901760
  %4618 = vmatpush.msra.mxu0 %v4617
  %v4619 = vand.u32 %v235, 4294901760
  %v4620 = vsub.f32 %v235, %v4619
  %v4621 = vand.u32 %v4620, 4294901760
  %v4622 = vsub.f32 %v4620, %v4621
  %v4623 = vand.u32 %v4622, 4294901760
  %4624 = vmatpush.msra.mxu0 %v4623
  %v4625 = vand.u32 %v234, 4294901760
  %v4626 = vsub.f32 %v234, %v4625
  %v4627 = vand.u32 %v4626, 4294901760
  %v4628 = vsub.f32 %v4626, %v4627
  %v4629 = vand.u32 %v4628, 4294901760
  %4630 = vmatpush.msra.mxu0 %v4629
  %v4631 = vand.u32 %v233, 4294901760
  %v4632 = vsub.f32 %v233, %v4631
  %v4633 = vand.u32 %v4632, 4294901760
  %v4634 = vsub.f32 %v4632, %v4633
  %v4635 = vand.u32 %v4634, 4294901760
  %4636 = vmatpush.msra.mxu0 %v4635
  %v4637 = vand.u32 %v232, 4294901760
  %v4638 = vsub.f32 %v232, %v4637
  %v4639 = vand.u32 %v4638, 4294901760
  %v4640 = vsub.f32 %v4638, %v4639
  %v4641 = vand.u32 %v4640, 4294901760
  %4642 = vmatpush.msra.mxu0 %v4641
  %v4643 = vand.u32 %v231, 4294901760
  %v4644 = vsub.f32 %v231, %v4643
  %v4645 = vand.u32 %v4644, 4294901760
  %v4646 = vsub.f32 %v4644, %v4645
  %v4647 = vand.u32 %v4646, 4294901760
  %4648 = vmatpush.msra.mxu0 %v4647
  %v4649 = vand.u32 %v230, 4294901760
  %v4650 = vsub.f32 %v230, %v4649
  %v4651 = vand.u32 %v4650, 4294901760
  %v4652 = vsub.f32 %v4650, %v4651
  %v4653 = vand.u32 %v4652, 4294901760
  %4654 = vmatpush.msra.mxu0 %v4653
  %v4655 = vand.u32 %v26, 4294901760
  %4656 = vmatmul.f32.gmra.mxu0 %v4655
  %v4657 = vpop.f32.mrf.mxu0
  %v4658 = vadd.f32 %v4557, %v4657
  %4659 = vdwg.mxu0
  %v4660 = vand.u32 %v245, 4294901760
  %v4661 = vsub.f32 %v245, %v4660
  %4662 = vmatpush.msra.mxu0 %v4661
  %v4663 = vand.u32 %v244, 4294901760
  %v4664 = vsub.f32 %v244, %v4663
  %4665 = vmatpush.msra.mxu0 %v4664
  %v4666 = vand.u32 %v243, 4294901760
  %v4667 = vsub.f32 %v243, %v4666
  %4668 = vmatpush.msra.mxu0 %v4667
  %v4669 = vand.u32 %v242, 4294901760
  %v4670 = vsub.f32 %v242, %v4669
  %4671 = vmatpush.msra.mxu0 %v4670
  %v4672 = vand.u32 %v241, 4294901760
  %v4673 = vsub.f32 %v241, %v4672
  %4674 = vmatpush.msra.mxu0 %v4673
  %v4675 = vand.u32 %v240, 4294901760
  %v4676 = vsub.f32 %v240, %v4675
  %4677 = vmatpush.msra.mxu0 %v4676
  %v4678 = vand.u32 %v239, 4294901760
  %v4679 = vsub.f32 %v239, %v4678
  %4680 = vmatpush.msra.mxu0 %v4679
  %v4681 = vand.u32 %v238, 4294901760
  %v4682 = vsub.f32 %v238, %v4681
  %4683 = vmatpush.msra.mxu0 %v4682
  %v4684 = vand.u32 %v237, 4294901760
  %v4685 = vsub.f32 %v237, %v4684
  %4686 = vmatpush.msra.mxu0 %v4685
  %v4687 = vand.u32 %v236, 4294901760
  %v4688 = vsub.f32 %v236, %v4687
  %4689 = vmatpush.msra.mxu0 %v4688
  %v4690 = vand.u32 %v235, 4294901760
  %v4691 = vsub.f32 %v235, %v4690
  %4692 = vmatpush.msra.mxu0 %v4691
  %v4693 = vand.u32 %v234, 4294901760
  %v4694 = vsub.f32 %v234, %v4693
  %4695 = vmatpush.msra.mxu0 %v4694
  %v4696 = vand.u32 %v233, 4294901760
  %v4697 = vsub.f32 %v233, %v4696
  %4698 = vmatpush.msra.mxu0 %v4697
  %v4699 = vand.u32 %v232, 4294901760
  %v4700 = vsub.f32 %v232, %v4699
  %4701 = vmatpush.msra.mxu0 %v4700
  %v4702 = vand.u32 %v231, 4294901760
  %v4703 = vsub.f32 %v231, %v4702
  %4704 = vmatpush.msra.mxu0 %v4703
  %v4705 = vand.u32 %v230, 4294901760
  %v4706 = vsub.f32 %v230, %v4705
  %4707 = vmatpush.msra.mxu0 %v4706
  %v4708 = vand.u32 %v26, 4294901760
  %v4709 = vsub.f32 %v26, %v4708
  %4710 = vmatmul.f32.gmra.mxu0 %v4709
  %v4711 = vpop.f32.mrf.mxu0
  %v4712 = vadd.f32 %v4658, %v4711
  %4713 = vdwg.mxu0
  %v4714 = vand.u32 %v245, 4294901760
  %4715 = vmatpush.msra.mxu0 %v4714
  %v4716 = vand.u32 %v244, 4294901760
  %4717 = vmatpush.msra.mxu0 %v4716
  %v4718 = vand.u32 %v243, 4294901760
  %4719 = vmatpush.msra.mxu0 %v4718
  %v4720 = vand.u32 %v242, 4294901760
  %4721 = vmatpush.msra.mxu0 %v4720
  %v4722 = vand.u32 %v241, 4294901760
  %4723 = vmatpush.msra.mxu0 %v4722
  %v4724 = vand.u32 %v240, 4294901760
  %4725 = vmatpush.msra.mxu0 %v4724
  %v4726 = vand.u32 %v239, 4294901760
  %4727 = vmatpush.msra.mxu0 %v4726
  %v4728 = vand.u32 %v238, 4294901760
  %4729 = vmatpush.msra.mxu0 %v4728
  %v4730 = vand.u32 %v237, 4294901760
  %4731 = vmatpush.msra.mxu0 %v4730
  %v4732 = vand.u32 %v236, 4294901760
  %4733 = vmatpush.msra.mxu0 %v4732
  %v4734 = vand.u32 %v235, 4294901760
  %4735 = vmatpush.msra.mxu0 %v4734
  %v4736 = vand.u32 %v234, 4294901760
  %4737 = vmatpush.msra.mxu0 %v4736
  %v4738 = vand.u32 %v233, 4294901760
  %4739 = vmatpush.msra.mxu0 %v4738
  %v4740 = vand.u32 %v232, 4294901760
  %4741 = vmatpush.msra.mxu0 %v4740
  %v4742 = vand.u32 %v231, 4294901760
  %4743 = vmatpush.msra.mxu0 %v4742
  %v4744 = vand.u32 %v230, 4294901760
  %4745 = vmatpush.msra.mxu0 %v4744
  %v4746 = vand.u32 %v26, 4294901760
  %v4747 = vsub.f32 %v26, %v4746
  %v4748 = vand.u32 %v4747, 4294901760
  %4749 = vmatmul.f32.gmra.mxu0 %v4748
  %v4750 = vpop.f32.mrf.mxu0
  %v4751 = vadd.f32 %v4712, %v4750
  %4752 = vdwg.mxu0
  %v4753 = vand.u32 %v245, 4294901760
  %v4754 = vsub.f32 %v245, %v4753
  %v4755 = vand.u32 %v4754, 4294901760
  %4756 = vmatpush.msra.mxu0 %v4755
  %v4757 = vand.u32 %v244, 4294901760
  %v4758 = vsub.f32 %v244, %v4757
  %v4759 = vand.u32 %v4758, 4294901760
  %4760 = vmatpush.msra.mxu0 %v4759
  %v4761 = vand.u32 %v243, 4294901760
  %v4762 = vsub.f32 %v243, %v4761
  %v4763 = vand.u32 %v4762, 4294901760
  %4764 = vmatpush.msra.mxu0 %v4763
  %v4765 = vand.u32 %v242, 4294901760
  %v4766 = vsub.f32 %v242, %v4765
  %v4767 = vand.u32 %v4766, 4294901760
  %4768 = vmatpush.msra.mxu0 %v4767
  %v4769 = vand.u32 %v241, 4294901760
  %v4770 = vsub.f32 %v241, %v4769
  %v4771 = vand.u32 %v4770, 4294901760
  %4772 = vmatpush.msra.mxu0 %v4771
  %v4773 = vand.u32 %v240, 4294901760
  %v4774 = vsub.f32 %v240, %v4773
  %v4775 = vand.u32 %v4774, 4294901760
  %4776 = vmatpush.msra.mxu0 %v4775
  %v4777 = vand.u32 %v239, 4294901760
  %v4778 = vsub.f32 %v239, %v4777
  %v4779 = vand.u32 %v4778, 4294901760
  %4780 = vmatpush.msra.mxu0 %v4779
  %v4781 = vand.u32 %v238, 4294901760
  %v4782 = vsub.f32 %v238, %v4781
  %v4783 = vand.u32 %v4782, 4294901760
  %4784 = vmatpush.msra.mxu0 %v4783
  %v4785 = vand.u32 %v237, 4294901760
  %v4786 = vsub.f32 %v237, %v4785
  %v4787 = vand.u32 %v4786, 4294901760
  %4788 = vmatpush.msra.mxu0 %v4787
  %v4789 = vand.u32 %v236, 4294901760
  %v4790 = vsub.f32 %v236, %v4789
  %v4791 = vand.u32 %v4790, 4294901760
  %4792 = vmatpush.msra.mxu0 %v4791
  %v4793 = vand.u32 %v235, 4294901760
  %v4794 = vsub.f32 %v235, %v4793
  %v4795 = vand.u32 %v4794, 4294901760
  %4796 = vmatpush.msra.mxu0 %v4795
  %v4797 = vand.u32 %v234, 4294901760
  %v4798 = vsub.f32 %v234, %v4797
  %v4799 = vand.u32 %v4798, 4294901760
  %4800 = vmatpush.msra.mxu0 %v4799
  %v4801 = vand.u32 %v233, 4294901760
  %v4802 = vsub.f32 %v233, %v4801
  %v4803 = vand.u32 %v4802, 4294901760
  %4804 = vmatpush.msra.mxu0 %v4803
  %v4805 = vand.u32 %v232, 4294901760
  %v4806 = vsub.f32 %v232, %v4805
  %v4807 = vand.u32 %v4806, 4294901760
  %4808 = vmatpush.msra.mxu0 %v4807
  %v4809 = vand.u32 %v231, 4294901760
  %v4810 = vsub.f32 %v231, %v4809
  %v4811 = vand.u32 %v4810, 4294901760
  %4812 = vmatpush.msra.mxu0 %v4811
  %v4813 = vand.u32 %v230, 4294901760
  %v4814 = vsub.f32 %v230, %v4813
  %v4815 = vand.u32 %v4814, 4294901760
  %4816 = vmatpush.msra.mxu0 %v4815
  %v4817 = vand.u32 %v26, 4294901760
  %4818 = vmatmul.f32.gmra.mxu0 %v4817
  %v4819 = vpop.f32.mrf.mxu0
  %v4820 = vadd.f32 %v4751, %v4819
  %4821 = vdwg.mxu0
  %v4822 = vand.u32 %v245, 4294901760
  %4823 = vmatpush.msra.mxu0 %v4822
  %v4824 = vand.u32 %v244, 4294901760
  %4825 = vmatpush.msra.mxu0 %v4824
  %v4826 = vand.u32 %v243, 4294901760
  %4827 = vmatpush.msra.mxu0 %v4826
  %v4828 = vand.u32 %v242, 4294901760
  %4829 = vmatpush.msra.mxu0 %v4828
  %v4830 = vand.u32 %v241, 4294901760
  %4831 = vmatpush.msra.mxu0 %v4830
  %v4832 = vand.u32 %v240, 4294901760
  %4833 = vmatpush.msra.mxu0 %v4832
  %v4834 = vand.u32 %v239, 4294901760
  %4835 = vmatpush.msra.mxu0 %v4834
  %v4836 = vand.u32 %v238, 4294901760
  %4837 = vmatpush.msra.mxu0 %v4836
  %v4838 = vand.u32 %v237, 4294901760
  %4839 = vmatpush.msra.mxu0 %v4838
  %v4840 = vand.u32 %v236, 4294901760
  %4841 = vmatpush.msra.mxu0 %v4840
  %v4842 = vand.u32 %v235, 4294901760
  %4843 = vmatpush.msra.mxu0 %v4842
  %v4844 = vand.u32 %v234, 4294901760
  %4845 = vmatpush.msra.mxu0 %v4844
  %v4846 = vand.u32 %v233, 4294901760
  %4847 = vmatpush.msra.mxu0 %v4846
  %v4848 = vand.u32 %v232, 4294901760
  %4849 = vmatpush.msra.mxu0 %v4848
  %v4850 = vand.u32 %v231, 4294901760
  %4851 = vmatpush.msra.mxu0 %v4850
  %v4852 = vand.u32 %v230, 4294901760
  %4853 = vmatpush.msra.mxu0 %v4852
  %v4854 = vand.u32 %v26, 4294901760
  %4855 = vmatmul.f32.gmra.mxu0 %v4854
  %v4856 = vpop.f32.mrf.mxu0
  %v4857 = vadd.f32 %v4820, %v4856
  %4858 = vdwg.mxu0
  %v4859 = vand.u32 %v261, 4294901760
  %4860 = vmatpush.msra.mxu0 %v4859
  %v4861 = vand.u32 %v260, 4294901760
  %4862 = vmatpush.msra.mxu0 %v4861
  %v4863 = vand.u32 %v259, 4294901760
  %4864 = vmatpush.msra.mxu0 %v4863
  %v4865 = vand.u32 %v258, 4294901760
  %4866 = vmatpush.msra.mxu0 %v4865
  %v4867 = vand.u32 %v257, 4294901760
  %4868 = vmatpush.msra.mxu0 %v4867
  %v4869 = vand.u32 %v256, 4294901760
  %4870 = vmatpush.msra.mxu0 %v4869
  %v4871 = vand.u32 %v255, 4294901760
  %4872 = vmatpush.msra.mxu0 %v4871
  %v4873 = vand.u32 %v254, 4294901760
  %4874 = vmatpush.msra.mxu0 %v4873
  %v4875 = vand.u32 %v253, 4294901760
  %4876 = vmatpush.msra.mxu0 %v4875
  %v4877 = vand.u32 %v252, 4294901760
  %4878 = vmatpush.msra.mxu0 %v4877
  %v4879 = vand.u32 %v251, 4294901760
  %4880 = vmatpush.msra.mxu0 %v4879
  %v4881 = vand.u32 %v250, 4294901760
  %4882 = vmatpush.msra.mxu0 %v4881
  %v4883 = vand.u32 %v249, 4294901760
  %4884 = vmatpush.msra.mxu0 %v4883
  %v4885 = vand.u32 %v248, 4294901760
  %4886 = vmatpush.msra.mxu0 %v4885
  %v4887 = vand.u32 %v247, 4294901760
  %4888 = vmatpush.msra.mxu0 %v4887
  %v4889 = vand.u32 %v246, 4294901760
  %4890 = vmatpush.msra.mxu0 %v4889
  %v4891 = vand.u32 %v27, 4294901760
  %v4892 = vsub.f32 %v27, %v4891
  %v4893 = vand.u32 %v4892, 4294901760
  %v4894 = vsub.f32 %v4892, %v4893
  %v4895 = vand.u32 %v4894, 4294901760
  %4896 = vmatmul.f32.gmra.mxu0 %v4895
  %v4897 = vpop.f32.mrf.mxu0
  %v4898 = vadd.f32 %v4857, %v4897
  %4899 = vdwg.mxu0
  %v4900 = vand.u32 %v261, 4294901760
  %v4901 = vsub.f32 %v261, %v4900
  %v4902 = vand.u32 %v4901, 4294901760
  %v4903 = vsub.f32 %v4901, %v4902
  %v4904 = vand.u32 %v4903, 4294901760
  %4905 = vmatpush.msra.mxu0 %v4904
  %v4906 = vand.u32 %v260, 4294901760
  %v4907 = vsub.f32 %v260, %v4906
  %v4908 = vand.u32 %v4907, 4294901760
  %v4909 = vsub.f32 %v4907, %v4908
  %v4910 = vand.u32 %v4909, 4294901760
  %4911 = vmatpush.msra.mxu0 %v4910
  %v4912 = vand.u32 %v259, 4294901760
  %v4913 = vsub.f32 %v259, %v4912
  %v4914 = vand.u32 %v4913, 4294901760
  %v4915 = vsub.f32 %v4913, %v4914
  %v4916 = vand.u32 %v4915, 4294901760
  %4917 = vmatpush.msra.mxu0 %v4916
  %v4918 = vand.u32 %v258, 4294901760
  %v4919 = vsub.f32 %v258, %v4918
  %v4920 = vand.u32 %v4919, 4294901760
  %v4921 = vsub.f32 %v4919, %v4920
  %v4922 = vand.u32 %v4921, 4294901760
  %4923 = vmatpush.msra.mxu0 %v4922
  %v4924 = vand.u32 %v257, 4294901760
  %v4925 = vsub.f32 %v257, %v4924
  %v4926 = vand.u32 %v4925, 4294901760
  %v4927 = vsub.f32 %v4925, %v4926
  %v4928 = vand.u32 %v4927, 4294901760
  %4929 = vmatpush.msra.mxu0 %v4928
  %v4930 = vand.u32 %v256, 4294901760
  %v4931 = vsub.f32 %v256, %v4930
  %v4932 = vand.u32 %v4931, 4294901760
  %v4933 = vsub.f32 %v4931, %v4932
  %v4934 = vand.u32 %v4933, 4294901760
  %4935 = vmatpush.msra.mxu0 %v4934
  %v4936 = vand.u32 %v255, 4294901760
  %v4937 = vsub.f32 %v255, %v4936
  %v4938 = vand.u32 %v4937, 4294901760
  %v4939 = vsub.f32 %v4937, %v4938
  %v4940 = vand.u32 %v4939, 4294901760
  %4941 = vmatpush.msra.mxu0 %v4940
  %v4942 = vand.u32 %v254, 4294901760
  %v4943 = vsub.f32 %v254, %v4942
  %v4944 = vand.u32 %v4943, 4294901760
  %v4945 = vsub.f32 %v4943, %v4944
  %v4946 = vand.u32 %v4945, 4294901760
  %4947 = vmatpush.msra.mxu0 %v4946
  %v4948 = vand.u32 %v253, 4294901760
  %v4949 = vsub.f32 %v253, %v4948
  %v4950 = vand.u32 %v4949, 4294901760
  %v4951 = vsub.f32 %v4949, %v4950
  %v4952 = vand.u32 %v4951, 4294901760
  %4953 = vmatpush.msra.mxu0 %v4952
  %v4954 = vand.u32 %v252, 4294901760
  %v4955 = vsub.f32 %v252, %v4954
  %v4956 = vand.u32 %v4955, 4294901760
  %v4957 = vsub.f32 %v4955, %v4956
  %v4958 = vand.u32 %v4957, 4294901760
  %4959 = vmatpush.msra.mxu0 %v4958
  %v4960 = vand.u32 %v251, 4294901760
  %v4961 = vsub.f32 %v251, %v4960
  %v4962 = vand.u32 %v4961, 4294901760
  %v4963 = vsub.f32 %v4961, %v4962
  %v4964 = vand.u32 %v4963, 4294901760
  %4965 = vmatpush.msra.mxu0 %v4964
  %v4966 = vand.u32 %v250, 4294901760
  %v4967 = vsub.f32 %v250, %v4966
  %v4968 = vand.u32 %v4967, 4294901760
  %v4969 = vsub.f32 %v4967, %v4968
  %v4970 = vand.u32 %v4969, 4294901760
  %4971 = vmatpush.msra.mxu0 %v4970
  %v4972 = vand.u32 %v249, 4294901760
  %v4973 = vsub.f32 %v249, %v4972
  %v4974 = vand.u32 %v4973, 4294901760
  %v4975 = vsub.f32 %v4973, %v4974
  %v4976 = vand.u32 %v4975, 4294901760
  %4977 = vmatpush.msra.mxu0 %v4976
  %v4978 = vand.u32 %v248, 4294901760
  %v4979 = vsub.f32 %v248, %v4978
  %v4980 = vand.u32 %v4979, 4294901760
  %v4981 = vsub.f32 %v4979, %v4980
  %v4982 = vand.u32 %v4981, 4294901760
  %4983 = vmatpush.msra.mxu0 %v4982
  %v4984 = vand.u32 %v247, 4294901760
  %v4985 = vsub.f32 %v247, %v4984
  %v4986 = vand.u32 %v4985, 4294901760
  %v4987 = vsub.f32 %v4985, %v4986
  %v4988 = vand.u32 %v4987, 4294901760
  %4989 = vmatpush.msra.mxu0 %v4988
  %v4990 = vand.u32 %v246, 4294901760
  %v4991 = vsub.f32 %v246, %v4990
  %v4992 = vand.u32 %v4991, 4294901760
  %v4993 = vsub.f32 %v4991, %v4992
  %v4994 = vand.u32 %v4993, 4294901760
  %4995 = vmatpush.msra.mxu0 %v4994
  %v4996 = vand.u32 %v27, 4294901760
  %4997 = vmatmul.f32.gmra.mxu0 %v4996
  %v4998 = vpop.f32.mrf.mxu0
  %v4999 = vadd.f32 %v4898, %v4998
  %5000 = vdwg.mxu0
  %v5001 = vand.u32 %v261, 4294901760
  %v5002 = vsub.f32 %v261, %v5001
  %5003 = vmatpush.msra.mxu0 %v5002
  %v5004 = vand.u32 %v260, 4294901760
  %v5005 = vsub.f32 %v260, %v5004
  %5006 = vmatpush.msra.mxu0 %v5005
  %v5007 = vand.u32 %v259, 4294901760
  %v5008 = vsub.f32 %v259, %v5007
  %5009 = vmatpush.msra.mxu0 %v5008
  %v5010 = vand.u32 %v258, 4294901760
  %v5011 = vsub.f32 %v258, %v5010
  %5012 = vmatpush.msra.mxu0 %v5011
  %v5013 = vand.u32 %v257, 4294901760
  %v5014 = vsub.f32 %v257, %v5013
  %5015 = vmatpush.msra.mxu0 %v5014
  %v5016 = vand.u32 %v256, 4294901760
  %v5017 = vsub.f32 %v256, %v5016
  %5018 = vmatpush.msra.mxu0 %v5017
  %v5019 = vand.u32 %v255, 4294901760
  %v5020 = vsub.f32 %v255, %v5019
  %5021 = vmatpush.msra.mxu0 %v5020
  %v5022 = vand.u32 %v254, 4294901760
  %v5023 = vsub.f32 %v254, %v5022
  %5024 = vmatpush.msra.mxu0 %v5023
  %v5025 = vand.u32 %v253, 4294901760
  %v5026 = vsub.f32 %v253, %v5025
  %5027 = vmatpush.msra.mxu0 %v5026
  %v5028 = vand.u32 %v252, 4294901760
  %v5029 = vsub.f32 %v252, %v5028
  %5030 = vmatpush.msra.mxu0 %v5029
  %v5031 = vand.u32 %v251, 4294901760
  %v5032 = vsub.f32 %v251, %v5031
  %5033 = vmatpush.msra.mxu0 %v5032
  %v5034 = vand.u32 %v250, 4294901760
  %v5035 = vsub.f32 %v250, %v5034
  %5036 = vmatpush.msra.mxu0 %v5035
  %v5037 = vand.u32 %v249, 4294901760
  %v5038 = vsub.f32 %v249, %v5037
  %5039 = vmatpush.msra.mxu0 %v5038
  %v5040 = vand.u32 %v248, 4294901760
  %v5041 = vsub.f32 %v248, %v5040
  %5042 = vmatpush.msra.mxu0 %v5041
  %v5043 = vand.u32 %v247, 4294901760
  %v5044 = vsub.f32 %v247, %v5043
  %5045 = vmatpush.msra.mxu0 %v5044
  %v5046 = vand.u32 %v246, 4294901760
  %v5047 = vsub.f32 %v246, %v5046
  %5048 = vmatpush.msra.mxu0 %v5047
  %v5049 = vand.u32 %v27, 4294901760
  %v5050 = vsub.f32 %v27, %v5049
  %5051 = vmatmul.f32.gmra.mxu0 %v5050
  %v5052 = vpop.f32.mrf.mxu0
  %v5053 = vadd.f32 %v4999, %v5052
  %5054 = vdwg.mxu0
  %v5055 = vand.u32 %v261, 4294901760
  %5056 = vmatpush.msra.mxu0 %v5055
  %v5057 = vand.u32 %v260, 4294901760
  %5058 = vmatpush.msra.mxu0 %v5057
  %v5059 = vand.u32 %v259, 4294901760
  %5060 = vmatpush.msra.mxu0 %v5059
  %v5061 = vand.u32 %v258, 4294901760
  %5062 = vmatpush.msra.mxu0 %v5061
  %v5063 = vand.u32 %v257, 4294901760
  %5064 = vmatpush.msra.mxu0 %v5063
  %v5065 = vand.u32 %v256, 4294901760
  %5066 = vmatpush.msra.mxu0 %v5065
  %v5067 = vand.u32 %v255, 4294901760
  %5068 = vmatpush.msra.mxu0 %v5067
  %v5069 = vand.u32 %v254, 4294901760
  %5070 = vmatpush.msra.mxu0 %v5069
  %v5071 = vand.u32 %v253, 4294901760
  %5072 = vmatpush.msra.mxu0 %v5071
  %v5073 = vand.u32 %v252, 4294901760
  %5074 = vmatpush.msra.mxu0 %v5073
  %v5075 = vand.u32 %v251, 4294901760
  %5076 = vmatpush.msra.mxu0 %v5075
  %v5077 = vand.u32 %v250, 4294901760
  %5078 = vmatpush.msra.mxu0 %v5077
  %v5079 = vand.u32 %v249, 4294901760
  %5080 = vmatpush.msra.mxu0 %v5079
  %v5081 = vand.u32 %v248, 4294901760
  %5082 = vmatpush.msra.mxu0 %v5081
  %v5083 = vand.u32 %v247, 4294901760
  %5084 = vmatpush.msra.mxu0 %v5083
  %v5085 = vand.u32 %v246, 4294901760
  %5086 = vmatpush.msra.mxu0 %v5085
  %v5087 = vand.u32 %v27, 4294901760
  %v5088 = vsub.f32 %v27, %v5087
  %v5089 = vand.u32 %v5088, 4294901760
  %5090 = vmatmul.f32.gmra.mxu0 %v5089
  %v5091 = vpop.f32.mrf.mxu0
  %v5092 = vadd.f32 %v5053, %v5091
  %5093 = vdwg.mxu0
  %v5094 = vand.u32 %v261, 4294901760
  %v5095 = vsub.f32 %v261, %v5094
  %v5096 = vand.u32 %v5095, 4294901760
  %5097 = vmatpush.msra.mxu0 %v5096
  %v5098 = vand.u32 %v260, 4294901760
  %v5099 = vsub.f32 %v260, %v5098
  %v5100 = vand.u32 %v5099, 4294901760
  %5101 = vmatpush.msra.mxu0 %v5100
  %v5102 = vand.u32 %v259, 4294901760
  %v5103 = vsub.f32 %v259, %v5102
  %v5104 = vand.u32 %v5103, 4294901760
  %5105 = vmatpush.msra.mxu0 %v5104
  %v5106 = vand.u32 %v258, 4294901760
  %v5107 = vsub.f32 %v258, %v5106
  %v5108 = vand.u32 %v5107, 4294901760
  %5109 = vmatpush.msra.mxu0 %v5108
  %v5110 = vand.u32 %v257, 4294901760
  %v5111 = vsub.f32 %v257, %v5110
  %v5112 = vand.u32 %v5111, 4294901760
  %5113 = vmatpush.msra.mxu0 %v5112
  %v5114 = vand.u32 %v256, 4294901760
  %v5115 = vsub.f32 %v256, %v5114
  %v5116 = vand.u32 %v5115, 4294901760
  %5117 = vmatpush.msra.mxu0 %v5116
  %v5118 = vand.u32 %v255, 4294901760
  %v5119 = vsub.f32 %v255, %v5118
  %v5120 = vand.u32 %v5119, 4294901760
  %5121 = vmatpush.msra.mxu0 %v5120
  %v5122 = vand.u32 %v254, 4294901760
  %v5123 = vsub.f32 %v254, %v5122
  %v5124 = vand.u32 %v5123, 4294901760
  %5125 = vmatpush.msra.mxu0 %v5124
  %v5126 = vand.u32 %v253, 4294901760
  %v5127 = vsub.f32 %v253, %v5126
  %v5128 = vand.u32 %v5127, 4294901760
  %5129 = vmatpush.msra.mxu0 %v5128
  %v5130 = vand.u32 %v252, 4294901760
  %v5131 = vsub.f32 %v252, %v5130
  %v5132 = vand.u32 %v5131, 4294901760
  %5133 = vmatpush.msra.mxu0 %v5132
  %v5134 = vand.u32 %v251, 4294901760
  %v5135 = vsub.f32 %v251, %v5134
  %v5136 = vand.u32 %v5135, 4294901760
  %5137 = vmatpush.msra.mxu0 %v5136
  %v5138 = vand.u32 %v250, 4294901760
  %v5139 = vsub.f32 %v250, %v5138
  %v5140 = vand.u32 %v5139, 4294901760
  %5141 = vmatpush.msra.mxu0 %v5140
  %v5142 = vand.u32 %v249, 4294901760
  %v5143 = vsub.f32 %v249, %v5142
  %v5144 = vand.u32 %v5143, 4294901760
  %5145 = vmatpush.msra.mxu0 %v5144
  %v5146 = vand.u32 %v248, 4294901760
  %v5147 = vsub.f32 %v248, %v5146
  %v5148 = vand.u32 %v5147, 4294901760
  %5149 = vmatpush.msra.mxu0 %v5148
  %v5150 = vand.u32 %v247, 4294901760
  %v5151 = vsub.f32 %v247, %v5150
  %v5152 = vand.u32 %v5151, 4294901760
  %5153 = vmatpush.msra.mxu0 %v5152
  %v5154 = vand.u32 %v246, 4294901760
  %v5155 = vsub.f32 %v246, %v5154
  %v5156 = vand.u32 %v5155, 4294901760
  %5157 = vmatpush.msra.mxu0 %v5156
  %v5158 = vand.u32 %v27, 4294901760
  %5159 = vmatmul.f32.gmra.mxu0 %v5158
  %v5160 = vpop.f32.mrf.mxu0
  %v5161 = vadd.f32 %v5092, %v5160
  %5162 = vdwg.mxu0
  %v5163 = vand.u32 %v261, 4294901760
  %5164 = vmatpush.msra.mxu0 %v5163
  %v5165 = vand.u32 %v260, 4294901760
  %5166 = vmatpush.msra.mxu0 %v5165
  %v5167 = vand.u32 %v259, 4294901760
  %5168 = vmatpush.msra.mxu0 %v5167
  %v5169 = vand.u32 %v258, 4294901760
  %5170 = vmatpush.msra.mxu0 %v5169
  %v5171 = vand.u32 %v257, 4294901760
  %5172 = vmatpush.msra.mxu0 %v5171
  %v5173 = vand.u32 %v256, 4294901760
  %5174 = vmatpush.msra.mxu0 %v5173
  %v5175 = vand.u32 %v255, 4294901760
  %5176 = vmatpush.msra.mxu0 %v5175
  %v5177 = vand.u32 %v254, 4294901760
  %5178 = vmatpush.msra.mxu0 %v5177
  %v5179 = vand.u32 %v253, 4294901760
  %5180 = vmatpush.msra.mxu0 %v5179
  %v5181 = vand.u32 %v252, 4294901760
  %5182 = vmatpush.msra.mxu0 %v5181
  %v5183 = vand.u32 %v251, 4294901760
  %5184 = vmatpush.msra.mxu0 %v5183
  %v5185 = vand.u32 %v250, 4294901760
  %5186 = vmatpush.msra.mxu0 %v5185
  %v5187 = vand.u32 %v249, 4294901760
  %5188 = vmatpush.msra.mxu0 %v5187
  %v5189 = vand.u32 %v248, 4294901760
  %5190 = vmatpush.msra.mxu0 %v5189
  %v5191 = vand.u32 %v247, 4294901760
  %5192 = vmatpush.msra.mxu0 %v5191
  %v5193 = vand.u32 %v246, 4294901760
  %5194 = vmatpush.msra.mxu0 %v5193
  %v5195 = vand.u32 %v27, 4294901760
  %5196 = vmatmul.f32.gmra.mxu0 %v5195
  %v5197 = vpop.f32.mrf.mxu0
  %v5198 = vadd.f32 %v5161, %v5197
  %5199 = vdwg.mxu0
  %v5200 = vand.u32 %v277, 4294901760
  %5201 = vmatpush.msra.mxu0 %v5200
  %v5202 = vand.u32 %v276, 4294901760
  %5203 = vmatpush.msra.mxu0 %v5202
  %v5204 = vand.u32 %v275, 4294901760
  %5205 = vmatpush.msra.mxu0 %v5204
  %v5206 = vand.u32 %v274, 4294901760
  %5207 = vmatpush.msra.mxu0 %v5206
  %v5208 = vand.u32 %v273, 4294901760
  %5209 = vmatpush.msra.mxu0 %v5208
  %v5210 = vand.u32 %v272, 4294901760
  %5211 = vmatpush.msra.mxu0 %v5210
  %v5212 = vand.u32 %v271, 4294901760
  %5213 = vmatpush.msra.mxu0 %v5212
  %v5214 = vand.u32 %v270, 4294901760
  %5215 = vmatpush.msra.mxu0 %v5214
  %v5216 = vand.u32 %v269, 4294901760
  %5217 = vmatpush.msra.mxu0 %v5216
  %v5218 = vand.u32 %v268, 4294901760
  %5219 = vmatpush.msra.mxu0 %v5218
  %v5220 = vand.u32 %v267, 4294901760
  %5221 = vmatpush.msra.mxu0 %v5220
  %v5222 = vand.u32 %v266, 4294901760
  %5223 = vmatpush.msra.mxu0 %v5222
  %v5224 = vand.u32 %v265, 4294901760
  %5225 = vmatpush.msra.mxu0 %v5224
  %v5226 = vand.u32 %v264, 4294901760
  %5227 = vmatpush.msra.mxu0 %v5226
  %v5228 = vand.u32 %v263, 4294901760
  %5229 = vmatpush.msra.mxu0 %v5228
  %v5230 = vand.u32 %v262, 4294901760
  %5231 = vmatpush.msra.mxu0 %v5230
  %v5232 = vand.u32 %v28, 4294901760
  %v5233 = vsub.f32 %v28, %v5232
  %v5234 = vand.u32 %v5233, 4294901760
  %v5235 = vsub.f32 %v5233, %v5234
  %v5236 = vand.u32 %v5235, 4294901760
  %5237 = vmatmul.f32.gmra.mxu0 %v5236
  %v5238 = vpop.f32.mrf.mxu0
  %v5239 = vadd.f32 %v5198, %v5238
  %5240 = vdwg.mxu0
  %v5241 = vand.u32 %v277, 4294901760
  %v5242 = vsub.f32 %v277, %v5241
  %v5243 = vand.u32 %v5242, 4294901760
  %v5244 = vsub.f32 %v5242, %v5243
  %v5245 = vand.u32 %v5244, 4294901760
  %5246 = vmatpush.msra.mxu0 %v5245
  %v5247 = vand.u32 %v276, 4294901760
  %v5248 = vsub.f32 %v276, %v5247
  %v5249 = vand.u32 %v5248, 4294901760
  %v5250 = vsub.f32 %v5248, %v5249
  %v5251 = vand.u32 %v5250, 4294901760
  %5252 = vmatpush.msra.mxu0 %v5251
  %v5253 = vand.u32 %v275, 4294901760
  %v5254 = vsub.f32 %v275, %v5253
  %v5255 = vand.u32 %v5254, 4294901760
  %v5256 = vsub.f32 %v5254, %v5255
  %v5257 = vand.u32 %v5256, 4294901760
  %5258 = vmatpush.msra.mxu0 %v5257
  %v5259 = vand.u32 %v274, 4294901760
  %v5260 = vsub.f32 %v274, %v5259
  %v5261 = vand.u32 %v5260, 4294901760
  %v5262 = vsub.f32 %v5260, %v5261
  %v5263 = vand.u32 %v5262, 4294901760
  %5264 = vmatpush.msra.mxu0 %v5263
  %v5265 = vand.u32 %v273, 4294901760
  %v5266 = vsub.f32 %v273, %v5265
  %v5267 = vand.u32 %v5266, 4294901760
  %v5268 = vsub.f32 %v5266, %v5267
  %v5269 = vand.u32 %v5268, 4294901760
  %5270 = vmatpush.msra.mxu0 %v5269
  %v5271 = vand.u32 %v272, 4294901760
  %v5272 = vsub.f32 %v272, %v5271
  %v5273 = vand.u32 %v5272, 4294901760
  %v5274 = vsub.f32 %v5272, %v5273
  %v5275 = vand.u32 %v5274, 4294901760
  %5276 = vmatpush.msra.mxu0 %v5275
  %v5277 = vand.u32 %v271, 4294901760
  %v5278 = vsub.f32 %v271, %v5277
  %v5279 = vand.u32 %v5278, 4294901760
  %v5280 = vsub.f32 %v5278, %v5279
  %v5281 = vand.u32 %v5280, 4294901760
  %5282 = vmatpush.msra.mxu0 %v5281
  %v5283 = vand.u32 %v270, 4294901760
  %v5284 = vsub.f32 %v270, %v5283
  %v5285 = vand.u32 %v5284, 4294901760
  %v5286 = vsub.f32 %v5284, %v5285
  %v5287 = vand.u32 %v5286, 4294901760
  %5288 = vmatpush.msra.mxu0 %v5287
  %v5289 = vand.u32 %v269, 4294901760
  %v5290 = vsub.f32 %v269, %v5289
  %v5291 = vand.u32 %v5290, 4294901760
  %v5292 = vsub.f32 %v5290, %v5291
  %v5293 = vand.u32 %v5292, 4294901760
  %5294 = vmatpush.msra.mxu0 %v5293
  %v5295 = vand.u32 %v268, 4294901760
  %v5296 = vsub.f32 %v268, %v5295
  %v5297 = vand.u32 %v5296, 4294901760
  %v5298 = vsub.f32 %v5296, %v5297
  %v5299 = vand.u32 %v5298, 4294901760
  %5300 = vmatpush.msra.mxu0 %v5299
  %v5301 = vand.u32 %v267, 4294901760
  %v5302 = vsub.f32 %v267, %v5301
  %v5303 = vand.u32 %v5302, 4294901760
  %v5304 = vsub.f32 %v5302, %v5303
  %v5305 = vand.u32 %v5304, 4294901760
  %5306 = vmatpush.msra.mxu0 %v5305
  %v5307 = vand.u32 %v266, 4294901760
  %v5308 = vsub.f32 %v266, %v5307
  %v5309 = vand.u32 %v5308, 4294901760
  %v5310 = vsub.f32 %v5308, %v5309
  %v5311 = vand.u32 %v5310, 4294901760
  %5312 = vmatpush.msra.mxu0 %v5311
  %v5313 = vand.u32 %v265, 4294901760
  %v5314 = vsub.f32 %v265, %v5313
  %v5315 = vand.u32 %v5314, 4294901760
  %v5316 = vsub.f32 %v5314, %v5315
  %v5317 = vand.u32 %v5316, 4294901760
  %5318 = vmatpush.msra.mxu0 %v5317
  %v5319 = vand.u32 %v264, 4294901760
  %v5320 = vsub.f32 %v264, %v5319
  %v5321 = vand.u32 %v5320, 4294901760
  %v5322 = vsub.f32 %v5320, %v5321
  %v5323 = vand.u32 %v5322, 4294901760
  %5324 = vmatpush.msra.mxu0 %v5323
  %v5325 = vand.u32 %v263, 4294901760
  %v5326 = vsub.f32 %v263, %v5325
  %v5327 = vand.u32 %v5326, 4294901760
  %v5328 = vsub.f32 %v5326, %v5327
  %v5329 = vand.u32 %v5328, 4294901760
  %5330 = vmatpush.msra.mxu0 %v5329
  %v5331 = vand.u32 %v262, 4294901760
  %v5332 = vsub.f32 %v262, %v5331
  %v5333 = vand.u32 %v5332, 4294901760
  %v5334 = vsub.f32 %v5332, %v5333
  %v5335 = vand.u32 %v5334, 4294901760
  %5336 = vmatpush.msra.mxu0 %v5335
  %v5337 = vand.u32 %v28, 4294901760
  %5338 = vmatmul.f32.gmra.mxu0 %v5337
  %v5339 = vpop.f32.mrf.mxu0
  %v5340 = vadd.f32 %v5239, %v5339
  %5341 = vdwg.mxu0
  %v5342 = vand.u32 %v277, 4294901760
  %v5343 = vsub.f32 %v277, %v5342
  %5344 = vmatpush.msra.mxu0 %v5343
  %v5345 = vand.u32 %v276, 4294901760
  %v5346 = vsub.f32 %v276, %v5345
  %5347 = vmatpush.msra.mxu0 %v5346
  %v5348 = vand.u32 %v275, 4294901760
  %v5349 = vsub.f32 %v275, %v5348
  %5350 = vmatpush.msra.mxu0 %v5349
  %v5351 = vand.u32 %v274, 4294901760
  %v5352 = vsub.f32 %v274, %v5351
  %5353 = vmatpush.msra.mxu0 %v5352
  %v5354 = vand.u32 %v273, 4294901760
  %v5355 = vsub.f32 %v273, %v5354
  %5356 = vmatpush.msra.mxu0 %v5355
  %v5357 = vand.u32 %v272, 4294901760
  %v5358 = vsub.f32 %v272, %v5357
  %5359 = vmatpush.msra.mxu0 %v5358
  %v5360 = vand.u32 %v271, 4294901760
  %v5361 = vsub.f32 %v271, %v5360
  %5362 = vmatpush.msra.mxu0 %v5361
  %v5363 = vand.u32 %v270, 4294901760
  %v5364 = vsub.f32 %v270, %v5363
  %5365 = vmatpush.msra.mxu0 %v5364
  %v5366 = vand.u32 %v269, 4294901760
  %v5367 = vsub.f32 %v269, %v5366
  %5368 = vmatpush.msra.mxu0 %v5367
  %v5369 = vand.u32 %v268, 4294901760
  %v5370 = vsub.f32 %v268, %v5369
  %5371 = vmatpush.msra.mxu0 %v5370
  %v5372 = vand.u32 %v267, 4294901760
  %v5373 = vsub.f32 %v267, %v5372
  %5374 = vmatpush.msra.mxu0 %v5373
  %v5375 = vand.u32 %v266, 4294901760
  %v5376 = vsub.f32 %v266, %v5375
  %5377 = vmatpush.msra.mxu0 %v5376
  %v5378 = vand.u32 %v265, 4294901760
  %v5379 = vsub.f32 %v265, %v5378
  %5380 = vmatpush.msra.mxu0 %v5379
  %v5381 = vand.u32 %v264, 4294901760
  %v5382 = vsub.f32 %v264, %v5381
  %5383 = vmatpush.msra.mxu0 %v5382
  %v5384 = vand.u32 %v263, 4294901760
  %v5385 = vsub.f32 %v263, %v5384
  %5386 = vmatpush.msra.mxu0 %v5385
  %v5387 = vand.u32 %v262, 4294901760
  %v5388 = vsub.f32 %v262, %v5387
  %5389 = vmatpush.msra.mxu0 %v5388
  %v5390 = vand.u32 %v28, 4294901760
  %v5391 = vsub.f32 %v28, %v5390
  %5392 = vmatmul.f32.gmra.mxu0 %v5391
  %v5393 = vpop.f32.mrf.mxu0
  %v5394 = vadd.f32 %v5340, %v5393
  %5395 = vdwg.mxu0
  %v5396 = vand.u32 %v277, 4294901760
  %5397 = vmatpush.msra.mxu0 %v5396
  %v5398 = vand.u32 %v276, 4294901760
  %5399 = vmatpush.msra.mxu0 %v5398
  %v5400 = vand.u32 %v275, 4294901760
  %5401 = vmatpush.msra.mxu0 %v5400
  %v5402 = vand.u32 %v274, 4294901760
  %5403 = vmatpush.msra.mxu0 %v5402
  %v5404 = vand.u32 %v273, 4294901760
  %5405 = vmatpush.msra.mxu0 %v5404
  %v5406 = vand.u32 %v272, 4294901760
  %5407 = vmatpush.msra.mxu0 %v5406
  %v5408 = vand.u32 %v271, 4294901760
  %5409 = vmatpush.msra.mxu0 %v5408
  %v5410 = vand.u32 %v270, 4294901760
  %5411 = vmatpush.msra.mxu0 %v5410
  %v5412 = vand.u32 %v269, 4294901760
  %5413 = vmatpush.msra.mxu0 %v5412
  %v5414 = vand.u32 %v268, 4294901760
  %5415 = vmatpush.msra.mxu0 %v5414
  %v5416 = vand.u32 %v267, 4294901760
  %5417 = vmatpush.msra.mxu0 %v5416
  %v5418 = vand.u32 %v266, 4294901760
  %5419 = vmatpush.msra.mxu0 %v5418
  %v5420 = vand.u32 %v265, 4294901760
  %5421 = vmatpush.msra.mxu0 %v5420
  %v5422 = vand.u32 %v264, 4294901760
  %5423 = vmatpush.msra.mxu0 %v5422
  %v5424 = vand.u32 %v263, 4294901760
  %5425 = vmatpush.msra.mxu0 %v5424
  %v5426 = vand.u32 %v262, 4294901760
  %5427 = vmatpush.msra.mxu0 %v5426
  %v5428 = vand.u32 %v28, 4294901760
  %v5429 = vsub.f32 %v28, %v5428
  %v5430 = vand.u32 %v5429, 4294901760
  %5431 = vmatmul.f32.gmra.mxu0 %v5430
  %v5432 = vpop.f32.mrf.mxu0
  %v5433 = vadd.f32 %v5394, %v5432
  %5434 = vdwg.mxu0
  %v5435 = vand.u32 %v277, 4294901760
  %v5436 = vsub.f32 %v277, %v5435
  %v5437 = vand.u32 %v5436, 4294901760
  %5438 = vmatpush.msra.mxu0 %v5437
  %v5439 = vand.u32 %v276, 4294901760
  %v5440 = vsub.f32 %v276, %v5439
  %v5441 = vand.u32 %v5440, 4294901760
  %5442 = vmatpush.msra.mxu0 %v5441
  %v5443 = vand.u32 %v275, 4294901760
  %v5444 = vsub.f32 %v275, %v5443
  %v5445 = vand.u32 %v5444, 4294901760
  %5446 = vmatpush.msra.mxu0 %v5445
  %v5447 = vand.u32 %v274, 4294901760
  %v5448 = vsub.f32 %v274, %v5447
  %v5449 = vand.u32 %v5448, 4294901760
  %5450 = vmatpush.msra.mxu0 %v5449
  %v5451 = vand.u32 %v273, 4294901760
  %v5452 = vsub.f32 %v273, %v5451
  %v5453 = vand.u32 %v5452, 4294901760
  %5454 = vmatpush.msra.mxu0 %v5453
  %v5455 = vand.u32 %v272, 4294901760
  %v5456 = vsub.f32 %v272, %v5455
  %v5457 = vand.u32 %v5456, 4294901760
  %5458 = vmatpush.msra.mxu0 %v5457
  %v5459 = vand.u32 %v271, 4294901760
  %v5460 = vsub.f32 %v271, %v5459
  %v5461 = vand.u32 %v5460, 4294901760
  %5462 = vmatpush.msra.mxu0 %v5461
  %v5463 = vand.u32 %v270, 4294901760
  %v5464 = vsub.f32 %v270, %v5463
  %v5465 = vand.u32 %v5464, 4294901760
  %5466 = vmatpush.msra.mxu0 %v5465
  %v5467 = vand.u32 %v269, 4294901760
  %v5468 = vsub.f32 %v269, %v5467
  %v5469 = vand.u32 %v5468, 4294901760
  %5470 = vmatpush.msra.mxu0 %v5469
  %v5471 = vand.u32 %v268, 4294901760
  %v5472 = vsub.f32 %v268, %v5471
  %v5473 = vand.u32 %v5472, 4294901760
  %5474 = vmatpush.msra.mxu0 %v5473
  %v5475 = vand.u32 %v267, 4294901760
  %v5476 = vsub.f32 %v267, %v5475
  %v5477 = vand.u32 %v5476, 4294901760
  %5478 = vmatpush.msra.mxu0 %v5477
  %v5479 = vand.u32 %v266, 4294901760
  %v5480 = vsub.f32 %v266, %v5479
  %v5481 = vand.u32 %v5480, 4294901760
  %5482 = vmatpush.msra.mxu0 %v5481
  %v5483 = vand.u32 %v265, 4294901760
  %v5484 = vsub.f32 %v265, %v5483
  %v5485 = vand.u32 %v5484, 4294901760
  %5486 = vmatpush.msra.mxu0 %v5485
  %v5487 = vand.u32 %v264, 4294901760
  %v5488 = vsub.f32 %v264, %v5487
  %v5489 = vand.u32 %v5488, 4294901760
  %5490 = vmatpush.msra.mxu0 %v5489
  %v5491 = vand.u32 %v263, 4294901760
  %v5492 = vsub.f32 %v263, %v5491
  %v5493 = vand.u32 %v5492, 4294901760
  %5494 = vmatpush.msra.mxu0 %v5493
  %v5495 = vand.u32 %v262, 4294901760
  %v5496 = vsub.f32 %v262, %v5495
  %v5497 = vand.u32 %v5496, 4294901760
  %5498 = vmatpush.msra.mxu0 %v5497
  %v5499 = vand.u32 %v28, 4294901760
  %5500 = vmatmul.f32.gmra.mxu0 %v5499
  %v5501 = vpop.f32.mrf.mxu0
  %v5502 = vadd.f32 %v5433, %v5501
  %5503 = vdwg.mxu0
  %v5504 = vand.u32 %v277, 4294901760
  %5505 = vmatpush.msra.mxu0 %v5504
  %v5506 = vand.u32 %v276, 4294901760
  %5507 = vmatpush.msra.mxu0 %v5506
  %v5508 = vand.u32 %v275, 4294901760
  %5509 = vmatpush.msra.mxu0 %v5508
  %v5510 = vand.u32 %v274, 4294901760
  %5511 = vmatpush.msra.mxu0 %v5510
  %v5512 = vand.u32 %v273, 4294901760
  %5513 = vmatpush.msra.mxu0 %v5512
  %v5514 = vand.u32 %v272, 4294901760
  %5515 = vmatpush.msra.mxu0 %v5514
  %v5516 = vand.u32 %v271, 4294901760
  %5517 = vmatpush.msra.mxu0 %v5516
  %v5518 = vand.u32 %v270, 4294901760
  %5519 = vmatpush.msra.mxu0 %v5518
  %v5520 = vand.u32 %v269, 4294901760
  %5521 = vmatpush.msra.mxu0 %v5520
  %v5522 = vand.u32 %v268, 4294901760
  %5523 = vmatpush.msra.mxu0 %v5522
  %v5524 = vand.u32 %v267, 4294901760
  %5525 = vmatpush.msra.mxu0 %v5524
  %v5526 = vand.u32 %v266, 4294901760
  %5527 = vmatpush.msra.mxu0 %v5526
  %v5528 = vand.u32 %v265, 4294901760
  %5529 = vmatpush.msra.mxu0 %v5528
  %v5530 = vand.u32 %v264, 4294901760
  %5531 = vmatpush.msra.mxu0 %v5530
  %v5532 = vand.u32 %v263, 4294901760
  %5533 = vmatpush.msra.mxu0 %v5532
  %v5534 = vand.u32 %v262, 4294901760
  %5535 = vmatpush.msra.mxu0 %v5534
  %v5536 = vand.u32 %v28, 4294901760
  %5537 = vmatmul.f32.gmra.mxu0 %v5536
  %v5538 = vpop.f32.mrf.mxu0
  %v5539 = vadd.f32 %v5502, %v5538
  %5540 = vdwg.mxu0
  %v5541 = vand.u32 %v293, 4294901760
  %5542 = vmatpush.msra.mxu0 %v5541
  %v5543 = vand.u32 %v292, 4294901760
  %5544 = vmatpush.msra.mxu0 %v5543
  %v5545 = vand.u32 %v291, 4294901760
  %5546 = vmatpush.msra.mxu0 %v5545
  %v5547 = vand.u32 %v290, 4294901760
  %5548 = vmatpush.msra.mxu0 %v5547
  %v5549 = vand.u32 %v289, 4294901760
  %5550 = vmatpush.msra.mxu0 %v5549
  %v5551 = vand.u32 %v288, 4294901760
  %5552 = vmatpush.msra.mxu0 %v5551
  %v5553 = vand.u32 %v287, 4294901760
  %5554 = vmatpush.msra.mxu0 %v5553
  %v5555 = vand.u32 %v286, 4294901760
  %5556 = vmatpush.msra.mxu0 %v5555
  %v5557 = vand.u32 %v285, 4294901760
  %5558 = vmatpush.msra.mxu0 %v5557
  %v5559 = vand.u32 %v284, 4294901760
  %5560 = vmatpush.msra.mxu0 %v5559
  %v5561 = vand.u32 %v283, 4294901760
  %5562 = vmatpush.msra.mxu0 %v5561
  %v5563 = vand.u32 %v282, 4294901760
  %5564 = vmatpush.msra.mxu0 %v5563
  %v5565 = vand.u32 %v281, 4294901760
  %5566 = vmatpush.msra.mxu0 %v5565
  %v5567 = vand.u32 %v280, 4294901760
  %5568 = vmatpush.msra.mxu0 %v5567
  %v5569 = vand.u32 %v279, 4294901760
  %5570 = vmatpush.msra.mxu0 %v5569
  %v5571 = vand.u32 %v278, 4294901760
  %5572 = vmatpush.msra.mxu0 %v5571
  %v5573 = vand.u32 %v29, 4294901760
  %v5574 = vsub.f32 %v29, %v5573
  %v5575 = vand.u32 %v5574, 4294901760
  %v5576 = vsub.f32 %v5574, %v5575
  %v5577 = vand.u32 %v5576, 4294901760
  %5578 = vmatmul.f32.gmra.mxu0 %v5577
  %v5579 = vpop.f32.mrf.mxu0
  %v5580 = vadd.f32 %v5539, %v5579
  %5581 = vdwg.mxu0
  %v5582 = vand.u32 %v293, 4294901760
  %v5583 = vsub.f32 %v293, %v5582
  %v5584 = vand.u32 %v5583, 4294901760
  %v5585 = vsub.f32 %v5583, %v5584
  %v5586 = vand.u32 %v5585, 4294901760
  %5587 = vmatpush.msra.mxu0 %v5586
  %v5588 = vand.u32 %v292, 4294901760
  %v5589 = vsub.f32 %v292, %v5588
  %v5590 = vand.u32 %v5589, 4294901760
  %v5591 = vsub.f32 %v5589, %v5590
  %v5592 = vand.u32 %v5591, 4294901760
  %5593 = vmatpush.msra.mxu0 %v5592
  %v5594 = vand.u32 %v291, 4294901760
  %v5595 = vsub.f32 %v291, %v5594
  %v5596 = vand.u32 %v5595, 4294901760
  %v5597 = vsub.f32 %v5595, %v5596
  %v5598 = vand.u32 %v5597, 4294901760
  %5599 = vmatpush.msra.mxu0 %v5598
  %v5600 = vand.u32 %v290, 4294901760
  %v5601 = vsub.f32 %v290, %v5600
  %v5602 = vand.u32 %v5601, 4294901760
  %v5603 = vsub.f32 %v5601, %v5602
  %v5604 = vand.u32 %v5603, 4294901760
  %5605 = vmatpush.msra.mxu0 %v5604
  %v5606 = vand.u32 %v289, 4294901760
  %v5607 = vsub.f32 %v289, %v5606
  %v5608 = vand.u32 %v5607, 4294901760
  %v5609 = vsub.f32 %v5607, %v5608
  %v5610 = vand.u32 %v5609, 4294901760
  %5611 = vmatpush.msra.mxu0 %v5610
  %v5612 = vand.u32 %v288, 4294901760
  %v5613 = vsub.f32 %v288, %v5612
  %v5614 = vand.u32 %v5613, 4294901760
  %v5615 = vsub.f32 %v5613, %v5614
  %v5616 = vand.u32 %v5615, 4294901760
  %5617 = vmatpush.msra.mxu0 %v5616
  %v5618 = vand.u32 %v287, 4294901760
  %v5619 = vsub.f32 %v287, %v5618
  %v5620 = vand.u32 %v5619, 4294901760
  %v5621 = vsub.f32 %v5619, %v5620
  %v5622 = vand.u32 %v5621, 4294901760
  %5623 = vmatpush.msra.mxu0 %v5622
  %v5624 = vand.u32 %v286, 4294901760
  %v5625 = vsub.f32 %v286, %v5624
  %v5626 = vand.u32 %v5625, 4294901760
  %v5627 = vsub.f32 %v5625, %v5626
  %v5628 = vand.u32 %v5627, 4294901760
  %5629 = vmatpush.msra.mxu0 %v5628
  %v5630 = vand.u32 %v285, 4294901760
  %v5631 = vsub.f32 %v285, %v5630
  %v5632 = vand.u32 %v5631, 4294901760
  %v5633 = vsub.f32 %v5631, %v5632
  %v5634 = vand.u32 %v5633, 4294901760
  %5635 = vmatpush.msra.mxu0 %v5634
  %v5636 = vand.u32 %v284, 4294901760
  %v5637 = vsub.f32 %v284, %v5636
  %v5638 = vand.u32 %v5637, 4294901760
  %v5639 = vsub.f32 %v5637, %v5638
  %v5640 = vand.u32 %v5639, 4294901760
  %5641 = vmatpush.msra.mxu0 %v5640
  %v5642 = vand.u32 %v283, 4294901760
  %v5643 = vsub.f32 %v283, %v5642
  %v5644 = vand.u32 %v5643, 4294901760
  %v5645 = vsub.f32 %v5643, %v5644
  %v5646 = vand.u32 %v5645, 4294901760
  %5647 = vmatpush.msra.mxu0 %v5646
  %v5648 = vand.u32 %v282, 4294901760
  %v5649 = vsub.f32 %v282, %v5648
  %v5650 = vand.u32 %v5649, 4294901760
  %v5651 = vsub.f32 %v5649, %v5650
  %v5652 = vand.u32 %v5651, 4294901760
  %5653 = vmatpush.msra.mxu0 %v5652
  %v5654 = vand.u32 %v281, 4294901760
  %v5655 = vsub.f32 %v281, %v5654
  %v5656 = vand.u32 %v5655, 4294901760
  %v5657 = vsub.f32 %v5655, %v5656
  %v5658 = vand.u32 %v5657, 4294901760
  %5659 = vmatpush.msra.mxu0 %v5658
  %v5660 = vand.u32 %v280, 4294901760
  %v5661 = vsub.f32 %v280, %v5660
  %v5662 = vand.u32 %v5661, 4294901760
  %v5663 = vsub.f32 %v5661, %v5662
  %v5664 = vand.u32 %v5663, 4294901760
  %5665 = vmatpush.msra.mxu0 %v5664
  %v5666 = vand.u32 %v279, 4294901760
  %v5667 = vsub.f32 %v279, %v5666
  %v5668 = vand.u32 %v5667, 4294901760
  %v5669 = vsub.f32 %v5667, %v5668
  %v5670 = vand.u32 %v5669, 4294901760
  %5671 = vmatpush.msra.mxu0 %v5670
  %v5672 = vand.u32 %v278, 4294901760
  %v5673 = vsub.f32 %v278, %v5672
  %v5674 = vand.u32 %v5673, 4294901760
  %v5675 = vsub.f32 %v5673, %v5674
  %v5676 = vand.u32 %v5675, 4294901760
  %5677 = vmatpush.msra.mxu0 %v5676
  %v5678 = vand.u32 %v29, 4294901760
  %5679 = vmatmul.f32.gmra.mxu0 %v5678
  %v5680 = vpop.f32.mrf.mxu0
  %v5681 = vadd.f32 %v5580, %v5680
  %5682 = vdwg.mxu0
  %v5683 = vand.u32 %v293, 4294901760
  %v5684 = vsub.f32 %v293, %v5683
  %5685 = vmatpush.msra.mxu0 %v5684
  %v5686 = vand.u32 %v292, 4294901760
  %v5687 = vsub.f32 %v292, %v5686
  %5688 = vmatpush.msra.mxu0 %v5687
  %v5689 = vand.u32 %v291, 4294901760
  %v5690 = vsub.f32 %v291, %v5689
  %5691 = vmatpush.msra.mxu0 %v5690
  %v5692 = vand.u32 %v290, 4294901760
  %v5693 = vsub.f32 %v290, %v5692
  %5694 = vmatpush.msra.mxu0 %v5693
  %v5695 = vand.u32 %v289, 4294901760
  %v5696 = vsub.f32 %v289, %v5695
  %5697 = vmatpush.msra.mxu0 %v5696
  %v5698 = vand.u32 %v288, 4294901760
  %v5699 = vsub.f32 %v288, %v5698
  %5700 = vmatpush.msra.mxu0 %v5699
  %v5701 = vand.u32 %v287, 4294901760
  %v5702 = vsub.f32 %v287, %v5701
  %5703 = vmatpush.msra.mxu0 %v5702
  %v5704 = vand.u32 %v286, 4294901760
  %v5705 = vsub.f32 %v286, %v5704
  %5706 = vmatpush.msra.mxu0 %v5705
  %v5707 = vand.u32 %v285, 4294901760
  %v5708 = vsub.f32 %v285, %v5707
  %5709 = vmatpush.msra.mxu0 %v5708
  %v5710 = vand.u32 %v284, 4294901760
  %v5711 = vsub.f32 %v284, %v5710
  %5712 = vmatpush.msra.mxu0 %v5711
  %v5713 = vand.u32 %v283, 4294901760
  %v5714 = vsub.f32 %v283, %v5713
  %5715 = vmatpush.msra.mxu0 %v5714
  %v5716 = vand.u32 %v282, 4294901760
  %v5717 = vsub.f32 %v282, %v5716
  %5718 = vmatpush.msra.mxu0 %v5717
  %v5719 = vand.u32 %v281, 4294901760
  %v5720 = vsub.f32 %v281, %v5719
  %5721 = vmatpush.msra.mxu0 %v5720
  %v5722 = vand.u32 %v280, 4294901760
  %v5723 = vsub.f32 %v280, %v5722
  %5724 = vmatpush.msra.mxu0 %v5723
  %v5725 = vand.u32 %v279, 4294901760
  %v5726 = vsub.f32 %v279, %v5725
  %5727 = vmatpush.msra.mxu0 %v5726
  %v5728 = vand.u32 %v278, 4294901760
  %v5729 = vsub.f32 %v278, %v5728
  %5730 = vmatpush.msra.mxu0 %v5729
  %v5731 = vand.u32 %v29, 4294901760
  %v5732 = vsub.f32 %v29, %v5731
  %5733 = vmatmul.f32.gmra.mxu0 %v5732
  %v5734 = vpop.f32.mrf.mxu0
  %v5735 = vadd.f32 %v5681, %v5734
  %5736 = vdwg.mxu0
  %v5737 = vand.u32 %v293, 4294901760
  %5738 = vmatpush.msra.mxu0 %v5737
  %v5739 = vand.u32 %v292, 4294901760
  %5740 = vmatpush.msra.mxu0 %v5739
  %v5741 = vand.u32 %v291, 4294901760
  %5742 = vmatpush.msra.mxu0 %v5741
  %v5743 = vand.u32 %v290, 4294901760
  %5744 = vmatpush.msra.mxu0 %v5743
  %v5745 = vand.u32 %v289, 4294901760
  %5746 = vmatpush.msra.mxu0 %v5745
  %v5747 = vand.u32 %v288, 4294901760
  %5748 = vmatpush.msra.mxu0 %v5747
  %v5749 = vand.u32 %v287, 4294901760
  %5750 = vmatpush.msra.mxu0 %v5749
  %v5751 = vand.u32 %v286, 4294901760
  %5752 = vmatpush.msra.mxu0 %v5751
  %v5753 = vand.u32 %v285, 4294901760
  %5754 = vmatpush.msra.mxu0 %v5753
  %v5755 = vand.u32 %v284, 4294901760
  %5756 = vmatpush.msra.mxu0 %v5755
  %v5757 = vand.u32 %v283, 4294901760
  %5758 = vmatpush.msra.mxu0 %v5757
  %v5759 = vand.u32 %v282, 4294901760
  %5760 = vmatpush.msra.mxu0 %v5759
  %v5761 = vand.u32 %v281, 4294901760
  %5762 = vmatpush.msra.mxu0 %v5761
  %v5763 = vand.u32 %v280, 4294901760
  %5764 = vmatpush.msra.mxu0 %v5763
  %v5765 = vand.u32 %v279, 4294901760
  %5766 = vmatpush.msra.mxu0 %v5765
  %v5767 = vand.u32 %v278, 4294901760
  %5768 = vmatpush.msra.mxu0 %v5767
  %v5769 = vand.u32 %v29, 4294901760
  %v5770 = vsub.f32 %v29, %v5769
  %v5771 = vand.u32 %v5770, 4294901760
  %5772 = vmatmul.f32.gmra.mxu0 %v5771
  %v5773 = vpop.f32.mrf.mxu0
  %v5774 = vadd.f32 %v5735, %v5773
  %5775 = vdwg.mxu0
  %v5776 = vand.u32 %v293, 4294901760
  %v5777 = vsub.f32 %v293, %v5776
  %v5778 = vand.u32 %v5777, 4294901760
  %5779 = vmatpush.msra.mxu0 %v5778
  %v5780 = vand.u32 %v292, 4294901760
  %v5781 = vsub.f32 %v292, %v5780
  %v5782 = vand.u32 %v5781, 4294901760
  %5783 = vmatpush.msra.mxu0 %v5782
  %v5784 = vand.u32 %v291, 4294901760
  %v5785 = vsub.f32 %v291, %v5784
  %v5786 = vand.u32 %v5785, 4294901760
  %5787 = vmatpush.msra.mxu0 %v5786
  %v5788 = vand.u32 %v290, 4294901760
  %v5789 = vsub.f32 %v290, %v5788
  %v5790 = vand.u32 %v5789, 4294901760
  %5791 = vmatpush.msra.mxu0 %v5790
  %v5792 = vand.u32 %v289, 4294901760
  %v5793 = vsub.f32 %v289, %v5792
  %v5794 = vand.u32 %v5793, 4294901760
  %5795 = vmatpush.msra.mxu0 %v5794
  %v5796 = vand.u32 %v288, 4294901760
  %v5797 = vsub.f32 %v288, %v5796
  %v5798 = vand.u32 %v5797, 4294901760
  %5799 = vmatpush.msra.mxu0 %v5798
  %v5800 = vand.u32 %v287, 4294901760
  %v5801 = vsub.f32 %v287, %v5800
  %v5802 = vand.u32 %v5801, 4294901760
  %5803 = vmatpush.msra.mxu0 %v5802
  %v5804 = vand.u32 %v286, 4294901760
  %v5805 = vsub.f32 %v286, %v5804
  %v5806 = vand.u32 %v5805, 4294901760
  %5807 = vmatpush.msra.mxu0 %v5806
  %v5808 = vand.u32 %v285, 4294901760
  %v5809 = vsub.f32 %v285, %v5808
  %v5810 = vand.u32 %v5809, 4294901760
  %5811 = vmatpush.msra.mxu0 %v5810
  %v5812 = vand.u32 %v284, 4294901760
  %v5813 = vsub.f32 %v284, %v5812
  %v5814 = vand.u32 %v5813, 4294901760
  %5815 = vmatpush.msra.mxu0 %v5814
  %v5816 = vand.u32 %v283, 4294901760
  %v5817 = vsub.f32 %v283, %v5816
  %v5818 = vand.u32 %v5817, 4294901760
  %5819 = vmatpush.msra.mxu0 %v5818
  %v5820 = vand.u32 %v282, 4294901760
  %v5821 = vsub.f32 %v282, %v5820
  %v5822 = vand.u32 %v5821, 4294901760
  %5823 = vmatpush.msra.mxu0 %v5822
  %v5824 = vand.u32 %v281, 4294901760
  %v5825 = vsub.f32 %v281, %v5824
  %v5826 = vand.u32 %v5825, 4294901760
  %5827 = vmatpush.msra.mxu0 %v5826
  %v5828 = vand.u32 %v280, 4294901760
  %v5829 = vsub.f32 %v280, %v5828
  %v5830 = vand.u32 %v5829, 4294901760
  %5831 = vmatpush.msra.mxu0 %v5830
  %v5832 = vand.u32 %v279, 4294901760
  %v5833 = vsub.f32 %v279, %v5832
  %v5834 = vand.u32 %v5833, 4294901760
  %5835 = vmatpush.msra.mxu0 %v5834
  %v5836 = vand.u32 %v278, 4294901760
  %v5837 = vsub.f32 %v278, %v5836
  %v5838 = vand.u32 %v5837, 4294901760
  %5839 = vmatpush.msra.mxu0 %v5838
  %v5840 = vand.u32 %v29, 4294901760
  %5841 = vmatmul.f32.gmra.mxu0 %v5840
  %v5842 = vpop.f32.mrf.mxu0
  %v5843 = vadd.f32 %v5774, %v5842
  %5844 = vdwg.mxu0
  %v5845 = vand.u32 %v293, 4294901760
  %5846 = vmatpush.msra.mxu0 %v5845
  %v5847 = vand.u32 %v292, 4294901760
  %5848 = vmatpush.msra.mxu0 %v5847
  %v5849 = vand.u32 %v291, 4294901760
  %5850 = vmatpush.msra.mxu0 %v5849
  %v5851 = vand.u32 %v290, 4294901760
  %5852 = vmatpush.msra.mxu0 %v5851
  %v5853 = vand.u32 %v289, 4294901760
  %5854 = vmatpush.msra.mxu0 %v5853
  %v5855 = vand.u32 %v288, 4294901760
  %5856 = vmatpush.msra.mxu0 %v5855
  %v5857 = vand.u32 %v287, 4294901760
  %5858 = vmatpush.msra.mxu0 %v5857
  %v5859 = vand.u32 %v286, 4294901760
  %5860 = vmatpush.msra.mxu0 %v5859
  %v5861 = vand.u32 %v285, 4294901760
  %5862 = vmatpush.msra.mxu0 %v5861
  %v5863 = vand.u32 %v284, 4294901760
  %5864 = vmatpush.msra.mxu0 %v5863
  %v5865 = vand.u32 %v283, 4294901760
  %5866 = vmatpush.msra.mxu0 %v5865
  %v5867 = vand.u32 %v282, 4294901760
  %5868 = vmatpush.msra.mxu0 %v5867
  %v5869 = vand.u32 %v281, 4294901760
  %5870 = vmatpush.msra.mxu0 %v5869
  %v5871 = vand.u32 %v280, 4294901760
  %5872 = vmatpush.msra.mxu0 %v5871
  %v5873 = vand.u32 %v279, 4294901760
  %5874 = vmatpush.msra.mxu0 %v5873
  %v5875 = vand.u32 %v278, 4294901760
  %5876 = vmatpush.msra.mxu0 %v5875
  %v5877 = vand.u32 %v29, 4294901760
  %5878 = vmatmul.f32.gmra.mxu0 %v5877
  %v5879 = vpop.f32.mrf.mxu0
  %v5880 = vadd.f32 %v5843, %v5879
  %5881 = vdwg.mxu0
  %v5882 = vand.u32 %v309, 4294901760
  %5883 = vmatpush.msra.mxu0 %v5882
  %v5884 = vand.u32 %v308, 4294901760
  %5885 = vmatpush.msra.mxu0 %v5884
  %v5886 = vand.u32 %v307, 4294901760
  %5887 = vmatpush.msra.mxu0 %v5886
  %v5888 = vand.u32 %v306, 4294901760
  %5889 = vmatpush.msra.mxu0 %v5888
  %v5890 = vand.u32 %v305, 4294901760
  %5891 = vmatpush.msra.mxu0 %v5890
  %v5892 = vand.u32 %v304, 4294901760
  %5893 = vmatpush.msra.mxu0 %v5892
  %v5894 = vand.u32 %v303, 4294901760
  %5895 = vmatpush.msra.mxu0 %v5894
  %v5896 = vand.u32 %v302, 4294901760
  %5897 = vmatpush.msra.mxu0 %v5896
  %v5898 = vand.u32 %v301, 4294901760
  %5899 = vmatpush.msra.mxu0 %v5898
  %v5900 = vand.u32 %v300, 4294901760
  %5901 = vmatpush.msra.mxu0 %v5900
  %v5902 = vand.u32 %v299, 4294901760
  %5903 = vmatpush.msra.mxu0 %v5902
  %v5904 = vand.u32 %v298, 4294901760
  %5905 = vmatpush.msra.mxu0 %v5904
  %v5906 = vand.u32 %v297, 4294901760
  %5907 = vmatpush.msra.mxu0 %v5906
  %v5908 = vand.u32 %v296, 4294901760
  %5909 = vmatpush.msra.mxu0 %v5908
  %v5910 = vand.u32 %v295, 4294901760
  %5911 = vmatpush.msra.mxu0 %v5910
  %v5912 = vand.u32 %v294, 4294901760
  %5913 = vmatpush.msra.mxu0 %v5912
  %v5914 = vand.u32 %v30, 4294901760
  %v5915 = vsub.f32 %v30, %v5914
  %v5916 = vand.u32 %v5915, 4294901760
  %v5917 = vsub.f32 %v5915, %v5916
  %v5918 = vand.u32 %v5917, 4294901760
  %5919 = vmatmul.f32.gmra.mxu0 %v5918
  %v5920 = vpop.f32.mrf.mxu0
  %v5921 = vadd.f32 %v5880, %v5920
  %5922 = vdwg.mxu0
  %v5923 = vand.u32 %v309, 4294901760
  %v5924 = vsub.f32 %v309, %v5923
  %v5925 = vand.u32 %v5924, 4294901760
  %v5926 = vsub.f32 %v5924, %v5925
  %v5927 = vand.u32 %v5926, 4294901760
  %5928 = vmatpush.msra.mxu0 %v5927
  %v5929 = vand.u32 %v308, 4294901760
  %v5930 = vsub.f32 %v308, %v5929
  %v5931 = vand.u32 %v5930, 4294901760
  %v5932 = vsub.f32 %v5930, %v5931
  %v5933 = vand.u32 %v5932, 4294901760
  %5934 = vmatpush.msra.mxu0 %v5933
  %v5935 = vand.u32 %v307, 4294901760
  %v5936 = vsub.f32 %v307, %v5935
  %v5937 = vand.u32 %v5936, 4294901760
  %v5938 = vsub.f32 %v5936, %v5937
  %v5939 = vand.u32 %v5938, 4294901760
  %5940 = vmatpush.msra.mxu0 %v5939
  %v5941 = vand.u32 %v306, 4294901760
  %v5942 = vsub.f32 %v306, %v5941
  %v5943 = vand.u32 %v5942, 4294901760
  %v5944 = vsub.f32 %v5942, %v5943
  %v5945 = vand.u32 %v5944, 4294901760
  %5946 = vmatpush.msra.mxu0 %v5945
  %v5947 = vand.u32 %v305, 4294901760
  %v5948 = vsub.f32 %v305, %v5947
  %v5949 = vand.u32 %v5948, 4294901760
  %v5950 = vsub.f32 %v5948, %v5949
  %v5951 = vand.u32 %v5950, 4294901760
  %5952 = vmatpush.msra.mxu0 %v5951
  %v5953 = vand.u32 %v304, 4294901760
  %v5954 = vsub.f32 %v304, %v5953
  %v5955 = vand.u32 %v5954, 4294901760
  %v5956 = vsub.f32 %v5954, %v5955
  %v5957 = vand.u32 %v5956, 4294901760
  %5958 = vmatpush.msra.mxu0 %v5957
  %v5959 = vand.u32 %v303, 4294901760
  %v5960 = vsub.f32 %v303, %v5959
  %v5961 = vand.u32 %v5960, 4294901760
  %v5962 = vsub.f32 %v5960, %v5961
  %v5963 = vand.u32 %v5962, 4294901760
  %5964 = vmatpush.msra.mxu0 %v5963
  %v5965 = vand.u32 %v302, 4294901760
  %v5966 = vsub.f32 %v302, %v5965
  %v5967 = vand.u32 %v5966, 4294901760
  %v5968 = vsub.f32 %v5966, %v5967
  %v5969 = vand.u32 %v5968, 4294901760
  %5970 = vmatpush.msra.mxu0 %v5969
  %v5971 = vand.u32 %v301, 4294901760
  %v5972 = vsub.f32 %v301, %v5971
  %v5973 = vand.u32 %v5972, 4294901760
  %v5974 = vsub.f32 %v5972, %v5973
  %v5975 = vand.u32 %v5974, 4294901760
  %5976 = vmatpush.msra.mxu0 %v5975
  %v5977 = vand.u32 %v300, 4294901760
  %v5978 = vsub.f32 %v300, %v5977
  %v5979 = vand.u32 %v5978, 4294901760
  %v5980 = vsub.f32 %v5978, %v5979
  %v5981 = vand.u32 %v5980, 4294901760
  %5982 = vmatpush.msra.mxu0 %v5981
  %v5983 = vand.u32 %v299, 4294901760
  %v5984 = vsub.f32 %v299, %v5983
  %v5985 = vand.u32 %v5984, 4294901760
  %v5986 = vsub.f32 %v5984, %v5985
  %v5987 = vand.u32 %v5986, 4294901760
  %5988 = vmatpush.msra.mxu0 %v5987
  %v5989 = vand.u32 %v298, 4294901760
  %v5990 = vsub.f32 %v298, %v5989
  %v5991 = vand.u32 %v5990, 4294901760
  %v5992 = vsub.f32 %v5990, %v5991
  %v5993 = vand.u32 %v5992, 4294901760
  %5994 = vmatpush.msra.mxu0 %v5993
  %v5995 = vand.u32 %v297, 4294901760
  %v5996 = vsub.f32 %v297, %v5995
  %v5997 = vand.u32 %v5996, 4294901760
  %v5998 = vsub.f32 %v5996, %v5997
  %v5999 = vand.u32 %v5998, 4294901760
  %6000 = vmatpush.msra.mxu0 %v5999
  %v6001 = vand.u32 %v296, 4294901760
  %v6002 = vsub.f32 %v296, %v6001
  %v6003 = vand.u32 %v6002, 4294901760
  %v6004 = vsub.f32 %v6002, %v6003
  %v6005 = vand.u32 %v6004, 4294901760
  %6006 = vmatpush.msra.mxu0 %v6005
  %v6007 = vand.u32 %v295, 4294901760
  %v6008 = vsub.f32 %v295, %v6007
  %v6009 = vand.u32 %v6008, 4294901760
  %v6010 = vsub.f32 %v6008, %v6009
  %v6011 = vand.u32 %v6010, 4294901760
  %6012 = vmatpush.msra.mxu0 %v6011
  %v6013 = vand.u32 %v294, 4294901760
  %v6014 = vsub.f32 %v294, %v6013
  %v6015 = vand.u32 %v6014, 4294901760
  %v6016 = vsub.f32 %v6014, %v6015
  %v6017 = vand.u32 %v6016, 4294901760
  %6018 = vmatpush.msra.mxu0 %v6017
  %v6019 = vand.u32 %v30, 4294901760
  %6020 = vmatmul.f32.gmra.mxu0 %v6019
  %v6021 = vpop.f32.mrf.mxu0
  %v6022 = vadd.f32 %v5921, %v6021
  %6023 = vdwg.mxu0
  %v6024 = vand.u32 %v309, 4294901760
  %v6025 = vsub.f32 %v309, %v6024
  %6026 = vmatpush.msra.mxu0 %v6025
  %v6027 = vand.u32 %v308, 4294901760
  %v6028 = vsub.f32 %v308, %v6027
  %6029 = vmatpush.msra.mxu0 %v6028
  %v6030 = vand.u32 %v307, 4294901760
  %v6031 = vsub.f32 %v307, %v6030
  %6032 = vmatpush.msra.mxu0 %v6031
  %v6033 = vand.u32 %v306, 4294901760
  %v6034 = vsub.f32 %v306, %v6033
  %6035 = vmatpush.msra.mxu0 %v6034
  %v6036 = vand.u32 %v305, 4294901760
  %v6037 = vsub.f32 %v305, %v6036
  %6038 = vmatpush.msra.mxu0 %v6037
  %v6039 = vand.u32 %v304, 4294901760
  %v6040 = vsub.f32 %v304, %v6039
  %6041 = vmatpush.msra.mxu0 %v6040
  %v6042 = vand.u32 %v303, 4294901760
  %v6043 = vsub.f32 %v303, %v6042
  %6044 = vmatpush.msra.mxu0 %v6043
  %v6045 = vand.u32 %v302, 4294901760
  %v6046 = vsub.f32 %v302, %v6045
  %6047 = vmatpush.msra.mxu0 %v6046
  %v6048 = vand.u32 %v301, 4294901760
  %v6049 = vsub.f32 %v301, %v6048
  %6050 = vmatpush.msra.mxu0 %v6049
  %v6051 = vand.u32 %v300, 4294901760
  %v6052 = vsub.f32 %v300, %v6051
  %6053 = vmatpush.msra.mxu0 %v6052
  %v6054 = vand.u32 %v299, 4294901760
  %v6055 = vsub.f32 %v299, %v6054
  %6056 = vmatpush.msra.mxu0 %v6055
  %v6057 = vand.u32 %v298, 4294901760
  %v6058 = vsub.f32 %v298, %v6057
  %6059 = vmatpush.msra.mxu0 %v6058
  %v6060 = vand.u32 %v297, 4294901760
  %v6061 = vsub.f32 %v297, %v6060
  %6062 = vmatpush.msra.mxu0 %v6061
  %v6063 = vand.u32 %v296, 4294901760
  %v6064 = vsub.f32 %v296, %v6063
  %6065 = vmatpush.msra.mxu0 %v6064
  %v6066 = vand.u32 %v295, 4294901760
  %v6067 = vsub.f32 %v295, %v6066
  %6068 = vmatpush.msra.mxu0 %v6067
  %v6069 = vand.u32 %v294, 4294901760
  %v6070 = vsub.f32 %v294, %v6069
  %6071 = vmatpush.msra.mxu0 %v6070
  %v6072 = vand.u32 %v30, 4294901760
  %v6073 = vsub.f32 %v30, %v6072
  %6074 = vmatmul.f32.gmra.mxu0 %v6073
  %v6075 = vpop.f32.mrf.mxu0
  %v6076 = vadd.f32 %v6022, %v6075
  %6077 = vdwg.mxu0
  %v6078 = vand.u32 %v309, 4294901760
  %6079 = vmatpush.msra.mxu0 %v6078
  %v6080 = vand.u32 %v308, 4294901760
  %6081 = vmatpush.msra.mxu0 %v6080
  %v6082 = vand.u32 %v307, 4294901760
  %6083 = vmatpush.msra.mxu0 %v6082
  %v6084 = vand.u32 %v306, 4294901760
  %6085 = vmatpush.msra.mxu0 %v6084
  %v6086 = vand.u32 %v305, 4294901760
  %6087 = vmatpush.msra.mxu0 %v6086
  %v6088 = vand.u32 %v304, 4294901760
  %6089 = vmatpush.msra.mxu0 %v6088
  %v6090 = vand.u32 %v303, 4294901760
  %6091 = vmatpush.msra.mxu0 %v6090
  %v6092 = vand.u32 %v302, 4294901760
  %6093 = vmatpush.msra.mxu0 %v6092
  %v6094 = vand.u32 %v301, 4294901760
  %6095 = vmatpush.msra.mxu0 %v6094
  %v6096 = vand.u32 %v300, 4294901760
  %6097 = vmatpush.msra.mxu0 %v6096
  %v6098 = vand.u32 %v299, 4294901760
  %6099 = vmatpush.msra.mxu0 %v6098
  %v6100 = vand.u32 %v298, 4294901760
  %6101 = vmatpush.msra.mxu0 %v6100
  %v6102 = vand.u32 %v297, 4294901760
  %6103 = vmatpush.msra.mxu0 %v6102
  %v6104 = vand.u32 %v296, 4294901760
  %6105 = vmatpush.msra.mxu0 %v6104
  %v6106 = vand.u32 %v295, 4294901760
  %6107 = vmatpush.msra.mxu0 %v6106
  %v6108 = vand.u32 %v294, 4294901760
  %6109 = vmatpush.msra.mxu0 %v6108
  %v6110 = vand.u32 %v30, 4294901760
  %v6111 = vsub.f32 %v30, %v6110
  %v6112 = vand.u32 %v6111, 4294901760
  %6113 = vmatmul.f32.gmra.mxu0 %v6112
  %v6114 = vpop.f32.mrf.mxu0
  %v6115 = vadd.f32 %v6076, %v6114
  %6116 = vdwg.mxu0
  %v6117 = vand.u32 %v309, 4294901760
  %v6118 = vsub.f32 %v309, %v6117
  %v6119 = vand.u32 %v6118, 4294901760
  %6120 = vmatpush.msra.mxu0 %v6119
  %v6121 = vand.u32 %v308, 4294901760
  %v6122 = vsub.f32 %v308, %v6121
  %v6123 = vand.u32 %v6122, 4294901760
  %6124 = vmatpush.msra.mxu0 %v6123
  %v6125 = vand.u32 %v307, 4294901760
  %v6126 = vsub.f32 %v307, %v6125
  %v6127 = vand.u32 %v6126, 4294901760
  %6128 = vmatpush.msra.mxu0 %v6127
  %v6129 = vand.u32 %v306, 4294901760
  %v6130 = vsub.f32 %v306, %v6129
  %v6131 = vand.u32 %v6130, 4294901760
  %6132 = vmatpush.msra.mxu0 %v6131
  %v6133 = vand.u32 %v305, 4294901760
  %v6134 = vsub.f32 %v305, %v6133
  %v6135 = vand.u32 %v6134, 4294901760
  %6136 = vmatpush.msra.mxu0 %v6135
  %v6137 = vand.u32 %v304, 4294901760
  %v6138 = vsub.f32 %v304, %v6137
  %v6139 = vand.u32 %v6138, 4294901760
  %6140 = vmatpush.msra.mxu0 %v6139
  %v6141 = vand.u32 %v303, 4294901760
  %v6142 = vsub.f32 %v303, %v6141
  %v6143 = vand.u32 %v6142, 4294901760
  %6144 = vmatpush.msra.mxu0 %v6143
  %v6145 = vand.u32 %v302, 4294901760
  %v6146 = vsub.f32 %v302, %v6145
  %v6147 = vand.u32 %v6146, 4294901760
  %6148 = vmatpush.msra.mxu0 %v6147
  %v6149 = vand.u32 %v301, 4294901760
  %v6150 = vsub.f32 %v301, %v6149
  %v6151 = vand.u32 %v6150, 4294901760
  %6152 = vmatpush.msra.mxu0 %v6151
  %v6153 = vand.u32 %v300, 4294901760
  %v6154 = vsub.f32 %v300, %v6153
  %v6155 = vand.u32 %v6154, 4294901760
  %6156 = vmatpush.msra.mxu0 %v6155
  %v6157 = vand.u32 %v299, 4294901760
  %v6158 = vsub.f32 %v299, %v6157
  %v6159 = vand.u32 %v6158, 4294901760
  %6160 = vmatpush.msra.mxu0 %v6159
  %v6161 = vand.u32 %v298, 4294901760
  %v6162 = vsub.f32 %v298, %v6161
  %v6163 = vand.u32 %v6162, 4294901760
  %6164 = vmatpush.msra.mxu0 %v6163
  %v6165 = vand.u32 %v297, 4294901760
  %v6166 = vsub.f32 %v297, %v6165
  %v6167 = vand.u32 %v6166, 4294901760
  %6168 = vmatpush.msra.mxu0 %v6167
  %v6169 = vand.u32 %v296, 4294901760
  %v6170 = vsub.f32 %v296, %v6169
  %v6171 = vand.u32 %v6170, 4294901760
  %6172 = vmatpush.msra.mxu0 %v6171
  %v6173 = vand.u32 %v295, 4294901760
  %v6174 = vsub.f32 %v295, %v6173
  %v6175 = vand.u32 %v6174, 4294901760
  %6176 = vmatpush.msra.mxu0 %v6175
  %v6177 = vand.u32 %v294, 4294901760
  %v6178 = vsub.f32 %v294, %v6177
  %v6179 = vand.u32 %v6178, 4294901760
  %6180 = vmatpush.msra.mxu0 %v6179
  %v6181 = vand.u32 %v30, 4294901760
  %6182 = vmatmul.f32.gmra.mxu0 %v6181
  %v6183 = vpop.f32.mrf.mxu0
  %v6184 = vadd.f32 %v6115, %v6183
  %6185 = vdwg.mxu0
  %v6186 = vand.u32 %v309, 4294901760
  %6187 = vmatpush.msra.mxu0 %v6186
  %v6188 = vand.u32 %v308, 4294901760
  %6189 = vmatpush.msra.mxu0 %v6188
  %v6190 = vand.u32 %v307, 4294901760
  %6191 = vmatpush.msra.mxu0 %v6190
  %v6192 = vand.u32 %v306, 4294901760
  %6193 = vmatpush.msra.mxu0 %v6192
  %v6194 = vand.u32 %v305, 4294901760
  %6195 = vmatpush.msra.mxu0 %v6194
  %v6196 = vand.u32 %v304, 4294901760
  %6197 = vmatpush.msra.mxu0 %v6196
  %v6198 = vand.u32 %v303, 4294901760
  %6199 = vmatpush.msra.mxu0 %v6198
  %v6200 = vand.u32 %v302, 4294901760
  %6201 = vmatpush.msra.mxu0 %v6200
  %v6202 = vand.u32 %v301, 4294901760
  %6203 = vmatpush.msra.mxu0 %v6202
  %v6204 = vand.u32 %v300, 4294901760
  %6205 = vmatpush.msra.mxu0 %v6204
  %v6206 = vand.u32 %v299, 4294901760
  %6207 = vmatpush.msra.mxu0 %v6206
  %v6208 = vand.u32 %v298, 4294901760
  %6209 = vmatpush.msra.mxu0 %v6208
  %v6210 = vand.u32 %v297, 4294901760
  %6211 = vmatpush.msra.mxu0 %v6210
  %v6212 = vand.u32 %v296, 4294901760
  %6213 = vmatpush.msra.mxu0 %v6212
  %v6214 = vand.u32 %v295, 4294901760
  %6215 = vmatpush.msra.mxu0 %v6214
  %v6216 = vand.u32 %v294, 4294901760
  %6217 = vmatpush.msra.mxu0 %v6216
  %v6218 = vand.u32 %v30, 4294901760
  %6219 = vmatmul.f32.gmra.mxu0 %v6218
  %v6220 = vpop.f32.mrf.mxu0
  %v6221 = vadd.f32 %v6184, %v6220
  %6222 = vdwg.mxu0
  %v6223 = vand.u32 %v325, 4294901760
  %6224 = vmatpush.msra.mxu0 %v6223
  %v6225 = vand.u32 %v324, 4294901760
  %6226 = vmatpush.msra.mxu0 %v6225
  %v6227 = vand.u32 %v323, 4294901760
  %6228 = vmatpush.msra.mxu0 %v6227
  %v6229 = vand.u32 %v322, 4294901760
  %6230 = vmatpush.msra.mxu0 %v6229
  %v6231 = vand.u32 %v321, 4294901760
  %6232 = vmatpush.msra.mxu0 %v6231
  %v6233 = vand.u32 %v320, 4294901760
  %6234 = vmatpush.msra.mxu0 %v6233
  %v6235 = vand.u32 %v319, 4294901760
  %6236 = vmatpush.msra.mxu0 %v6235
  %v6237 = vand.u32 %v318, 4294901760
  %6238 = vmatpush.msra.mxu0 %v6237
  %v6239 = vand.u32 %v317, 4294901760
  %6240 = vmatpush.msra.mxu0 %v6239
  %v6241 = vand.u32 %v316, 4294901760
  %6242 = vmatpush.msra.mxu0 %v6241
  %v6243 = vand.u32 %v315, 4294901760
  %6244 = vmatpush.msra.mxu0 %v6243
  %v6245 = vand.u32 %v314, 4294901760
  %6246 = vmatpush.msra.mxu0 %v6245
  %v6247 = vand.u32 %v313, 4294901760
  %6248 = vmatpush.msra.mxu0 %v6247
  %v6249 = vand.u32 %v312, 4294901760
  %6250 = vmatpush.msra.mxu0 %v6249
  %v6251 = vand.u32 %v311, 4294901760
  %6252 = vmatpush.msra.mxu0 %v6251
  %v6253 = vand.u32 %v310, 4294901760
  %6254 = vmatpush.msra.mxu0 %v6253
  %v6255 = vand.u32 %v31, 4294901760
  %v6256 = vsub.f32 %v31, %v6255
  %v6257 = vand.u32 %v6256, 4294901760
  %v6258 = vsub.f32 %v6256, %v6257
  %v6259 = vand.u32 %v6258, 4294901760
  %6260 = vmatmul.f32.gmra.mxu0 %v6259
  %v6261 = vpop.f32.mrf.mxu0
  %v6262 = vadd.f32 %v6221, %v6261
  %6263 = vdwg.mxu0
  %v6264 = vand.u32 %v325, 4294901760
  %v6265 = vsub.f32 %v325, %v6264
  %v6266 = vand.u32 %v6265, 4294901760
  %v6267 = vsub.f32 %v6265, %v6266
  %v6268 = vand.u32 %v6267, 4294901760
  %6269 = vmatpush.msra.mxu0 %v6268
  %v6270 = vand.u32 %v324, 4294901760
  %v6271 = vsub.f32 %v324, %v6270
  %v6272 = vand.u32 %v6271, 4294901760
  %v6273 = vsub.f32 %v6271, %v6272
  %v6274 = vand.u32 %v6273, 4294901760
  %6275 = vmatpush.msra.mxu0 %v6274
  %v6276 = vand.u32 %v323, 4294901760
  %v6277 = vsub.f32 %v323, %v6276
  %v6278 = vand.u32 %v6277, 4294901760
  %v6279 = vsub.f32 %v6277, %v6278
  %v6280 = vand.u32 %v6279, 4294901760
  %6281 = vmatpush.msra.mxu0 %v6280
  %v6282 = vand.u32 %v322, 4294901760
  %v6283 = vsub.f32 %v322, %v6282
  %v6284 = vand.u32 %v6283, 4294901760
  %v6285 = vsub.f32 %v6283, %v6284
  %v6286 = vand.u32 %v6285, 4294901760
  %6287 = vmatpush.msra.mxu0 %v6286
  %v6288 = vand.u32 %v321, 4294901760
  %v6289 = vsub.f32 %v321, %v6288
  %v6290 = vand.u32 %v6289, 4294901760
  %v6291 = vsub.f32 %v6289, %v6290
  %v6292 = vand.u32 %v6291, 4294901760
  %6293 = vmatpush.msra.mxu0 %v6292
  %v6294 = vand.u32 %v320, 4294901760
  %v6295 = vsub.f32 %v320, %v6294
  %v6296 = vand.u32 %v6295, 4294901760
  %v6297 = vsub.f32 %v6295, %v6296
  %v6298 = vand.u32 %v6297, 4294901760
  %6299 = vmatpush.msra.mxu0 %v6298
  %v6300 = vand.u32 %v319, 4294901760
  %v6301 = vsub.f32 %v319, %v6300
  %v6302 = vand.u32 %v6301, 4294901760
  %v6303 = vsub.f32 %v6301, %v6302
  %v6304 = vand.u32 %v6303, 4294901760
  %6305 = vmatpush.msra.mxu0 %v6304
  %v6306 = vand.u32 %v318, 4294901760
  %v6307 = vsub.f32 %v318, %v6306
  %v6308 = vand.u32 %v6307, 4294901760
  %v6309 = vsub.f32 %v6307, %v6308
  %v6310 = vand.u32 %v6309, 4294901760
  %6311 = vmatpush.msra.mxu0 %v6310
  %v6312 = vand.u32 %v317, 4294901760
  %v6313 = vsub.f32 %v317, %v6312
  %v6314 = vand.u32 %v6313, 4294901760
  %v6315 = vsub.f32 %v6313, %v6314
  %v6316 = vand.u32 %v6315, 4294901760
  %6317 = vmatpush.msra.mxu0 %v6316
  %v6318 = vand.u32 %v316, 4294901760
  %v6319 = vsub.f32 %v316, %v6318
  %v6320 = vand.u32 %v6319, 4294901760
  %v6321 = vsub.f32 %v6319, %v6320
  %v6322 = vand.u32 %v6321, 4294901760
  %6323 = vmatpush.msra.mxu0 %v6322
  %v6324 = vand.u32 %v315, 4294901760
  %v6325 = vsub.f32 %v315, %v6324
  %v6326 = vand.u32 %v6325, 4294901760
  %v6327 = vsub.f32 %v6325, %v6326
  %v6328 = vand.u32 %v6327, 4294901760
  %6329 = vmatpush.msra.mxu0 %v6328
  %v6330 = vand.u32 %v314, 4294901760
  %v6331 = vsub.f32 %v314, %v6330
  %v6332 = vand.u32 %v6331, 4294901760
  %v6333 = vsub.f32 %v6331, %v6332
  %v6334 = vand.u32 %v6333, 4294901760
  %6335 = vmatpush.msra.mxu0 %v6334
  %v6336 = vand.u32 %v313, 4294901760
  %v6337 = vsub.f32 %v313, %v6336
  %v6338 = vand.u32 %v6337, 4294901760
  %v6339 = vsub.f32 %v6337, %v6338
  %v6340 = vand.u32 %v6339, 4294901760
  %6341 = vmatpush.msra.mxu0 %v6340
  %v6342 = vand.u32 %v312, 4294901760
  %v6343 = vsub.f32 %v312, %v6342
  %v6344 = vand.u32 %v6343, 4294901760
  %v6345 = vsub.f32 %v6343, %v6344
  %v6346 = vand.u32 %v6345, 4294901760
  %6347 = vmatpush.msra.mxu0 %v6346
  %v6348 = vand.u32 %v311, 4294901760
  %v6349 = vsub.f32 %v311, %v6348
  %v6350 = vand.u32 %v6349, 4294901760
  %v6351 = vsub.f32 %v6349, %v6350
  %v6352 = vand.u32 %v6351, 4294901760
  %6353 = vmatpush.msra.mxu0 %v6352
  %v6354 = vand.u32 %v310, 4294901760
  %v6355 = vsub.f32 %v310, %v6354
  %v6356 = vand.u32 %v6355, 4294901760
  %v6357 = vsub.f32 %v6355, %v6356
  %v6358 = vand.u32 %v6357, 4294901760
  %6359 = vmatpush.msra.mxu0 %v6358
  %v6360 = vand.u32 %v31, 4294901760
  %6361 = vmatmul.f32.gmra.mxu0 %v6360
  %v6362 = vpop.f32.mrf.mxu0
  %v6363 = vadd.f32 %v6262, %v6362
  %6364 = vdwg.mxu0
  %v6365 = vand.u32 %v325, 4294901760
  %v6366 = vsub.f32 %v325, %v6365
  %6367 = vmatpush.msra.mxu0 %v6366
  %v6368 = vand.u32 %v324, 4294901760
  %v6369 = vsub.f32 %v324, %v6368
  %6370 = vmatpush.msra.mxu0 %v6369
  %v6371 = vand.u32 %v323, 4294901760
  %v6372 = vsub.f32 %v323, %v6371
  %6373 = vmatpush.msra.mxu0 %v6372
  %v6374 = vand.u32 %v322, 4294901760
  %v6375 = vsub.f32 %v322, %v6374
  %6376 = vmatpush.msra.mxu0 %v6375
  %v6377 = vand.u32 %v321, 4294901760
  %v6378 = vsub.f32 %v321, %v6377
  %6379 = vmatpush.msra.mxu0 %v6378
  %v6380 = vand.u32 %v320, 4294901760
  %v6381 = vsub.f32 %v320, %v6380
  %6382 = vmatpush.msra.mxu0 %v6381
  %v6383 = vand.u32 %v319, 4294901760
  %v6384 = vsub.f32 %v319, %v6383
  %6385 = vmatpush.msra.mxu0 %v6384
  %v6386 = vand.u32 %v318, 4294901760
  %v6387 = vsub.f32 %v318, %v6386
  %6388 = vmatpush.msra.mxu0 %v6387
  %v6389 = vand.u32 %v317, 4294901760
  %v6390 = vsub.f32 %v317, %v6389
  %6391 = vmatpush.msra.mxu0 %v6390
  %v6392 = vand.u32 %v316, 4294901760
  %v6393 = vsub.f32 %v316, %v6392
  %6394 = vmatpush.msra.mxu0 %v6393
  %v6395 = vand.u32 %v315, 4294901760
  %v6396 = vsub.f32 %v315, %v6395
  %6397 = vmatpush.msra.mxu0 %v6396
  %v6398 = vand.u32 %v314, 4294901760
  %v6399 = vsub.f32 %v314, %v6398
  %6400 = vmatpush.msra.mxu0 %v6399
  %v6401 = vand.u32 %v313, 4294901760
  %v6402 = vsub.f32 %v313, %v6401
  %6403 = vmatpush.msra.mxu0 %v6402
  %v6404 = vand.u32 %v312, 4294901760
  %v6405 = vsub.f32 %v312, %v6404
  %6406 = vmatpush.msra.mxu0 %v6405
  %v6407 = vand.u32 %v311, 4294901760
  %v6408 = vsub.f32 %v311, %v6407
  %6409 = vmatpush.msra.mxu0 %v6408
  %v6410 = vand.u32 %v310, 4294901760
  %v6411 = vsub.f32 %v310, %v6410
  %6412 = vmatpush.msra.mxu0 %v6411
  %v6413 = vand.u32 %v31, 4294901760
  %v6414 = vsub.f32 %v31, %v6413
  %6415 = vmatmul.f32.gmra.mxu0 %v6414
  %v6416 = vpop.f32.mrf.mxu0
  %v6417 = vadd.f32 %v6363, %v6416
  %6418 = vdwg.mxu0
  %v6419 = vand.u32 %v325, 4294901760
  %6420 = vmatpush.msra.mxu0 %v6419
  %v6421 = vand.u32 %v324, 4294901760
  %6422 = vmatpush.msra.mxu0 %v6421
  %v6423 = vand.u32 %v323, 4294901760
  %6424 = vmatpush.msra.mxu0 %v6423
  %v6425 = vand.u32 %v322, 4294901760
  %6426 = vmatpush.msra.mxu0 %v6425
  %v6427 = vand.u32 %v321, 4294901760
  %6428 = vmatpush.msra.mxu0 %v6427
  %v6429 = vand.u32 %v320, 4294901760
  %6430 = vmatpush.msra.mxu0 %v6429
  %v6431 = vand.u32 %v319, 4294901760
  %6432 = vmatpush.msra.mxu0 %v6431
  %v6433 = vand.u32 %v318, 4294901760
  %6434 = vmatpush.msra.mxu0 %v6433
  %v6435 = vand.u32 %v317, 4294901760
  %6436 = vmatpush.msra.mxu0 %v6435
  %v6437 = vand.u32 %v316, 4294901760
  %6438 = vmatpush.msra.mxu0 %v6437
  %v6439 = vand.u32 %v315, 4294901760
  %6440 = vmatpush.msra.mxu0 %v6439
  %v6441 = vand.u32 %v314, 4294901760
  %6442 = vmatpush.msra.mxu0 %v6441
  %v6443 = vand.u32 %v313, 4294901760
  %6444 = vmatpush.msra.mxu0 %v6443
  %v6445 = vand.u32 %v312, 4294901760
  %6446 = vmatpush.msra.mxu0 %v6445
  %v6447 = vand.u32 %v311, 4294901760
  %6448 = vmatpush.msra.mxu0 %v6447
  %v6449 = vand.u32 %v310, 4294901760
  %6450 = vmatpush.msra.mxu0 %v6449
  %v6451 = vand.u32 %v31, 4294901760
  %v6452 = vsub.f32 %v31, %v6451
  %v6453 = vand.u32 %v6452, 4294901760
  %6454 = vmatmul.f32.gmra.mxu0 %v6453
  %v6455 = vpop.f32.mrf.mxu0
  %v6456 = vadd.f32 %v6417, %v6455
  %6457 = vdwg.mxu0
  %v6458 = vand.u32 %v325, 4294901760
  %v6459 = vsub.f32 %v325, %v6458
  %v6460 = vand.u32 %v6459, 4294901760
  %6461 = vmatpush.msra.mxu0 %v6460
  %v6462 = vand.u32 %v324, 4294901760
  %v6463 = vsub.f32 %v324, %v6462
  %v6464 = vand.u32 %v6463, 4294901760
  %6465 = vmatpush.msra.mxu0 %v6464
  %v6466 = vand.u32 %v323, 4294901760
  %v6467 = vsub.f32 %v323, %v6466
  %v6468 = vand.u32 %v6467, 4294901760
  %6469 = vmatpush.msra.mxu0 %v6468
  %v6470 = vand.u32 %v322, 4294901760
  %v6471 = vsub.f32 %v322, %v6470
  %v6472 = vand.u32 %v6471, 4294901760
  %6473 = vmatpush.msra.mxu0 %v6472
  %v6474 = vand.u32 %v321, 4294901760
  %v6475 = vsub.f32 %v321, %v6474
  %v6476 = vand.u32 %v6475, 4294901760
  %6477 = vmatpush.msra.mxu0 %v6476
  %v6478 = vand.u32 %v320, 4294901760
  %v6479 = vsub.f32 %v320, %v6478
  %v6480 = vand.u32 %v6479, 4294901760
  %6481 = vmatpush.msra.mxu0 %v6480
  %v6482 = vand.u32 %v319, 4294901760
  %v6483 = vsub.f32 %v319, %v6482
  %v6484 = vand.u32 %v6483, 4294901760
  %6485 = vmatpush.msra.mxu0 %v6484
  %v6486 = vand.u32 %v318, 4294901760
  %v6487 = vsub.f32 %v318, %v6486
  %v6488 = vand.u32 %v6487, 4294901760
  %6489 = vmatpush.msra.mxu0 %v6488
  %v6490 = vand.u32 %v317, 4294901760
  %v6491 = vsub.f32 %v317, %v6490
  %v6492 = vand.u32 %v6491, 4294901760
  %6493 = vmatpush.msra.mxu0 %v6492
  %v6494 = vand.u32 %v316, 4294901760
  %v6495 = vsub.f32 %v316, %v6494
  %v6496 = vand.u32 %v6495, 4294901760
  %6497 = vmatpush.msra.mxu0 %v6496
  %v6498 = vand.u32 %v315, 4294901760
  %v6499 = vsub.f32 %v315, %v6498
  %v6500 = vand.u32 %v6499, 4294901760
  %6501 = vmatpush.msra.mxu0 %v6500
  %v6502 = vand.u32 %v314, 4294901760
  %v6503 = vsub.f32 %v314, %v6502
  %v6504 = vand.u32 %v6503, 4294901760
  %6505 = vmatpush.msra.mxu0 %v6504
  %v6506 = vand.u32 %v313, 4294901760
  %v6507 = vsub.f32 %v313, %v6506
  %v6508 = vand.u32 %v6507, 4294901760
  %6509 = vmatpush.msra.mxu0 %v6508
  %v6510 = vand.u32 %v312, 4294901760
  %v6511 = vsub.f32 %v312, %v6510
  %v6512 = vand.u32 %v6511, 4294901760
  %6513 = vmatpush.msra.mxu0 %v6512
  %v6514 = vand.u32 %v311, 4294901760
  %v6515 = vsub.f32 %v311, %v6514
  %v6516 = vand.u32 %v6515, 4294901760
  %6517 = vmatpush.msra.mxu0 %v6516
  %v6518 = vand.u32 %v310, 4294901760
  %v6519 = vsub.f32 %v310, %v6518
  %v6520 = vand.u32 %v6519, 4294901760
  %6521 = vmatpush.msra.mxu0 %v6520
  %v6522 = vand.u32 %v31, 4294901760
  %6523 = vmatmul.f32.gmra.mxu0 %v6522
  %v6524 = vpop.f32.mrf.mxu0
  %v6525 = vadd.f32 %v6456, %v6524
  %6526 = vdwg.mxu0
  %v6527 = vand.u32 %v325, 4294901760
  %6528 = vmatpush.msra.mxu0 %v6527
  %v6529 = vand.u32 %v324, 4294901760
  %6530 = vmatpush.msra.mxu0 %v6529
  %v6531 = vand.u32 %v323, 4294901760
  %6532 = vmatpush.msra.mxu0 %v6531
  %v6533 = vand.u32 %v322, 4294901760
  %6534 = vmatpush.msra.mxu0 %v6533
  %v6535 = vand.u32 %v321, 4294901760
  %6536 = vmatpush.msra.mxu0 %v6535
  %v6537 = vand.u32 %v320, 4294901760
  %6538 = vmatpush.msra.mxu0 %v6537
  %v6539 = vand.u32 %v319, 4294901760
  %6540 = vmatpush.msra.mxu0 %v6539
  %v6541 = vand.u32 %v318, 4294901760
  %6542 = vmatpush.msra.mxu0 %v6541
  %v6543 = vand.u32 %v317, 4294901760
  %6544 = vmatpush.msra.mxu0 %v6543
  %v6545 = vand.u32 %v316, 4294901760
  %6546 = vmatpush.msra.mxu0 %v6545
  %v6547 = vand.u32 %v315, 4294901760
  %6548 = vmatpush.msra.mxu0 %v6547
  %v6549 = vand.u32 %v314, 4294901760
  %6550 = vmatpush.msra.mxu0 %v6549
  %v6551 = vand.u32 %v313, 4294901760
  %6552 = vmatpush.msra.mxu0 %v6551
  %v6553 = vand.u32 %v312, 4294901760
  %6554 = vmatpush.msra.mxu0 %v6553
  %v6555 = vand.u32 %v311, 4294901760
  %6556 = vmatpush.msra.mxu0 %v6555
  %v6557 = vand.u32 %v310, 4294901760
  %6558 = vmatpush.msra.mxu0 %v6557
  %v6559 = vand.u32 %v31, 4294901760
  %6560 = vmatmul.f32.gmra.mxu0 %v6559
  %v6561 = vpop.f32.mrf.mxu0
  %v6562 = vadd.f32 %v6525, %v6561
  %6563 = vdwg.mxu0
  %v6564 = vand.u32 %v341, 4294901760
  %6565 = vmatpush.msra.mxu0 %v6564
  %v6566 = vand.u32 %v340, 4294901760
  %6567 = vmatpush.msra.mxu0 %v6566
  %v6568 = vand.u32 %v339, 4294901760
  %6569 = vmatpush.msra.mxu0 %v6568
  %v6570 = vand.u32 %v338, 4294901760
  %6571 = vmatpush.msra.mxu0 %v6570
  %v6572 = vand.u32 %v337, 4294901760
  %6573 = vmatpush.msra.mxu0 %v6572
  %v6574 = vand.u32 %v336, 4294901760
  %6575 = vmatpush.msra.mxu0 %v6574
  %v6576 = vand.u32 %v335, 4294901760
  %6577 = vmatpush.msra.mxu0 %v6576
  %v6578 = vand.u32 %v334, 4294901760
  %6579 = vmatpush.msra.mxu0 %v6578
  %v6580 = vand.u32 %v333, 4294901760
  %6581 = vmatpush.msra.mxu0 %v6580
  %v6582 = vand.u32 %v332, 4294901760
  %6583 = vmatpush.msra.mxu0 %v6582
  %v6584 = vand.u32 %v331, 4294901760
  %6585 = vmatpush.msra.mxu0 %v6584
  %v6586 = vand.u32 %v330, 4294901760
  %6587 = vmatpush.msra.mxu0 %v6586
  %v6588 = vand.u32 %v329, 4294901760
  %6589 = vmatpush.msra.mxu0 %v6588
  %v6590 = vand.u32 %v328, 4294901760
  %6591 = vmatpush.msra.mxu0 %v6590
  %v6592 = vand.u32 %v327, 4294901760
  %6593 = vmatpush.msra.mxu0 %v6592
  %v6594 = vand.u32 %v326, 4294901760
  %6595 = vmatpush.msra.mxu0 %v6594
  %v6596 = vand.u32 %v32, 4294901760
  %v6597 = vsub.f32 %v32, %v6596
  %v6598 = vand.u32 %v6597, 4294901760
  %v6599 = vsub.f32 %v6597, %v6598
  %v6600 = vand.u32 %v6599, 4294901760
  %6601 = vmatmul.f32.gmra.mxu0 %v6600
  %v6602 = vpop.f32.mrf.mxu0
  %v6603 = vadd.f32 %v6562, %v6602
  %6604 = vdwg.mxu0
  %v6605 = vand.u32 %v341, 4294901760
  %v6606 = vsub.f32 %v341, %v6605
  %v6607 = vand.u32 %v6606, 4294901760
  %v6608 = vsub.f32 %v6606, %v6607
  %v6609 = vand.u32 %v6608, 4294901760
  %6610 = vmatpush.msra.mxu0 %v6609
  %v6611 = vand.u32 %v340, 4294901760
  %v6612 = vsub.f32 %v340, %v6611
  %v6613 = vand.u32 %v6612, 4294901760
  %v6614 = vsub.f32 %v6612, %v6613
  %v6615 = vand.u32 %v6614, 4294901760
  %6616 = vmatpush.msra.mxu0 %v6615
  %v6617 = vand.u32 %v339, 4294901760
  %v6618 = vsub.f32 %v339, %v6617
  %v6619 = vand.u32 %v6618, 4294901760
  %v6620 = vsub.f32 %v6618, %v6619
  %v6621 = vand.u32 %v6620, 4294901760
  %6622 = vmatpush.msra.mxu0 %v6621
  %v6623 = vand.u32 %v338, 4294901760
  %v6624 = vsub.f32 %v338, %v6623
  %v6625 = vand.u32 %v6624, 4294901760
  %v6626 = vsub.f32 %v6624, %v6625
  %v6627 = vand.u32 %v6626, 4294901760
  %6628 = vmatpush.msra.mxu0 %v6627
  %v6629 = vand.u32 %v337, 4294901760
  %v6630 = vsub.f32 %v337, %v6629
  %v6631 = vand.u32 %v6630, 4294901760
  %v6632 = vsub.f32 %v6630, %v6631
  %v6633 = vand.u32 %v6632, 4294901760
  %6634 = vmatpush.msra.mxu0 %v6633
  %v6635 = vand.u32 %v336, 4294901760
  %v6636 = vsub.f32 %v336, %v6635
  %v6637 = vand.u32 %v6636, 4294901760
  %v6638 = vsub.f32 %v6636, %v6637
  %v6639 = vand.u32 %v6638, 4294901760
  %6640 = vmatpush.msra.mxu0 %v6639
  %v6641 = vand.u32 %v335, 4294901760
  %v6642 = vsub.f32 %v335, %v6641
  %v6643 = vand.u32 %v6642, 4294901760
  %v6644 = vsub.f32 %v6642, %v6643
  %v6645 = vand.u32 %v6644, 4294901760
  %6646 = vmatpush.msra.mxu0 %v6645
  %v6647 = vand.u32 %v334, 4294901760
  %v6648 = vsub.f32 %v334, %v6647
  %v6649 = vand.u32 %v6648, 4294901760
  %v6650 = vsub.f32 %v6648, %v6649
  %v6651 = vand.u32 %v6650, 4294901760
  %6652 = vmatpush.msra.mxu0 %v6651
  %v6653 = vand.u32 %v333, 4294901760
  %v6654 = vsub.f32 %v333, %v6653
  %v6655 = vand.u32 %v6654, 4294901760
  %v6656 = vsub.f32 %v6654, %v6655
  %v6657 = vand.u32 %v6656, 4294901760
  %6658 = vmatpush.msra.mxu0 %v6657
  %v6659 = vand.u32 %v332, 4294901760
  %v6660 = vsub.f32 %v332, %v6659
  %v6661 = vand.u32 %v6660, 4294901760
  %v6662 = vsub.f32 %v6660, %v6661
  %v6663 = vand.u32 %v6662, 4294901760
  %6664 = vmatpush.msra.mxu0 %v6663
  %v6665 = vand.u32 %v331, 4294901760
  %v6666 = vsub.f32 %v331, %v6665
  %v6667 = vand.u32 %v6666, 4294901760
  %v6668 = vsub.f32 %v6666, %v6667
  %v6669 = vand.u32 %v6668, 4294901760
  %6670 = vmatpush.msra.mxu0 %v6669
  %v6671 = vand.u32 %v330, 4294901760
  %v6672 = vsub.f32 %v330, %v6671
  %v6673 = vand.u32 %v6672, 4294901760
  %v6674 = vsub.f32 %v6672, %v6673
  %v6675 = vand.u32 %v6674, 4294901760
  %6676 = vmatpush.msra.mxu0 %v6675
  %v6677 = vand.u32 %v329, 4294901760
  %v6678 = vsub.f32 %v329, %v6677
  %v6679 = vand.u32 %v6678, 4294901760
  %v6680 = vsub.f32 %v6678, %v6679
  %v6681 = vand.u32 %v6680, 4294901760
  %6682 = vmatpush.msra.mxu0 %v6681
  %v6683 = vand.u32 %v328, 4294901760
  %v6684 = vsub.f32 %v328, %v6683
  %v6685 = vand.u32 %v6684, 4294901760
  %v6686 = vsub.f32 %v6684, %v6685
  %v6687 = vand.u32 %v6686, 4294901760
  %6688 = vmatpush.msra.mxu0 %v6687
  %v6689 = vand.u32 %v327, 4294901760
  %v6690 = vsub.f32 %v327, %v6689
  %v6691 = vand.u32 %v6690, 4294901760
  %v6692 = vsub.f32 %v6690, %v6691
  %v6693 = vand.u32 %v6692, 4294901760
  %6694 = vmatpush.msra.mxu0 %v6693
  %v6695 = vand.u32 %v326, 4294901760
  %v6696 = vsub.f32 %v326, %v6695
  %v6697 = vand.u32 %v6696, 4294901760
  %v6698 = vsub.f32 %v6696, %v6697
  %v6699 = vand.u32 %v6698, 4294901760
  %6700 = vmatpush.msra.mxu0 %v6699
  %v6701 = vand.u32 %v32, 4294901760
  %6702 = vmatmul.f32.gmra.mxu0 %v6701
  %v6703 = vpop.f32.mrf.mxu0
  %v6704 = vadd.f32 %v6603, %v6703
  %6705 = vdwg.mxu0
  %v6706 = vand.u32 %v341, 4294901760
  %v6707 = vsub.f32 %v341, %v6706
  %6708 = vmatpush.msra.mxu0 %v6707
  %v6709 = vand.u32 %v340, 4294901760
  %v6710 = vsub.f32 %v340, %v6709
  %6711 = vmatpush.msra.mxu0 %v6710
  %v6712 = vand.u32 %v339, 4294901760
  %v6713 = vsub.f32 %v339, %v6712
  %6714 = vmatpush.msra.mxu0 %v6713
  %v6715 = vand.u32 %v338, 4294901760
  %v6716 = vsub.f32 %v338, %v6715
  %6717 = vmatpush.msra.mxu0 %v6716
  %v6718 = vand.u32 %v337, 4294901760
  %v6719 = vsub.f32 %v337, %v6718
  %6720 = vmatpush.msra.mxu0 %v6719
  %v6721 = vand.u32 %v336, 4294901760
  %v6722 = vsub.f32 %v336, %v6721
  %6723 = vmatpush.msra.mxu0 %v6722
  %v6724 = vand.u32 %v335, 4294901760
  %v6725 = vsub.f32 %v335, %v6724
  %6726 = vmatpush.msra.mxu0 %v6725
  %v6727 = vand.u32 %v334, 4294901760
  %v6728 = vsub.f32 %v334, %v6727
  %6729 = vmatpush.msra.mxu0 %v6728
  %v6730 = vand.u32 %v333, 4294901760
  %v6731 = vsub.f32 %v333, %v6730
  %6732 = vmatpush.msra.mxu0 %v6731
  %v6733 = vand.u32 %v332, 4294901760
  %v6734 = vsub.f32 %v332, %v6733
  %6735 = vmatpush.msra.mxu0 %v6734
  %v6736 = vand.u32 %v331, 4294901760
  %v6737 = vsub.f32 %v331, %v6736
  %6738 = vmatpush.msra.mxu0 %v6737
  %v6739 = vand.u32 %v330, 4294901760
  %v6740 = vsub.f32 %v330, %v6739
  %6741 = vmatpush.msra.mxu0 %v6740
  %v6742 = vand.u32 %v329, 4294901760
  %v6743 = vsub.f32 %v329, %v6742
  %6744 = vmatpush.msra.mxu0 %v6743
  %v6745 = vand.u32 %v328, 4294901760
  %v6746 = vsub.f32 %v328, %v6745
  %6747 = vmatpush.msra.mxu0 %v6746
  %v6748 = vand.u32 %v327, 4294901760
  %v6749 = vsub.f32 %v327, %v6748
  %6750 = vmatpush.msra.mxu0 %v6749
  %v6751 = vand.u32 %v326, 4294901760
  %v6752 = vsub.f32 %v326, %v6751
  %6753 = vmatpush.msra.mxu0 %v6752
  %v6754 = vand.u32 %v32, 4294901760
  %v6755 = vsub.f32 %v32, %v6754
  %6756 = vmatmul.f32.gmra.mxu0 %v6755
  %v6757 = vpop.f32.mrf.mxu0
  %v6758 = vadd.f32 %v6704, %v6757
  %6759 = vdwg.mxu0
  %v6760 = vand.u32 %v341, 4294901760
  %6761 = vmatpush.msra.mxu0 %v6760
  %v6762 = vand.u32 %v340, 4294901760
  %6763 = vmatpush.msra.mxu0 %v6762
  %v6764 = vand.u32 %v339, 4294901760
  %6765 = vmatpush.msra.mxu0 %v6764
  %v6766 = vand.u32 %v338, 4294901760
  %6767 = vmatpush.msra.mxu0 %v6766
  %v6768 = vand.u32 %v337, 4294901760
  %6769 = vmatpush.msra.mxu0 %v6768
  %v6770 = vand.u32 %v336, 4294901760
  %6771 = vmatpush.msra.mxu0 %v6770
  %v6772 = vand.u32 %v335, 4294901760
  %6773 = vmatpush.msra.mxu0 %v6772
  %v6774 = vand.u32 %v334, 4294901760
  %6775 = vmatpush.msra.mxu0 %v6774
  %v6776 = vand.u32 %v333, 4294901760
  %6777 = vmatpush.msra.mxu0 %v6776
  %v6778 = vand.u32 %v332, 4294901760
  %6779 = vmatpush.msra.mxu0 %v6778
  %v6780 = vand.u32 %v331, 4294901760
  %6781 = vmatpush.msra.mxu0 %v6780
  %v6782 = vand.u32 %v330, 4294901760
  %6783 = vmatpush.msra.mxu0 %v6782
  %v6784 = vand.u32 %v329, 4294901760
  %6785 = vmatpush.msra.mxu0 %v6784
  %v6786 = vand.u32 %v328, 4294901760
  %6787 = vmatpush.msra.mxu0 %v6786
  %v6788 = vand.u32 %v327, 4294901760
  %6789 = vmatpush.msra.mxu0 %v6788
  %v6790 = vand.u32 %v326, 4294901760
  %6791 = vmatpush.msra.mxu0 %v6790
  %v6792 = vand.u32 %v32, 4294901760
  %v6793 = vsub.f32 %v32, %v6792
  %v6794 = vand.u32 %v6793, 4294901760
  %6795 = vmatmul.f32.gmra.mxu0 %v6794
  %v6796 = vpop.f32.mrf.mxu0
  %v6797 = vadd.f32 %v6758, %v6796
  %6798 = vdwg.mxu0
  %v6799 = vand.u32 %v341, 4294901760
  %v6800 = vsub.f32 %v341, %v6799
  %v6801 = vand.u32 %v6800, 4294901760
  %6802 = vmatpush.msra.mxu0 %v6801
  %v6803 = vand.u32 %v340, 4294901760
  %v6804 = vsub.f32 %v340, %v6803
  %v6805 = vand.u32 %v6804, 4294901760
  %6806 = vmatpush.msra.mxu0 %v6805
  %v6807 = vand.u32 %v339, 4294901760
  %v6808 = vsub.f32 %v339, %v6807
  %v6809 = vand.u32 %v6808, 4294901760
  %6810 = vmatpush.msra.mxu0 %v6809
  %v6811 = vand.u32 %v338, 4294901760
  %v6812 = vsub.f32 %v338, %v6811
  %v6813 = vand.u32 %v6812, 4294901760
  %6814 = vmatpush.msra.mxu0 %v6813
  %v6815 = vand.u32 %v337, 4294901760
  %v6816 = vsub.f32 %v337, %v6815
  %v6817 = vand.u32 %v6816, 4294901760
  %6818 = vmatpush.msra.mxu0 %v6817
  %v6819 = vand.u32 %v336, 4294901760
  %v6820 = vsub.f32 %v336, %v6819
  %v6821 = vand.u32 %v6820, 4294901760
  %6822 = vmatpush.msra.mxu0 %v6821
  %v6823 = vand.u32 %v335, 4294901760
  %v6824 = vsub.f32 %v335, %v6823
  %v6825 = vand.u32 %v6824, 4294901760
  %6826 = vmatpush.msra.mxu0 %v6825
  %v6827 = vand.u32 %v334, 4294901760
  %v6828 = vsub.f32 %v334, %v6827
  %v6829 = vand.u32 %v6828, 4294901760
  %6830 = vmatpush.msra.mxu0 %v6829
  %v6831 = vand.u32 %v333, 4294901760
  %v6832 = vsub.f32 %v333, %v6831
  %v6833 = vand.u32 %v6832, 4294901760
  %6834 = vmatpush.msra.mxu0 %v6833
  %v6835 = vand.u32 %v332, 4294901760
  %v6836 = vsub.f32 %v332, %v6835
  %v6837 = vand.u32 %v6836, 4294901760
  %6838 = vmatpush.msra.mxu0 %v6837
  %v6839 = vand.u32 %v331, 4294901760
  %v6840 = vsub.f32 %v331, %v6839
  %v6841 = vand.u32 %v6840, 4294901760
  %6842 = vmatpush.msra.mxu0 %v6841
  %v6843 = vand.u32 %v330, 4294901760
  %v6844 = vsub.f32 %v330, %v6843
  %v6845 = vand.u32 %v6844, 4294901760
  %6846 = vmatpush.msra.mxu0 %v6845
  %v6847 = vand.u32 %v329, 4294901760
  %v6848 = vsub.f32 %v329, %v6847
  %v6849 = vand.u32 %v6848, 4294901760
  %6850 = vmatpush.msra.mxu0 %v6849
  %v6851 = vand.u32 %v328, 4294901760
  %v6852 = vsub.f32 %v328, %v6851
  %v6853 = vand.u32 %v6852, 4294901760
  %6854 = vmatpush.msra.mxu0 %v6853
  %v6855 = vand.u32 %v327, 4294901760
  %v6856 = vsub.f32 %v327, %v6855
  %v6857 = vand.u32 %v6856, 4294901760
  %6858 = vmatpush.msra.mxu0 %v6857
  %v6859 = vand.u32 %v326, 4294901760
  %v6860 = vsub.f32 %v326, %v6859
  %v6861 = vand.u32 %v6860, 4294901760
  %6862 = vmatpush.msra.mxu0 %v6861
  %v6863 = vand.u32 %v32, 4294901760
  %6864 = vmatmul.f32.gmra.mxu0 %v6863
  %v6865 = vpop.f32.mrf.mxu0
  %v6866 = vadd.f32 %v6797, %v6865
  %6867 = vdwg.mxu0
  %v6868 = vand.u32 %v341, 4294901760
  %6869 = vmatpush.msra.mxu0 %v6868
  %v6870 = vand.u32 %v340, 4294901760
  %6871 = vmatpush.msra.mxu0 %v6870
  %v6872 = vand.u32 %v339, 4294901760
  %6873 = vmatpush.msra.mxu0 %v6872
  %v6874 = vand.u32 %v338, 4294901760
  %6875 = vmatpush.msra.mxu0 %v6874
  %v6876 = vand.u32 %v337, 4294901760
  %6877 = vmatpush.msra.mxu0 %v6876
  %v6878 = vand.u32 %v336, 4294901760
  %6879 = vmatpush.msra.mxu0 %v6878
  %v6880 = vand.u32 %v335, 4294901760
  %6881 = vmatpush.msra.mxu0 %v6880
  %v6882 = vand.u32 %v334, 4294901760
  %6883 = vmatpush.msra.mxu0 %v6882
  %v6884 = vand.u32 %v333, 4294901760
  %6885 = vmatpush.msra.mxu0 %v6884
  %v6886 = vand.u32 %v332, 4294901760
  %6887 = vmatpush.msra.mxu0 %v6886
  %v6888 = vand.u32 %v331, 4294901760
  %6889 = vmatpush.msra.mxu0 %v6888
  %v6890 = vand.u32 %v330, 4294901760
  %6891 = vmatpush.msra.mxu0 %v6890
  %v6892 = vand.u32 %v329, 4294901760
  %6893 = vmatpush.msra.mxu0 %v6892
  %v6894 = vand.u32 %v328, 4294901760
  %6895 = vmatpush.msra.mxu0 %v6894
  %v6896 = vand.u32 %v327, 4294901760
  %6897 = vmatpush.msra.mxu0 %v6896
  %v6898 = vand.u32 %v326, 4294901760
  %6899 = vmatpush.msra.mxu0 %v6898
  %v6900 = vand.u32 %v32, 4294901760
  %6901 = vmatmul.f32.gmra.mxu0 %v6900
  %v6902 = vpop.f32.mrf.mxu0
  %v6903 = vadd.f32 %v6866, %v6902
  %6904 = vdwg.mxu0
  %v6905 = vand.u32 %v357, 4294901760
  %6906 = vmatpush.msra.mxu0 %v6905
  %v6907 = vand.u32 %v356, 4294901760
  %6908 = vmatpush.msra.mxu0 %v6907
  %v6909 = vand.u32 %v355, 4294901760
  %6910 = vmatpush.msra.mxu0 %v6909
  %v6911 = vand.u32 %v354, 4294901760
  %6912 = vmatpush.msra.mxu0 %v6911
  %v6913 = vand.u32 %v353, 4294901760
  %6914 = vmatpush.msra.mxu0 %v6913
  %v6915 = vand.u32 %v352, 4294901760
  %6916 = vmatpush.msra.mxu0 %v6915
  %v6917 = vand.u32 %v351, 4294901760
  %6918 = vmatpush.msra.mxu0 %v6917
  %v6919 = vand.u32 %v350, 4294901760
  %6920 = vmatpush.msra.mxu0 %v6919
  %v6921 = vand.u32 %v349, 4294901760
  %6922 = vmatpush.msra.mxu0 %v6921
  %v6923 = vand.u32 %v348, 4294901760
  %6924 = vmatpush.msra.mxu0 %v6923
  %v6925 = vand.u32 %v347, 4294901760
  %6926 = vmatpush.msra.mxu0 %v6925
  %v6927 = vand.u32 %v346, 4294901760
  %6928 = vmatpush.msra.mxu0 %v6927
  %v6929 = vand.u32 %v345, 4294901760
  %6930 = vmatpush.msra.mxu0 %v6929
  %v6931 = vand.u32 %v344, 4294901760
  %6932 = vmatpush.msra.mxu0 %v6931
  %v6933 = vand.u32 %v343, 4294901760
  %6934 = vmatpush.msra.mxu0 %v6933
  %v6935 = vand.u32 %v342, 4294901760
  %6936 = vmatpush.msra.mxu0 %v6935
  %v6937 = vand.u32 %v33, 4294901760
  %v6938 = vsub.f32 %v33, %v6937
  %v6939 = vand.u32 %v6938, 4294901760
  %v6940 = vsub.f32 %v6938, %v6939
  %v6941 = vand.u32 %v6940, 4294901760
  %6942 = vmatmul.f32.gmra.mxu0 %v6941
  %v6943 = vpop.f32.mrf.mxu0
  %v6944 = vadd.f32 %v6903, %v6943
  %6945 = vdwg.mxu0
  %v6946 = vand.u32 %v357, 4294901760
  %v6947 = vsub.f32 %v357, %v6946
  %v6948 = vand.u32 %v6947, 4294901760
  %v6949 = vsub.f32 %v6947, %v6948
  %v6950 = vand.u32 %v6949, 4294901760
  %6951 = vmatpush.msra.mxu0 %v6950
  %v6952 = vand.u32 %v356, 4294901760
  %v6953 = vsub.f32 %v356, %v6952
  %v6954 = vand.u32 %v6953, 4294901760
  %v6955 = vsub.f32 %v6953, %v6954
  %v6956 = vand.u32 %v6955, 4294901760
  %6957 = vmatpush.msra.mxu0 %v6956
  %v6958 = vand.u32 %v355, 4294901760
  %v6959 = vsub.f32 %v355, %v6958
  %v6960 = vand.u32 %v6959, 4294901760
  %v6961 = vsub.f32 %v6959, %v6960
  %v6962 = vand.u32 %v6961, 4294901760
  %6963 = vmatpush.msra.mxu0 %v6962
  %v6964 = vand.u32 %v354, 4294901760
  %v6965 = vsub.f32 %v354, %v6964
  %v6966 = vand.u32 %v6965, 4294901760
  %v6967 = vsub.f32 %v6965, %v6966
  %v6968 = vand.u32 %v6967, 4294901760
  %6969 = vmatpush.msra.mxu0 %v6968
  %v6970 = vand.u32 %v353, 4294901760
  %v6971 = vsub.f32 %v353, %v6970
  %v6972 = vand.u32 %v6971, 4294901760
  %v6973 = vsub.f32 %v6971, %v6972
  %v6974 = vand.u32 %v6973, 4294901760
  %6975 = vmatpush.msra.mxu0 %v6974
  %v6976 = vand.u32 %v352, 4294901760
  %v6977 = vsub.f32 %v352, %v6976
  %v6978 = vand.u32 %v6977, 4294901760
  %v6979 = vsub.f32 %v6977, %v6978
  %v6980 = vand.u32 %v6979, 4294901760
  %6981 = vmatpush.msra.mxu0 %v6980
  %v6982 = vand.u32 %v351, 4294901760
  %v6983 = vsub.f32 %v351, %v6982
  %v6984 = vand.u32 %v6983, 4294901760
  %v6985 = vsub.f32 %v6983, %v6984
  %v6986 = vand.u32 %v6985, 4294901760
  %6987 = vmatpush.msra.mxu0 %v6986
  %v6988 = vand.u32 %v350, 4294901760
  %v6989 = vsub.f32 %v350, %v6988
  %v6990 = vand.u32 %v6989, 4294901760
  %v6991 = vsub.f32 %v6989, %v6990
  %v6992 = vand.u32 %v6991, 4294901760
  %6993 = vmatpush.msra.mxu0 %v6992
  %v6994 = vand.u32 %v349, 4294901760
  %v6995 = vsub.f32 %v349, %v6994
  %v6996 = vand.u32 %v6995, 4294901760
  %v6997 = vsub.f32 %v6995, %v6996
  %v6998 = vand.u32 %v6997, 4294901760
  %6999 = vmatpush.msra.mxu0 %v6998
  %v7000 = vand.u32 %v348, 4294901760
  %v7001 = vsub.f32 %v348, %v7000
  %v7002 = vand.u32 %v7001, 4294901760
  %v7003 = vsub.f32 %v7001, %v7002
  %v7004 = vand.u32 %v7003, 4294901760
  %7005 = vmatpush.msra.mxu0 %v7004
  %v7006 = vand.u32 %v347, 4294901760
  %v7007 = vsub.f32 %v347, %v7006
  %v7008 = vand.u32 %v7007, 4294901760
  %v7009 = vsub.f32 %v7007, %v7008
  %v7010 = vand.u32 %v7009, 4294901760
  %7011 = vmatpush.msra.mxu0 %v7010
  %v7012 = vand.u32 %v346, 4294901760
  %v7013 = vsub.f32 %v346, %v7012
  %v7014 = vand.u32 %v7013, 4294901760
  %v7015 = vsub.f32 %v7013, %v7014
  %v7016 = vand.u32 %v7015, 4294901760
  %7017 = vmatpush.msra.mxu0 %v7016
  %v7018 = vand.u32 %v345, 4294901760
  %v7019 = vsub.f32 %v345, %v7018
  %v7020 = vand.u32 %v7019, 4294901760
  %v7021 = vsub.f32 %v7019, %v7020
  %v7022 = vand.u32 %v7021, 4294901760
  %7023 = vmatpush.msra.mxu0 %v7022
  %v7024 = vand.u32 %v344, 4294901760
  %v7025 = vsub.f32 %v344, %v7024
  %v7026 = vand.u32 %v7025, 4294901760
  %v7027 = vsub.f32 %v7025, %v7026
  %v7028 = vand.u32 %v7027, 4294901760
  %7029 = vmatpush.msra.mxu0 %v7028
  %v7030 = vand.u32 %v343, 4294901760
  %v7031 = vsub.f32 %v343, %v7030
  %v7032 = vand.u32 %v7031, 4294901760
  %v7033 = vsub.f32 %v7031, %v7032
  %v7034 = vand.u32 %v7033, 4294901760
  %7035 = vmatpush.msra.mxu0 %v7034
  %v7036 = vand.u32 %v342, 4294901760
  %v7037 = vsub.f32 %v342, %v7036
  %v7038 = vand.u32 %v7037, 4294901760
  %v7039 = vsub.f32 %v7037, %v7038
  %v7040 = vand.u32 %v7039, 4294901760
  %7041 = vmatpush.msra.mxu0 %v7040
  %v7042 = vand.u32 %v33, 4294901760
  %7043 = vmatmul.f32.gmra.mxu0 %v7042
  %v7044 = vpop.f32.mrf.mxu0
  %v7045 = vadd.f32 %v6944, %v7044
  %7046 = vdwg.mxu0
  %v7047 = vand.u32 %v357, 4294901760
  %v7048 = vsub.f32 %v357, %v7047
  %7049 = vmatpush.msra.mxu0 %v7048
  %v7050 = vand.u32 %v356, 4294901760
  %v7051 = vsub.f32 %v356, %v7050
  %7052 = vmatpush.msra.mxu0 %v7051
  %v7053 = vand.u32 %v355, 4294901760
  %v7054 = vsub.f32 %v355, %v7053
  %7055 = vmatpush.msra.mxu0 %v7054
  %v7056 = vand.u32 %v354, 4294901760
  %v7057 = vsub.f32 %v354, %v7056
  %7058 = vmatpush.msra.mxu0 %v7057
  %v7059 = vand.u32 %v353, 4294901760
  %v7060 = vsub.f32 %v353, %v7059
  %7061 = vmatpush.msra.mxu0 %v7060
  %v7062 = vand.u32 %v352, 4294901760
  %v7063 = vsub.f32 %v352, %v7062
  %7064 = vmatpush.msra.mxu0 %v7063
  %v7065 = vand.u32 %v351, 4294901760
  %v7066 = vsub.f32 %v351, %v7065
  %7067 = vmatpush.msra.mxu0 %v7066
  %v7068 = vand.u32 %v350, 4294901760
  %v7069 = vsub.f32 %v350, %v7068
  %7070 = vmatpush.msra.mxu0 %v7069
  %v7071 = vand.u32 %v349, 4294901760
  %v7072 = vsub.f32 %v349, %v7071
  %7073 = vmatpush.msra.mxu0 %v7072
  %v7074 = vand.u32 %v348, 4294901760
  %v7075 = vsub.f32 %v348, %v7074
  %7076 = vmatpush.msra.mxu0 %v7075
  %v7077 = vand.u32 %v347, 4294901760
  %v7078 = vsub.f32 %v347, %v7077
  %7079 = vmatpush.msra.mxu0 %v7078
  %v7080 = vand.u32 %v346, 4294901760
  %v7081 = vsub.f32 %v346, %v7080
  %7082 = vmatpush.msra.mxu0 %v7081
  %v7083 = vand.u32 %v345, 4294901760
  %v7084 = vsub.f32 %v345, %v7083
  %7085 = vmatpush.msra.mxu0 %v7084
  %v7086 = vand.u32 %v344, 4294901760
  %v7087 = vsub.f32 %v344, %v7086
  %7088 = vmatpush.msra.mxu0 %v7087
  %v7089 = vand.u32 %v343, 4294901760
  %v7090 = vsub.f32 %v343, %v7089
  %7091 = vmatpush.msra.mxu0 %v7090
  %v7092 = vand.u32 %v342, 4294901760
  %v7093 = vsub.f32 %v342, %v7092
  %7094 = vmatpush.msra.mxu0 %v7093
  %v7095 = vand.u32 %v33, 4294901760
  %v7096 = vsub.f32 %v33, %v7095
  %7097 = vmatmul.f32.gmra.mxu0 %v7096
  %v7098 = vpop.f32.mrf.mxu0
  %v7099 = vadd.f32 %v7045, %v7098
  %7100 = vdwg.mxu0
  %v7101 = vand.u32 %v357, 4294901760
  %7102 = vmatpush.msra.mxu0 %v7101
  %v7103 = vand.u32 %v356, 4294901760
  %7104 = vmatpush.msra.mxu0 %v7103
  %v7105 = vand.u32 %v355, 4294901760
  %7106 = vmatpush.msra.mxu0 %v7105
  %v7107 = vand.u32 %v354, 4294901760
  %7108 = vmatpush.msra.mxu0 %v7107
  %v7109 = vand.u32 %v353, 4294901760
  %7110 = vmatpush.msra.mxu0 %v7109
  %v7111 = vand.u32 %v352, 4294901760
  %7112 = vmatpush.msra.mxu0 %v7111
  %v7113 = vand.u32 %v351, 4294901760
  %7114 = vmatpush.msra.mxu0 %v7113
  %v7115 = vand.u32 %v350, 4294901760
  %7116 = vmatpush.msra.mxu0 %v7115
  %v7117 = vand.u32 %v349, 4294901760
  %7118 = vmatpush.msra.mxu0 %v7117
  %v7119 = vand.u32 %v348, 4294901760
  %7120 = vmatpush.msra.mxu0 %v7119
  %v7121 = vand.u32 %v347, 4294901760
  %7122 = vmatpush.msra.mxu0 %v7121
  %v7123 = vand.u32 %v346, 4294901760
  %7124 = vmatpush.msra.mxu0 %v7123
  %v7125 = vand.u32 %v345, 4294901760
  %7126 = vmatpush.msra.mxu0 %v7125
  %v7127 = vand.u32 %v344, 4294901760
  %7128 = vmatpush.msra.mxu0 %v7127
  %v7129 = vand.u32 %v343, 4294901760
  %7130 = vmatpush.msra.mxu0 %v7129
  %v7131 = vand.u32 %v342, 4294901760
  %7132 = vmatpush.msra.mxu0 %v7131
  %v7133 = vand.u32 %v33, 4294901760
  %v7134 = vsub.f32 %v33, %v7133
  %v7135 = vand.u32 %v7134, 4294901760
  %7136 = vmatmul.f32.gmra.mxu0 %v7135
  %v7137 = vpop.f32.mrf.mxu0
  %v7138 = vadd.f32 %v7099, %v7137
  %7139 = vdwg.mxu0
  %v7140 = vand.u32 %v357, 4294901760
  %v7141 = vsub.f32 %v357, %v7140
  %v7142 = vand.u32 %v7141, 4294901760
  %7143 = vmatpush.msra.mxu0 %v7142
  %v7144 = vand.u32 %v356, 4294901760
  %v7145 = vsub.f32 %v356, %v7144
  %v7146 = vand.u32 %v7145, 4294901760
  %7147 = vmatpush.msra.mxu0 %v7146
  %v7148 = vand.u32 %v355, 4294901760
  %v7149 = vsub.f32 %v355, %v7148
  %v7150 = vand.u32 %v7149, 4294901760
  %7151 = vmatpush.msra.mxu0 %v7150
  %v7152 = vand.u32 %v354, 4294901760
  %v7153 = vsub.f32 %v354, %v7152
  %v7154 = vand.u32 %v7153, 4294901760
  %7155 = vmatpush.msra.mxu0 %v7154
  %v7156 = vand.u32 %v353, 4294901760
  %v7157 = vsub.f32 %v353, %v7156
  %v7158 = vand.u32 %v7157, 4294901760
  %7159 = vmatpush.msra.mxu0 %v7158
  %v7160 = vand.u32 %v352, 4294901760
  %v7161 = vsub.f32 %v352, %v7160
  %v7162 = vand.u32 %v7161, 4294901760
  %7163 = vmatpush.msra.mxu0 %v7162
  %v7164 = vand.u32 %v351, 4294901760
  %v7165 = vsub.f32 %v351, %v7164
  %v7166 = vand.u32 %v7165, 4294901760
  %7167 = vmatpush.msra.mxu0 %v7166
  %v7168 = vand.u32 %v350, 4294901760
  %v7169 = vsub.f32 %v350, %v7168
  %v7170 = vand.u32 %v7169, 4294901760
  %7171 = vmatpush.msra.mxu0 %v7170
  %v7172 = vand.u32 %v349, 4294901760
  %v7173 = vsub.f32 %v349, %v7172
  %v7174 = vand.u32 %v7173, 4294901760
  %7175 = vmatpush.msra.mxu0 %v7174
  %v7176 = vand.u32 %v348, 4294901760
  %v7177 = vsub.f32 %v348, %v7176
  %v7178 = vand.u32 %v7177, 4294901760
  %7179 = vmatpush.msra.mxu0 %v7178
  %v7180 = vand.u32 %v347, 4294901760
  %v7181 = vsub.f32 %v347, %v7180
  %v7182 = vand.u32 %v7181, 4294901760
  %7183 = vmatpush.msra.mxu0 %v7182
  %v7184 = vand.u32 %v346, 4294901760
  %v7185 = vsub.f32 %v346, %v7184
  %v7186 = vand.u32 %v7185, 4294901760
  %7187 = vmatpush.msra.mxu0 %v7186
  %v7188 = vand.u32 %v345, 4294901760
  %v7189 = vsub.f32 %v345, %v7188
  %v7190 = vand.u32 %v7189, 4294901760
  %7191 = vmatpush.msra.mxu0 %v7190
  %v7192 = vand.u32 %v344, 4294901760
  %v7193 = vsub.f32 %v344, %v7192
  %v7194 = vand.u32 %v7193, 4294901760
  %7195 = vmatpush.msra.mxu0 %v7194
  %v7196 = vand.u32 %v343, 4294901760
  %v7197 = vsub.f32 %v343, %v7196
  %v7198 = vand.u32 %v7197, 4294901760
  %7199 = vmatpush.msra.mxu0 %v7198
  %v7200 = vand.u32 %v342, 4294901760
  %v7201 = vsub.f32 %v342, %v7200
  %v7202 = vand.u32 %v7201, 4294901760
  %7203 = vmatpush.msra.mxu0 %v7202
  %v7204 = vand.u32 %v33, 4294901760
  %7205 = vmatmul.f32.gmra.mxu0 %v7204
  %v7206 = vpop.f32.mrf.mxu0
  %v7207 = vadd.f32 %v7138, %v7206
  %7208 = vdwg.mxu0
  %v7209 = vand.u32 %v357, 4294901760
  %7210 = vmatpush.msra.mxu0 %v7209
  %v7211 = vand.u32 %v356, 4294901760
  %7212 = vmatpush.msra.mxu0 %v7211
  %v7213 = vand.u32 %v355, 4294901760
  %7214 = vmatpush.msra.mxu0 %v7213
  %v7215 = vand.u32 %v354, 4294901760
  %7216 = vmatpush.msra.mxu0 %v7215
  %v7217 = vand.u32 %v353, 4294901760
  %7218 = vmatpush.msra.mxu0 %v7217
  %v7219 = vand.u32 %v352, 4294901760
  %7220 = vmatpush.msra.mxu0 %v7219
  %v7221 = vand.u32 %v351, 4294901760
  %7222 = vmatpush.msra.mxu0 %v7221
  %v7223 = vand.u32 %v350, 4294901760
  %7224 = vmatpush.msra.mxu0 %v7223
  %v7225 = vand.u32 %v349, 4294901760
  %7226 = vmatpush.msra.mxu0 %v7225
  %v7227 = vand.u32 %v348, 4294901760
  %7228 = vmatpush.msra.mxu0 %v7227
  %v7229 = vand.u32 %v347, 4294901760
  %7230 = vmatpush.msra.mxu0 %v7229
  %v7231 = vand.u32 %v346, 4294901760
  %7232 = vmatpush.msra.mxu0 %v7231
  %v7233 = vand.u32 %v345, 4294901760
  %7234 = vmatpush.msra.mxu0 %v7233
  %v7235 = vand.u32 %v344, 4294901760
  %7236 = vmatpush.msra.mxu0 %v7235
  %v7237 = vand.u32 %v343, 4294901760
  %7238 = vmatpush.msra.mxu0 %v7237
  %v7239 = vand.u32 %v342, 4294901760
  %7240 = vmatpush.msra.mxu0 %v7239
  %v7241 = vand.u32 %v33, 4294901760
  %7242 = vmatmul.f32.gmra.mxu0 %v7241
  %v7243 = vpop.f32.mrf.mxu0
  %v7244 = vadd.f32 %v7207, %v7243
  %7245 = vdwg.mxu0
  %v7246 = vand.u32 %v373, 4294901760
  %7247 = vmatpush.msra.mxu0 %v7246
  %v7248 = vand.u32 %v372, 4294901760
  %7249 = vmatpush.msra.mxu0 %v7248
  %v7250 = vand.u32 %v371, 4294901760
  %7251 = vmatpush.msra.mxu0 %v7250
  %v7252 = vand.u32 %v370, 4294901760
  %7253 = vmatpush.msra.mxu0 %v7252
  %v7254 = vand.u32 %v369, 4294901760
  %7255 = vmatpush.msra.mxu0 %v7254
  %v7256 = vand.u32 %v368, 4294901760
  %7257 = vmatpush.msra.mxu0 %v7256
  %v7258 = vand.u32 %v367, 4294901760
  %7259 = vmatpush.msra.mxu0 %v7258
  %v7260 = vand.u32 %v366, 4294901760
  %7261 = vmatpush.msra.mxu0 %v7260
  %v7262 = vand.u32 %v365, 4294901760
  %7263 = vmatpush.msra.mxu0 %v7262
  %v7264 = vand.u32 %v364, 4294901760
  %7265 = vmatpush.msra.mxu0 %v7264
  %v7266 = vand.u32 %v363, 4294901760
  %7267 = vmatpush.msra.mxu0 %v7266
  %v7268 = vand.u32 %v362, 4294901760
  %7269 = vmatpush.msra.mxu0 %v7268
  %v7270 = vand.u32 %v361, 4294901760
  %7271 = vmatpush.msra.mxu0 %v7270
  %v7272 = vand.u32 %v360, 4294901760
  %7273 = vmatpush.msra.mxu0 %v7272
  %v7274 = vand.u32 %v359, 4294901760
  %7275 = vmatpush.msra.mxu0 %v7274
  %v7276 = vand.u32 %v358, 4294901760
  %7277 = vmatpush.msra.mxu0 %v7276
  %v7278 = vand.u32 %v34, 4294901760
  %v7279 = vsub.f32 %v34, %v7278
  %v7280 = vand.u32 %v7279, 4294901760
  %v7281 = vsub.f32 %v7279, %v7280
  %v7282 = vand.u32 %v7281, 4294901760
  %7283 = vmatmul.f32.gmra.mxu0 %v7282
  %v7284 = vpop.f32.mrf.mxu0
  %v7285 = vadd.f32 %v7244, %v7284
  %7286 = vdwg.mxu0
  %v7287 = vand.u32 %v373, 4294901760
  %v7288 = vsub.f32 %v373, %v7287
  %v7289 = vand.u32 %v7288, 4294901760
  %v7290 = vsub.f32 %v7288, %v7289
  %v7291 = vand.u32 %v7290, 4294901760
  %7292 = vmatpush.msra.mxu0 %v7291
  %v7293 = vand.u32 %v372, 4294901760
  %v7294 = vsub.f32 %v372, %v7293
  %v7295 = vand.u32 %v7294, 4294901760
  %v7296 = vsub.f32 %v7294, %v7295
  %v7297 = vand.u32 %v7296, 4294901760
  %7298 = vmatpush.msra.mxu0 %v7297
  %v7299 = vand.u32 %v371, 4294901760
  %v7300 = vsub.f32 %v371, %v7299
  %v7301 = vand.u32 %v7300, 4294901760
  %v7302 = vsub.f32 %v7300, %v7301
  %v7303 = vand.u32 %v7302, 4294901760
  %7304 = vmatpush.msra.mxu0 %v7303
  %v7305 = vand.u32 %v370, 4294901760
  %v7306 = vsub.f32 %v370, %v7305
  %v7307 = vand.u32 %v7306, 4294901760
  %v7308 = vsub.f32 %v7306, %v7307
  %v7309 = vand.u32 %v7308, 4294901760
  %7310 = vmatpush.msra.mxu0 %v7309
  %v7311 = vand.u32 %v369, 4294901760
  %v7312 = vsub.f32 %v369, %v7311
  %v7313 = vand.u32 %v7312, 4294901760
  %v7314 = vsub.f32 %v7312, %v7313
  %v7315 = vand.u32 %v7314, 4294901760
  %7316 = vmatpush.msra.mxu0 %v7315
  %v7317 = vand.u32 %v368, 4294901760
  %v7318 = vsub.f32 %v368, %v7317
  %v7319 = vand.u32 %v7318, 4294901760
  %v7320 = vsub.f32 %v7318, %v7319
  %v7321 = vand.u32 %v7320, 4294901760
  %7322 = vmatpush.msra.mxu0 %v7321
  %v7323 = vand.u32 %v367, 4294901760
  %v7324 = vsub.f32 %v367, %v7323
  %v7325 = vand.u32 %v7324, 4294901760
  %v7326 = vsub.f32 %v7324, %v7325
  %v7327 = vand.u32 %v7326, 4294901760
  %7328 = vmatpush.msra.mxu0 %v7327
  %v7329 = vand.u32 %v366, 4294901760
  %v7330 = vsub.f32 %v366, %v7329
  %v7331 = vand.u32 %v7330, 4294901760
  %v7332 = vsub.f32 %v7330, %v7331
  %v7333 = vand.u32 %v7332, 4294901760
  %7334 = vmatpush.msra.mxu0 %v7333
  %v7335 = vand.u32 %v365, 4294901760
  %v7336 = vsub.f32 %v365, %v7335
  %v7337 = vand.u32 %v7336, 4294901760
  %v7338 = vsub.f32 %v7336, %v7337
  %v7339 = vand.u32 %v7338, 4294901760
  %7340 = vmatpush.msra.mxu0 %v7339
  %v7341 = vand.u32 %v364, 4294901760
  %v7342 = vsub.f32 %v364, %v7341
  %v7343 = vand.u32 %v7342, 4294901760
  %v7344 = vsub.f32 %v7342, %v7343
  %v7345 = vand.u32 %v7344, 4294901760
  %7346 = vmatpush.msra.mxu0 %v7345
  %v7347 = vand.u32 %v363, 4294901760
  %v7348 = vsub.f32 %v363, %v7347
  %v7349 = vand.u32 %v7348, 4294901760
  %v7350 = vsub.f32 %v7348, %v7349
  %v7351 = vand.u32 %v7350, 4294901760
  %7352 = vmatpush.msra.mxu0 %v7351
  %v7353 = vand.u32 %v362, 4294901760
  %v7354 = vsub.f32 %v362, %v7353
  %v7355 = vand.u32 %v7354, 4294901760
  %v7356 = vsub.f32 %v7354, %v7355
  %v7357 = vand.u32 %v7356, 4294901760
  %7358 = vmatpush.msra.mxu0 %v7357
  %v7359 = vand.u32 %v361, 4294901760
  %v7360 = vsub.f32 %v361, %v7359
  %v7361 = vand.u32 %v7360, 4294901760
  %v7362 = vsub.f32 %v7360, %v7361
  %v7363 = vand.u32 %v7362, 4294901760
  %7364 = vmatpush.msra.mxu0 %v7363
  %v7365 = vand.u32 %v360, 4294901760
  %v7366 = vsub.f32 %v360, %v7365
  %v7367 = vand.u32 %v7366, 4294901760
  %v7368 = vsub.f32 %v7366, %v7367
  %v7369 = vand.u32 %v7368, 4294901760
  %7370 = vmatpush.msra.mxu0 %v7369
  %v7371 = vand.u32 %v359, 4294901760
  %v7372 = vsub.f32 %v359, %v7371
  %v7373 = vand.u32 %v7372, 4294901760
  %v7374 = vsub.f32 %v7372, %v7373
  %v7375 = vand.u32 %v7374, 4294901760
  %7376 = vmatpush.msra.mxu0 %v7375
  %v7377 = vand.u32 %v358, 4294901760
  %v7378 = vsub.f32 %v358, %v7377
  %v7379 = vand.u32 %v7378, 4294901760
  %v7380 = vsub.f32 %v7378, %v7379
  %v7381 = vand.u32 %v7380, 4294901760
  %7382 = vmatpush.msra.mxu0 %v7381
  %v7383 = vand.u32 %v34, 4294901760
  %7384 = vmatmul.f32.gmra.mxu0 %v7383
  %v7385 = vpop.f32.mrf.mxu0
  %v7386 = vadd.f32 %v7285, %v7385
  %7387 = vdwg.mxu0
  %v7388 = vand.u32 %v373, 4294901760
  %v7389 = vsub.f32 %v373, %v7388
  %7390 = vmatpush.msra.mxu0 %v7389
  %v7391 = vand.u32 %v372, 4294901760
  %v7392 = vsub.f32 %v372, %v7391
  %7393 = vmatpush.msra.mxu0 %v7392
  %v7394 = vand.u32 %v371, 4294901760
  %v7395 = vsub.f32 %v371, %v7394
  %7396 = vmatpush.msra.mxu0 %v7395
  %v7397 = vand.u32 %v370, 4294901760
  %v7398 = vsub.f32 %v370, %v7397
  %7399 = vmatpush.msra.mxu0 %v7398
  %v7400 = vand.u32 %v369, 4294901760
  %v7401 = vsub.f32 %v369, %v7400
  %7402 = vmatpush.msra.mxu0 %v7401
  %v7403 = vand.u32 %v368, 4294901760
  %v7404 = vsub.f32 %v368, %v7403
  %7405 = vmatpush.msra.mxu0 %v7404
  %v7406 = vand.u32 %v367, 4294901760
  %v7407 = vsub.f32 %v367, %v7406
  %7408 = vmatpush.msra.mxu0 %v7407
  %v7409 = vand.u32 %v366, 4294901760
  %v7410 = vsub.f32 %v366, %v7409
  %7411 = vmatpush.msra.mxu0 %v7410
  %v7412 = vand.u32 %v365, 4294901760
  %v7413 = vsub.f32 %v365, %v7412
  %7414 = vmatpush.msra.mxu0 %v7413
  %v7415 = vand.u32 %v364, 4294901760
  %v7416 = vsub.f32 %v364, %v7415
  %7417 = vmatpush.msra.mxu0 %v7416
  %v7418 = vand.u32 %v363, 4294901760
  %v7419 = vsub.f32 %v363, %v7418
  %7420 = vmatpush.msra.mxu0 %v7419
  %v7421 = vand.u32 %v362, 4294901760
  %v7422 = vsub.f32 %v362, %v7421
  %7423 = vmatpush.msra.mxu0 %v7422
  %v7424 = vand.u32 %v361, 4294901760
  %v7425 = vsub.f32 %v361, %v7424
  %7426 = vmatpush.msra.mxu0 %v7425
  %v7427 = vand.u32 %v360, 4294901760
  %v7428 = vsub.f32 %v360, %v7427
  %7429 = vmatpush.msra.mxu0 %v7428
  %v7430 = vand.u32 %v359, 4294901760
  %v7431 = vsub.f32 %v359, %v7430
  %7432 = vmatpush.msra.mxu0 %v7431
  %v7433 = vand.u32 %v358, 4294901760
  %v7434 = vsub.f32 %v358, %v7433
  %7435 = vmatpush.msra.mxu0 %v7434
  %v7436 = vand.u32 %v34, 4294901760
  %v7437 = vsub.f32 %v34, %v7436
  %7438 = vmatmul.f32.gmra.mxu0 %v7437
  %v7439 = vpop.f32.mrf.mxu0
  %v7440 = vadd.f32 %v7386, %v7439
  %7441 = vdwg.mxu0
  %v7442 = vand.u32 %v373, 4294901760
  %7443 = vmatpush.msra.mxu0 %v7442
  %v7444 = vand.u32 %v372, 4294901760
  %7445 = vmatpush.msra.mxu0 %v7444
  %v7446 = vand.u32 %v371, 4294901760
  %7447 = vmatpush.msra.mxu0 %v7446
  %v7448 = vand.u32 %v370, 4294901760
  %7449 = vmatpush.msra.mxu0 %v7448
  %v7450 = vand.u32 %v369, 4294901760
  %7451 = vmatpush.msra.mxu0 %v7450
  %v7452 = vand.u32 %v368, 4294901760
  %7453 = vmatpush.msra.mxu0 %v7452
  %v7454 = vand.u32 %v367, 4294901760
  %7455 = vmatpush.msra.mxu0 %v7454
  %v7456 = vand.u32 %v366, 4294901760
  %7457 = vmatpush.msra.mxu0 %v7456
  %v7458 = vand.u32 %v365, 4294901760
  %7459 = vmatpush.msra.mxu0 %v7458
  %v7460 = vand.u32 %v364, 4294901760
  %7461 = vmatpush.msra.mxu0 %v7460
  %v7462 = vand.u32 %v363, 4294901760
  %7463 = vmatpush.msra.mxu0 %v7462
  %v7464 = vand.u32 %v362, 4294901760
  %7465 = vmatpush.msra.mxu0 %v7464
  %v7466 = vand.u32 %v361, 4294901760
  %7467 = vmatpush.msra.mxu0 %v7466
  %v7468 = vand.u32 %v360, 4294901760
  %7469 = vmatpush.msra.mxu0 %v7468
  %v7470 = vand.u32 %v359, 4294901760
  %7471 = vmatpush.msra.mxu0 %v7470
  %v7472 = vand.u32 %v358, 4294901760
  %7473 = vmatpush.msra.mxu0 %v7472
  %v7474 = vand.u32 %v34, 4294901760
  %v7475 = vsub.f32 %v34, %v7474
  %v7476 = vand.u32 %v7475, 4294901760
  %7477 = vmatmul.f32.gmra.mxu0 %v7476
  %v7478 = vpop.f32.mrf.mxu0
  %v7479 = vadd.f32 %v7440, %v7478
  %7480 = vdwg.mxu0
  %v7481 = vand.u32 %v373, 4294901760
  %v7482 = vsub.f32 %v373, %v7481
  %v7483 = vand.u32 %v7482, 4294901760
  %7484 = vmatpush.msra.mxu0 %v7483
  %v7485 = vand.u32 %v372, 4294901760
  %v7486 = vsub.f32 %v372, %v7485
  %v7487 = vand.u32 %v7486, 4294901760
  %7488 = vmatpush.msra.mxu0 %v7487
  %v7489 = vand.u32 %v371, 4294901760
  %v7490 = vsub.f32 %v371, %v7489
  %v7491 = vand.u32 %v7490, 4294901760
  %7492 = vmatpush.msra.mxu0 %v7491
  %v7493 = vand.u32 %v370, 4294901760
  %v7494 = vsub.f32 %v370, %v7493
  %v7495 = vand.u32 %v7494, 4294901760
  %7496 = vmatpush.msra.mxu0 %v7495
  %v7497 = vand.u32 %v369, 4294901760
  %v7498 = vsub.f32 %v369, %v7497
  %v7499 = vand.u32 %v7498, 4294901760
  %7500 = vmatpush.msra.mxu0 %v7499
  %v7501 = vand.u32 %v368, 4294901760
  %v7502 = vsub.f32 %v368, %v7501
  %v7503 = vand.u32 %v7502, 4294901760
  %7504 = vmatpush.msra.mxu0 %v7503
  %v7505 = vand.u32 %v367, 4294901760
  %v7506 = vsub.f32 %v367, %v7505
  %v7507 = vand.u32 %v7506, 4294901760
  %7508 = vmatpush.msra.mxu0 %v7507
  %v7509 = vand.u32 %v366, 4294901760
  %v7510 = vsub.f32 %v366, %v7509
  %v7511 = vand.u32 %v7510, 4294901760
  %7512 = vmatpush.msra.mxu0 %v7511
  %v7513 = vand.u32 %v365, 4294901760
  %v7514 = vsub.f32 %v365, %v7513
  %v7515 = vand.u32 %v7514, 4294901760
  %7516 = vmatpush.msra.mxu0 %v7515
  %v7517 = vand.u32 %v364, 4294901760
  %v7518 = vsub.f32 %v364, %v7517
  %v7519 = vand.u32 %v7518, 4294901760
  %7520 = vmatpush.msra.mxu0 %v7519
  %v7521 = vand.u32 %v363, 4294901760
  %v7522 = vsub.f32 %v363, %v7521
  %v7523 = vand.u32 %v7522, 4294901760
  %7524 = vmatpush.msra.mxu0 %v7523
  %v7525 = vand.u32 %v362, 4294901760
  %v7526 = vsub.f32 %v362, %v7525
  %v7527 = vand.u32 %v7526, 4294901760
  %7528 = vmatpush.msra.mxu0 %v7527
  %v7529 = vand.u32 %v361, 4294901760
  %v7530 = vsub.f32 %v361, %v7529
  %v7531 = vand.u32 %v7530, 4294901760
  %7532 = vmatpush.msra.mxu0 %v7531
  %v7533 = vand.u32 %v360, 4294901760
  %v7534 = vsub.f32 %v360, %v7533
  %v7535 = vand.u32 %v7534, 4294901760
  %7536 = vmatpush.msra.mxu0 %v7535
  %v7537 = vand.u32 %v359, 4294901760
  %v7538 = vsub.f32 %v359, %v7537
  %v7539 = vand.u32 %v7538, 4294901760
  %7540 = vmatpush.msra.mxu0 %v7539
  %v7541 = vand.u32 %v358, 4294901760
  %v7542 = vsub.f32 %v358, %v7541
  %v7543 = vand.u32 %v7542, 4294901760
  %7544 = vmatpush.msra.mxu0 %v7543
  %v7545 = vand.u32 %v34, 4294901760
  %7546 = vmatmul.f32.gmra.mxu0 %v7545
  %v7547 = vpop.f32.mrf.mxu0
  %v7548 = vadd.f32 %v7479, %v7547
  %7549 = vdwg.mxu0
  %v7550 = vand.u32 %v373, 4294901760
  %7551 = vmatpush.msra.mxu0 %v7550
  %v7552 = vand.u32 %v372, 4294901760
  %7553 = vmatpush.msra.mxu0 %v7552
  %v7554 = vand.u32 %v371, 4294901760
  %7555 = vmatpush.msra.mxu0 %v7554
  %v7556 = vand.u32 %v370, 4294901760
  %7557 = vmatpush.msra.mxu0 %v7556
  %v7558 = vand.u32 %v369, 4294901760
  %7559 = vmatpush.msra.mxu0 %v7558
  %v7560 = vand.u32 %v368, 4294901760
  %7561 = vmatpush.msra.mxu0 %v7560
  %v7562 = vand.u32 %v367, 4294901760
  %7563 = vmatpush.msra.mxu0 %v7562
  %v7564 = vand.u32 %v366, 4294901760
  %7565 = vmatpush.msra.mxu0 %v7564
  %v7566 = vand.u32 %v365, 4294901760
  %7567 = vmatpush.msra.mxu0 %v7566
  %v7568 = vand.u32 %v364, 4294901760
  %7569 = vmatpush.msra.mxu0 %v7568
  %v7570 = vand.u32 %v363, 4294901760
  %7571 = vmatpush.msra.mxu0 %v7570
  %v7572 = vand.u32 %v362, 4294901760
  %7573 = vmatpush.msra.mxu0 %v7572
  %v7574 = vand.u32 %v361, 4294901760
  %7575 = vmatpush.msra.mxu0 %v7574
  %v7576 = vand.u32 %v360, 4294901760
  %7577 = vmatpush.msra.mxu0 %v7576
  %v7578 = vand.u32 %v359, 4294901760
  %7579 = vmatpush.msra.mxu0 %v7578
  %v7580 = vand.u32 %v358, 4294901760
  %7581 = vmatpush.msra.mxu0 %v7580
  %v7582 = vand.u32 %v34, 4294901760
  %7583 = vmatmul.f32.gmra.mxu0 %v7582
  %v7584 = vpop.f32.mrf.mxu0
  %v7585 = vadd.f32 %v7548, %v7584
  %7586 = vdwg.mxu0
  %v7587 = vand.u32 %v389, 4294901760
  %7588 = vmatpush.msra.mxu0 %v7587
  %v7589 = vand.u32 %v388, 4294901760
  %7590 = vmatpush.msra.mxu0 %v7589
  %v7591 = vand.u32 %v387, 4294901760
  %7592 = vmatpush.msra.mxu0 %v7591
  %v7593 = vand.u32 %v386, 4294901760
  %7594 = vmatpush.msra.mxu0 %v7593
  %v7595 = vand.u32 %v385, 4294901760
  %7596 = vmatpush.msra.mxu0 %v7595
  %v7597 = vand.u32 %v384, 4294901760
  %7598 = vmatpush.msra.mxu0 %v7597
  %v7599 = vand.u32 %v383, 4294901760
  %7600 = vmatpush.msra.mxu0 %v7599
  %v7601 = vand.u32 %v382, 4294901760
  %7602 = vmatpush.msra.mxu0 %v7601
  %v7603 = vand.u32 %v381, 4294901760
  %7604 = vmatpush.msra.mxu0 %v7603
  %v7605 = vand.u32 %v380, 4294901760
  %7606 = vmatpush.msra.mxu0 %v7605
  %v7607 = vand.u32 %v379, 4294901760
  %7608 = vmatpush.msra.mxu0 %v7607
  %v7609 = vand.u32 %v378, 4294901760
  %7610 = vmatpush.msra.mxu0 %v7609
  %v7611 = vand.u32 %v377, 4294901760
  %7612 = vmatpush.msra.mxu0 %v7611
  %v7613 = vand.u32 %v376, 4294901760
  %7614 = vmatpush.msra.mxu0 %v7613
  %v7615 = vand.u32 %v375, 4294901760
  %7616 = vmatpush.msra.mxu0 %v7615
  %v7617 = vand.u32 %v374, 4294901760
  %7618 = vmatpush.msra.mxu0 %v7617
  %v7619 = vand.u32 %v35, 4294901760
  %v7620 = vsub.f32 %v35, %v7619
  %v7621 = vand.u32 %v7620, 4294901760
  %v7622 = vsub.f32 %v7620, %v7621
  %v7623 = vand.u32 %v7622, 4294901760
  %7624 = vmatmul.f32.gmra.mxu0 %v7623
  %v7625 = vpop.f32.mrf.mxu0
  %v7626 = vadd.f32 %v7585, %v7625
  %7627 = vdwg.mxu0
  %v7628 = vand.u32 %v389, 4294901760
  %v7629 = vsub.f32 %v389, %v7628
  %v7630 = vand.u32 %v7629, 4294901760
  %v7631 = vsub.f32 %v7629, %v7630
  %v7632 = vand.u32 %v7631, 4294901760
  %7633 = vmatpush.msra.mxu0 %v7632
  %v7634 = vand.u32 %v388, 4294901760
  %v7635 = vsub.f32 %v388, %v7634
  %v7636 = vand.u32 %v7635, 4294901760
  %v7637 = vsub.f32 %v7635, %v7636
  %v7638 = vand.u32 %v7637, 4294901760
  %7639 = vmatpush.msra.mxu0 %v7638
  %v7640 = vand.u32 %v387, 4294901760
  %v7641 = vsub.f32 %v387, %v7640
  %v7642 = vand.u32 %v7641, 4294901760
  %v7643 = vsub.f32 %v7641, %v7642
  %v7644 = vand.u32 %v7643, 4294901760
  %7645 = vmatpush.msra.mxu0 %v7644
  %v7646 = vand.u32 %v386, 4294901760
  %v7647 = vsub.f32 %v386, %v7646
  %v7648 = vand.u32 %v7647, 4294901760
  %v7649 = vsub.f32 %v7647, %v7648
  %v7650 = vand.u32 %v7649, 4294901760
  %7651 = vmatpush.msra.mxu0 %v7650
  %v7652 = vand.u32 %v385, 4294901760
  %v7653 = vsub.f32 %v385, %v7652
  %v7654 = vand.u32 %v7653, 4294901760
  %v7655 = vsub.f32 %v7653, %v7654
  %v7656 = vand.u32 %v7655, 4294901760
  %7657 = vmatpush.msra.mxu0 %v7656
  %v7658 = vand.u32 %v384, 4294901760
  %v7659 = vsub.f32 %v384, %v7658
  %v7660 = vand.u32 %v7659, 4294901760
  %v7661 = vsub.f32 %v7659, %v7660
  %v7662 = vand.u32 %v7661, 4294901760
  %7663 = vmatpush.msra.mxu0 %v7662
  %v7664 = vand.u32 %v383, 4294901760
  %v7665 = vsub.f32 %v383, %v7664
  %v7666 = vand.u32 %v7665, 4294901760
  %v7667 = vsub.f32 %v7665, %v7666
  %v7668 = vand.u32 %v7667, 4294901760
  %7669 = vmatpush.msra.mxu0 %v7668
  %v7670 = vand.u32 %v382, 4294901760
  %v7671 = vsub.f32 %v382, %v7670
  %v7672 = vand.u32 %v7671, 4294901760
  %v7673 = vsub.f32 %v7671, %v7672
  %v7674 = vand.u32 %v7673, 4294901760
  %7675 = vmatpush.msra.mxu0 %v7674
  %v7676 = vand.u32 %v381, 4294901760
  %v7677 = vsub.f32 %v381, %v7676
  %v7678 = vand.u32 %v7677, 4294901760
  %v7679 = vsub.f32 %v7677, %v7678
  %v7680 = vand.u32 %v7679, 4294901760
  %7681 = vmatpush.msra.mxu0 %v7680
  %v7682 = vand.u32 %v380, 4294901760
  %v7683 = vsub.f32 %v380, %v7682
  %v7684 = vand.u32 %v7683, 4294901760
  %v7685 = vsub.f32 %v7683, %v7684
  %v7686 = vand.u32 %v7685, 4294901760
  %7687 = vmatpush.msra.mxu0 %v7686
  %v7688 = vand.u32 %v379, 4294901760
  %v7689 = vsub.f32 %v379, %v7688
  %v7690 = vand.u32 %v7689, 4294901760
  %v7691 = vsub.f32 %v7689, %v7690
  %v7692 = vand.u32 %v7691, 4294901760
  %7693 = vmatpush.msra.mxu0 %v7692
  %v7694 = vand.u32 %v378, 4294901760
  %v7695 = vsub.f32 %v378, %v7694
  %v7696 = vand.u32 %v7695, 4294901760
  %v7697 = vsub.f32 %v7695, %v7696
  %v7698 = vand.u32 %v7697, 4294901760
  %7699 = vmatpush.msra.mxu0 %v7698
  %v7700 = vand.u32 %v377, 4294901760
  %v7701 = vsub.f32 %v377, %v7700
  %v7702 = vand.u32 %v7701, 4294901760
  %v7703 = vsub.f32 %v7701, %v7702
  %v7704 = vand.u32 %v7703, 4294901760
  %7705 = vmatpush.msra.mxu0 %v7704
  %v7706 = vand.u32 %v376, 4294901760
  %v7707 = vsub.f32 %v376, %v7706
  %v7708 = vand.u32 %v7707, 4294901760
  %v7709 = vsub.f32 %v7707, %v7708
  %v7710 = vand.u32 %v7709, 4294901760
  %7711 = vmatpush.msra.mxu0 %v7710
  %v7712 = vand.u32 %v375, 4294901760
  %v7713 = vsub.f32 %v375, %v7712
  %v7714 = vand.u32 %v7713, 4294901760
  %v7715 = vsub.f32 %v7713, %v7714
  %v7716 = vand.u32 %v7715, 4294901760
  %7717 = vmatpush.msra.mxu0 %v7716
  %v7718 = vand.u32 %v374, 4294901760
  %v7719 = vsub.f32 %v374, %v7718
  %v7720 = vand.u32 %v7719, 4294901760
  %v7721 = vsub.f32 %v7719, %v7720
  %v7722 = vand.u32 %v7721, 4294901760
  %7723 = vmatpush.msra.mxu0 %v7722
  %v7724 = vand.u32 %v35, 4294901760
  %7725 = vmatmul.f32.gmra.mxu0 %v7724
  %v7726 = vpop.f32.mrf.mxu0
  %v7727 = vadd.f32 %v7626, %v7726
  %7728 = vdwg.mxu0
  %v7729 = vand.u32 %v389, 4294901760
  %v7730 = vsub.f32 %v389, %v7729
  %7731 = vmatpush.msra.mxu0 %v7730
  %v7732 = vand.u32 %v388, 4294901760
  %v7733 = vsub.f32 %v388, %v7732
  %7734 = vmatpush.msra.mxu0 %v7733
  %v7735 = vand.u32 %v387, 4294901760
  %v7736 = vsub.f32 %v387, %v7735
  %7737 = vmatpush.msra.mxu0 %v7736
  %v7738 = vand.u32 %v386, 4294901760
  %v7739 = vsub.f32 %v386, %v7738
  %7740 = vmatpush.msra.mxu0 %v7739
  %v7741 = vand.u32 %v385, 4294901760
  %v7742 = vsub.f32 %v385, %v7741
  %7743 = vmatpush.msra.mxu0 %v7742
  %v7744 = vand.u32 %v384, 4294901760
  %v7745 = vsub.f32 %v384, %v7744
  %7746 = vmatpush.msra.mxu0 %v7745
  %v7747 = vand.u32 %v383, 4294901760
  %v7748 = vsub.f32 %v383, %v7747
  %7749 = vmatpush.msra.mxu0 %v7748
  %v7750 = vand.u32 %v382, 4294901760
  %v7751 = vsub.f32 %v382, %v7750
  %7752 = vmatpush.msra.mxu0 %v7751
  %v7753 = vand.u32 %v381, 4294901760
  %v7754 = vsub.f32 %v381, %v7753
  %7755 = vmatpush.msra.mxu0 %v7754
  %v7756 = vand.u32 %v380, 4294901760
  %v7757 = vsub.f32 %v380, %v7756
  %7758 = vmatpush.msra.mxu0 %v7757
  %v7759 = vand.u32 %v379, 4294901760
  %v7760 = vsub.f32 %v379, %v7759
  %7761 = vmatpush.msra.mxu0 %v7760
  %v7762 = vand.u32 %v378, 4294901760
  %v7763 = vsub.f32 %v378, %v7762
  %7764 = vmatpush.msra.mxu0 %v7763
  %v7765 = vand.u32 %v377, 4294901760
  %v7766 = vsub.f32 %v377, %v7765
  %7767 = vmatpush.msra.mxu0 %v7766
  %v7768 = vand.u32 %v376, 4294901760
  %v7769 = vsub.f32 %v376, %v7768
  %7770 = vmatpush.msra.mxu0 %v7769
  %v7771 = vand.u32 %v375, 4294901760
  %v7772 = vsub.f32 %v375, %v7771
  %7773 = vmatpush.msra.mxu0 %v7772
  %v7774 = vand.u32 %v374, 4294901760
  %v7775 = vsub.f32 %v374, %v7774
  %7776 = vmatpush.msra.mxu0 %v7775
  %v7777 = vand.u32 %v35, 4294901760
  %v7778 = vsub.f32 %v35, %v7777
  %7779 = vmatmul.f32.gmra.mxu0 %v7778
  %v7780 = vpop.f32.mrf.mxu0
  %v7781 = vadd.f32 %v7727, %v7780
  %7782 = vdwg.mxu0
  %v7783 = vand.u32 %v389, 4294901760
  %7784 = vmatpush.msra.mxu0 %v7783
  %v7785 = vand.u32 %v388, 4294901760
  %7786 = vmatpush.msra.mxu0 %v7785
  %v7787 = vand.u32 %v387, 4294901760
  %7788 = vmatpush.msra.mxu0 %v7787
  %v7789 = vand.u32 %v386, 4294901760
  %7790 = vmatpush.msra.mxu0 %v7789
  %v7791 = vand.u32 %v385, 4294901760
  %7792 = vmatpush.msra.mxu0 %v7791
  %v7793 = vand.u32 %v384, 4294901760
  %7794 = vmatpush.msra.mxu0 %v7793
  %v7795 = vand.u32 %v383, 4294901760
  %7796 = vmatpush.msra.mxu0 %v7795
  %v7797 = vand.u32 %v382, 4294901760
  %7798 = vmatpush.msra.mxu0 %v7797
  %v7799 = vand.u32 %v381, 4294901760
  %7800 = vmatpush.msra.mxu0 %v7799
  %v7801 = vand.u32 %v380, 4294901760
  %7802 = vmatpush.msra.mxu0 %v7801
  %v7803 = vand.u32 %v379, 4294901760
  %7804 = vmatpush.msra.mxu0 %v7803
  %v7805 = vand.u32 %v378, 4294901760
  %7806 = vmatpush.msra.mxu0 %v7805
  %v7807 = vand.u32 %v377, 4294901760
  %7808 = vmatpush.msra.mxu0 %v7807
  %v7809 = vand.u32 %v376, 4294901760
  %7810 = vmatpush.msra.mxu0 %v7809
  %v7811 = vand.u32 %v375, 4294901760
  %7812 = vmatpush.msra.mxu0 %v7811
  %v7813 = vand.u32 %v374, 4294901760
  %7814 = vmatpush.msra.mxu0 %v7813
  %v7815 = vand.u32 %v35, 4294901760
  %v7816 = vsub.f32 %v35, %v7815
  %v7817 = vand.u32 %v7816, 4294901760
  %7818 = vmatmul.f32.gmra.mxu0 %v7817
  %v7819 = vpop.f32.mrf.mxu0
  %v7820 = vadd.f32 %v7781, %v7819
  %7821 = vdwg.mxu0
  %v7822 = vand.u32 %v389, 4294901760
  %v7823 = vsub.f32 %v389, %v7822
  %v7824 = vand.u32 %v7823, 4294901760
  %7825 = vmatpush.msra.mxu0 %v7824
  %v7826 = vand.u32 %v388, 4294901760
  %v7827 = vsub.f32 %v388, %v7826
  %v7828 = vand.u32 %v7827, 4294901760
  %7829 = vmatpush.msra.mxu0 %v7828
  %v7830 = vand.u32 %v387, 4294901760
  %v7831 = vsub.f32 %v387, %v7830
  %v7832 = vand.u32 %v7831, 4294901760
  %7833 = vmatpush.msra.mxu0 %v7832
  %v7834 = vand.u32 %v386, 4294901760
  %v7835 = vsub.f32 %v386, %v7834
  %v7836 = vand.u32 %v7835, 4294901760
  %7837 = vmatpush.msra.mxu0 %v7836
  %v7838 = vand.u32 %v385, 4294901760
  %v7839 = vsub.f32 %v385, %v7838
  %v7840 = vand.u32 %v7839, 4294901760
  %7841 = vmatpush.msra.mxu0 %v7840
  %v7842 = vand.u32 %v384, 4294901760
  %v7843 = vsub.f32 %v384, %v7842
  %v7844 = vand.u32 %v7843, 4294901760
  %7845 = vmatpush.msra.mxu0 %v7844
  %v7846 = vand.u32 %v383, 4294901760
  %v7847 = vsub.f32 %v383, %v7846
  %v7848 = vand.u32 %v7847, 4294901760
  %7849 = vmatpush.msra.mxu0 %v7848
  %v7850 = vand.u32 %v382, 4294901760
  %v7851 = vsub.f32 %v382, %v7850
  %v7852 = vand.u32 %v7851, 4294901760
  %7853 = vmatpush.msra.mxu0 %v7852
  %v7854 = vand.u32 %v381, 4294901760
  %v7855 = vsub.f32 %v381, %v7854
  %v7856 = vand.u32 %v7855, 4294901760
  %7857 = vmatpush.msra.mxu0 %v7856
  %v7858 = vand.u32 %v380, 4294901760
  %v7859 = vsub.f32 %v380, %v7858
  %v7860 = vand.u32 %v7859, 4294901760
  %7861 = vmatpush.msra.mxu0 %v7860
  %v7862 = vand.u32 %v379, 4294901760
  %v7863 = vsub.f32 %v379, %v7862
  %v7864 = vand.u32 %v7863, 4294901760
  %7865 = vmatpush.msra.mxu0 %v7864
  %v7866 = vand.u32 %v378, 4294901760
  %v7867 = vsub.f32 %v378, %v7866
  %v7868 = vand.u32 %v7867, 4294901760
  %7869 = vmatpush.msra.mxu0 %v7868
  %v7870 = vand.u32 %v377, 4294901760
  %v7871 = vsub.f32 %v377, %v7870
  %v7872 = vand.u32 %v7871, 4294901760
  %7873 = vmatpush.msra.mxu0 %v7872
  %v7874 = vand.u32 %v376, 4294901760
  %v7875 = vsub.f32 %v376, %v7874
  %v7876 = vand.u32 %v7875, 4294901760
  %7877 = vmatpush.msra.mxu0 %v7876
  %v7878 = vand.u32 %v375, 4294901760
  %v7879 = vsub.f32 %v375, %v7878
  %v7880 = vand.u32 %v7879, 4294901760
  %7881 = vmatpush.msra.mxu0 %v7880
  %v7882 = vand.u32 %v374, 4294901760
  %v7883 = vsub.f32 %v374, %v7882
  %v7884 = vand.u32 %v7883, 4294901760
  %7885 = vmatpush.msra.mxu0 %v7884
  %v7886 = vand.u32 %v35, 4294901760
  %7887 = vmatmul.f32.gmra.mxu0 %v7886
  %v7888 = vpop.f32.mrf.mxu0
  %v7889 = vadd.f32 %v7820, %v7888
  %7890 = vdwg.mxu0
  %v7891 = vand.u32 %v389, 4294901760
  %7892 = vmatpush.msra.mxu0 %v7891
  %v7893 = vand.u32 %v388, 4294901760
  %7894 = vmatpush.msra.mxu0 %v7893
  %v7895 = vand.u32 %v387, 4294901760
  %7896 = vmatpush.msra.mxu0 %v7895
  %v7897 = vand.u32 %v386, 4294901760
  %7898 = vmatpush.msra.mxu0 %v7897
  %v7899 = vand.u32 %v385, 4294901760
  %7900 = vmatpush.msra.mxu0 %v7899
  %v7901 = vand.u32 %v384, 4294901760
  %7902 = vmatpush.msra.mxu0 %v7901
  %v7903 = vand.u32 %v383, 4294901760
  %7904 = vmatpush.msra.mxu0 %v7903
  %v7905 = vand.u32 %v382, 4294901760
  %7906 = vmatpush.msra.mxu0 %v7905
  %v7907 = vand.u32 %v381, 4294901760
  %7908 = vmatpush.msra.mxu0 %v7907
  %v7909 = vand.u32 %v380, 4294901760
  %7910 = vmatpush.msra.mxu0 %v7909
  %v7911 = vand.u32 %v379, 4294901760
  %7912 = vmatpush.msra.mxu0 %v7911
  %v7913 = vand.u32 %v378, 4294901760
  %7914 = vmatpush.msra.mxu0 %v7913
  %v7915 = vand.u32 %v377, 4294901760
  %7916 = vmatpush.msra.mxu0 %v7915
  %v7917 = vand.u32 %v376, 4294901760
  %7918 = vmatpush.msra.mxu0 %v7917
  %v7919 = vand.u32 %v375, 4294901760
  %7920 = vmatpush.msra.mxu0 %v7919
  %v7921 = vand.u32 %v374, 4294901760
  %7922 = vmatpush.msra.mxu0 %v7921
  %v7923 = vand.u32 %v35, 4294901760
  %7924 = vmatmul.f32.gmra.mxu0 %v7923
  %v7925 = vpop.f32.mrf.mxu0
  %v7926 = vadd.f32 %v7889, %v7925
  %7927 = vdwg.mxu0
  %v7928 = vand.u32 %v405, 4294901760
  %7929 = vmatpush.msra.mxu0 %v7928
  %v7930 = vand.u32 %v404, 4294901760
  %7931 = vmatpush.msra.mxu0 %v7930
  %v7932 = vand.u32 %v403, 4294901760
  %7933 = vmatpush.msra.mxu0 %v7932
  %v7934 = vand.u32 %v402, 4294901760
  %7935 = vmatpush.msra.mxu0 %v7934
  %v7936 = vand.u32 %v401, 4294901760
  %7937 = vmatpush.msra.mxu0 %v7936
  %v7938 = vand.u32 %v400, 4294901760
  %7939 = vmatpush.msra.mxu0 %v7938
  %v7940 = vand.u32 %v399, 4294901760
  %7941 = vmatpush.msra.mxu0 %v7940
  %v7942 = vand.u32 %v398, 4294901760
  %7943 = vmatpush.msra.mxu0 %v7942
  %v7944 = vand.u32 %v397, 4294901760
  %7945 = vmatpush.msra.mxu0 %v7944
  %v7946 = vand.u32 %v396, 4294901760
  %7947 = vmatpush.msra.mxu0 %v7946
  %v7948 = vand.u32 %v395, 4294901760
  %7949 = vmatpush.msra.mxu0 %v7948
  %v7950 = vand.u32 %v394, 4294901760
  %7951 = vmatpush.msra.mxu0 %v7950
  %v7952 = vand.u32 %v393, 4294901760
  %7953 = vmatpush.msra.mxu0 %v7952
  %v7954 = vand.u32 %v392, 4294901760
  %7955 = vmatpush.msra.mxu0 %v7954
  %v7956 = vand.u32 %v391, 4294901760
  %7957 = vmatpush.msra.mxu0 %v7956
  %v7958 = vand.u32 %v390, 4294901760
  %7959 = vmatpush.msra.mxu0 %v7958
  %v7960 = vand.u32 %v36, 4294901760
  %v7961 = vsub.f32 %v36, %v7960
  %v7962 = vand.u32 %v7961, 4294901760
  %v7963 = vsub.f32 %v7961, %v7962
  %v7964 = vand.u32 %v7963, 4294901760
  %7965 = vmatmul.f32.gmra.mxu0 %v7964
  %v7966 = vpop.f32.mrf.mxu0
  %v7967 = vadd.f32 %v7926, %v7966
  %7968 = vdwg.mxu0
  %v7969 = vand.u32 %v405, 4294901760
  %v7970 = vsub.f32 %v405, %v7969
  %v7971 = vand.u32 %v7970, 4294901760
  %v7972 = vsub.f32 %v7970, %v7971
  %v7973 = vand.u32 %v7972, 4294901760
  %7974 = vmatpush.msra.mxu0 %v7973
  %v7975 = vand.u32 %v404, 4294901760
  %v7976 = vsub.f32 %v404, %v7975
  %v7977 = vand.u32 %v7976, 4294901760
  %v7978 = vsub.f32 %v7976, %v7977
  %v7979 = vand.u32 %v7978, 4294901760
  %7980 = vmatpush.msra.mxu0 %v7979
  %v7981 = vand.u32 %v403, 4294901760
  %v7982 = vsub.f32 %v403, %v7981
  %v7983 = vand.u32 %v7982, 4294901760
  %v7984 = vsub.f32 %v7982, %v7983
  %v7985 = vand.u32 %v7984, 4294901760
  %7986 = vmatpush.msra.mxu0 %v7985
  %v7987 = vand.u32 %v402, 4294901760
  %v7988 = vsub.f32 %v402, %v7987
  %v7989 = vand.u32 %v7988, 4294901760
  %v7990 = vsub.f32 %v7988, %v7989
  %v7991 = vand.u32 %v7990, 4294901760
  %7992 = vmatpush.msra.mxu0 %v7991
  %v7993 = vand.u32 %v401, 4294901760
  %v7994 = vsub.f32 %v401, %v7993
  %v7995 = vand.u32 %v7994, 4294901760
  %v7996 = vsub.f32 %v7994, %v7995
  %v7997 = vand.u32 %v7996, 4294901760
  %7998 = vmatpush.msra.mxu0 %v7997
  %v7999 = vand.u32 %v400, 4294901760
  %v8000 = vsub.f32 %v400, %v7999
  %v8001 = vand.u32 %v8000, 4294901760
  %v8002 = vsub.f32 %v8000, %v8001
  %v8003 = vand.u32 %v8002, 4294901760
  %8004 = vmatpush.msra.mxu0 %v8003
  %v8005 = vand.u32 %v399, 4294901760
  %v8006 = vsub.f32 %v399, %v8005
  %v8007 = vand.u32 %v8006, 4294901760
  %v8008 = vsub.f32 %v8006, %v8007
  %v8009 = vand.u32 %v8008, 4294901760
  %8010 = vmatpush.msra.mxu0 %v8009
  %v8011 = vand.u32 %v398, 4294901760
  %v8012 = vsub.f32 %v398, %v8011
  %v8013 = vand.u32 %v8012, 4294901760
  %v8014 = vsub.f32 %v8012, %v8013
  %v8015 = vand.u32 %v8014, 4294901760
  %8016 = vmatpush.msra.mxu0 %v8015
  %v8017 = vand.u32 %v397, 4294901760
  %v8018 = vsub.f32 %v397, %v8017
  %v8019 = vand.u32 %v8018, 4294901760
  %v8020 = vsub.f32 %v8018, %v8019
  %v8021 = vand.u32 %v8020, 4294901760
  %8022 = vmatpush.msra.mxu0 %v8021
  %v8023 = vand.u32 %v396, 4294901760
  %v8024 = vsub.f32 %v396, %v8023
  %v8025 = vand.u32 %v8024, 4294901760
  %v8026 = vsub.f32 %v8024, %v8025
  %v8027 = vand.u32 %v8026, 4294901760
  %8028 = vmatpush.msra.mxu0 %v8027
  %v8029 = vand.u32 %v395, 4294901760
  %v8030 = vsub.f32 %v395, %v8029
  %v8031 = vand.u32 %v8030, 4294901760
  %v8032 = vsub.f32 %v8030, %v8031
  %v8033 = vand.u32 %v8032, 4294901760
  %8034 = vmatpush.msra.mxu0 %v8033
  %v8035 = vand.u32 %v394, 4294901760
  %v8036 = vsub.f32 %v394, %v8035
  %v8037 = vand.u32 %v8036, 4294901760
  %v8038 = vsub.f32 %v8036, %v8037
  %v8039 = vand.u32 %v8038, 4294901760
  %8040 = vmatpush.msra.mxu0 %v8039
  %v8041 = vand.u32 %v393, 4294901760
  %v8042 = vsub.f32 %v393, %v8041
  %v8043 = vand.u32 %v8042, 4294901760
  %v8044 = vsub.f32 %v8042, %v8043
  %v8045 = vand.u32 %v8044, 4294901760
  %8046 = vmatpush.msra.mxu0 %v8045
  %v8047 = vand.u32 %v392, 4294901760
  %v8048 = vsub.f32 %v392, %v8047
  %v8049 = vand.u32 %v8048, 4294901760
  %v8050 = vsub.f32 %v8048, %v8049
  %v8051 = vand.u32 %v8050, 4294901760
  %8052 = vmatpush.msra.mxu0 %v8051
  %v8053 = vand.u32 %v391, 4294901760
  %v8054 = vsub.f32 %v391, %v8053
  %v8055 = vand.u32 %v8054, 4294901760
  %v8056 = vsub.f32 %v8054, %v8055
  %v8057 = vand.u32 %v8056, 4294901760
  %8058 = vmatpush.msra.mxu0 %v8057
  %v8059 = vand.u32 %v390, 4294901760
  %v8060 = vsub.f32 %v390, %v8059
  %v8061 = vand.u32 %v8060, 4294901760
  %v8062 = vsub.f32 %v8060, %v8061
  %v8063 = vand.u32 %v8062, 4294901760
  %8064 = vmatpush.msra.mxu0 %v8063
  %v8065 = vand.u32 %v36, 4294901760
  %8066 = vmatmul.f32.gmra.mxu0 %v8065
  %v8067 = vpop.f32.mrf.mxu0
  %v8068 = vadd.f32 %v7967, %v8067
  %8069 = vdwg.mxu0
  %v8070 = vand.u32 %v405, 4294901760
  %v8071 = vsub.f32 %v405, %v8070
  %8072 = vmatpush.msra.mxu0 %v8071
  %v8073 = vand.u32 %v404, 4294901760
  %v8074 = vsub.f32 %v404, %v8073
  %8075 = vmatpush.msra.mxu0 %v8074
  %v8076 = vand.u32 %v403, 4294901760
  %v8077 = vsub.f32 %v403, %v8076
  %8078 = vmatpush.msra.mxu0 %v8077
  %v8079 = vand.u32 %v402, 4294901760
  %v8080 = vsub.f32 %v402, %v8079
  %8081 = vmatpush.msra.mxu0 %v8080
  %v8082 = vand.u32 %v401, 4294901760
  %v8083 = vsub.f32 %v401, %v8082
  %8084 = vmatpush.msra.mxu0 %v8083
  %v8085 = vand.u32 %v400, 4294901760
  %v8086 = vsub.f32 %v400, %v8085
  %8087 = vmatpush.msra.mxu0 %v8086
  %v8088 = vand.u32 %v399, 4294901760
  %v8089 = vsub.f32 %v399, %v8088
  %8090 = vmatpush.msra.mxu0 %v8089
  %v8091 = vand.u32 %v398, 4294901760
  %v8092 = vsub.f32 %v398, %v8091
  %8093 = vmatpush.msra.mxu0 %v8092
  %v8094 = vand.u32 %v397, 4294901760
  %v8095 = vsub.f32 %v397, %v8094
  %8096 = vmatpush.msra.mxu0 %v8095
  %v8097 = vand.u32 %v396, 4294901760
  %v8098 = vsub.f32 %v396, %v8097
  %8099 = vmatpush.msra.mxu0 %v8098
  %v8100 = vand.u32 %v395, 4294901760
  %v8101 = vsub.f32 %v395, %v8100
  %8102 = vmatpush.msra.mxu0 %v8101
  %v8103 = vand.u32 %v394, 4294901760
  %v8104 = vsub.f32 %v394, %v8103
  %8105 = vmatpush.msra.mxu0 %v8104
  %v8106 = vand.u32 %v393, 4294901760
  %v8107 = vsub.f32 %v393, %v8106
  %8108 = vmatpush.msra.mxu0 %v8107
  %v8109 = vand.u32 %v392, 4294901760
  %v8110 = vsub.f32 %v392, %v8109
  %8111 = vmatpush.msra.mxu0 %v8110
  %v8112 = vand.u32 %v391, 4294901760
  %v8113 = vsub.f32 %v391, %v8112
  %8114 = vmatpush.msra.mxu0 %v8113
  %v8115 = vand.u32 %v390, 4294901760
  %v8116 = vsub.f32 %v390, %v8115
  %8117 = vmatpush.msra.mxu0 %v8116
  %v8118 = vand.u32 %v36, 4294901760
  %v8119 = vsub.f32 %v36, %v8118
  %8120 = vmatmul.f32.gmra.mxu0 %v8119
  %v8121 = vpop.f32.mrf.mxu0
  %v8122 = vadd.f32 %v8068, %v8121
  %8123 = vdwg.mxu0
  %v8124 = vand.u32 %v405, 4294901760
  %8125 = vmatpush.msra.mxu0 %v8124
  %v8126 = vand.u32 %v404, 4294901760
  %8127 = vmatpush.msra.mxu0 %v8126
  %v8128 = vand.u32 %v403, 4294901760
  %8129 = vmatpush.msra.mxu0 %v8128
  %v8130 = vand.u32 %v402, 4294901760
  %8131 = vmatpush.msra.mxu0 %v8130
  %v8132 = vand.u32 %v401, 4294901760
  %8133 = vmatpush.msra.mxu0 %v8132
  %v8134 = vand.u32 %v400, 4294901760
  %8135 = vmatpush.msra.mxu0 %v8134
  %v8136 = vand.u32 %v399, 4294901760
  %8137 = vmatpush.msra.mxu0 %v8136
  %v8138 = vand.u32 %v398, 4294901760
  %8139 = vmatpush.msra.mxu0 %v8138
  %v8140 = vand.u32 %v397, 4294901760
  %8141 = vmatpush.msra.mxu0 %v8140
  %v8142 = vand.u32 %v396, 4294901760
  %8143 = vmatpush.msra.mxu0 %v8142
  %v8144 = vand.u32 %v395, 4294901760
  %8145 = vmatpush.msra.mxu0 %v8144
  %v8146 = vand.u32 %v394, 4294901760
  %8147 = vmatpush.msra.mxu0 %v8146
  %v8148 = vand.u32 %v393, 4294901760
  %8149 = vmatpush.msra.mxu0 %v8148
  %v8150 = vand.u32 %v392, 4294901760
  %8151 = vmatpush.msra.mxu0 %v8150
  %v8152 = vand.u32 %v391, 4294901760
  %8153 = vmatpush.msra.mxu0 %v8152
  %v8154 = vand.u32 %v390, 4294901760
  %8155 = vmatpush.msra.mxu0 %v8154
  %v8156 = vand.u32 %v36, 4294901760
  %v8157 = vsub.f32 %v36, %v8156
  %v8158 = vand.u32 %v8157, 4294901760
  %8159 = vmatmul.f32.gmra.mxu0 %v8158
  %v8160 = vpop.f32.mrf.mxu0
  %v8161 = vadd.f32 %v8122, %v8160
  %8162 = vdwg.mxu0
  %v8163 = vand.u32 %v405, 4294901760
  %v8164 = vsub.f32 %v405, %v8163
  %v8165 = vand.u32 %v8164, 4294901760
  %8166 = vmatpush.msra.mxu0 %v8165
  %v8167 = vand.u32 %v404, 4294901760
  %v8168 = vsub.f32 %v404, %v8167
  %v8169 = vand.u32 %v8168, 4294901760
  %8170 = vmatpush.msra.mxu0 %v8169
  %v8171 = vand.u32 %v403, 4294901760
  %v8172 = vsub.f32 %v403, %v8171
  %v8173 = vand.u32 %v8172, 4294901760
  %8174 = vmatpush.msra.mxu0 %v8173
  %v8175 = vand.u32 %v402, 4294901760
  %v8176 = vsub.f32 %v402, %v8175
  %v8177 = vand.u32 %v8176, 4294901760
  %8178 = vmatpush.msra.mxu0 %v8177
  %v8179 = vand.u32 %v401, 4294901760
  %v8180 = vsub.f32 %v401, %v8179
  %v8181 = vand.u32 %v8180, 4294901760
  %8182 = vmatpush.msra.mxu0 %v8181
  %v8183 = vand.u32 %v400, 4294901760
  %v8184 = vsub.f32 %v400, %v8183
  %v8185 = vand.u32 %v8184, 4294901760
  %8186 = vmatpush.msra.mxu0 %v8185
  %v8187 = vand.u32 %v399, 4294901760
  %v8188 = vsub.f32 %v399, %v8187
  %v8189 = vand.u32 %v8188, 4294901760
  %8190 = vmatpush.msra.mxu0 %v8189
  %v8191 = vand.u32 %v398, 4294901760
  %v8192 = vsub.f32 %v398, %v8191
  %v8193 = vand.u32 %v8192, 4294901760
  %8194 = vmatpush.msra.mxu0 %v8193
  %v8195 = vand.u32 %v397, 4294901760
  %v8196 = vsub.f32 %v397, %v8195
  %v8197 = vand.u32 %v8196, 4294901760
  %8198 = vmatpush.msra.mxu0 %v8197
  %v8199 = vand.u32 %v396, 4294901760
  %v8200 = vsub.f32 %v396, %v8199
  %v8201 = vand.u32 %v8200, 4294901760
  %8202 = vmatpush.msra.mxu0 %v8201
  %v8203 = vand.u32 %v395, 4294901760
  %v8204 = vsub.f32 %v395, %v8203
  %v8205 = vand.u32 %v8204, 4294901760
  %8206 = vmatpush.msra.mxu0 %v8205
  %v8207 = vand.u32 %v394, 4294901760
  %v8208 = vsub.f32 %v394, %v8207
  %v8209 = vand.u32 %v8208, 4294901760
  %8210 = vmatpush.msra.mxu0 %v8209
  %v8211 = vand.u32 %v393, 4294901760
  %v8212 = vsub.f32 %v393, %v8211
  %v8213 = vand.u32 %v8212, 4294901760
  %8214 = vmatpush.msra.mxu0 %v8213
  %v8215 = vand.u32 %v392, 4294901760
  %v8216 = vsub.f32 %v392, %v8215
  %v8217 = vand.u32 %v8216, 4294901760
  %8218 = vmatpush.msra.mxu0 %v8217
  %v8219 = vand.u32 %v391, 4294901760
  %v8220 = vsub.f32 %v391, %v8219
  %v8221 = vand.u32 %v8220, 4294901760
  %8222 = vmatpush.msra.mxu0 %v8221
  %v8223 = vand.u32 %v390, 4294901760
  %v8224 = vsub.f32 %v390, %v8223
  %v8225 = vand.u32 %v8224, 4294901760
  %8226 = vmatpush.msra.mxu0 %v8225
  %v8227 = vand.u32 %v36, 4294901760
  %8228 = vmatmul.f32.gmra.mxu0 %v8227
  %v8229 = vpop.f32.mrf.mxu0
  %v8230 = vadd.f32 %v8161, %v8229
  %8231 = vdwg.mxu0
  %v8232 = vand.u32 %v405, 4294901760
  %8233 = vmatpush.msra.mxu0 %v8232
  %v8234 = vand.u32 %v404, 4294901760
  %8235 = vmatpush.msra.mxu0 %v8234
  %v8236 = vand.u32 %v403, 4294901760
  %8237 = vmatpush.msra.mxu0 %v8236
  %v8238 = vand.u32 %v402, 4294901760
  %8239 = vmatpush.msra.mxu0 %v8238
  %v8240 = vand.u32 %v401, 4294901760
  %8241 = vmatpush.msra.mxu0 %v8240
  %v8242 = vand.u32 %v400, 4294901760
  %8243 = vmatpush.msra.mxu0 %v8242
  %v8244 = vand.u32 %v399, 4294901760
  %8245 = vmatpush.msra.mxu0 %v8244
  %v8246 = vand.u32 %v398, 4294901760
  %8247 = vmatpush.msra.mxu0 %v8246
  %v8248 = vand.u32 %v397, 4294901760
  %8249 = vmatpush.msra.mxu0 %v8248
  %v8250 = vand.u32 %v396, 4294901760
  %8251 = vmatpush.msra.mxu0 %v8250
  %v8252 = vand.u32 %v395, 4294901760
  %8253 = vmatpush.msra.mxu0 %v8252
  %v8254 = vand.u32 %v394, 4294901760
  %8255 = vmatpush.msra.mxu0 %v8254
  %v8256 = vand.u32 %v393, 4294901760
  %8257 = vmatpush.msra.mxu0 %v8256
  %v8258 = vand.u32 %v392, 4294901760
  %8259 = vmatpush.msra.mxu0 %v8258
  %v8260 = vand.u32 %v391, 4294901760
  %8261 = vmatpush.msra.mxu0 %v8260
  %v8262 = vand.u32 %v390, 4294901760
  %8263 = vmatpush.msra.mxu0 %v8262
  %v8264 = vand.u32 %v36, 4294901760
  %8265 = vmatmul.f32.gmra.mxu0 %v8264
  %v8266 = vpop.f32.mrf.mxu0
  %v8267 = vadd.f32 %v8230, %v8266
  %8268 = vdwg.mxu0
  %v8269 = vand.u32 %v421, 4294901760
  %8270 = vmatpush.msra.mxu0 %v8269
  %v8271 = vand.u32 %v420, 4294901760
  %8272 = vmatpush.msra.mxu0 %v8271
  %v8273 = vand.u32 %v419, 4294901760
  %8274 = vmatpush.msra.mxu0 %v8273
  %v8275 = vand.u32 %v418, 4294901760
  %8276 = vmatpush.msra.mxu0 %v8275
  %v8277 = vand.u32 %v417, 4294901760
  %8278 = vmatpush.msra.mxu0 %v8277
  %v8279 = vand.u32 %v416, 4294901760
  %8280 = vmatpush.msra.mxu0 %v8279
  %v8281 = vand.u32 %v415, 4294901760
  %8282 = vmatpush.msra.mxu0 %v8281
  %v8283 = vand.u32 %v414, 4294901760
  %8284 = vmatpush.msra.mxu0 %v8283
  %v8285 = vand.u32 %v413, 4294901760
  %8286 = vmatpush.msra.mxu0 %v8285
  %v8287 = vand.u32 %v412, 4294901760
  %8288 = vmatpush.msra.mxu0 %v8287
  %v8289 = vand.u32 %v411, 4294901760
  %8290 = vmatpush.msra.mxu0 %v8289
  %v8291 = vand.u32 %v410, 4294901760
  %8292 = vmatpush.msra.mxu0 %v8291
  %v8293 = vand.u32 %v409, 4294901760
  %8294 = vmatpush.msra.mxu0 %v8293
  %v8295 = vand.u32 %v408, 4294901760
  %8296 = vmatpush.msra.mxu0 %v8295
  %v8297 = vand.u32 %v407, 4294901760
  %8298 = vmatpush.msra.mxu0 %v8297
  %v8299 = vand.u32 %v406, 4294901760
  %8300 = vmatpush.msra.mxu0 %v8299
  %v8301 = vand.u32 %v37, 4294901760
  %v8302 = vsub.f32 %v37, %v8301
  %v8303 = vand.u32 %v8302, 4294901760
  %v8304 = vsub.f32 %v8302, %v8303
  %v8305 = vand.u32 %v8304, 4294901760
  %8306 = vmatmul.f32.gmra.mxu0 %v8305
  %v8307 = vpop.f32.mrf.mxu0
  %v8308 = vadd.f32 %v8267, %v8307
  %8309 = vdwg.mxu0
  %v8310 = vand.u32 %v421, 4294901760
  %v8311 = vsub.f32 %v421, %v8310
  %v8312 = vand.u32 %v8311, 4294901760
  %v8313 = vsub.f32 %v8311, %v8312
  %v8314 = vand.u32 %v8313, 4294901760
  %8315 = vmatpush.msra.mxu0 %v8314
  %v8316 = vand.u32 %v420, 4294901760
  %v8317 = vsub.f32 %v420, %v8316
  %v8318 = vand.u32 %v8317, 4294901760
  %v8319 = vsub.f32 %v8317, %v8318
  %v8320 = vand.u32 %v8319, 4294901760
  %8321 = vmatpush.msra.mxu0 %v8320
  %v8322 = vand.u32 %v419, 4294901760
  %v8323 = vsub.f32 %v419, %v8322
  %v8324 = vand.u32 %v8323, 4294901760
  %v8325 = vsub.f32 %v8323, %v8324
  %v8326 = vand.u32 %v8325, 4294901760
  %8327 = vmatpush.msra.mxu0 %v8326
  %v8328 = vand.u32 %v418, 4294901760
  %v8329 = vsub.f32 %v418, %v8328
  %v8330 = vand.u32 %v8329, 4294901760
  %v8331 = vsub.f32 %v8329, %v8330
  %v8332 = vand.u32 %v8331, 4294901760
  %8333 = vmatpush.msra.mxu0 %v8332
  %v8334 = vand.u32 %v417, 4294901760
  %v8335 = vsub.f32 %v417, %v8334
  %v8336 = vand.u32 %v8335, 4294901760
  %v8337 = vsub.f32 %v8335, %v8336
  %v8338 = vand.u32 %v8337, 4294901760
  %8339 = vmatpush.msra.mxu0 %v8338
  %v8340 = vand.u32 %v416, 4294901760
  %v8341 = vsub.f32 %v416, %v8340
  %v8342 = vand.u32 %v8341, 4294901760
  %v8343 = vsub.f32 %v8341, %v8342
  %v8344 = vand.u32 %v8343, 4294901760
  %8345 = vmatpush.msra.mxu0 %v8344
  %v8346 = vand.u32 %v415, 4294901760
  %v8347 = vsub.f32 %v415, %v8346
  %v8348 = vand.u32 %v8347, 4294901760
  %v8349 = vsub.f32 %v8347, %v8348
  %v8350 = vand.u32 %v8349, 4294901760
  %8351 = vmatpush.msra.mxu0 %v8350
  %v8352 = vand.u32 %v414, 4294901760
  %v8353 = vsub.f32 %v414, %v8352
  %v8354 = vand.u32 %v8353, 4294901760
  %v8355 = vsub.f32 %v8353, %v8354
  %v8356 = vand.u32 %v8355, 4294901760
  %8357 = vmatpush.msra.mxu0 %v8356
  %v8358 = vand.u32 %v413, 4294901760
  %v8359 = vsub.f32 %v413, %v8358
  %v8360 = vand.u32 %v8359, 4294901760
  %v8361 = vsub.f32 %v8359, %v8360
  %v8362 = vand.u32 %v8361, 4294901760
  %8363 = vmatpush.msra.mxu0 %v8362
  %v8364 = vand.u32 %v412, 4294901760
  %v8365 = vsub.f32 %v412, %v8364
  %v8366 = vand.u32 %v8365, 4294901760
  %v8367 = vsub.f32 %v8365, %v8366
  %v8368 = vand.u32 %v8367, 4294901760
  %8369 = vmatpush.msra.mxu0 %v8368
  %v8370 = vand.u32 %v411, 4294901760
  %v8371 = vsub.f32 %v411, %v8370
  %v8372 = vand.u32 %v8371, 4294901760
  %v8373 = vsub.f32 %v8371, %v8372
  %v8374 = vand.u32 %v8373, 4294901760
  %8375 = vmatpush.msra.mxu0 %v8374
  %v8376 = vand.u32 %v410, 4294901760
  %v8377 = vsub.f32 %v410, %v8376
  %v8378 = vand.u32 %v8377, 4294901760
  %v8379 = vsub.f32 %v8377, %v8378
  %v8380 = vand.u32 %v8379, 4294901760
  %8381 = vmatpush.msra.mxu0 %v8380
  %v8382 = vand.u32 %v409, 4294901760
  %v8383 = vsub.f32 %v409, %v8382
  %v8384 = vand.u32 %v8383, 4294901760
  %v8385 = vsub.f32 %v8383, %v8384
  %v8386 = vand.u32 %v8385, 4294901760
  %8387 = vmatpush.msra.mxu0 %v8386
  %v8388 = vand.u32 %v408, 4294901760
  %v8389 = vsub.f32 %v408, %v8388
  %v8390 = vand.u32 %v8389, 4294901760
  %v8391 = vsub.f32 %v8389, %v8390
  %v8392 = vand.u32 %v8391, 4294901760
  %8393 = vmatpush.msra.mxu0 %v8392
  %v8394 = vand.u32 %v407, 4294901760
  %v8395 = vsub.f32 %v407, %v8394
  %v8396 = vand.u32 %v8395, 4294901760
  %v8397 = vsub.f32 %v8395, %v8396
  %v8398 = vand.u32 %v8397, 4294901760
  %8399 = vmatpush.msra.mxu0 %v8398
  %v8400 = vand.u32 %v406, 4294901760
  %v8401 = vsub.f32 %v406, %v8400
  %v8402 = vand.u32 %v8401, 4294901760
  %v8403 = vsub.f32 %v8401, %v8402
  %v8404 = vand.u32 %v8403, 4294901760
  %8405 = vmatpush.msra.mxu0 %v8404
  %v8406 = vand.u32 %v37, 4294901760
  %8407 = vmatmul.f32.gmra.mxu0 %v8406
  %v8408 = vpop.f32.mrf.mxu0
  %v8409 = vadd.f32 %v8308, %v8408
  %8410 = vdwg.mxu0
  %v8411 = vand.u32 %v421, 4294901760
  %v8412 = vsub.f32 %v421, %v8411
  %8413 = vmatpush.msra.mxu0 %v8412
  %v8414 = vand.u32 %v420, 4294901760
  %v8415 = vsub.f32 %v420, %v8414
  %8416 = vmatpush.msra.mxu0 %v8415
  %v8417 = vand.u32 %v419, 4294901760
  %v8418 = vsub.f32 %v419, %v8417
  %8419 = vmatpush.msra.mxu0 %v8418
  %v8420 = vand.u32 %v418, 4294901760
  %v8421 = vsub.f32 %v418, %v8420
  %8422 = vmatpush.msra.mxu0 %v8421
  %v8423 = vand.u32 %v417, 4294901760
  %v8424 = vsub.f32 %v417, %v8423
  %8425 = vmatpush.msra.mxu0 %v8424
  %v8426 = vand.u32 %v416, 4294901760
  %v8427 = vsub.f32 %v416, %v8426
  %8428 = vmatpush.msra.mxu0 %v8427
  %v8429 = vand.u32 %v415, 4294901760
  %v8430 = vsub.f32 %v415, %v8429
  %8431 = vmatpush.msra.mxu0 %v8430
  %v8432 = vand.u32 %v414, 4294901760
  %v8433 = vsub.f32 %v414, %v8432
  %8434 = vmatpush.msra.mxu0 %v8433
  %v8435 = vand.u32 %v413, 4294901760
  %v8436 = vsub.f32 %v413, %v8435
  %8437 = vmatpush.msra.mxu0 %v8436
  %v8438 = vand.u32 %v412, 4294901760
  %v8439 = vsub.f32 %v412, %v8438
  %8440 = vmatpush.msra.mxu0 %v8439
  %v8441 = vand.u32 %v411, 4294901760
  %v8442 = vsub.f32 %v411, %v8441
  %8443 = vmatpush.msra.mxu0 %v8442
  %v8444 = vand.u32 %v410, 4294901760
  %v8445 = vsub.f32 %v410, %v8444
  %8446 = vmatpush.msra.mxu0 %v8445
  %v8447 = vand.u32 %v409, 4294901760
  %v8448 = vsub.f32 %v409, %v8447
  %8449 = vmatpush.msra.mxu0 %v8448
  %v8450 = vand.u32 %v408, 4294901760
  %v8451 = vsub.f32 %v408, %v8450
  %8452 = vmatpush.msra.mxu0 %v8451
  %v8453 = vand.u32 %v407, 4294901760
  %v8454 = vsub.f32 %v407, %v8453
  %8455 = vmatpush.msra.mxu0 %v8454
  %v8456 = vand.u32 %v406, 4294901760
  %v8457 = vsub.f32 %v406, %v8456
  %8458 = vmatpush.msra.mxu0 %v8457
  %v8459 = vand.u32 %v37, 4294901760
  %v8460 = vsub.f32 %v37, %v8459
  %8461 = vmatmul.f32.gmra.mxu0 %v8460
  %v8462 = vpop.f32.mrf.mxu0
  %v8463 = vadd.f32 %v8409, %v8462
  %8464 = vdwg.mxu0
  %v8465 = vand.u32 %v421, 4294901760
  %8466 = vmatpush.msra.mxu0 %v8465
  %v8467 = vand.u32 %v420, 4294901760
  %8468 = vmatpush.msra.mxu0 %v8467
  %v8469 = vand.u32 %v419, 4294901760
  %8470 = vmatpush.msra.mxu0 %v8469
  %v8471 = vand.u32 %v418, 4294901760
  %8472 = vmatpush.msra.mxu0 %v8471
  %v8473 = vand.u32 %v417, 4294901760
  %8474 = vmatpush.msra.mxu0 %v8473
  %v8475 = vand.u32 %v416, 4294901760
  %8476 = vmatpush.msra.mxu0 %v8475
  %v8477 = vand.u32 %v415, 4294901760
  %8478 = vmatpush.msra.mxu0 %v8477
  %v8479 = vand.u32 %v414, 4294901760
  %8480 = vmatpush.msra.mxu0 %v8479
  %v8481 = vand.u32 %v413, 4294901760
  %8482 = vmatpush.msra.mxu0 %v8481
  %v8483 = vand.u32 %v412, 4294901760
  %8484 = vmatpush.msra.mxu0 %v8483
  %v8485 = vand.u32 %v411, 4294901760
  %8486 = vmatpush.msra.mxu0 %v8485
  %v8487 = vand.u32 %v410, 4294901760
  %8488 = vmatpush.msra.mxu0 %v8487
  %v8489 = vand.u32 %v409, 4294901760
  %8490 = vmatpush.msra.mxu0 %v8489
  %v8491 = vand.u32 %v408, 4294901760
  %8492 = vmatpush.msra.mxu0 %v8491
  %v8493 = vand.u32 %v407, 4294901760
  %8494 = vmatpush.msra.mxu0 %v8493
  %v8495 = vand.u32 %v406, 4294901760
  %8496 = vmatpush.msra.mxu0 %v8495
  %v8497 = vand.u32 %v37, 4294901760
  %v8498 = vsub.f32 %v37, %v8497
  %v8499 = vand.u32 %v8498, 4294901760
  %8500 = vmatmul.f32.gmra.mxu0 %v8499
  %v8501 = vpop.f32.mrf.mxu0
  %v8502 = vadd.f32 %v8463, %v8501
  %8503 = vdwg.mxu0
  %v8504 = vand.u32 %v421, 4294901760
  %v8505 = vsub.f32 %v421, %v8504
  %v8506 = vand.u32 %v8505, 4294901760
  %8507 = vmatpush.msra.mxu0 %v8506
  %v8508 = vand.u32 %v420, 4294901760
  %v8509 = vsub.f32 %v420, %v8508
  %v8510 = vand.u32 %v8509, 4294901760
  %8511 = vmatpush.msra.mxu0 %v8510
  %v8512 = vand.u32 %v419, 4294901760
  %v8513 = vsub.f32 %v419, %v8512
  %v8514 = vand.u32 %v8513, 4294901760
  %8515 = vmatpush.msra.mxu0 %v8514
  %v8516 = vand.u32 %v418, 4294901760
  %v8517 = vsub.f32 %v418, %v8516
  %v8518 = vand.u32 %v8517, 4294901760
  %8519 = vmatpush.msra.mxu0 %v8518
  %v8520 = vand.u32 %v417, 4294901760
  %v8521 = vsub.f32 %v417, %v8520
  %v8522 = vand.u32 %v8521, 4294901760
  %8523 = vmatpush.msra.mxu0 %v8522
  %v8524 = vand.u32 %v416, 4294901760
  %v8525 = vsub.f32 %v416, %v8524
  %v8526 = vand.u32 %v8525, 4294901760
  %8527 = vmatpush.msra.mxu0 %v8526
  %v8528 = vand.u32 %v415, 4294901760
  %v8529 = vsub.f32 %v415, %v8528
  %v8530 = vand.u32 %v8529, 4294901760
  %8531 = vmatpush.msra.mxu0 %v8530
  %v8532 = vand.u32 %v414, 4294901760
  %v8533 = vsub.f32 %v414, %v8532
  %v8534 = vand.u32 %v8533, 4294901760
  %8535 = vmatpush.msra.mxu0 %v8534
  %v8536 = vand.u32 %v413, 4294901760
  %v8537 = vsub.f32 %v413, %v8536
  %v8538 = vand.u32 %v8537, 4294901760
  %8539 = vmatpush.msra.mxu0 %v8538
  %v8540 = vand.u32 %v412, 4294901760
  %v8541 = vsub.f32 %v412, %v8540
  %v8542 = vand.u32 %v8541, 4294901760
  %8543 = vmatpush.msra.mxu0 %v8542
  %v8544 = vand.u32 %v411, 4294901760
  %v8545 = vsub.f32 %v411, %v8544
  %v8546 = vand.u32 %v8545, 4294901760
  %8547 = vmatpush.msra.mxu0 %v8546
  %v8548 = vand.u32 %v410, 4294901760
  %v8549 = vsub.f32 %v410, %v8548
  %v8550 = vand.u32 %v8549, 4294901760
  %8551 = vmatpush.msra.mxu0 %v8550
  %v8552 = vand.u32 %v409, 4294901760
  %v8553 = vsub.f32 %v409, %v8552
  %v8554 = vand.u32 %v8553, 4294901760
  %8555 = vmatpush.msra.mxu0 %v8554
  %v8556 = vand.u32 %v408, 4294901760
  %v8557 = vsub.f32 %v408, %v8556
  %v8558 = vand.u32 %v8557, 4294901760
  %8559 = vmatpush.msra.mxu0 %v8558
  %v8560 = vand.u32 %v407, 4294901760
  %v8561 = vsub.f32 %v407, %v8560
  %v8562 = vand.u32 %v8561, 4294901760
  %8563 = vmatpush.msra.mxu0 %v8562
  %v8564 = vand.u32 %v406, 4294901760
  %v8565 = vsub.f32 %v406, %v8564
  %v8566 = vand.u32 %v8565, 4294901760
  %8567 = vmatpush.msra.mxu0 %v8566
  %v8568 = vand.u32 %v37, 4294901760
  %8569 = vmatmul.f32.gmra.mxu0 %v8568
  %v8570 = vpop.f32.mrf.mxu0
  %v8571 = vadd.f32 %v8502, %v8570
  %8572 = vdwg.mxu0
  %v8573 = vand.u32 %v421, 4294901760
  %8574 = vmatpush.msra.mxu0 %v8573
  %v8575 = vand.u32 %v420, 4294901760
  %8576 = vmatpush.msra.mxu0 %v8575
  %v8577 = vand.u32 %v419, 4294901760
  %8578 = vmatpush.msra.mxu0 %v8577
  %v8579 = vand.u32 %v418, 4294901760
  %8580 = vmatpush.msra.mxu0 %v8579
  %v8581 = vand.u32 %v417, 4294901760
  %8582 = vmatpush.msra.mxu0 %v8581
  %v8583 = vand.u32 %v416, 4294901760
  %8584 = vmatpush.msra.mxu0 %v8583
  %v8585 = vand.u32 %v415, 4294901760
  %8586 = vmatpush.msra.mxu0 %v8585
  %v8587 = vand.u32 %v414, 4294901760
  %8588 = vmatpush.msra.mxu0 %v8587
  %v8589 = vand.u32 %v413, 4294901760
  %8590 = vmatpush.msra.mxu0 %v8589
  %v8591 = vand.u32 %v412, 4294901760
  %8592 = vmatpush.msra.mxu0 %v8591
  %v8593 = vand.u32 %v411, 4294901760
  %8594 = vmatpush.msra.mxu0 %v8593
  %v8595 = vand.u32 %v410, 4294901760
  %8596 = vmatpush.msra.mxu0 %v8595
  %v8597 = vand.u32 %v409, 4294901760
  %8598 = vmatpush.msra.mxu0 %v8597
  %v8599 = vand.u32 %v408, 4294901760
  %8600 = vmatpush.msra.mxu0 %v8599
  %v8601 = vand.u32 %v407, 4294901760
  %8602 = vmatpush.msra.mxu0 %v8601
  %v8603 = vand.u32 %v406, 4294901760
  %8604 = vmatpush.msra.mxu0 %v8603
  %v8605 = vand.u32 %v37, 4294901760
  %8606 = vmatmul.f32.gmra.mxu0 %v8605
  %v8607 = vpop.f32.mrf.mxu0
  %v8608 = vadd.f32 %v8571, %v8607
  %8609 = vdwg.mxu0
  %vm8610 = vcmask 15360
  %8611 = vst.msk [vmem:[%s3] sm:$0xff] %vm8610, %v8608
  // Predicated region
  $region14: #{net_forward.1} parent=0 // pred_check
    _
  $region15: #{net_forward.1} parent=0 // pred_check_branch
    %8613 = sbr.rel (0) target = $region17
  $region16: #{net_forward.1} parent=0 // pred_region
    _
  $region17: #{net_forward.1} parent=0 // pred_fallthru
    _
  // Predicated region
  $region18: #{net_forward.1} parent=0 // pred_check
    _
  $region19: #{net_forward.1} parent=0 // pred_check_branch
    %8615 = sbr.rel (0) target = $region21
  $region20: #{net_forward.1} parent=0 // pred_region
    _
  $region21: #{net_forward.1} parent=0 // pred_fallthru
    _

</llo_original>
